<compile_context>
chip_gen: v7x
topology: tpu7x:2x2x1
jax: 0.10.0
libtpu: 0.0.40
codegen_flags: <defaults>
</compile_context>

<pallas_src>
import functools

import jax
import jax.numpy as jnp
from jax import lax
from jax.experimental import pallas as pl
from jax.experimental.pallas import tpu as pltpu


_IMG = 32                 # spatial size (3x32x32 input -> 16*5*5 = 400 fc1 feats)
_LPI = _IMG * _IMG        # lanes per image (spatial-major), 1024
_K = 5                    # conv kernel size
_B_TILE_DEFAULT = 8       # images per grid step (VMEM-sized for v7x's 64 MiB)


def _round_up(x, m):
    return (x + m - 1) // m * m


def _lenet_kernel(x_ref, w1s_ref, b1_ref, w2s_ref, b2_ref,
                  fc1w_ref, fc1b_ref, fc2w_ref, fc2b_ref, fc3w_ref, fc3b_ref,
                  out_ref,
                  slab_ref, a1_ref, p1_ref, a2_ref, feat_ref,
                  *, bt):
    """One batch tile of `bt` images.

    Lane layout (batch-minor): value (c, b, h, w) sits at lane (32*h + w)*bt + b.
    """
    f32 = jnp.float32
    NW = bt * _LPI                               # lanes per tile

    # Hygiene: the scratch tails only ever feed lanes that never reach a valid
    # output, but keep them deterministic/finite (uninitialised VMEM may hold
    # NaN bit patterns).  Cheap (few KiB) -> done unconditionally every step so
    # it is also correct under a megacore split of the parallel batch axis.
    a1_ref[:, NW:] = jnp.zeros((6, a1_ref.shape[1] - NW), f32)
    p1_ref[:, NW:] = jnp.zeros((6, p1_ref.shape[1] - NW), f32)

    # ---------------- conv1: 3 -> 6, 5x5 VALID, +bias, ReLU ------------------
    # im2col slab: row 8*s + ci = x[ci, lane + (32*kh + kw)*bt], s = 5*kh + kw.
    # Rows 8s+3..8s+7 are padding (their weight columns are zero) but must be
    # finite, so they are zero-stored every step.
    zpad = jnp.zeros((5, NW), f32)               # hoisted (no per-iter broadcast)
    for kh in range(_K):
        for kw in range(_K):
            s = kh * _K + kw
            off = (kh * _IMG + kw) * bt
            slab_ref[8 * s:8 * s + 3, :] = x_ref[:, off:off + NW]
            slab_ref[8 * s + 3:8 * s + 8, :] = zpad

    a1 = jnp.dot(w1s_ref[...], slab_ref[...], preferred_element_type=f32)
    a1_ref[:, :NW] = jnp.maximum(a1 + b1_ref[...], 0.0)
    # valid conv1 value (co,b,h,w), h,w < 28, at lane (32h+w)*bt + b

    # ---------------- pool1: 2x2 / stride 2 max ------------------------------
    p1_ref[:, :NW] = jnp.maximum(
        jnp.maximum(a1_ref[:, 0:NW], a1_ref[:, bt:NW + bt]),
        jnp.maximum(a1_ref[:, 32 * bt:NW + 32 * bt],
                    a1_ref[:, 33 * bt:NW + 33 * bt]))
    # pooled value (c,b,oh,ow), oh,ow < 14, at lane (64*oh + 2*ow)*bt + b

    # ---------------- conv2: 6 -> 16, 5x5 VALID, +bias, ReLU -----------------
    # Reuse the slab; rows 8s+6..7 stay zero from the conv1 build this step.
    for kh in range(_K):
        for kw in range(_K):
            s = kh * _K + kw
            off = (64 * kh + 2 * kw) * bt
            slab_ref[8 * s:8 * s + 6, :] = p1_ref[:, off:off + NW]

    a2 = jnp.dot(w2s_ref[...], slab_ref[...], preferred_element_type=f32)
    a2_ref[...] = jnp.maximum(a2 + b2_ref[...], 0.0)
    # valid conv2 value (co,b,oh,ow), oh,ow < 10, at lane (64*oh + 2*ow)*bt + b

    # ------- pool2 fused with the fc1 feature gather: [400, bt] --------------
    # Only the 25 valid taps are pooled (no full-width pool2).  Thanks to the
    # batch-minor layout each tap's batch values are a CONTIGUOUS bt-lane slice.
    for oh in range(5):
        for ow in range(5):
            s = oh * 5 + ow
            base = (128 * oh + 4 * ow) * bt
            f = jnp.maximum(
                jnp.maximum(a2_ref[:, base:base + bt],
                            a2_ref[:, base + 2 * bt:base + 3 * bt]),
                jnp.maximum(a2_ref[:, base + 64 * bt:base + 65 * bt],
                            a2_ref[:, base + 66 * bt:base + 67 * bt]))
            feat_ref[16 * s:16 * s + 16, :] = f   # rows ordered (tap, channel)

    # ---------------- fc1 -> relu -> fc2 -> relu -> fc3 ----------------------
    y1 = jnp.maximum(
        jnp.dot(fc1w_ref[...], feat_ref[...], preferred_element_type=f32)
        + fc1b_ref[...], 0.0)                                   # [120, bt]
    y2 = jnp.maximum(
        jnp.dot(fc2w_ref[...], y1, preferred_element_type=f32)
        + fc2b_ref[...], 0.0)                                   # [84, bt]
    out_ref[...] = (jnp.dot(fc3w_ref[...], y2, preferred_element_type=f32)
                    + fc3b_ref[...])                            # [10, bt]


@functools.partial(jax.jit, static_argnames=("b_tile",))
def lenet_forward(x, params, b_tile=_B_TILE_DEFAULT):
    """x: [B, 3, 32, 32] float32 (NCHW) -> logits [B, 10]."""
    B, C, H, W = x.shape
    assert (C, H, W) == (3, _IMG, _IMG), "this LeNet expects 3x32x32 inputs"
    f32 = jnp.float32

    bt = max(1, min(int(b_tile), B))             # images per grid step
    T = -(-B // bt)                              # number of batch tiles
    B_pad = T * bt
    NW = bt * _LPI

    # Padding tails sized to the maximum shifted-slice offsets (static asserts
    # per review: an OOB VMEM read is unchecked on TPU).
    pad_x = _round_up(132 * bt, 128)             # conv1 reads up to (32*4+4)*bt
    pad_a1 = _round_up(33 * bt, 128)             # pool1 reads up to 33*bt
    pad_p1 = _round_up(264 * bt, 128)            # conv2 reads up to (64*4+2*4)*bt
    assert pad_x >= (_IMG * (_K - 1) + (_K - 1)) * bt
    assert pad_a1 >= 33 * bt
    assert pad_p1 >= (64 * (_K - 1) + 2 * (_K - 1)) * bt
    # pool2/gather reads at most lane 595*bt - 1 < NW  -> a2 needs no tail.

    # ---- boundary-only layout prep (fused by XLA) ---------------------------
    # [B,3,32,32] -> [T, 3, NW(+pad)] with batch-minor lanes per tile.
    xp = jnp.pad(x.astype(f32), ((0, B_pad - B), (0, 0), (0, 0), (0, 0)))
    xw = xp.reshape(T, bt, 3, _IMG, _IMG).transpose(0, 2, 3, 4, 1).reshape(T, 3, NW)
    xw = jnp.pad(xw, ((0, 0), (0, 0), (0, pad_x)))

    # conv weights -> im2col slabs [Cout, 25*8]; column 8*s + ci (pad cols = 0)
    w1 = jnp.transpose(params["conv1_w"].astype(f32), (0, 2, 3, 1)).reshape(6, 25, 3)
    w1s = jnp.pad(w1, ((0, 0), (0, 0), (0, 5))).reshape(6, 200)
    w2 = jnp.transpose(params["conv2_w"].astype(f32), (0, 2, 3, 1)).reshape(16, 25, 6)
    w2s = jnp.pad(w2, ((0, 0), (0, 0), (0, 2))).reshape(16, 200)
    b1 = params["conv1_b"].reshape(6, 1).astype(f32)
    b2 = params["conv2_b"].reshape(16, 1).astype(f32)
    # fc1 weight columns reordered (ci, oh, ow) -> (tap, ci) to match the gather
    fc1w = jnp.transpose(params["fc1_w"].astype(f32).reshape(120, 16, 25),
                         (0, 2, 1)).reshape(120, 400)
    fc1b = params["fc1_b"].reshape(120, 1).astype(f32)
    fc2w = params["fc2_w"].astype(f32)
    fc2b = params["fc2_b"].reshape(84, 1).astype(f32)
    fc3w = params["fc3_w"].astype(f32)
    fc3b = params["fc3_b"].reshape(10, 1).astype(f32)

    def _w_spec(shape):
        # weights/biases stay resident: constant block index across the grid
        return pl.BlockSpec(shape, lambda i, _n=len(shape): (0,) * _n)

    kernel = functools.partial(_lenet_kernel, bt=bt)

    flops = T * 2 * (6 + 16) * 200 * NW + B_pad * 2 * (120 * 400 + 84 * 120 + 10 * 84)
    bytes_accessed = 4 * (xw.size + w1s.size + w2s.size + fc1w.size + fc2w.size
                          + fc3w.size + 6 + 16 + 120 + 84 + 10 + B_pad * 10)

    out = pl.pallas_call(
        kernel,
        out_shape=jax.ShapeDtypeStruct((T, 10, bt), f32),
        grid_spec=pltpu.PrefetchScalarGridSpec(
            num_scalar_prefetch=0,
            grid=(T,),
            in_specs=[
                pl.BlockSpec((None, 3, NW + pad_x), lambda i: (i, 0, 0)),
                _w_spec(w1s.shape), _w_spec(b1.shape),
                _w_spec(w2s.shape), _w_spec(b2.shape),
                _w_spec(fc1w.shape), _w_spec(fc1b.shape),
                _w_spec(fc2w.shape), _w_spec(fc2b.shape),
                _w_spec(fc3w.shape), _w_spec(fc3b.shape),
            ],
            out_specs=pl.BlockSpec((None, 10, bt), lambda i: (i, 0, 0)),
            scratch_shapes=[
                pltpu.VMEM((200, NW), f32),            # shared im2col slab
                pltpu.VMEM((6, NW + pad_a1), f32),     # conv1 out (wide grid)
                pltpu.VMEM((6, NW + pad_p1), f32),     # pool1 out
                pltpu.VMEM((16, NW), f32),             # conv2 out
                pltpu.VMEM((400, bt), f32),            # fc1 feature matrix
            ],
        ),
        compiler_params=pltpu.CompilerParams(
            dimension_semantics=("parallel",),          # batch tiles split over TCs
            vmem_limit_bytes=48 * 1024 * 1024),         # explicit, fits v7x's 64 MiB
        cost_estimate=pl.CostEstimate(flops=flops, transcendentals=0,
                                      bytes_accessed=bytes_accessed),
    )(xw, w1s, b1, w2s, b2, fc1w, fc1b, fc2w, fc2b, fc3w, fc3b)

    logits = jnp.transpose(out, (0, 2, 1)).reshape(B_pad, 10)
    return logits[:B]


# -----------------------------------------------------------------------------
# Deterministic synthetic parameters (PyTorch-style uniform(-1/sqrt(fan_in), +))
# -----------------------------------------------------------------------------
def init_params(key):
    def uinit(k, shape, fan_in):
        bound = 1.0 / jnp.sqrt(jnp.float32(fan_in))
        return jax.random.uniform(k, shape, jnp.float32, -bound, bound)

    ks = jax.random.split(key, 10)
    return {
        "conv1_w": uinit(ks[0], (6, 3, 5, 5), 3 * 5 * 5),
        "conv1_b": uinit(ks[1], (6,), 3 * 5 * 5),
        "conv2_w": uinit(ks[2], (16, 6, 5, 5), 6 * 5 * 5),
        "conv2_b": uinit(ks[3], (16,), 6 * 5 * 5),
        "fc1_w": uinit(ks[4], (120, 400), 400),
        "fc1_b": uinit(ks[5], (120,), 400),
        "fc2_w": uinit(ks[6], (84, 120), 120),
        "fc2_b": uinit(ks[7], (84,), 120),
        "fc3_w": uinit(ks[8], (10, 84), 84),
        "fc3_b": uinit(ks[9], (10,), 84),
    }


# -----------------------------------------------------------------------------
# Pure-JAX reference (correctness check)
# -----------------------------------------------------------------------------
def lenet_reference(x, p):
    dn = ("NCHW", "OIHW", "NCHW")

    def conv(x, w, b):
        y = lax.conv_general_dilated(x, w, (1, 1), "VALID", dimension_numbers=dn)
        return jax.nn.relu(y + b[None, :, None, None])

    def pool(x):
        B, C, H, W = x.shape
        return x.reshape(B, C, H // 2, 2, W // 2, 2).max(axis=(3, 5))

    x = pool(conv(x, p["conv1_w"], p["conv1_b"]))
    x = pool(conv(x, p["conv2_w"], p["conv2_b"]))
    x = x.reshape(x.shape[0], -1)
    x = jax.nn.relu(x @ p["fc1_w"].T + p["fc1_b"])
    x = jax.nn.relu(x @ p["fc2_w"].T + p["fc2_b"])
    return x @ p["fc3_w"].T + p["fc3_b"]


if __name__ == "__main__":
    key = jax.random.PRNGKey(0)
    k_x, k_p = jax.random.split(key)
    # fc1 expects 16*5*5 = 400 features -> input must be [B, 3, 32, 32]
    x = jax.random.normal(k_x, (2, 3, 32, 32), jnp.float32)
    params = init_params(k_p)

    out = jax.block_until_ready(lenet_forward(x, params))
    assert out.shape == (2, 10) and out.dtype == jnp.float32

    ref = jax.block_until_ready(lenet_reference(x, params))
    assert jnp.allclose(out, ref, rtol=2e-4, atol=2e-4), "mismatch vs reference"

    print("KERNEL_OK")
</pallas_src>

<mosaic_0001>
module attributes {stable_mosaic.version = 11 : i64} {
  func.func @_lenet_kernel(%arg0: i32, %arg1: memref<1x3x2432xf32, #tpu.memory_space<vmem>>, %arg2: memref<6x200xf32, #tpu.memory_space<vmem>>, %arg3: memref<6x1xf32, #tpu.memory_space<vmem>>, %arg4: memref<16x200xf32, #tpu.memory_space<vmem>>, %arg5: memref<16x1xf32, #tpu.memory_space<vmem>>, %arg6: memref<120x400xf32, #tpu.memory_space<vmem>>, %arg7: memref<120x1xf32, #tpu.memory_space<vmem>>, %arg8: memref<84x120xf32, #tpu.memory_space<vmem>>, %arg9: memref<84x1xf32, #tpu.memory_space<vmem>>, %arg10: memref<10x84xf32, #tpu.memory_space<vmem>>, %arg11: memref<10x1xf32, #tpu.memory_space<vmem>>, %arg12: memref<1x10x2xf32, #tpu.memory_space<vmem>>, %arg13: memref<200x2048xf32, #tpu.memory_space<vmem>>, %arg14: memref<6x2176xf32, #tpu.memory_space<vmem>>, %arg15: memref<6x2688xf32, #tpu.memory_space<vmem>>, %arg16: memref<16x2048xf32, #tpu.memory_space<vmem>>, %arg17: memref<400x2xf32, #tpu.memory_space<vmem>>) attributes {dimension_semantics = [#tpu.dimension_semantics<parallel>], iteration_bounds = array<i64: 1>, scalar_prefetch = 0 : i64, scratch_operands = 5 : i64, tpu.core_type = #tpu.core_type<tc>, window_params = [{transform_indices = @transform_0, window_bounds = array<i64: 1, 3, 2432>}, {pipeline_mode = #tpu.pipeline_mode<synchronous>, transform_indices = @transform_1, window_bounds = array<i64: 6, 200>}, {pipeline_mode = #tpu.pipeline_mode<synchronous>, transform_indices = @transform_2, window_bounds = array<i64: 6, 1>}, {pipeline_mode = #tpu.pipeline_mode<synchronous>, transform_indices = @transform_3, window_bounds = array<i64: 16, 200>}, {pipeline_mode = #tpu.pipeline_mode<synchronous>, transform_indices = @transform_4, window_bounds = array<i64: 16, 1>}, {pipeline_mode = #tpu.pipeline_mode<synchronous>, transform_indices = @transform_5, window_bounds = array<i64: 120, 400>}, {pipeline_mode = #tpu.pipeline_mode<synchronous>, transform_indices = @transform_6, window_bounds = array<i64: 120, 1>}, {pipeline_mode = #tpu.pipeline_mode<synchronous>, transform_indices = @transform_7, window_bounds = array<i64: 84, 120>}, {pipeline_mode = #tpu.pipeline_mode<synchronous>, transform_indices = @transform_8, window_bounds = array<i64: 84, 1>}, {pipeline_mode = #tpu.pipeline_mode<synchronous>, transform_indices = @transform_9, window_bounds = array<i64: 10, 84>}, {pipeline_mode = #tpu.pipeline_mode<synchronous>, transform_indices = @transform_10, window_bounds = array<i64: 10, 1>}, {transform_indices = @transform_11, window_bounds = array<i64: 1, 10, 2>}]} {
    %cst = arith.constant 0.000000e+00 : f32
    %0 = vector.broadcast %cst : f32 to vector<6x128xf32>
    %c0 = arith.constant 0 : index
    %c2048 = arith.constant 2048 : index
    %1 = vector.load %arg14[%c0, %c2048] : memref<6x2176xf32, #tpu.memory_space<vmem>>, vector<6x128xf32>
    tpu.vector_store %arg14[%c0, %c2048], %0 {strides = array<i32>} : memref<6x2176xf32, #tpu.memory_space<vmem>>, vector<6x128xf32>,
    %cst_0 = arith.constant 0.000000e+00 : f32
    %2 = vector.broadcast %cst_0 : f32 to vector<6x640xf32>
    %c0_1 = arith.constant 0 : index
    %c2048_2 = arith.constant 2048 : index
    %3 = vector.load %arg15[%c0_1, %c2048_2] : memref<6x2688xf32, #tpu.memory_space<vmem>>, vector<6x640xf32>
    tpu.vector_store %arg15[%c0_1, %c2048_2], %2 {strides = array<i32>} : memref<6x2688xf32, #tpu.memory_space<vmem>>, vector<6x640xf32>,
    %cst_3 = arith.constant 0.000000e+00 : f32
    %4 = vector.broadcast %cst_3 : f32 to vector<5x2048xf32>
    %c0_4 = arith.constant 0 : index
    %c0_5 = arith.constant 0 : index
    %c0_6 = arith.constant 0 : index
    %5 = vector.load %arg1[%c0_4, %c0_5, %c0_6] : memref<1x3x2432xf32, #tpu.memory_space<vmem>>, vector<1x3x2048xf32>
    %6 = vector.shape_cast %5 : vector<1x3x2048xf32> to vector<3x2048xf32>
    %c0_7 = arith.constant 0 : index
    %c0_8 = arith.constant 0 : index
    %7 = vector.load %arg13[%c0_7, %c0_8] : memref<200x2048xf32, #tpu.memory_space<vmem>>, vector<3x2048xf32>
    tpu.vector_store %arg13[%c0_7, %c0_8], %6 {strides = array<i32>} : memref<200x2048xf32, #tpu.memory_space<vmem>>, vector<3x2048xf32>,
    %c3 = arith.constant 3 : index
    %c0_9 = arith.constant 0 : index
    %8 = vector.load %arg13[%c3, %c0_9] : memref<200x2048xf32, #tpu.memory_space<vmem>>, vector<5x2048xf32>
    tpu.vector_store %arg13[%c3, %c0_9], %4 {strides = array<i32>} : memref<200x2048xf32, #tpu.memory_space<vmem>>, vector<5x2048xf32>,
    %c0_10 = arith.constant 0 : index
    %c0_11 = arith.constant 0 : index
    %c2 = arith.constant 2 : index
    %9 = vector.load %arg1[%c0_10, %c0_11, %c2] : memref<1x3x2432xf32, #tpu.memory_space<vmem>>, vector<1x3x2048xf32>
    %10 = vector.shape_cast %9 : vector<1x3x2048xf32> to vector<3x2048xf32>
    %c8 = arith.constant 8 : index
    %c0_12 = arith.constant 0 : index
    %11 = vector.load %arg13[%c8, %c0_12] : memref<200x2048xf32, #tpu.memory_space<vmem>>, vector<3x2048xf32>
    tpu.vector_store %arg13[%c8, %c0_12], %10 {strides = array<i32>} : memref<200x2048xf32, #tpu.memory_space<vmem>>, vector<3x2048xf32>,
    %c11 = arith.constant 11 : index
    %c0_13 = arith.constant 0 : index
    %12 = vector.load %arg13[%c11, %c0_13] : memref<200x2048xf32, #tpu.memory_space<vmem>>, vector<5x2048xf32>
    tpu.vector_store %arg13[%c11, %c0_13], %4 {strides = array<i32>} : memref<200x2048xf32, #tpu.memory_space<vmem>>, vector<5x2048xf32>,
    %c0_14 = arith.constant 0 : index
    %c0_15 = arith.constant 0 : index
    %c4 = arith.constant 4 : index
    %13 = vector.load %arg1[%c0_14, %c0_15, %c4] : memref<1x3x2432xf32, #tpu.memory_space<vmem>>, vector<1x3x2048xf32>
    %14 = vector.shape_cast %13 : vector<1x3x2048xf32> to vector<3x2048xf32>
    %c16 = arith.constant 16 : index
    %c0_16 = arith.constant 0 : index
    %15 = vector.load %arg13[%c16, %c0_16] : memref<200x2048xf32, #tpu.memory_space<vmem>>, vector<3x2048xf32>
    tpu.vector_store %arg13[%c16, %c0_16], %14 {strides = array<i32>} : memref<200x2048xf32, #tpu.memory_space<vmem>>, vector<3x2048xf32>,
    %c19 = arith.constant 19 : index
    %c0_17 = arith.constant 0 : index
    %16 = vector.load %arg13[%c19, %c0_17] : memref<200x2048xf32, #tpu.memory_space<vmem>>, vector<5x2048xf32>
    tpu.vector_store %arg13[%c19, %c0_17], %4 {strides = array<i32>} : memref<200x2048xf32, #tpu.memory_space<vmem>>, vector<5x2048xf32>,
    %c0_18 = arith.constant 0 : index
    %c0_19 = arith.constant 0 : index
    %c6 = arith.constant 6 : index
    %17 = vector.load %arg1[%c0_18, %c0_19, %c6] : memref<1x3x2432xf32, #tpu.memory_space<vmem>>, vector<1x3x2048xf32>
    %18 = vector.shape_cast %17 : vector<1x3x2048xf32> to vector<3x2048xf32>
    %c24 = arith.constant 24 : index
    %c0_20 = arith.constant 0 : index
    %19 = vector.load %arg13[%c24, %c0_20] : memref<200x2048xf32, #tpu.memory_space<vmem>>, vector<3x2048xf32>
    tpu.vector_store %arg13[%c24, %c0_20], %18 {strides = array<i32>} : memref<200x2048xf32, #tpu.memory_space<vmem>>, vector<3x2048xf32>,
    %c27 = arith.constant 27 : index
    %c0_21 = arith.constant 0 : index
    %20 = vector.load %arg13[%c27, %c0_21] : memref<200x2048xf32, #tpu.memory_space<vmem>>, vector<5x2048xf32>
    tpu.vector_store %arg13[%c27, %c0_21], %4 {strides = array<i32>} : memref<200x2048xf32, #tpu.memory_space<vmem>>, vector<5x2048xf32>,
    %c0_22 = arith.constant 0 : index
    %c0_23 = arith.constant 0 : index
    %c8_24 = arith.constant 8 : index
    %21 = vector.load %arg1[%c0_22, %c0_23, %c8_24] : memref<1x3x2432xf32, #tpu.memory_space<vmem>>, vector<1x3x2048xf32>
    %22 = vector.shape_cast %21 : vector<1x3x2048xf32> to vector<3x2048xf32>
    %c32 = arith.constant 32 : index
    %c0_25 = arith.constant 0 : index
    %23 = vector.load %arg13[%c32, %c0_25] : memref<200x2048xf32, #tpu.memory_space<vmem>>, vector<3x2048xf32>
    tpu.vector_store %arg13[%c32, %c0_25], %22 {strides = array<i32>} : memref<200x2048xf32, #tpu.memory_space<vmem>>, vector<3x2048xf32>,
    %c35 = arith.constant 35 : index
    %c0_26 = arith.constant 0 : index
    %24 = vector.load %arg13[%c35, %c0_26] : memref<200x2048xf32, #tpu.memory_space<vmem>>, vector<5x2048xf32>
    tpu.vector_store %arg13[%c35, %c0_26], %4 {strides = array<i32>} : memref<200x2048xf32, #tpu.memory_space<vmem>>, vector<5x2048xf32>,
    %c0_27 = arith.constant 0 : index
    %c0_28 = arith.constant 0 : index
    %c64 = arith.constant 64 : index
    %25 = vector.load %arg1[%c0_27, %c0_28, %c64] : memref<1x3x2432xf32, #tpu.memory_space<vmem>>, vector<1x3x2048xf32>
    %26 = vector.shape_cast %25 : vector<1x3x2048xf32> to vector<3x2048xf32>
    %c40 = arith.constant 40 : index
    %c0_29 = arith.constant 0 : index
    %27 = vector.load %arg13[%c40, %c0_29] : memref<200x2048xf32, #tpu.memory_space<vmem>>, vector<3x2048xf32>
    tpu.vector_store %arg13[%c40, %c0_29], %26 {strides = array<i32>} : memref<200x2048xf32, #tpu.memory_space<vmem>>, vector<3x2048xf32>,
    %c43 = arith.constant 43 : index
    %c0_30 = arith.constant 0 : index
    %28 = vector.load %arg13[%c43, %c0_30] : memref<200x2048xf32, #tpu.memory_space<vmem>>, vector<5x2048xf32>
    tpu.vector_store %arg13[%c43, %c0_30], %4 {strides = array<i32>} : memref<200x2048xf32, #tpu.memory_space<vmem>>, vector<5x2048xf32>,
    %c0_31 = arith.constant 0 : index
    %c0_32 = arith.constant 0 : index
    %c66 = arith.constant 66 : index
    %29 = vector.load %arg1[%c0_31, %c0_32, %c66] : memref<1x3x2432xf32, #tpu.memory_space<vmem>>, vector<1x3x2048xf32>
    %30 = vector.shape_cast %29 : vector<1x3x2048xf32> to vector<3x2048xf32>
    %c48 = arith.constant 48 : index
    %c0_33 = arith.constant 0 : index
    %31 = vector.load %arg13[%c48, %c0_33] : memref<200x2048xf32, #tpu.memory_space<vmem>>, vector<3x2048xf32>
    tpu.vector_store %arg13[%c48, %c0_33], %30 {strides = array<i32>} : memref<200x2048xf32, #tpu.memory_space<vmem>>, vector<3x2048xf32>,
    %c51 = arith.constant 51 : index
    %c0_34 = arith.constant 0 : index
    %32 = vector.load %arg13[%c51, %c0_34] : memref<200x2048xf32, #tpu.memory_space<vmem>>, vector<5x2048xf32>
    tpu.vector_store %arg13[%c51, %c0_34], %4 {strides = array<i32>} : memref<200x2048xf32, #tpu.memory_space<vmem>>, vector<5x2048xf32>,
    %c0_35 = arith.constant 0 : index
    %c0_36 = arith.constant 0 : index
    %c68 = arith.constant 68 : index
    %33 = vector.load %arg1[%c0_35, %c0_36, %c68] : memref<1x3x2432xf32, #tpu.memory_space<vmem>>, vector<1x3x2048xf32>
    %34 = vector.shape_cast %33 : vector<1x3x2048xf32> to vector<3x2048xf32>
    %c56 = arith.constant 56 : index
    %c0_37 = arith.constant 0 : index
    %35 = vector.load %arg13[%c56, %c0_37] : memref<200x2048xf32, #tpu.memory_space<vmem>>, vector<3x2048xf32>
    tpu.vector_store %arg13[%c56, %c0_37], %34 {strides = array<i32>} : memref<200x2048xf32, #tpu.memory_space<vmem>>, vector<3x2048xf32>,
    %c59 = arith.constant 59 : index
    %c0_38 = arith.constant 0 : index
    %36 = vector.load %arg13[%c59, %c0_38] : memref<200x2048xf32, #tpu.memory_space<vmem>>, vector<5x2048xf32>
    tpu.vector_store %arg13[%c59, %c0_38], %4 {strides = array<i32>} : memref<200x2048xf32, #tpu.memory_space<vmem>>, vector<5x2048xf32>,
    %c0_39 = arith.constant 0 : index
    %c0_40 = arith.constant 0 : index
    %c70 = arith.constant 70 : index
    %37 = vector.load %arg1[%c0_39, %c0_40, %c70] : memref<1x3x2432xf32, #tpu.memory_space<vmem>>, vector<1x3x2048xf32>
    %38 = vector.shape_cast %37 : vector<1x3x2048xf32> to vector<3x2048xf32>
    %c64_41 = arith.constant 64 : index
    %c0_42 = arith.constant 0 : index
    %39 = vector.load %arg13[%c64_41, %c0_42] : memref<200x2048xf32, #tpu.memory_space<vmem>>, vector<3x2048xf32>
    tpu.vector_store %arg13[%c64_41, %c0_42], %38 {strides = array<i32>} : memref<200x2048xf32, #tpu.memory_space<vmem>>, vector<3x2048xf32>,
    %c67 = arith.constant 67 : index
    %c0_43 = arith.constant 0 : index
    %40 = vector.load %arg13[%c67, %c0_43] : memref<200x2048xf32, #tpu.memory_space<vmem>>, vector<5x2048xf32>
    tpu.vector_store %arg13[%c67, %c0_43], %4 {strides = array<i32>} : memref<200x2048xf32, #tpu.memory_space<vmem>>, vector<5x2048xf32>,
    %c0_44 = arith.constant 0 : index
    %c0_45 = arith.constant 0 : index
    %c72 = arith.constant 72 : index
    %41 = vector.load %arg1[%c0_44, %c0_45, %c72] : memref<1x3x2432xf32, #tpu.memory_space<vmem>>, vector<1x3x2048xf32>
    %42 = vector.shape_cast %41 : vector<1x3x2048xf32> to vector<3x2048xf32>
    %c72_46 = arith.constant 72 : index
    %c0_47 = arith.constant 0 : index
    %43 = vector.load %arg13[%c72_46, %c0_47] : memref<200x2048xf32, #tpu.memory_space<vmem>>, vector<3x2048xf32>
    tpu.vector_store %arg13[%c72_46, %c0_47], %42 {strides = array<i32>} : memref<200x2048xf32, #tpu.memory_space<vmem>>, vector<3x2048xf32>,
    %c75 = arith.constant 75 : index
    %c0_48 = arith.constant 0 : index
    %44 = vector.load %arg13[%c75, %c0_48] : memref<200x2048xf32, #tpu.memory_space<vmem>>, vector<5x2048xf32>
    tpu.vector_store %arg13[%c75, %c0_48], %4 {strides = array<i32>} : memref<200x2048xf32, #tpu.memory_space<vmem>>, vector<5x2048xf32>,
    %c0_49 = arith.constant 0 : index
    %c0_50 = arith.constant 0 : index
    %c128 = arith.constant 128 : index
    %45 = vector.load %arg1[%c0_49, %c0_50, %c128] : memref<1x3x2432xf32, #tpu.memory_space<vmem>>, vector<1x3x2048xf32>
    %46 = vector.shape_cast %45 : vector<1x3x2048xf32> to vector<3x2048xf32>
    %c80 = arith.constant 80 : index
    %c0_51 = arith.constant 0 : index
    %47 = vector.load %arg13[%c80, %c0_51] : memref<200x2048xf32, #tpu.memory_space<vmem>>, vector<3x2048xf32>
    tpu.vector_store %arg13[%c80, %c0_51], %46 {strides = array<i32>} : memref<200x2048xf32, #tpu.memory_space<vmem>>, vector<3x2048xf32>,
    %c83 = arith.constant 83 : index
    %c0_52 = arith.constant 0 : index
    %48 = vector.load %arg13[%c83, %c0_52] : memref<200x2048xf32, #tpu.memory_space<vmem>>, vector<5x2048xf32>
    tpu.vector_store %arg13[%c83, %c0_52], %4 {strides = array<i32>} : memref<200x2048xf32, #tpu.memory_space<vmem>>, vector<5x2048xf32>,
    %c0_53 = arith.constant 0 : index
    %c0_54 = arith.constant 0 : index
    %c130 = arith.constant 130 : index
    %49 = vector.load %arg1[%c0_53, %c0_54, %c130] : memref<1x3x2432xf32, #tpu.memory_space<vmem>>, vector<1x3x2048xf32>
    %50 = vector.shape_cast %49 : vector<1x3x2048xf32> to vector<3x2048xf32>
    %c88 = arith.constant 88 : index
    %c0_55 = arith.constant 0 : index
    %51 = vector.load %arg13[%c88, %c0_55] : memref<200x2048xf32, #tpu.memory_space<vmem>>, vector<3x2048xf32>
    tpu.vector_store %arg13[%c88, %c0_55], %50 {strides = array<i32>} : memref<200x2048xf32, #tpu.memory_space<vmem>>, vector<3x2048xf32>,
    %c91 = arith.constant 91 : index
    %c0_56 = arith.constant 0 : index
    %52 = vector.load %arg13[%c91, %c0_56] : memref<200x2048xf32, #tpu.memory_space<vmem>>, vector<5x2048xf32>
    tpu.vector_store %arg13[%c91, %c0_56], %4 {strides = array<i32>} : memref<200x2048xf32, #tpu.memory_space<vmem>>, vector<5x2048xf32>,
    %c0_57 = arith.constant 0 : index
    %c0_58 = arith.constant 0 : index
    %c132 = arith.constant 132 : index
    %53 = vector.load %arg1[%c0_57, %c0_58, %c132] : memref<1x3x2432xf32, #tpu.memory_space<vmem>>, vector<1x3x2048xf32>
    %54 = vector.shape_cast %53 : vector<1x3x2048xf32> to vector<3x2048xf32>
    %c96 = arith.constant 96 : index
    %c0_59 = arith.constant 0 : index
    %55 = vector.load %arg13[%c96, %c0_59] : memref<200x2048xf32, #tpu.memory_space<vmem>>, vector<3x2048xf32>
    tpu.vector_store %arg13[%c96, %c0_59], %54 {strides = array<i32>} : memref<200x2048xf32, #tpu.memory_space<vmem>>, vector<3x2048xf32>,
    %c99 = arith.constant 99 : index
    %c0_60 = arith.constant 0 : index
    %56 = vector.load %arg13[%c99, %c0_60] : memref<200x2048xf32, #tpu.memory_space<vmem>>, vector<5x2048xf32>
    tpu.vector_store %arg13[%c99, %c0_60], %4 {strides = array<i32>} : memref<200x2048xf32, #tpu.memory_space<vmem>>, vector<5x2048xf32>,
    %c0_61 = arith.constant 0 : index
    %c0_62 = arith.constant 0 : index
    %c134 = arith.constant 134 : index
    %57 = vector.load %arg1[%c0_61, %c0_62, %c134] : memref<1x3x2432xf32, #tpu.memory_space<vmem>>, vector<1x3x2048xf32>
    %58 = vector.shape_cast %57 : vector<1x3x2048xf32> to vector<3x2048xf32>
    %c104 = arith.constant 104 : index
    %c0_63 = arith.constant 0 : index
    %59 = vector.load %arg13[%c104, %c0_63] : memref<200x2048xf32, #tpu.memory_space<vmem>>, vector<3x2048xf32>
    tpu.vector_store %arg13[%c104, %c0_63], %58 {strides = array<i32>} : memref<200x2048xf32, #tpu.memory_space<vmem>>, vector<3x2048xf32>,
    %c107 = arith.constant 107 : index
    %c0_64 = arith.constant 0 : index
    %60 = vector.load %arg13[%c107, %c0_64] : memref<200x2048xf32, #tpu.memory_space<vmem>>, vector<5x2048xf32>
    tpu.vector_store %arg13[%c107, %c0_64], %4 {strides = array<i32>} : memref<200x2048xf32, #tpu.memory_space<vmem>>, vector<5x2048xf32>,
    %c0_65 = arith.constant 0 : index
    %c0_66 = arith.constant 0 : index
    %c136 = arith.constant 136 : index
    %61 = vector.load %arg1[%c0_65, %c0_66, %c136] : memref<1x3x2432xf32, #tpu.memory_space<vmem>>, vector<1x3x2048xf32>
    %62 = vector.shape_cast %61 : vector<1x3x2048xf32> to vector<3x2048xf32>
    %c112 = arith.constant 112 : index
    %c0_67 = arith.constant 0 : index
    %63 = vector.load %arg13[%c112, %c0_67] : memref<200x2048xf32, #tpu.memory_space<vmem>>, vector<3x2048xf32>
    tpu.vector_store %arg13[%c112, %c0_67], %62 {strides = array<i32>} : memref<200x2048xf32, #tpu.memory_space<vmem>>, vector<3x2048xf32>,
    %c115 = arith.constant 115 : index
    %c0_68 = arith.constant 0 : index
    %64 = vector.load %arg13[%c115, %c0_68] : memref<200x2048xf32, #tpu.memory_space<vmem>>, vector<5x2048xf32>
    tpu.vector_store %arg13[%c115, %c0_68], %4 {strides = array<i32>} : memref<200x2048xf32, #tpu.memory_space<vmem>>, vector<5x2048xf32>,
    %c0_69 = arith.constant 0 : index
    %c0_70 = arith.constant 0 : index
    %c192 = arith.constant 192 : index
    %65 = vector.load %arg1[%c0_69, %c0_70, %c192] : memref<1x3x2432xf32, #tpu.memory_space<vmem>>, vector<1x3x2048xf32>
    %66 = vector.shape_cast %65 : vector<1x3x2048xf32> to vector<3x2048xf32>
    %c120 = arith.constant 120 : index
    %c0_71 = arith.constant 0 : index
    %67 = vector.load %arg13[%c120, %c0_71] : memref<200x2048xf32, #tpu.memory_space<vmem>>, vector<3x2048xf32>
    tpu.vector_store %arg13[%c120, %c0_71], %66 {strides = array<i32>} : memref<200x2048xf32, #tpu.memory_space<vmem>>, vector<3x2048xf32>,
    %c123 = arith.constant 123 : index
    %c0_72 = arith.constant 0 : index
    %68 = vector.load %arg13[%c123, %c0_72] : memref<200x2048xf32, #tpu.memory_space<vmem>>, vector<5x2048xf32>
    tpu.vector_store %arg13[%c123, %c0_72], %4 {strides = array<i32>} : memref<200x2048xf32, #tpu.memory_space<vmem>>, vector<5x2048xf32>,
    %c0_73 = arith.constant 0 : index
    %c0_74 = arith.constant 0 : index
    %c194 = arith.constant 194 : index
    %69 = vector.load %arg1[%c0_73, %c0_74, %c194] : memref<1x3x2432xf32, #tpu.memory_space<vmem>>, vector<1x3x2048xf32>
    %70 = vector.shape_cast %69 : vector<1x3x2048xf32> to vector<3x2048xf32>
    %c128_75 = arith.constant 128 : index
    %c0_76 = arith.constant 0 : index
    %71 = vector.load %arg13[%c128_75, %c0_76] : memref<200x2048xf32, #tpu.memory_space<vmem>>, vector<3x2048xf32>
    tpu.vector_store %arg13[%c128_75, %c0_76], %70 {strides = array<i32>} : memref<200x2048xf32, #tpu.memory_space<vmem>>, vector<3x2048xf32>,
    %c131 = arith.constant 131 : index
    %c0_77 = arith.constant 0 : index
    %72 = vector.load %arg13[%c131, %c0_77] : memref<200x2048xf32, #tpu.memory_space<vmem>>, vector<5x2048xf32>
    tpu.vector_store %arg13[%c131, %c0_77], %4 {strides = array<i32>} : memref<200x2048xf32, #tpu.memory_space<vmem>>, vector<5x2048xf32>,
    %c0_78 = arith.constant 0 : index
    %c0_79 = arith.constant 0 : index
    %c196 = arith.constant 196 : index
    %73 = vector.load %arg1[%c0_78, %c0_79, %c196] : memref<1x3x2432xf32, #tpu.memory_space<vmem>>, vector<1x3x2048xf32>
    %74 = vector.shape_cast %73 : vector<1x3x2048xf32> to vector<3x2048xf32>
    %c136_80 = arith.constant 136 : index
    %c0_81 = arith.constant 0 : index
    %75 = vector.load %arg13[%c136_80, %c0_81] : memref<200x2048xf32, #tpu.memory_space<vmem>>, vector<3x2048xf32>
    tpu.vector_store %arg13[%c136_80, %c0_81], %74 {strides = array<i32>} : memref<200x2048xf32, #tpu.memory_space<vmem>>, vector<3x2048xf32>,
    %c139 = arith.constant 139 : index
    %c0_82 = arith.constant 0 : index
    %76 = vector.load %arg13[%c139, %c0_82] : memref<200x2048xf32, #tpu.memory_space<vmem>>, vector<5x2048xf32>
    tpu.vector_store %arg13[%c139, %c0_82], %4 {strides = array<i32>} : memref<200x2048xf32, #tpu.memory_space<vmem>>, vector<5x2048xf32>,
    %c0_83 = arith.constant 0 : index
    %c0_84 = arith.constant 0 : index
    %c198 = arith.constant 198 : index
    %77 = vector.load %arg1[%c0_83, %c0_84, %c198] : memref<1x3x2432xf32, #tpu.memory_space<vmem>>, vector<1x3x2048xf32>
    %78 = vector.shape_cast %77 : vector<1x3x2048xf32> to vector<3x2048xf32>
    %c144 = arith.constant 144 : index
    %c0_85 = arith.constant 0 : index
    %79 = vector.load %arg13[%c144, %c0_85] : memref<200x2048xf32, #tpu.memory_space<vmem>>, vector<3x2048xf32>
    tpu.vector_store %arg13[%c144, %c0_85], %78 {strides = array<i32>} : memref<200x2048xf32, #tpu.memory_space<vmem>>, vector<3x2048xf32>,
    %c147 = arith.constant 147 : index
    %c0_86 = arith.constant 0 : index
    %80 = vector.load %arg13[%c147, %c0_86] : memref<200x2048xf32, #tpu.memory_space<vmem>>, vector<5x2048xf32>
    tpu.vector_store %arg13[%c147, %c0_86], %4 {strides = array<i32>} : memref<200x2048xf32, #tpu.memory_space<vmem>>, vector<5x2048xf32>,
    %c0_87 = arith.constant 0 : index
    %c0_88 = arith.constant 0 : index
    %c200 = arith.constant 200 : index
    %81 = vector.load %arg1[%c0_87, %c0_88, %c200] : memref<1x3x2432xf32, #tpu.memory_space<vmem>>, vector<1x3x2048xf32>
    %82 = vector.shape_cast %81 : vector<1x3x2048xf32> to vector<3x2048xf32>
    %c152 = arith.constant 152 : index
    %c0_89 = arith.constant 0 : index
    %83 = vector.load %arg13[%c152, %c0_89] : memref<200x2048xf32, #tpu.memory_space<vmem>>, vector<3x2048xf32>
    tpu.vector_store %arg13[%c152, %c0_89], %82 {strides = array<i32>} : memref<200x2048xf32, #tpu.memory_space<vmem>>, vector<3x2048xf32>,
    %c155 = arith.constant 155 : index
    %c0_90 = arith.constant 0 : index
    %84 = vector.load %arg13[%c155, %c0_90] : memref<200x2048xf32, #tpu.memory_space<vmem>>, vector<5x2048xf32>
    tpu.vector_store %arg13[%c155, %c0_90], %4 {strides = array<i32>} : memref<200x2048xf32, #tpu.memory_space<vmem>>, vector<5x2048xf32>,
    %c0_91 = arith.constant 0 : index
    %c0_92 = arith.constant 0 : index
    %c256 = arith.constant 256 : index
    %85 = vector.load %arg1[%c0_91, %c0_92, %c256] : memref<1x3x2432xf32, #tpu.memory_space<vmem>>, vector<1x3x2048xf32>
    %86 = vector.shape_cast %85 : vector<1x3x2048xf32> to vector<3x2048xf32>
    %c160 = arith.constant 160 : index
    %c0_93 = arith.constant 0 : index
    %87 = vector.load %arg13[%c160, %c0_93] : memref<200x2048xf32, #tpu.memory_space<vmem>>, vector<3x2048xf32>
    tpu.vector_store %arg13[%c160, %c0_93], %86 {strides = array<i32>} : memref<200x2048xf32, #tpu.memory_space<vmem>>, vector<3x2048xf32>,
    %c163 = arith.constant 163 : index
    %c0_94 = arith.constant 0 : index
    %88 = vector.load %arg13[%c163, %c0_94] : memref<200x2048xf32, #tpu.memory_space<vmem>>, vector<5x2048xf32>
    tpu.vector_store %arg13[%c163, %c0_94], %4 {strides = array<i32>} : memref<200x2048xf32, #tpu.memory_space<vmem>>, vector<5x2048xf32>,
    %c0_95 = arith.constant 0 : index
    %c0_96 = arith.constant 0 : index
    %c258 = arith.constant 258 : index
    %89 = vector.load %arg1[%c0_95, %c0_96, %c258] : memref<1x3x2432xf32, #tpu.memory_space<vmem>>, vector<1x3x2048xf32>
    %90 = vector.shape_cast %89 : vector<1x3x2048xf32> to vector<3x2048xf32>
    %c168 = arith.constant 168 : index
    %c0_97 = arith.constant 0 : index
    %91 = vector.load %arg13[%c168, %c0_97] : memref<200x2048xf32, #tpu.memory_space<vmem>>, vector<3x2048xf32>
    tpu.vector_store %arg13[%c168, %c0_97], %90 {strides = array<i32>} : memref<200x2048xf32, #tpu.memory_space<vmem>>, vector<3x2048xf32>,
    %c171 = arith.constant 171 : index
    %c0_98 = arith.constant 0 : index
    %92 = vector.load %arg13[%c171, %c0_98] : memref<200x2048xf32, #tpu.memory_space<vmem>>, vector<5x2048xf32>
    tpu.vector_store %arg13[%c171, %c0_98], %4 {strides = array<i32>} : memref<200x2048xf32, #tpu.memory_space<vmem>>, vector<5x2048xf32>,
    %c0_99 = arith.constant 0 : index
    %c0_100 = arith.constant 0 : index
    %c260 = arith.constant 260 : index
    %93 = vector.load %arg1[%c0_99, %c0_100, %c260] : memref<1x3x2432xf32, #tpu.memory_space<vmem>>, vector<1x3x2048xf32>
    %94 = vector.shape_cast %93 : vector<1x3x2048xf32> to vector<3x2048xf32>
    %c176 = arith.constant 176 : index
    %c0_101 = arith.constant 0 : index
    %95 = vector.load %arg13[%c176, %c0_101] : memref<200x2048xf32, #tpu.memory_space<vmem>>, vector<3x2048xf32>
    tpu.vector_store %arg13[%c176, %c0_101], %94 {strides = array<i32>} : memref<200x2048xf32, #tpu.memory_space<vmem>>, vector<3x2048xf32>,
    %c179 = arith.constant 179 : index
    %c0_102 = arith.constant 0 : index
    %96 = vector.load %arg13[%c179, %c0_102] : memref<200x2048xf32, #tpu.memory_space<vmem>>, vector<5x2048xf32>
    tpu.vector_store %arg13[%c179, %c0_102], %4 {strides = array<i32>} : memref<200x2048xf32, #tpu.memory_space<vmem>>, vector<5x2048xf32>,
    %c0_103 = arith.constant 0 : index
    %c0_104 = arith.constant 0 : index
    %c262 = arith.constant 262 : index
    %97 = vector.load %arg1[%c0_103, %c0_104, %c262] : memref<1x3x2432xf32, #tpu.memory_space<vmem>>, vector<1x3x2048xf32>
    %98 = vector.shape_cast %97 : vector<1x3x2048xf32> to vector<3x2048xf32>
    %c184 = arith.constant 184 : index
    %c0_105 = arith.constant 0 : index
    %99 = vector.load %arg13[%c184, %c0_105] : memref<200x2048xf32, #tpu.memory_space<vmem>>, vector<3x2048xf32>
    tpu.vector_store %arg13[%c184, %c0_105], %98 {strides = array<i32>} : memref<200x2048xf32, #tpu.memory_space<vmem>>, vector<3x2048xf32>,
    %c187 = arith.constant 187 : index
    %c0_106 = arith.constant 0 : index
    %100 = vector.load %arg13[%c187, %c0_106] : memref<200x2048xf32, #tpu.memory_space<vmem>>, vector<5x2048xf32>
    tpu.vector_store %arg13[%c187, %c0_106], %4 {strides = array<i32>} : memref<200x2048xf32, #tpu.memory_space<vmem>>, vector<5x2048xf32>,
    %c0_107 = arith.constant 0 : index
    %c0_108 = arith.constant 0 : index
    %c264 = arith.constant 264 : index
    %101 = vector.load %arg1[%c0_107, %c0_108, %c264] : memref<1x3x2432xf32, #tpu.memory_space<vmem>>, vector<1x3x2048xf32>
    %102 = vector.shape_cast %101 : vector<1x3x2048xf32> to vector<3x2048xf32>
    %c192_109 = arith.constant 192 : index
    %c0_110 = arith.constant 0 : index
    %103 = vector.load %arg13[%c192_109, %c0_110] : memref<200x2048xf32, #tpu.memory_space<vmem>>, vector<3x2048xf32>
    tpu.vector_store %arg13[%c192_109, %c0_110], %102 {strides = array<i32>} : memref<200x2048xf32, #tpu.memory_space<vmem>>, vector<3x2048xf32>,
    %c195 = arith.constant 195 : index
    %c0_111 = arith.constant 0 : index
    %104 = vector.load %arg13[%c195, %c0_111] : memref<200x2048xf32, #tpu.memory_space<vmem>>, vector<5x2048xf32>
    tpu.vector_store %arg13[%c195, %c0_111], %4 {strides = array<i32>} : memref<200x2048xf32, #tpu.memory_space<vmem>>, vector<5x2048xf32>,
    %c0_112 = arith.constant 0 : index
    %c0_113 = arith.constant 0 : index
    %105 = vector.load %arg2[%c0_112, %c0_113] : memref<6x200xf32, #tpu.memory_space<vmem>>, vector<6x200xf32>
    %c0_114 = arith.constant 0 : index
    %c0_115 = arith.constant 0 : index
    %106 = vector.load %arg13[%c0_114, %c0_115] : memref<200x2048xf32, #tpu.memory_space<vmem>>, vector<200x2048xf32>
    %cst_116 = arith.constant dense<0.000000e+00> : vector<6x2048xf32>
    %107 = tpu.matmul %105, %106, %cst_116 {dimension_numbers = #tpu.dot_dimension_numbers<[1], [0], [0], [1], [0, 0, 1, 1], [], []>} : vector<6x200xf32>, vector<200x2048xf32>, vector<6x2048xf32> -> vector<6x2048xf32>
    %c0_117 = arith.constant 0 : index
    %c0_118 = arith.constant 0 : index
    %108 = vector.load %arg3[%c0_117, %c0_118] : memref<6x1xf32, #tpu.memory_space<vmem>>, vector<6x1xf32>
    %109 = vector.broadcast %108 : vector<6x1xf32> to vector<6x2048xf32>
    %110 = arith.addf %107, %109 : vector<6x2048xf32>
    %cst_119 = arith.constant 0.000000e+00 : f32
    %111 = vector.broadcast %cst_119 : f32 to vector<6x2048xf32>
    %112 = arith.maximumf %110, %111 : vector<6x2048xf32>
    %c0_120 = arith.constant 0 : index
    %c0_121 = arith.constant 0 : index
    %113 = vector.load %arg14[%c0_120, %c0_121] : memref<6x2176xf32, #tpu.memory_space<vmem>>, vector<6x2048xf32>
    tpu.vector_store %arg14[%c0_120, %c0_121], %112 {strides = array<i32>} : memref<6x2176xf32, #tpu.memory_space<vmem>>, vector<6x2048xf32>,
    %c0_122 = arith.constant 0 : index
    %c0_123 = arith.constant 0 : index
    %114 = vector.load %arg14[%c0_122, %c0_123] : memref<6x2176xf32, #tpu.memory_space<vmem>>, vector<6x2048xf32>
    %c0_124 = arith.constant 0 : index
    %c2_125 = arith.constant 2 : index
    %115 = vector.load %arg14[%c0_124, %c2_125] : memref<6x2176xf32, #tpu.memory_space<vmem>>, vector<6x2048xf32>
    %116 = arith.maximumf %114, %115 : vector<6x2048xf32>
    %c0_126 = arith.constant 0 : index
    %c64_127 = arith.constant 64 : index
    %117 = vector.load %arg14[%c0_126, %c64_127] : memref<6x2176xf32, #tpu.memory_space<vmem>>, vector<6x2048xf32>
    %c0_128 = arith.constant 0 : index
    %c66_129 = arith.constant 66 : index
    %118 = vector.load %arg14[%c0_128, %c66_129] : memref<6x2176xf32, #tpu.memory_space<vmem>>, vector<6x2048xf32>
    %119 = arith.maximumf %117, %118 : vector<6x2048xf32>
    %120 = arith.maximumf %116, %119 : vector<6x2048xf32>
    %c0_130 = arith.constant 0 : index
    %c0_131 = arith.constant 0 : index
    %121 = vector.load %arg15[%c0_130, %c0_131] : memref<6x2688xf32, #tpu.memory_space<vmem>>, vector<6x2048xf32>
    tpu.vector_store %arg15[%c0_130, %c0_131], %120 {strides = array<i32>} : memref<6x2688xf32, #tpu.memory_space<vmem>>, vector<6x2048xf32>,
    %c0_132 = arith.constant 0 : index
    %c0_133 = arith.constant 0 : index
    %122 = vector.load %arg15[%c0_132, %c0_133] : memref<6x2688xf32, #tpu.memory_space<vmem>>, vector<6x2048xf32>
    %c0_134 = arith.constant 0 : index
    %c0_135 = arith.constant 0 : index
    %123 = vector.load %arg13[%c0_134, %c0_135] : memref<200x2048xf32, #tpu.memory_space<vmem>>, vector<6x2048xf32>
    tpu.vector_store %arg13[%c0_134, %c0_135], %122 {strides = array<i32>} : memref<200x2048xf32, #tpu.memory_space<vmem>>, vector<6x2048xf32>,
    %c0_136 = arith.constant 0 : index
    %c4_137 = arith.constant 4 : index
    %124 = vector.load %arg15[%c0_136, %c4_137] : memref<6x2688xf32, #tpu.memory_space<vmem>>, vector<6x2048xf32>
    %c8_138 = arith.constant 8 : index
    %c0_139 = arith.constant 0 : index
    %125 = vector.load %arg13[%c8_138, %c0_139] : memref<200x2048xf32, #tpu.memory_space<vmem>>, vector<6x2048xf32>
    tpu.vector_store %arg13[%c8_138, %c0_139], %124 {strides = array<i32>} : memref<200x2048xf32, #tpu.memory_space<vmem>>, vector<6x2048xf32>,
    %c0_140 = arith.constant 0 : index
    %c8_141 = arith.constant 8 : index
    %126 = vector.load %arg15[%c0_140, %c8_141] : memref<6x2688xf32, #tpu.memory_space<vmem>>, vector<6x2048xf32>
    %c16_142 = arith.constant 16 : index
    %c0_143 = arith.constant 0 : index
    %127 = vector.load %arg13[%c16_142, %c0_143] : memref<200x2048xf32, #tpu.memory_space<vmem>>, vector<6x2048xf32>
    tpu.vector_store %arg13[%c16_142, %c0_143], %126 {strides = array<i32>} : memref<200x2048xf32, #tpu.memory_space<vmem>>, vector<6x2048xf32>,
    %c0_144 = arith.constant 0 : index
    %c12 = arith.constant 12 : index
    %128 = vector.load %arg15[%c0_144, %c12] : memref<6x2688xf32, #tpu.memory_space<vmem>>, vector<6x2048xf32>
    %c24_145 = arith.constant 24 : index
    %c0_146 = arith.constant 0 : index
    %129 = vector.load %arg13[%c24_145, %c0_146] : memref<200x2048xf32, #tpu.memory_space<vmem>>, vector<6x2048xf32>
    tpu.vector_store %arg13[%c24_145, %c0_146], %128 {strides = array<i32>} : memref<200x2048xf32, #tpu.memory_space<vmem>>, vector<6x2048xf32>,
    %c0_147 = arith.constant 0 : index
    %c16_148 = arith.constant 16 : index
    %130 = vector.load %arg15[%c0_147, %c16_148] : memref<6x2688xf32, #tpu.memory_space<vmem>>, vector<6x2048xf32>
    %c32_149 = arith.constant 32 : index
    %c0_150 = arith.constant 0 : index
    %131 = vector.load %arg13[%c32_149, %c0_150] : memref<200x2048xf32, #tpu.memory_space<vmem>>, vector<6x2048xf32>
    tpu.vector_store %arg13[%c32_149, %c0_150], %130 {strides = array<i32>} : memref<200x2048xf32, #tpu.memory_space<vmem>>, vector<6x2048xf32>,
    %c0_151 = arith.constant 0 : index
    %c128_152 = arith.constant 128 : index
    %132 = vector.load %arg15[%c0_151, %c128_152] : memref<6x2688xf32, #tpu.memory_space<vmem>>, vector<6x2048xf32>
    %c40_153 = arith.constant 40 : index
    %c0_154 = arith.constant 0 : index
    %133 = vector.load %arg13[%c40_153, %c0_154] : memref<200x2048xf32, #tpu.memory_space<vmem>>, vector<6x2048xf32>
    tpu.vector_store %arg13[%c40_153, %c0_154], %132 {strides = array<i32>} : memref<200x2048xf32, #tpu.memory_space<vmem>>, vector<6x2048xf32>,
    %c0_155 = arith.constant 0 : index
    %c132_156 = arith.constant 132 : index
    %134 = vector.load %arg15[%c0_155, %c132_156] : memref<6x2688xf32, #tpu.memory_space<vmem>>, vector<6x2048xf32>
    %c48_157 = arith.constant 48 : index
    %c0_158 = arith.constant 0 : index
    %135 = vector.load %arg13[%c48_157, %c0_158] : memref<200x2048xf32, #tpu.memory_space<vmem>>, vector<6x2048xf32>
    tpu.vector_store %arg13[%c48_157, %c0_158], %134 {strides = array<i32>} : memref<200x2048xf32, #tpu.memory_space<vmem>>, vector<6x2048xf32>,
    %c0_159 = arith.constant 0 : index
    %c136_160 = arith.constant 136 : index
    %136 = vector.load %arg15[%c0_159, %c136_160] : memref<6x2688xf32, #tpu.memory_space<vmem>>, vector<6x2048xf32>
    %c56_161 = arith.constant 56 : index
    %c0_162 = arith.constant 0 : index
    %137 = vector.load %arg13[%c56_161, %c0_162] : memref<200x2048xf32, #tpu.memory_space<vmem>>, vector<6x2048xf32>
    tpu.vector_store %arg13[%c56_161, %c0_162], %136 {strides = array<i32>} : memref<200x2048xf32, #tpu.memory_space<vmem>>, vector<6x2048xf32>,
    %c0_163 = arith.constant 0 : index
    %c140 = arith.constant 140 : index
    %138 = vector.load %arg15[%c0_163, %c140] : memref<6x2688xf32, #tpu.memory_space<vmem>>, vector<6x2048xf32>
    %c64_164 = arith.constant 64 : index
    %c0_165 = arith.constant 0 : index
    %139 = vector.load %arg13[%c64_164, %c0_165] : memref<200x2048xf32, #tpu.memory_space<vmem>>, vector<6x2048xf32>
    tpu.vector_store %arg13[%c64_164, %c0_165], %138 {strides = array<i32>} : memref<200x2048xf32, #tpu.memory_space<vmem>>, vector<6x2048xf32>,
    %c0_166 = arith.constant 0 : index
    %c144_167 = arith.constant 144 : index
    %140 = vector.load %arg15[%c0_166, %c144_167] : memref<6x2688xf32, #tpu.memory_space<vmem>>, vector<6x2048xf32>
    %c72_168 = arith.constant 72 : index
    %c0_169 = arith.constant 0 : index
    %141 = vector.load %arg13[%c72_168, %c0_169] : memref<200x2048xf32, #tpu.memory_space<vmem>>, vector<6x2048xf32>
    tpu.vector_store %arg13[%c72_168, %c0_169], %140 {strides = array<i32>} : memref<200x2048xf32, #tpu.memory_space<vmem>>, vector<6x2048xf32>,
    %c0_170 = arith.constant 0 : index
    %c256_171 = arith.constant 256 : index
    %142 = vector.load %arg15[%c0_170, %c256_171] : memref<6x2688xf32, #tpu.memory_space<vmem>>, vector<6x2048xf32>
    %c80_172 = arith.constant 80 : index
    %c0_173 = arith.constant 0 : index
    %143 = vector.load %arg13[%c80_172, %c0_173] : memref<200x2048xf32, #tpu.memory_space<vmem>>, vector<6x2048xf32>
    tpu.vector_store %arg13[%c80_172, %c0_173], %142 {strides = array<i32>} : memref<200x2048xf32, #tpu.memory_space<vmem>>, vector<6x2048xf32>,
    %c0_174 = arith.constant 0 : index
    %c260_175 = arith.constant 260 : index
    %144 = vector.load %arg15[%c0_174, %c260_175] : memref<6x2688xf32, #tpu.memory_space<vmem>>, vector<6x2048xf32>
    %c88_176 = arith.constant 88 : index
    %c0_177 = arith.constant 0 : index
    %145 = vector.load %arg13[%c88_176, %c0_177] : memref<200x2048xf32, #tpu.memory_space<vmem>>, vector<6x2048xf32>
    tpu.vector_store %arg13[%c88_176, %c0_177], %144 {strides = array<i32>} : memref<200x2048xf32, #tpu.memory_space<vmem>>, vector<6x2048xf32>,
    %c0_178 = arith.constant 0 : index
    %c264_179 = arith.constant 264 : index
    %146 = vector.load %arg15[%c0_178, %c264_179] : memref<6x2688xf32, #tpu.memory_space<vmem>>, vector<6x2048xf32>
    %c96_180 = arith.constant 96 : index
    %c0_181 = arith.constant 0 : index
    %147 = vector.load %arg13[%c96_180, %c0_181] : memref<200x2048xf32, #tpu.memory_space<vmem>>, vector<6x2048xf32>
    tpu.vector_store %arg13[%c96_180, %c0_181], %146 {strides = array<i32>} : memref<200x2048xf32, #tpu.memory_space<vmem>>, vector<6x2048xf32>,
    %c0_182 = arith.constant 0 : index
    %c268 = arith.constant 268 : index
    %148 = vector.load %arg15[%c0_182, %c268] : memref<6x2688xf32, #tpu.memory_space<vmem>>, vector<6x2048xf32>
    %c104_183 = arith.constant 104 : index
    %c0_184 = arith.constant 0 : index
    %149 = vector.load %arg13[%c104_183, %c0_184] : memref<200x2048xf32, #tpu.memory_space<vmem>>, vector<6x2048xf32>
    tpu.vector_store %arg13[%c104_183, %c0_184], %148 {strides = array<i32>} : memref<200x2048xf32, #tpu.memory_space<vmem>>, vector<6x2048xf32>,
    %c0_185 = arith.constant 0 : index
    %c272 = arith.constant 272 : index
    %150 = vector.load %arg15[%c0_185, %c272] : memref<6x2688xf32, #tpu.memory_space<vmem>>, vector<6x2048xf32>
    %c112_186 = arith.constant 112 : index
    %c0_187 = arith.constant 0 : index
    %151 = vector.load %arg13[%c112_186, %c0_187] : memref<200x2048xf32, #tpu.memory_space<vmem>>, vector<6x2048xf32>
    tpu.vector_store %arg13[%c112_186, %c0_187], %150 {strides = array<i32>} : memref<200x2048xf32, #tpu.memory_space<vmem>>, vector<6x2048xf32>,
    %c0_188 = arith.constant 0 : index
    %c384 = arith.constant 384 : index
    %152 = vector.load %arg15[%c0_188, %c384] : memref<6x2688xf32, #tpu.memory_space<vmem>>, vector<6x2048xf32>
    %c120_189 = arith.constant 120 : index
    %c0_190 = arith.constant 0 : index
    %153 = vector.load %arg13[%c120_189, %c0_190] : memref<200x2048xf32, #tpu.memory_space<vmem>>, vector<6x2048xf32>
    tpu.vector_store %arg13[%c120_189, %c0_190], %152 {strides = array<i32>} : memref<200x2048xf32, #tpu.memory_space<vmem>>, vector<6x2048xf32>,
    %c0_191 = arith.constant 0 : index
    %c388 = arith.constant 388 : index
    %154 = vector.load %arg15[%c0_191, %c388] : memref<6x2688xf32, #tpu.memory_space<vmem>>, vector<6x2048xf32>
    %c128_192 = arith.constant 128 : index
    %c0_193 = arith.constant 0 : index
    %155 = vector.load %arg13[%c128_192, %c0_193] : memref<200x2048xf32, #tpu.memory_space<vmem>>, vector<6x2048xf32>
    tpu.vector_store %arg13[%c128_192, %c0_193], %154 {strides = array<i32>} : memref<200x2048xf32, #tpu.memory_space<vmem>>, vector<6x2048xf32>,
    %c0_194 = arith.constant 0 : index
    %c392 = arith.constant 392 : index
    %156 = vector.load %arg15[%c0_194, %c392] : memref<6x2688xf32, #tpu.memory_space<vmem>>, vector<6x2048xf32>
    %c136_195 = arith.constant 136 : index
    %c0_196 = arith.constant 0 : index
    %157 = vector.load %arg13[%c136_195, %c0_196] : memref<200x2048xf32, #tpu.memory_space<vmem>>, vector<6x2048xf32>
    tpu.vector_store %arg13[%c136_195, %c0_196], %156 {strides = array<i32>} : memref<200x2048xf32, #tpu.memory_space<vmem>>, vector<6x2048xf32>,
    %c0_197 = arith.constant 0 : index
    %c396 = arith.constant 396 : index
    %158 = vector.load %arg15[%c0_197, %c396] : memref<6x2688xf32, #tpu.memory_space<vmem>>, vector<6x2048xf32>
    %c144_198 = arith.constant 144 : index
    %c0_199 = arith.constant 0 : index
    %159 = vector.load %arg13[%c144_198, %c0_199] : memref<200x2048xf32, #tpu.memory_space<vmem>>, vector<6x2048xf32>
    tpu.vector_store %arg13[%c144_198, %c0_199], %158 {strides = array<i32>} : memref<200x2048xf32, #tpu.memory_space<vmem>>, vector<6x2048xf32>,
    %c0_200 = arith.constant 0 : index
    %c400 = arith.constant 400 : index
    %160 = vector.load %arg15[%c0_200, %c400] : memref<6x2688xf32, #tpu.memory_space<vmem>>, vector<6x2048xf32>
    %c152_201 = arith.constant 152 : index
    %c0_202 = arith.constant 0 : index
    %161 = vector.load %arg13[%c152_201, %c0_202] : memref<200x2048xf32, #tpu.memory_space<vmem>>, vector<6x2048xf32>
    tpu.vector_store %arg13[%c152_201, %c0_202], %160 {strides = array<i32>} : memref<200x2048xf32, #tpu.memory_space<vmem>>, vector<6x2048xf32>,
    %c0_203 = arith.constant 0 : index
    %c512 = arith.constant 512 : index
    %162 = vector.load %arg15[%c0_203, %c512] : memref<6x2688xf32, #tpu.memory_space<vmem>>, vector<6x2048xf32>
    %c160_204 = arith.constant 160 : index
    %c0_205 = arith.constant 0 : index
    %163 = vector.load %arg13[%c160_204, %c0_205] : memref<200x2048xf32, #tpu.memory_space<vmem>>, vector<6x2048xf32>
    tpu.vector_store %arg13[%c160_204, %c0_205], %162 {strides = array<i32>} : memref<200x2048xf32, #tpu.memory_space<vmem>>, vector<6x2048xf32>,
    %c0_206 = arith.constant 0 : index
    %c516 = arith.constant 516 : index
    %164 = vector.load %arg15[%c0_206, %c516] : memref<6x2688xf32, #tpu.memory_space<vmem>>, vector<6x2048xf32>
    %c168_207 = arith.constant 168 : index
    %c0_208 = arith.constant 0 : index
    %165 = vector.load %arg13[%c168_207, %c0_208] : memref<200x2048xf32, #tpu.memory_space<vmem>>, vector<6x2048xf32>
    tpu.vector_store %arg13[%c168_207, %c0_208], %164 {strides = array<i32>} : memref<200x2048xf32, #tpu.memory_space<vmem>>, vector<6x2048xf32>,
    %c0_209 = arith.constant 0 : index
    %c520 = arith.constant 520 : index
    %166 = vector.load %arg15[%c0_209, %c520] : memref<6x2688xf32, #tpu.memory_space<vmem>>, vector<6x2048xf32>
    %c176_210 = arith.constant 176 : index
    %c0_211 = arith.constant 0 : index
    %167 = vector.load %arg13[%c176_210, %c0_211] : memref<200x2048xf32, #tpu.memory_space<vmem>>, vector<6x2048xf32>
    tpu.vector_store %arg13[%c176_210, %c0_211], %166 {strides = array<i32>} : memref<200x2048xf32, #tpu.memory_space<vmem>>, vector<6x2048xf32>,
    %c0_212 = arith.constant 0 : index
    %c524 = arith.constant 524 : index
    %168 = vector.load %arg15[%c0_212, %c524] : memref<6x2688xf32, #tpu.memory_space<vmem>>, vector<6x2048xf32>
    %c184_213 = arith.constant 184 : index
    %c0_214 = arith.constant 0 : index
    %169 = vector.load %arg13[%c184_213, %c0_214] : memref<200x2048xf32, #tpu.memory_space<vmem>>, vector<6x2048xf32>
    tpu.vector_store %arg13[%c184_213, %c0_214], %168 {strides = array<i32>} : memref<200x2048xf32, #tpu.memory_space<vmem>>, vector<6x2048xf32>,
    %c0_215 = arith.constant 0 : index
    %c528 = arith.constant 528 : index
    %170 = vector.load %arg15[%c0_215, %c528] : memref<6x2688xf32, #tpu.memory_space<vmem>>, vector<6x2048xf32>
    %c192_216 = arith.constant 192 : index
    %c0_217 = arith.constant 0 : index
    %171 = vector.load %arg13[%c192_216, %c0_217] : memref<200x2048xf32, #tpu.memory_space<vmem>>, vector<6x2048xf32>
    tpu.vector_store %arg13[%c192_216, %c0_217], %170 {strides = array<i32>} : memref<200x2048xf32, #tpu.memory_space<vmem>>, vector<6x2048xf32>,
    %c0_218 = arith.constant 0 : index
    %c0_219 = arith.constant 0 : index
    %172 = vector.load %arg4[%c0_218, %c0_219] : memref<16x200xf32, #tpu.memory_space<vmem>>, vector<16x200xf32>
    %c0_220 = arith.constant 0 : index
    %c0_221 = arith.constant 0 : index
    %173 = vector.load %arg13[%c0_220, %c0_221] : memref<200x2048xf32, #tpu.memory_space<vmem>>, vector<200x2048xf32>
    %cst_222 = arith.constant dense<0.000000e+00> : vector<16x2048xf32>
    %174 = tpu.matmul %172, %173, %cst_222 {dimension_numbers = #tpu.dot_dimension_numbers<[1], [0], [0], [1], [0, 0, 1, 1], [], []>} : vector<16x200xf32>, vector<200x2048xf32>, vector<16x2048xf32> -> vector<16x2048xf32>
    %c0_223 = arith.constant 0 : index
    %c0_224 = arith.constant 0 : index
    %175 = vector.load %arg5[%c0_223, %c0_224] : memref<16x1xf32, #tpu.memory_space<vmem>>, vector<16x1xf32>
    %176 = vector.broadcast %175 : vector<16x1xf32> to vector<16x2048xf32>
    %177 = arith.addf %174, %176 : vector<16x2048xf32>
    %cst_225 = arith.constant 0.000000e+00 : f32
    %178 = vector.broadcast %cst_225 : f32 to vector<16x2048xf32>
    %179 = arith.maximumf %177, %178 : vector<16x2048xf32>
    %c0_226 = arith.constant 0 : index
    %c0_227 = arith.constant 0 : index
    %180 = vector.load %arg16[%c0_226, %c0_227] : memref<16x2048xf32, #tpu.memory_space<vmem>>, vector<16x2048xf32>
    tpu.vector_store %arg16[%c0_226, %c0_227], %179 {strides = array<i32>} : memref<16x2048xf32, #tpu.memory_space<vmem>>, vector<16x2048xf32>,
    %c0_228 = arith.constant 0 : index
    %c0_229 = arith.constant 0 : index
    %181 = vector.load %arg16[%c0_228, %c0_229] : memref<16x2048xf32, #tpu.memory_space<vmem>>, vector<16x2xf32>
    %c0_230 = arith.constant 0 : index
    %c4_231 = arith.constant 4 : index
    %182 = vector.load %arg16[%c0_230, %c4_231] : memref<16x2048xf32, #tpu.memory_space<vmem>>, vector<16x2xf32>
    %183 = arith.maximumf %181, %182 : vector<16x2xf32>
    %c0_232 = arith.constant 0 : index
    %c128_233 = arith.constant 128 : index
    %184 = vector.load %arg16[%c0_232, %c128_233] : memref<16x2048xf32, #tpu.memory_space<vmem>>, vector<16x2xf32>
    %c0_234 = arith.constant 0 : index
    %c132_235 = arith.constant 132 : index
    %185 = vector.load %arg16[%c0_234, %c132_235] : memref<16x2048xf32, #tpu.memory_space<vmem>>, vector<16x2xf32>
    %186 = arith.maximumf %184, %185 : vector<16x2xf32>
    %187 = arith.maximumf %183, %186 : vector<16x2xf32>
    %c0_236 = arith.constant 0 : index
    %c0_237 = arith.constant 0 : index
    %188 = vector.load %arg17[%c0_236, %c0_237] : memref<400x2xf32, #tpu.memory_space<vmem>>, vector<16x2xf32>
    tpu.vector_store %arg17[%c0_236, %c0_237], %187 {strides = array<i32>} : memref<400x2xf32, #tpu.memory_space<vmem>>, vector<16x2xf32>,
    %c0_238 = arith.constant 0 : index
    %c8_239 = arith.constant 8 : index
    %189 = vector.load %arg16[%c0_238, %c8_239] : memref<16x2048xf32, #tpu.memory_space<vmem>>, vector<16x2xf32>
    %c0_240 = arith.constant 0 : index
    %c12_241 = arith.constant 12 : index
    %190 = vector.load %arg16[%c0_240, %c12_241] : memref<16x2048xf32, #tpu.memory_space<vmem>>, vector<16x2xf32>
    %191 = arith.maximumf %189, %190 : vector<16x2xf32>
    %c0_242 = arith.constant 0 : index
    %c136_243 = arith.constant 136 : index
    %192 = vector.load %arg16[%c0_242, %c136_243] : memref<16x2048xf32, #tpu.memory_space<vmem>>, vector<16x2xf32>
    %c0_244 = arith.constant 0 : index
    %c140_245 = arith.constant 140 : index
    %193 = vector.load %arg16[%c0_244, %c140_245] : memref<16x2048xf32, #tpu.memory_space<vmem>>, vector<16x2xf32>
    %194 = arith.maximumf %192, %193 : vector<16x2xf32>
    %195 = arith.maximumf %191, %194 : vector<16x2xf32>
    %c16_246 = arith.constant 16 : index
    %c0_247 = arith.constant 0 : index
    %196 = vector.load %arg17[%c16_246, %c0_247] : memref<400x2xf32, #tpu.memory_space<vmem>>, vector<16x2xf32>
    tpu.vector_store %arg17[%c16_246, %c0_247], %195 {strides = array<i32>} : memref<400x2xf32, #tpu.memory_space<vmem>>, vector<16x2xf32>,
    %c0_248 = arith.constant 0 : index
    %c16_249 = arith.constant 16 : index
    %197 = vector.load %arg16[%c0_248, %c16_249] : memref<16x2048xf32, #tpu.memory_space<vmem>>, vector<16x2xf32>
    %c0_250 = arith.constant 0 : index
    %c20 = arith.constant 20 : index
    %198 = vector.load %arg16[%c0_250, %c20] : memref<16x2048xf32, #tpu.memory_space<vmem>>, vector<16x2xf32>
    %199 = arith.maximumf %197, %198 : vector<16x2xf32>
    %c0_251 = arith.constant 0 : index
    %c144_252 = arith.constant 144 : index
    %200 = vector.load %arg16[%c0_251, %c144_252] : memref<16x2048xf32, #tpu.memory_space<vmem>>, vector<16x2xf32>
    %c0_253 = arith.constant 0 : index
    %c148 = arith.constant 148 : index
    %201 = vector.load %arg16[%c0_253, %c148] : memref<16x2048xf32, #tpu.memory_space<vmem>>, vector<16x2xf32>
    %202 = arith.maximumf %200, %201 : vector<16x2xf32>
    %203 = arith.maximumf %199, %202 : vector<16x2xf32>
    %c32_254 = arith.constant 32 : index
    %c0_255 = arith.constant 0 : index
    %204 = vector.load %arg17[%c32_254, %c0_255] : memref<400x2xf32, #tpu.memory_space<vmem>>, vector<16x2xf32>
    tpu.vector_store %arg17[%c32_254, %c0_255], %203 {strides = array<i32>} : memref<400x2xf32, #tpu.memory_space<vmem>>, vector<16x2xf32>,
    %c0_256 = arith.constant 0 : index
    %c24_257 = arith.constant 24 : index
    %205 = vector.load %arg16[%c0_256, %c24_257] : memref<16x2048xf32, #tpu.memory_space<vmem>>, vector<16x2xf32>
    %c0_258 = arith.constant 0 : index
    %c28 = arith.constant 28 : index
    %206 = vector.load %arg16[%c0_258, %c28] : memref<16x2048xf32, #tpu.memory_space<vmem>>, vector<16x2xf32>
    %207 = arith.maximumf %205, %206 : vector<16x2xf32>
    %c0_259 = arith.constant 0 : index
    %c152_260 = arith.constant 152 : index
    %208 = vector.load %arg16[%c0_259, %c152_260] : memref<16x2048xf32, #tpu.memory_space<vmem>>, vector<16x2xf32>
    %c0_261 = arith.constant 0 : index
    %c156 = arith.constant 156 : index
    %209 = vector.load %arg16[%c0_261, %c156] : memref<16x2048xf32, #tpu.memory_space<vmem>>, vector<16x2xf32>
    %210 = arith.maximumf %208, %209 : vector<16x2xf32>
    %211 = arith.maximumf %207, %210 : vector<16x2xf32>
    %c48_262 = arith.constant 48 : index
    %c0_263 = arith.constant 0 : index
    %212 = vector.load %arg17[%c48_262, %c0_263] : memref<400x2xf32, #tpu.memory_space<vmem>>, vector<16x2xf32>
    tpu.vector_store %arg17[%c48_262, %c0_263], %211 {strides = array<i32>} : memref<400x2xf32, #tpu.memory_space<vmem>>, vector<16x2xf32>,
    %c0_264 = arith.constant 0 : index
    %c32_265 = arith.constant 32 : index
    %213 = vector.load %arg16[%c0_264, %c32_265] : memref<16x2048xf32, #tpu.memory_space<vmem>>, vector<16x2xf32>
    %c0_266 = arith.constant 0 : index
    %c36 = arith.constant 36 : index
    %214 = vector.load %arg16[%c0_266, %c36] : memref<16x2048xf32, #tpu.memory_space<vmem>>, vector<16x2xf32>
    %215 = arith.maximumf %213, %214 : vector<16x2xf32>
    %c0_267 = arith.constant 0 : index
    %c160_268 = arith.constant 160 : index
    %216 = vector.load %arg16[%c0_267, %c160_268] : memref<16x2048xf32, #tpu.memory_space<vmem>>, vector<16x2xf32>
    %c0_269 = arith.constant 0 : index
    %c164 = arith.constant 164 : index
    %217 = vector.load %arg16[%c0_269, %c164] : memref<16x2048xf32, #tpu.memory_space<vmem>>, vector<16x2xf32>
    %218 = arith.maximumf %216, %217 : vector<16x2xf32>
    %219 = arith.maximumf %215, %218 : vector<16x2xf32>
    %c64_270 = arith.constant 64 : index
    %c0_271 = arith.constant 0 : index
    %220 = vector.load %arg17[%c64_270, %c0_271] : memref<400x2xf32, #tpu.memory_space<vmem>>, vector<16x2xf32>
    tpu.vector_store %arg17[%c64_270, %c0_271], %219 {strides = array<i32>} : memref<400x2xf32, #tpu.memory_space<vmem>>, vector<16x2xf32>,
    %c0_272 = arith.constant 0 : index
    %c256_273 = arith.constant 256 : index
    %221 = vector.load %arg16[%c0_272, %c256_273] : memref<16x2048xf32, #tpu.memory_space<vmem>>, vector<16x2xf32>
    %c0_274 = arith.constant 0 : index
    %c260_275 = arith.constant 260 : index
    %222 = vector.load %arg16[%c0_274, %c260_275] : memref<16x2048xf32, #tpu.memory_space<vmem>>, vector<16x2xf32>
    %223 = arith.maximumf %221, %222 : vector<16x2xf32>
    %c0_276 = arith.constant 0 : index
    %c384_277 = arith.constant 384 : index
    %224 = vector.load %arg16[%c0_276, %c384_277] : memref<16x2048xf32, #tpu.memory_space<vmem>>, vector<16x2xf32>
    %c0_278 = arith.constant 0 : index
    %c388_279 = arith.constant 388 : index
    %225 = vector.load %arg16[%c0_278, %c388_279] : memref<16x2048xf32, #tpu.memory_space<vmem>>, vector<16x2xf32>
    %226 = arith.maximumf %224, %225 : vector<16x2xf32>
    %227 = arith.maximumf %223, %226 : vector<16x2xf32>
    %c80_280 = arith.constant 80 : index
    %c0_281 = arith.constant 0 : index
    %228 = vector.load %arg17[%c80_280, %c0_281] : memref<400x2xf32, #tpu.memory_space<vmem>>, vector<16x2xf32>
    tpu.vector_store %arg17[%c80_280, %c0_281], %227 {strides = array<i32>} : memref<400x2xf32, #tpu.memory_space<vmem>>, vector<16x2xf32>,
    %c0_282 = arith.constant 0 : index
    %c264_283 = arith.constant 264 : index
    %229 = vector.load %arg16[%c0_282, %c264_283] : memref<16x2048xf32, #tpu.memory_space<vmem>>, vector<16x2xf32>
    %c0_284 = arith.constant 0 : index
    %c268_285 = arith.constant 268 : index
    %230 = vector.load %arg16[%c0_284, %c268_285] : memref<16x2048xf32, #tpu.memory_space<vmem>>, vector<16x2xf32>
    %231 = arith.maximumf %229, %230 : vector<16x2xf32>
    %c0_286 = arith.constant 0 : index
    %c392_287 = arith.constant 392 : index
    %232 = vector.load %arg16[%c0_286, %c392_287] : memref<16x2048xf32, #tpu.memory_space<vmem>>, vector<16x2xf32>
    %c0_288 = arith.constant 0 : index
    %c396_289 = arith.constant 396 : index
    %233 = vector.load %arg16[%c0_288, %c396_289] : memref<16x2048xf32, #tpu.memory_space<vmem>>, vector<16x2xf32>
    %234 = arith.maximumf %232, %233 : vector<16x2xf32>
    %235 = arith.maximumf %231, %234 : vector<16x2xf32>
    %c96_290 = arith.constant 96 : index
    %c0_291 = arith.constant 0 : index
    %236 = vector.load %arg17[%c96_290, %c0_291] : memref<400x2xf32, #tpu.memory_space<vmem>>, vector<16x2xf32>
    tpu.vector_store %arg17[%c96_290, %c0_291], %235 {strides = array<i32>} : memref<400x2xf32, #tpu.memory_space<vmem>>, vector<16x2xf32>,
    %c0_292 = arith.constant 0 : index
    %c272_293 = arith.constant 272 : index
    %237 = vector.load %arg16[%c0_292, %c272_293] : memref<16x2048xf32, #tpu.memory_space<vmem>>, vector<16x2xf32>
    %c0_294 = arith.constant 0 : index
    %c276 = arith.constant 276 : index
    %238 = vector.load %arg16[%c0_294, %c276] : memref<16x2048xf32, #tpu.memory_space<vmem>>, vector<16x2xf32>
    %239 = arith.maximumf %237, %238 : vector<16x2xf32>
    %c0_295 = arith.constant 0 : index
    %c400_296 = arith.constant 400 : index
    %240 = vector.load %arg16[%c0_295, %c400_296] : memref<16x2048xf32, #tpu.memory_space<vmem>>, vector<16x2xf32>
    %c0_297 = arith.constant 0 : index
    %c404 = arith.constant 404 : index
    %241 = vector.load %arg16[%c0_297, %c404] : memref<16x2048xf32, #tpu.memory_space<vmem>>, vector<16x2xf32>
    %242 = arith.maximumf %240, %241 : vector<16x2xf32>
    %243 = arith.maximumf %239, %242 : vector<16x2xf32>
    %c112_298 = arith.constant 112 : index
    %c0_299 = arith.constant 0 : index
    %244 = vector.load %arg17[%c112_298, %c0_299] : memref<400x2xf32, #tpu.memory_space<vmem>>, vector<16x2xf32>
    tpu.vector_store %arg17[%c112_298, %c0_299], %243 {strides = array<i32>} : memref<400x2xf32, #tpu.memory_space<vmem>>, vector<16x2xf32>,
    %c0_300 = arith.constant 0 : index
    %c280 = arith.constant 280 : index
    %245 = vector.load %arg16[%c0_300, %c280] : memref<16x2048xf32, #tpu.memory_space<vmem>>, vector<16x2xf32>
    %c0_301 = arith.constant 0 : index
    %c284 = arith.constant 284 : index
    %246 = vector.load %arg16[%c0_301, %c284] : memref<16x2048xf32, #tpu.memory_space<vmem>>, vector<16x2xf32>
    %247 = arith.maximumf %245, %246 : vector<16x2xf32>
    %c0_302 = arith.constant 0 : index
    %c408 = arith.constant 408 : index
    %248 = vector.load %arg16[%c0_302, %c408] : memref<16x2048xf32, #tpu.memory_space<vmem>>, vector<16x2xf32>
    %c0_303 = arith.constant 0 : index
    %c412 = arith.constant 412 : index
    %249 = vector.load %arg16[%c0_303, %c412] : memref<16x2048xf32, #tpu.memory_space<vmem>>, vector<16x2xf32>
    %250 = arith.maximumf %248, %249 : vector<16x2xf32>
    %251 = arith.maximumf %247, %250 : vector<16x2xf32>
    %c128_304 = arith.constant 128 : index
    %c0_305 = arith.constant 0 : index
    %252 = vector.load %arg17[%c128_304, %c0_305] : memref<400x2xf32, #tpu.memory_space<vmem>>, vector<16x2xf32>
    tpu.vector_store %arg17[%c128_304, %c0_305], %251 {strides = array<i32>} : memref<400x2xf32, #tpu.memory_space<vmem>>, vector<16x2xf32>,
    %c0_306 = arith.constant 0 : index
    %c288 = arith.constant 288 : index
    %253 = vector.load %arg16[%c0_306, %c288] : memref<16x2048xf32, #tpu.memory_space<vmem>>, vector<16x2xf32>
    %c0_307 = arith.constant 0 : index
    %c292 = arith.constant 292 : index
    %254 = vector.load %arg16[%c0_307, %c292] : memref<16x2048xf32, #tpu.memory_space<vmem>>, vector<16x2xf32>
    %255 = arith.maximumf %253, %254 : vector<16x2xf32>
    %c0_308 = arith.constant 0 : index
    %c416 = arith.constant 416 : index
    %256 = vector.load %arg16[%c0_308, %c416] : memref<16x2048xf32, #tpu.memory_space<vmem>>, vector<16x2xf32>
    %c0_309 = arith.constant 0 : index
    %c420 = arith.constant 420 : index
    %257 = vector.load %arg16[%c0_309, %c420] : memref<16x2048xf32, #tpu.memory_space<vmem>>, vector<16x2xf32>
    %258 = arith.maximumf %256, %257 : vector<16x2xf32>
    %259 = arith.maximumf %255, %258 : vector<16x2xf32>
    %c144_310 = arith.constant 144 : index
    %c0_311 = arith.constant 0 : index
    %260 = vector.load %arg17[%c144_310, %c0_311] : memref<400x2xf32, #tpu.memory_space<vmem>>, vector<16x2xf32>
    tpu.vector_store %arg17[%c144_310, %c0_311], %259 {strides = array<i32>} : memref<400x2xf32, #tpu.memory_space<vmem>>, vector<16x2xf32>,
    %c0_312 = arith.constant 0 : index
    %c512_313 = arith.constant 512 : index
    %261 = vector.load %arg16[%c0_312, %c512_313] : memref<16x2048xf32, #tpu.memory_space<vmem>>, vector<16x2xf32>
    %c0_314 = arith.constant 0 : index
    %c516_315 = arith.constant 516 : index
    %262 = vector.load %arg16[%c0_314, %c516_315] : memref<16x2048xf32, #tpu.memory_space<vmem>>, vector<16x2xf32>
    %263 = arith.maximumf %261, %262 : vector<16x2xf32>
    %c0_316 = arith.constant 0 : index
    %c640 = arith.constant 640 : index
    %264 = vector.load %arg16[%c0_316, %c640] : memref<16x2048xf32, #tpu.memory_space<vmem>>, vector<16x2xf32>
    %c0_317 = arith.constant 0 : index
    %c644 = arith.constant 644 : index
    %265 = vector.load %arg16[%c0_317, %c644] : memref<16x2048xf32, #tpu.memory_space<vmem>>, vector<16x2xf32>
    %266 = arith.maximumf %264, %265 : vector<16x2xf32>
    %267 = arith.maximumf %263, %266 : vector<16x2xf32>
    %c160_318 = arith.constant 160 : index
    %c0_319 = arith.constant 0 : index
    %268 = vector.load %arg17[%c160_318, %c0_319] : memref<400x2xf32, #tpu.memory_space<vmem>>, vector<16x2xf32>
    tpu.vector_store %arg17[%c160_318, %c0_319], %267 {strides = array<i32>} : memref<400x2xf32, #tpu.memory_space<vmem>>, vector<16x2xf32>,
    %c0_320 = arith.constant 0 : index
    %c520_321 = arith.constant 520 : index
    %269 = vector.load %arg16[%c0_320, %c520_321] : memref<16x2048xf32, #tpu.memory_space<vmem>>, vector<16x2xf32>
    %c0_322 = arith.constant 0 : index
    %c524_323 = arith.constant 524 : index
    %270 = vector.load %arg16[%c0_322, %c524_323] : memref<16x2048xf32, #tpu.memory_space<vmem>>, vector<16x2xf32>
    %271 = arith.maximumf %269, %270 : vector<16x2xf32>
    %c0_324 = arith.constant 0 : index
    %c648 = arith.constant 648 : index
    %272 = vector.load %arg16[%c0_324, %c648] : memref<16x2048xf32, #tpu.memory_space<vmem>>, vector<16x2xf32>
    %c0_325 = arith.constant 0 : index
    %c652 = arith.constant 652 : index
    %273 = vector.load %arg16[%c0_325, %c652] : memref<16x2048xf32, #tpu.memory_space<vmem>>, vector<16x2xf32>
    %274 = arith.maximumf %272, %273 : vector<16x2xf32>
    %275 = arith.maximumf %271, %274 : vector<16x2xf32>
    %c176_326 = arith.constant 176 : index
    %c0_327 = arith.constant 0 : index
    %276 = vector.load %arg17[%c176_326, %c0_327] : memref<400x2xf32, #tpu.memory_space<vmem>>, vector<16x2xf32>
    tpu.vector_store %arg17[%c176_326, %c0_327], %275 {strides = array<i32>} : memref<400x2xf32, #tpu.memory_space<vmem>>, vector<16x2xf32>,
    %c0_328 = arith.constant 0 : index
    %c528_329 = arith.constant 528 : index
    %277 = vector.load %arg16[%c0_328, %c528_329] : memref<16x2048xf32, #tpu.memory_space<vmem>>, vector<16x2xf32>
    %c0_330 = arith.constant 0 : index
    %c532 = arith.constant 532 : index
    %278 = vector.load %arg16[%c0_330, %c532] : memref<16x2048xf32, #tpu.memory_space<vmem>>, vector<16x2xf32>
    %279 = arith.maximumf %277, %278 : vector<16x2xf32>
    %c0_331 = arith.constant 0 : index
    %c656 = arith.constant 656 : index
    %280 = vector.load %arg16[%c0_331, %c656] : memref<16x2048xf32, #tpu.memory_space<vmem>>, vector<16x2xf32>
    %c0_332 = arith.constant 0 : index
    %c660 = arith.constant 660 : index
    %281 = vector.load %arg16[%c0_332, %c660] : memref<16x2048xf32, #tpu.memory_space<vmem>>, vector<16x2xf32>
    %282 = arith.maximumf %280, %281 : vector<16x2xf32>
    %283 = arith.maximumf %279, %282 : vector<16x2xf32>
    %c192_333 = arith.constant 192 : index
    %c0_334 = arith.constant 0 : index
    %284 = vector.load %arg17[%c192_333, %c0_334] : memref<400x2xf32, #tpu.memory_space<vmem>>, vector<16x2xf32>
    tpu.vector_store %arg17[%c192_333, %c0_334], %283 {strides = array<i32>} : memref<400x2xf32, #tpu.memory_space<vmem>>, vector<16x2xf32>,
    %c0_335 = arith.constant 0 : index
    %c536 = arith.constant 536 : index
    %285 = vector.load %arg16[%c0_335, %c536] : memref<16x2048xf32, #tpu.memory_space<vmem>>, vector<16x2xf32>
    %c0_336 = arith.constant 0 : index
    %c540 = arith.constant 540 : index
    %286 = vector.load %arg16[%c0_336, %c540] : memref<16x2048xf32, #tpu.memory_space<vmem>>, vector<16x2xf32>
    %287 = arith.maximumf %285, %286 : vector<16x2xf32>
    %c0_337 = arith.constant 0 : index
    %c664 = arith.constant 664 : index
    %288 = vector.load %arg16[%c0_337, %c664] : memref<16x2048xf32, #tpu.memory_space<vmem>>, vector<16x2xf32>
    %c0_338 = arith.constant 0 : index
    %c668 = arith.constant 668 : index
    %289 = vector.load %arg16[%c0_338, %c668] : memref<16x2048xf32, #tpu.memory_space<vmem>>, vector<16x2xf32>
    %290 = arith.maximumf %288, %289 : vector<16x2xf32>
    %291 = arith.maximumf %287, %290 : vector<16x2xf32>
    %c208 = arith.constant 208 : index
    %c0_339 = arith.constant 0 : index
    %292 = vector.load %arg17[%c208, %c0_339] : memref<400x2xf32, #tpu.memory_space<vmem>>, vector<16x2xf32>
    tpu.vector_store %arg17[%c208, %c0_339], %291 {strides = array<i32>} : memref<400x2xf32, #tpu.memory_space<vmem>>, vector<16x2xf32>,
    %c0_340 = arith.constant 0 : index
    %c544 = arith.constant 544 : index
    %293 = vector.load %arg16[%c0_340, %c544] : memref<16x2048xf32, #tpu.memory_space<vmem>>, vector<16x2xf32>
    %c0_341 = arith.constant 0 : index
    %c548 = arith.constant 548 : index
    %294 = vector.load %arg16[%c0_341, %c548] : memref<16x2048xf32, #tpu.memory_space<vmem>>, vector<16x2xf32>
    %295 = arith.maximumf %293, %294 : vector<16x2xf32>
    %c0_342 = arith.constant 0 : index
    %c672 = arith.constant 672 : index
    %296 = vector.load %arg16[%c0_342, %c672] : memref<16x2048xf32, #tpu.memory_space<vmem>>, vector<16x2xf32>
    %c0_343 = arith.constant 0 : index
    %c676 = arith.constant 676 : index
    %297 = vector.load %arg16[%c0_343, %c676] : memref<16x2048xf32, #tpu.memory_space<vmem>>, vector<16x2xf32>
    %298 = arith.maximumf %296, %297 : vector<16x2xf32>
    %299 = arith.maximumf %295, %298 : vector<16x2xf32>
    %c224 = arith.constant 224 : index
    %c0_344 = arith.constant 0 : index
    %300 = vector.load %arg17[%c224, %c0_344] : memref<400x2xf32, #tpu.memory_space<vmem>>, vector<16x2xf32>
    tpu.vector_store %arg17[%c224, %c0_344], %299 {strides = array<i32>} : memref<400x2xf32, #tpu.memory_space<vmem>>, vector<16x2xf32>,
    %c0_345 = arith.constant 0 : index
    %c768 = arith.constant 768 : index
    %301 = vector.load %arg16[%c0_345, %c768] : memref<16x2048xf32, #tpu.memory_space<vmem>>, vector<16x2xf32>
    %c0_346 = arith.constant 0 : index
    %c772 = arith.constant 772 : index
    %302 = vector.load %arg16[%c0_346, %c772] : memref<16x2048xf32, #tpu.memory_space<vmem>>, vector<16x2xf32>
    %303 = arith.maximumf %301, %302 : vector<16x2xf32>
    %c0_347 = arith.constant 0 : index
    %c896 = arith.constant 896 : index
    %304 = vector.load %arg16[%c0_347, %c896] : memref<16x2048xf32, #tpu.memory_space<vmem>>, vector<16x2xf32>
    %c0_348 = arith.constant 0 : index
    %c900 = arith.constant 900 : index
    %305 = vector.load %arg16[%c0_348, %c900] : memref<16x2048xf32, #tpu.memory_space<vmem>>, vector<16x2xf32>
    %306 = arith.maximumf %304, %305 : vector<16x2xf32>
    %307 = arith.maximumf %303, %306 : vector<16x2xf32>
    %c240 = arith.constant 240 : index
    %c0_349 = arith.constant 0 : index
    %308 = vector.load %arg17[%c240, %c0_349] : memref<400x2xf32, #tpu.memory_space<vmem>>, vector<16x2xf32>
    tpu.vector_store %arg17[%c240, %c0_349], %307 {strides = array<i32>} : memref<400x2xf32, #tpu.memory_space<vmem>>, vector<16x2xf32>,
    %c0_350 = arith.constant 0 : index
    %c776 = arith.constant 776 : index
    %309 = vector.load %arg16[%c0_350, %c776] : memref<16x2048xf32, #tpu.memory_space<vmem>>, vector<16x2xf32>
    %c0_351 = arith.constant 0 : index
    %c780 = arith.constant 780 : index
    %310 = vector.load %arg16[%c0_351, %c780] : memref<16x2048xf32, #tpu.memory_space<vmem>>, vector<16x2xf32>
    %311 = arith.maximumf %309, %310 : vector<16x2xf32>
    %c0_352 = arith.constant 0 : index
    %c904 = arith.constant 904 : index
    %312 = vector.load %arg16[%c0_352, %c904] : memref<16x2048xf32, #tpu.memory_space<vmem>>, vector<16x2xf32>
    %c0_353 = arith.constant 0 : index
    %c908 = arith.constant 908 : index
    %313 = vector.load %arg16[%c0_353, %c908] : memref<16x2048xf32, #tpu.memory_space<vmem>>, vector<16x2xf32>
    %314 = arith.maximumf %312, %313 : vector<16x2xf32>
    %315 = arith.maximumf %311, %314 : vector<16x2xf32>
    %c256_354 = arith.constant 256 : index
    %c0_355 = arith.constant 0 : index
    %316 = vector.load %arg17[%c256_354, %c0_355] : memref<400x2xf32, #tpu.memory_space<vmem>>, vector<16x2xf32>
    tpu.vector_store %arg17[%c256_354, %c0_355], %315 {strides = array<i32>} : memref<400x2xf32, #tpu.memory_space<vmem>>, vector<16x2xf32>,
    %c0_356 = arith.constant 0 : index
    %c784 = arith.constant 784 : index
    %317 = vector.load %arg16[%c0_356, %c784] : memref<16x2048xf32, #tpu.memory_space<vmem>>, vector<16x2xf32>
    %c0_357 = arith.constant 0 : index
    %c788 = arith.constant 788 : index
    %318 = vector.load %arg16[%c0_357, %c788] : memref<16x2048xf32, #tpu.memory_space<vmem>>, vector<16x2xf32>
    %319 = arith.maximumf %317, %318 : vector<16x2xf32>
    %c0_358 = arith.constant 0 : index
    %c912 = arith.constant 912 : index
    %320 = vector.load %arg16[%c0_358, %c912] : memref<16x2048xf32, #tpu.memory_space<vmem>>, vector<16x2xf32>
    %c0_359 = arith.constant 0 : index
    %c916 = arith.constant 916 : index
    %321 = vector.load %arg16[%c0_359, %c916] : memref<16x2048xf32, #tpu.memory_space<vmem>>, vector<16x2xf32>
    %322 = arith.maximumf %320, %321 : vector<16x2xf32>
    %323 = arith.maximumf %319, %322 : vector<16x2xf32>
    %c272_360 = arith.constant 272 : index
    %c0_361 = arith.constant 0 : index
    %324 = vector.load %arg17[%c272_360, %c0_361] : memref<400x2xf32, #tpu.memory_space<vmem>>, vector<16x2xf32>
    tpu.vector_store %arg17[%c272_360, %c0_361], %323 {strides = array<i32>} : memref<400x2xf32, #tpu.memory_space<vmem>>, vector<16x2xf32>,
    %c0_362 = arith.constant 0 : index
    %c792 = arith.constant 792 : index
    %325 = vector.load %arg16[%c0_362, %c792] : memref<16x2048xf32, #tpu.memory_space<vmem>>, vector<16x2xf32>
    %c0_363 = arith.constant 0 : index
    %c796 = arith.constant 796 : index
    %326 = vector.load %arg16[%c0_363, %c796] : memref<16x2048xf32, #tpu.memory_space<vmem>>, vector<16x2xf32>
    %327 = arith.maximumf %325, %326 : vector<16x2xf32>
    %c0_364 = arith.constant 0 : index
    %c920 = arith.constant 920 : index
    %328 = vector.load %arg16[%c0_364, %c920] : memref<16x2048xf32, #tpu.memory_space<vmem>>, vector<16x2xf32>
    %c0_365 = arith.constant 0 : index
    %c924 = arith.constant 924 : index
    %329 = vector.load %arg16[%c0_365, %c924] : memref<16x2048xf32, #tpu.memory_space<vmem>>, vector<16x2xf32>
    %330 = arith.maximumf %328, %329 : vector<16x2xf32>
    %331 = arith.maximumf %327, %330 : vector<16x2xf32>
    %c288_366 = arith.constant 288 : index
    %c0_367 = arith.constant 0 : index
    %332 = vector.load %arg17[%c288_366, %c0_367] : memref<400x2xf32, #tpu.memory_space<vmem>>, vector<16x2xf32>
    tpu.vector_store %arg17[%c288_366, %c0_367], %331 {strides = array<i32>} : memref<400x2xf32, #tpu.memory_space<vmem>>, vector<16x2xf32>,
    %c0_368 = arith.constant 0 : index
    %c800 = arith.constant 800 : index
    %333 = vector.load %arg16[%c0_368, %c800] : memref<16x2048xf32, #tpu.memory_space<vmem>>, vector<16x2xf32>
    %c0_369 = arith.constant 0 : index
    %c804 = arith.constant 804 : index
    %334 = vector.load %arg16[%c0_369, %c804] : memref<16x2048xf32, #tpu.memory_space<vmem>>, vector<16x2xf32>
    %335 = arith.maximumf %333, %334 : vector<16x2xf32>
    %c0_370 = arith.constant 0 : index
    %c928 = arith.constant 928 : index
    %336 = vector.load %arg16[%c0_370, %c928] : memref<16x2048xf32, #tpu.memory_space<vmem>>, vector<16x2xf32>
    %c0_371 = arith.constant 0 : index
    %c932 = arith.constant 932 : index
    %337 = vector.load %arg16[%c0_371, %c932] : memref<16x2048xf32, #tpu.memory_space<vmem>>, vector<16x2xf32>
    %338 = arith.maximumf %336, %337 : vector<16x2xf32>
    %339 = arith.maximumf %335, %338 : vector<16x2xf32>
    %c304 = arith.constant 304 : index
    %c0_372 = arith.constant 0 : index
    %340 = vector.load %arg17[%c304, %c0_372] : memref<400x2xf32, #tpu.memory_space<vmem>>, vector<16x2xf32>
    tpu.vector_store %arg17[%c304, %c0_372], %339 {strides = array<i32>} : memref<400x2xf32, #tpu.memory_space<vmem>>, vector<16x2xf32>,
    %c0_373 = arith.constant 0 : index
    %c1024 = arith.constant 1024 : index
    %341 = vector.load %arg16[%c0_373, %c1024] : memref<16x2048xf32, #tpu.memory_space<vmem>>, vector<16x2xf32>
    %c0_374 = arith.constant 0 : index
    %c1028 = arith.constant 1028 : index
    %342 = vector.load %arg16[%c0_374, %c1028] : memref<16x2048xf32, #tpu.memory_space<vmem>>, vector<16x2xf32>
    %343 = arith.maximumf %341, %342 : vector<16x2xf32>
    %c0_375 = arith.constant 0 : index
    %c1152 = arith.constant 1152 : index
    %344 = vector.load %arg16[%c0_375, %c1152] : memref<16x2048xf32, #tpu.memory_space<vmem>>, vector<16x2xf32>
    %c0_376 = arith.constant 0 : index
    %c1156 = arith.constant 1156 : index
    %345 = vector.load %arg16[%c0_376, %c1156] : memref<16x2048xf32, #tpu.memory_space<vmem>>, vector<16x2xf32>
    %346 = arith.maximumf %344, %345 : vector<16x2xf32>
    %347 = arith.maximumf %343, %346 : vector<16x2xf32>
    %c320 = arith.constant 320 : index
    %c0_377 = arith.constant 0 : index
    %348 = vector.load %arg17[%c320, %c0_377] : memref<400x2xf32, #tpu.memory_space<vmem>>, vector<16x2xf32>
    tpu.vector_store %arg17[%c320, %c0_377], %347 {strides = array<i32>} : memref<400x2xf32, #tpu.memory_space<vmem>>, vector<16x2xf32>,
    %c0_378 = arith.constant 0 : index
    %c1032 = arith.constant 1032 : index
    %349 = vector.load %arg16[%c0_378, %c1032] : memref<16x2048xf32, #tpu.memory_space<vmem>>, vector<16x2xf32>
    %c0_379 = arith.constant 0 : index
    %c1036 = arith.constant 1036 : index
    %350 = vector.load %arg16[%c0_379, %c1036] : memref<16x2048xf32, #tpu.memory_space<vmem>>, vector<16x2xf32>
    %351 = arith.maximumf %349, %350 : vector<16x2xf32>
    %c0_380 = arith.constant 0 : index
    %c1160 = arith.constant 1160 : index
    %352 = vector.load %arg16[%c0_380, %c1160] : memref<16x2048xf32, #tpu.memory_space<vmem>>, vector<16x2xf32>
    %c0_381 = arith.constant 0 : index
    %c1164 = arith.constant 1164 : index
    %353 = vector.load %arg16[%c0_381, %c1164] : memref<16x2048xf32, #tpu.memory_space<vmem>>, vector<16x2xf32>
    %354 = arith.maximumf %352, %353 : vector<16x2xf32>
    %355 = arith.maximumf %351, %354 : vector<16x2xf32>
    %c336 = arith.constant 336 : index
    %c0_382 = arith.constant 0 : index
    %356 = vector.load %arg17[%c336, %c0_382] : memref<400x2xf32, #tpu.memory_space<vmem>>, vector<16x2xf32>
    tpu.vector_store %arg17[%c336, %c0_382], %355 {strides = array<i32>} : memref<400x2xf32, #tpu.memory_space<vmem>>, vector<16x2xf32>,
    %c0_383 = arith.constant 0 : index
    %c1040 = arith.constant 1040 : index
    %357 = vector.load %arg16[%c0_383, %c1040] : memref<16x2048xf32, #tpu.memory_space<vmem>>, vector<16x2xf32>
    %c0_384 = arith.constant 0 : index
    %c1044 = arith.constant 1044 : index
    %358 = vector.load %arg16[%c0_384, %c1044] : memref<16x2048xf32, #tpu.memory_space<vmem>>, vector<16x2xf32>
    %359 = arith.maximumf %357, %358 : vector<16x2xf32>
    %c0_385 = arith.constant 0 : index
    %c1168 = arith.constant 1168 : index
    %360 = vector.load %arg16[%c0_385, %c1168] : memref<16x2048xf32, #tpu.memory_space<vmem>>, vector<16x2xf32>
    %c0_386 = arith.constant 0 : index
    %c1172 = arith.constant 1172 : index
    %361 = vector.load %arg16[%c0_386, %c1172] : memref<16x2048xf32, #tpu.memory_space<vmem>>, vector<16x2xf32>
    %362 = arith.maximumf %360, %361 : vector<16x2xf32>
    %363 = arith.maximumf %359, %362 : vector<16x2xf32>
    %c352 = arith.constant 352 : index
    %c0_387 = arith.constant 0 : index
    %364 = vector.load %arg17[%c352, %c0_387] : memref<400x2xf32, #tpu.memory_space<vmem>>, vector<16x2xf32>
    tpu.vector_store %arg17[%c352, %c0_387], %363 {strides = array<i32>} : memref<400x2xf32, #tpu.memory_space<vmem>>, vector<16x2xf32>,
    %c0_388 = arith.constant 0 : index
    %c1048 = arith.constant 1048 : index
    %365 = vector.load %arg16[%c0_388, %c1048] : memref<16x2048xf32, #tpu.memory_space<vmem>>, vector<16x2xf32>
    %c0_389 = arith.constant 0 : index
    %c1052 = arith.constant 1052 : index
    %366 = vector.load %arg16[%c0_389, %c1052] : memref<16x2048xf32, #tpu.memory_space<vmem>>, vector<16x2xf32>
    %367 = arith.maximumf %365, %366 : vector<16x2xf32>
    %c0_390 = arith.constant 0 : index
    %c1176 = arith.constant 1176 : index
    %368 = vector.load %arg16[%c0_390, %c1176] : memref<16x2048xf32, #tpu.memory_space<vmem>>, vector<16x2xf32>
    %c0_391 = arith.constant 0 : index
    %c1180 = arith.constant 1180 : index
    %369 = vector.load %arg16[%c0_391, %c1180] : memref<16x2048xf32, #tpu.memory_space<vmem>>, vector<16x2xf32>
    %370 = arith.maximumf %368, %369 : vector<16x2xf32>
    %371 = arith.maximumf %367, %370 : vector<16x2xf32>
    %c368 = arith.constant 368 : index
    %c0_392 = arith.constant 0 : index
    %372 = vector.load %arg17[%c368, %c0_392] : memref<400x2xf32, #tpu.memory_space<vmem>>, vector<16x2xf32>
    tpu.vector_store %arg17[%c368, %c0_392], %371 {strides = array<i32>} : memref<400x2xf32, #tpu.memory_space<vmem>>, vector<16x2xf32>,
    %c0_393 = arith.constant 0 : index
    %c1056 = arith.constant 1056 : index
    %373 = vector.load %arg16[%c0_393, %c1056] : memref<16x2048xf32, #tpu.memory_space<vmem>>, vector<16x2xf32>
    %c0_394 = arith.constant 0 : index
    %c1060 = arith.constant 1060 : index
    %374 = vector.load %arg16[%c0_394, %c1060] : memref<16x2048xf32, #tpu.memory_space<vmem>>, vector<16x2xf32>
    %375 = arith.maximumf %373, %374 : vector<16x2xf32>
    %c0_395 = arith.constant 0 : index
    %c1184 = arith.constant 1184 : index
    %376 = vector.load %arg16[%c0_395, %c1184] : memref<16x2048xf32, #tpu.memory_space<vmem>>, vector<16x2xf32>
    %c0_396 = arith.constant 0 : index
    %c1188 = arith.constant 1188 : index
    %377 = vector.load %arg16[%c0_396, %c1188] : memref<16x2048xf32, #tpu.memory_space<vmem>>, vector<16x2xf32>
    %378 = arith.maximumf %376, %377 : vector<16x2xf32>
    %379 = arith.maximumf %375, %378 : vector<16x2xf32>
    %c384_397 = arith.constant 384 : index
    %c0_398 = arith.constant 0 : index
    %380 = vector.load %arg17[%c384_397, %c0_398] : memref<400x2xf32, #tpu.memory_space<vmem>>, vector<16x2xf32>
    tpu.vector_store %arg17[%c384_397, %c0_398], %379 {strides = array<i32>} : memref<400x2xf32, #tpu.memory_space<vmem>>, vector<16x2xf32>,
    %c0_399 = arith.constant 0 : index
    %c0_400 = arith.constant 0 : index
    %381 = vector.load %arg6[%c0_399, %c0_400] : memref<120x400xf32, #tpu.memory_space<vmem>>, vector<120x400xf32>
    %c0_401 = arith.constant 0 : index
    %c0_402 = arith.constant 0 : index
    %382 = vector.load %arg17[%c0_401, %c0_402] : memref<400x2xf32, #tpu.memory_space<vmem>>, vector<400x2xf32>
    %cst_403 = arith.constant dense<0.000000e+00> : vector<120x2xf32>
    %383 = tpu.matmul %381, %382, %cst_403 {dimension_numbers = #tpu.dot_dimension_numbers<[1], [0], [0], [1], [0, 0, 1, 1], [], []>} : vector<120x400xf32>, vector<400x2xf32>, vector<120x2xf32> -> vector<120x2xf32>
    %c0_404 = arith.constant 0 : index
    %c0_405 = arith.constant 0 : index
    %384 = vector.load %arg7[%c0_404, %c0_405] : memref<120x1xf32, #tpu.memory_space<vmem>>, vector<120x1xf32>
    %385 = vector.broadcast %384 : vector<120x1xf32> to vector<120x2xf32>
    %386 = arith.addf %383, %385 : vector<120x2xf32>
    %cst_406 = arith.constant 0.000000e+00 : f32
    %387 = vector.broadcast %cst_406 : f32 to vector<120x2xf32>
    %388 = arith.maximumf %386, %387 : vector<120x2xf32>
    %c0_407 = arith.constant 0 : index
    %c0_408 = arith.constant 0 : index
    %389 = vector.load %arg8[%c0_407, %c0_408] : memref<84x120xf32, #tpu.memory_space<vmem>>, vector<84x120xf32>
    %cst_409 = arith.constant dense<0.000000e+00> : vector<84x2xf32>
    %390 = tpu.matmul %389, %388, %cst_409 {dimension_numbers = #tpu.dot_dimension_numbers<[1], [0], [0], [1], [0, 0, 1, 1], [], []>} : vector<84x120xf32>, vector<120x2xf32>, vector<84x2xf32> -> vector<84x2xf32>
    %c0_410 = arith.constant 0 : index
    %c0_411 = arith.constant 0 : index
    %391 = vector.load %arg9[%c0_410, %c0_411] : memref<84x1xf32, #tpu.memory_space<vmem>>, vector<84x1xf32>
    %392 = vector.broadcast %391 : vector<84x1xf32> to vector<84x2xf32>
    %393 = arith.addf %390, %392 : vector<84x2xf32>
    %cst_412 = arith.constant 0.000000e+00 : f32
    %394 = vector.broadcast %cst_412 : f32 to vector<84x2xf32>
    %395 = arith.maximumf %393, %394 : vector<84x2xf32>
    %c0_413 = arith.constant 0 : index
    %c0_414 = arith.constant 0 : index
    %396 = vector.load %arg10[%c0_413, %c0_414] : memref<10x84xf32, #tpu.memory_space<vmem>>, vector<10x84xf32>
    %cst_415 = arith.constant dense<0.000000e+00> : vector<10x2xf32>
    %397 = tpu.matmul %396, %395, %cst_415 {dimension_numbers = #tpu.dot_dimension_numbers<[1], [0], [0], [1], [0, 0, 1, 1], [], []>} : vector<10x84xf32>, vector<84x2xf32>, vector<10x2xf32> -> vector<10x2xf32>
    %c0_416 = arith.constant 0 : index
    %c0_417 = arith.constant 0 : index
    %398 = vector.load %arg11[%c0_416, %c0_417] : memref<10x1xf32, #tpu.memory_space<vmem>>, vector<10x1xf32>
    %399 = vector.broadcast %398 : vector<10x1xf32> to vector<10x2xf32>
    %400 = arith.addf %397, %399 : vector<10x2xf32>
    %c0_418 = arith.constant 0 : index
    %c0_419 = arith.constant 0 : index
    %c0_420 = arith.constant 0 : index
    %401 = vector.load %arg12[%c0_418, %c0_419, %c0_420] : memref<1x10x2xf32, #tpu.memory_space<vmem>>, vector<1x10x2xf32>
    %402 = vector.shape_cast %401 : vector<1x10x2xf32> to vector<10x2xf32>
    %403 = vector.shape_cast %400 : vector<10x2xf32> to vector<1x10x2xf32>
    tpu.vector_store %arg12[%c0_418, %c0_419, %c0_420], %403 {strides = array<i32>} : memref<1x10x2xf32, #tpu.memory_space<vmem>>, vector<1x10x2xf32>,
    return
  }
  func.func @transform_0(%arg0: i32) -> (i32, i32, i32) {
    %c0_i32 = arith.constant 0 : i32
    %c0_i32_0 = arith.constant 0 : i32
    %c0_i32_1 = arith.constant 0 : i32
    return %arg0, %c0_i32, %c0_i32_0 : i32, i32, i32
  }
  func.func @transform_1(%arg0: i32) -> (i32, i32) {
    %c0_i32 = arith.constant 0 : i32
    %c0_i32_0 = arith.constant 0 : i32
    %c0_i32_1 = arith.constant 0 : i32
    return %c0_i32, %c0_i32_0 : i32, i32
  }
  func.func @transform_2(%arg0: i32) -> (i32, i32) {
    %c0_i32 = arith.constant 0 : i32
    %c0_i32_0 = arith.constant 0 : i32
    %c0_i32_1 = arith.constant 0 : i32
    return %c0_i32, %c0_i32_0 : i32, i32
  }
  func.func @transform_3(%arg0: i32) -> (i32, i32) {
    %c0_i32 = arith.constant 0 : i32
    %c0_i32_0 = arith.constant 0 : i32
    %c0_i32_1 = arith.constant 0 : i32
    return %c0_i32, %c0_i32_0 : i32, i32
  }
  func.func @transform_4(%arg0: i32) -> (i32, i32) {
    %c0_i32 = arith.constant 0 : i32
    %c0_i32_0 = arith.constant 0 : i32
    %c0_i32_1 = arith.constant 0 : i32
    return %c0_i32, %c0_i32_0 : i32, i32
  }
  func.func @transform_5(%arg0: i32) -> (i32, i32) {
    %c0_i32 = arith.constant 0 : i32
    %c0_i32_0 = arith.constant 0 : i32
    %c0_i32_1 = arith.constant 0 : i32
    return %c0_i32, %c0_i32_0 : i32, i32
  }
  func.func @transform_6(%arg0: i32) -> (i32, i32) {
    %c0_i32 = arith.constant 0 : i32
    %c0_i32_0 = arith.constant 0 : i32
    %c0_i32_1 = arith.constant 0 : i32
    return %c0_i32, %c0_i32_0 : i32, i32
  }
  func.func @transform_7(%arg0: i32) -> (i32, i32) {
    %c0_i32 = arith.constant 0 : i32
    %c0_i32_0 = arith.constant 0 : i32
    %c0_i32_1 = arith.constant 0 : i32
    return %c0_i32, %c0_i32_0 : i32, i32
  }
  func.func @transform_8(%arg0: i32) -> (i32, i32) {
    %c0_i32 = arith.constant 0 : i32
    %c0_i32_0 = arith.constant 0 : i32
    %c0_i32_1 = arith.constant 0 : i32
    return %c0_i32, %c0_i32_0 : i32, i32
  }
  func.func @transform_9(%arg0: i32) -> (i32, i32) {
    %c0_i32 = arith.constant 0 : i32
    %c0_i32_0 = arith.constant 0 : i32
    %c0_i32_1 = arith.constant 0 : i32
    return %c0_i32, %c0_i32_0 : i32, i32
  }
  func.func @transform_10(%arg0: i32) -> (i32, i32) {
    %c0_i32 = arith.constant 0 : i32
    %c0_i32_0 = arith.constant 0 : i32
    %c0_i32_1 = arith.constant 0 : i32
    return %c0_i32, %c0_i32_0 : i32, i32
  }
  func.func @transform_11(%arg0: i32) -> (i32, i32, i32) {
    %c0_i32 = arith.constant 0 : i32
    %c0_i32_0 = arith.constant 0 : i32
    %c0_i32_1 = arith.constant 0 : i32
    return %arg0, %c0_i32, %c0_i32_0 : i32, i32, i32
  }
}

</mosaic_0001>

<llo_original>
// kernel: lenet_forward.1
$region0: #{lenet_forward.1}
  #allocation0 [shape = 'u32[]', space=smem, size = 0x4, offset = 0x4, fixed_abs, tag = 'smem constant byte address 0x4 - core index']
  #allocation1 [shape = 'u32[144,128]{1,0:T(1,128)}', space=vmem, size = 0x12000, scoped, tag = 'internal scratch']
  #allocation2 [shape = 'f32[200,2048]{1,0:T(8,128)}', space=vmem, size = 0x190000, scoped, tag = 'scratch operand']
  #allocation3 [shape = 'f32[6,2176]{1,0:T(8,128)}', space=vmem, size = 0x11000, scoped, tag = 'scratch operand']
  #allocation4 [shape = 'f32[6,2688]{1,0:T(8,128)}', space=vmem, size = 0x15000, scoped, tag = 'scratch operand']
  #allocation5 [shape = 'f32[16,2048]{1,0:T(8,128)}', space=vmem, size = 0x20000, scoped, tag = 'scratch operand']
  #allocation6 [shape = 'f32[400,2]{1,0:T(8,128)}', space=vmem, size = 0x32000, scoped, tag = 'scratch operand']
  %s0 = inlined_call_operand.vmem [shape: f32[1,3,2432], index: 0, kind: input, shape index: {}]
  %s1 = inlined_call_operand.vmem [shape: f32[6,200], index: 1, kind: input, shape index: {}]
  %s2 = inlined_call_operand.vmem [shape: f32[6,1], index: 2, kind: input, shape index: {}]
  %s3 = inlined_call_operand.vmem [shape: f32[16,200], index: 3, kind: input, shape index: {}]
  %s4 = inlined_call_operand.vmem [shape: f32[16,1], index: 4, kind: input, shape index: {}]
  %s5 = inlined_call_operand.vmem [shape: f32[120,400], index: 5, kind: input, shape index: {}]
  %s6 = inlined_call_operand.vmem [shape: f32[120,1], index: 6, kind: input, shape index: {}]
  %s7 = inlined_call_operand.vmem [shape: f32[84,120], index: 7, kind: input, shape index: {}]
  %s8 = inlined_call_operand.vmem [shape: f32[84,1], index: 8, kind: input, shape index: {}]
  %s9 = inlined_call_operand.vmem [shape: f32[10,84], index: 9, kind: input, shape index: {}]
  %s10 = inlined_call_operand.vmem [shape: f32[10,1], index: 10, kind: input, shape index: {}]
  %s11 = inlined_call_operand.vmem [shape: f32[1,10,2], index: 11, kind: output, shape index: {}]
  %s12 = sld [smem:[#allocation0]]
  $region54: #{lenet_forward.1} parent=0
    _
  %s14 = ssub.s32 1, %s12
  %s15 = scalar_select 0, %s14, %s12
  // Predicated region
  $region2: #{lenet_forward.1} parent=0 // pred_check
    _
  $region3: #{lenet_forward.1} parent=0 // pred_check_branch
    %17 = sbr.rel (0) target = $region5
  $region4: #{lenet_forward.1} parent=0 // pred_region
    _
  $region5: #{lenet_forward.1} parent=0 // pred_fallthru
    _
  // Predicated region
  $region6: #{lenet_forward.1} parent=0 // pred_check
    _
  $region7: #{lenet_forward.1} parent=0 // pred_check_branch
    %19 = sbr.rel (0) target = $region9
  $region8: #{lenet_forward.1} parent=0 // pred_region
    _
  $region9: #{lenet_forward.1} parent=0 // pred_fallthru
    _
  // Predicated region
  $region10: #{lenet_forward.1} parent=0 // pred_check
    _
  $region11: #{lenet_forward.1} parent=0 // pred_check_branch
    %21 = sbr.rel (0) target = $region13
  $region12: #{lenet_forward.1} parent=0 // pred_region
    _
  $region13: #{lenet_forward.1} parent=0 // pred_fallthru
    _
  // Predicated region
  $region14: #{lenet_forward.1} parent=0 // pred_check
    _
  $region15: #{lenet_forward.1} parent=0 // pred_check_branch
    %23 = sbr.rel (0) target = $region17
  $region16: #{lenet_forward.1} parent=0 // pred_region
    _
  $region17: #{lenet_forward.1} parent=0 // pred_fallthru
    _
  // Predicated region
  $region18: #{lenet_forward.1} parent=0 // pred_check
    _
  $region19: #{lenet_forward.1} parent=0 // pred_check_branch
    %25 = sbr.rel (0) target = $region21
  $region20: #{lenet_forward.1} parent=0 // pred_region
    _
  $region21: #{lenet_forward.1} parent=0 // pred_fallthru
    _
  // Predicated region
  $region22: #{lenet_forward.1} parent=0 // pred_check
    _
  $region23: #{lenet_forward.1} parent=0 // pred_check_branch
    %27 = sbr.rel (0) target = $region25
  $region24: #{lenet_forward.1} parent=0 // pred_region
    _
  $region25: #{lenet_forward.1} parent=0 // pred_fallthru
    _
  // Predicated region
  $region26: #{lenet_forward.1} parent=0 // pred_check
    _
  $region27: #{lenet_forward.1} parent=0 // pred_check_branch
    %29 = sbr.rel (0) target = $region29
  $region28: #{lenet_forward.1} parent=0 // pred_region
    _
  $region29: #{lenet_forward.1} parent=0 // pred_fallthru
    _
  // Predicated region
  $region30: #{lenet_forward.1} parent=0 // pred_check
    _
  $region31: #{lenet_forward.1} parent=0 // pred_check_branch
    %31 = sbr.rel (0) target = $region33
  $region32: #{lenet_forward.1} parent=0 // pred_region
    _
  $region33: #{lenet_forward.1} parent=0 // pred_fallthru
    _
  // Predicated region
  $region34: #{lenet_forward.1} parent=0 // pred_check
    _
  $region35: #{lenet_forward.1} parent=0 // pred_check_branch
    %33 = sbr.rel (0) target = $region37
  $region36: #{lenet_forward.1} parent=0 // pred_region
    _
  $region37: #{lenet_forward.1} parent=0 // pred_fallthru
    _
  // Predicated region
  $region38: #{lenet_forward.1} parent=0 // pred_check
    _
  $region39: #{lenet_forward.1} parent=0 // pred_check_branch
    %35 = sbr.rel (0) target = $region41
  $region40: #{lenet_forward.1} parent=0 // pred_region
    _
  $region41: #{lenet_forward.1} parent=0 // pred_fallthru
    _
  // Predicated region
  $region42: #{lenet_forward.1} parent=0 // pred_check
    _
  $region43: #{lenet_forward.1} parent=0 // pred_check_branch
    %37 = sbr.rel (0) target = $region45
  $region44: #{lenet_forward.1} parent=0 // pred_region
    _
  $region45: #{lenet_forward.1} parent=0 // pred_fallthru
    _
  %38 = vst [vmem:[#allocation3 + $0x80] sm:$0x3f] 0.0
  %39 = vst [vmem:[#allocation4 + $0x80] sm:$0x3f] 0.0
  %40 = vst [vmem:[#allocation4 + $0x88] sm:$0x3f] 0.0
  %41 = vst [vmem:[#allocation4 + $0x90] sm:$0x3f] 0.0
  %42 = vst [vmem:[#allocation4 + $0x98] sm:$0x3f] 0.0
  %43 = vst [vmem:[#allocation4 + $0xa0] sm:$0x3f] 0.0
  %v44 = vld [vmem:[%s0] sm:$0x77]
  %v45 = vld [vmem:[%s0 + $0x8] sm:$0x77]
  %v46 = vld [vmem:[%s0 + $0x10] sm:$0x77]
  %v47 = vld [vmem:[%s0 + $0x18] sm:$0x77]
  %v48 = vld [vmem:[%s0 + $0x20] sm:$0x77]
  %v49 = vld [vmem:[%s0 + $0x28] sm:$0x77]
  %v50 = vld [vmem:[%s0 + $0x30] sm:$0x77]
  %v51 = vld [vmem:[%s0 + $0x38] sm:$0x77]
  %v60 = vcombine.high %v44, %v44
  %v61 = vcombine.high %v45, %v45
  %v62 = vcombine.high %v46, %v46
  %v63 = vcombine.high %v47, %v47
  %v64 = vcombine.high %v48, %v48
  %v65 = vcombine.high %v49, %v49
  %v66 = vcombine.high %v50, %v50
  %v67 = vcombine.high %v51, %v51
  %76 = vst [vmem:[#allocation2] sm:$0x7] %v44
  %77 = vst [vmem:[#allocation2 + $0x8] sm:$0x7] %v60
  %78 = vst [vmem:[#allocation2 + $0x10] sm:$0x7] %v45
  %79 = vst [vmem:[#allocation2 + $0x18] sm:$0x7] %v61
  %80 = vst [vmem:[#allocation2 + $0x20] sm:$0x7] %v46
  %81 = vst [vmem:[#allocation2 + $0x28] sm:$0x7] %v62
  %82 = vst [vmem:[#allocation2 + $0x30] sm:$0x7] %v47
  %83 = vst [vmem:[#allocation2 + $0x38] sm:$0x7] %v63
  %84 = vst [vmem:[#allocation2 + $0x40] sm:$0x7] %v48
  %85 = vst [vmem:[#allocation2 + $0x48] sm:$0x7] %v64
  %86 = vst [vmem:[#allocation2 + $0x50] sm:$0x7] %v49
  %87 = vst [vmem:[#allocation2 + $0x58] sm:$0x7] %v65
  %88 = vst [vmem:[#allocation2 + $0x60] sm:$0x7] %v50
  %89 = vst [vmem:[#allocation2 + $0x68] sm:$0x7] %v66
  %90 = vst [vmem:[#allocation2 + $0x70] sm:$0x7] %v51
  %91 = vst [vmem:[#allocation2 + $0x78] sm:$0x7] %v67
  %92 = vst [vmem:[#allocation2] sm:$0xf8] 0.0
  %93 = vst [vmem:[#allocation2 + $0x8] sm:$0xf8] 0.0
  %94 = vst [vmem:[#allocation2 + $0x10] sm:$0xf8] 0.0
  %95 = vst [vmem:[#allocation2 + $0x18] sm:$0xf8] 0.0
  %96 = vst [vmem:[#allocation2 + $0x20] sm:$0xf8] 0.0
  %97 = vst [vmem:[#allocation2 + $0x28] sm:$0xf8] 0.0
  %98 = vst [vmem:[#allocation2 + $0x30] sm:$0xf8] 0.0
  %99 = vst [vmem:[#allocation2 + $0x38] sm:$0xf8] 0.0
  %100 = vst [vmem:[#allocation2 + $0x40] sm:$0xf8] 0.0
  %101 = vst [vmem:[#allocation2 + $0x48] sm:$0xf8] 0.0
  %102 = vst [vmem:[#allocation2 + $0x50] sm:$0xf8] 0.0
  %103 = vst [vmem:[#allocation2 + $0x58] sm:$0xf8] 0.0
  %104 = vst [vmem:[#allocation2 + $0x60] sm:$0xf8] 0.0
  %105 = vst [vmem:[#allocation2 + $0x68] sm:$0xf8] 0.0
  %106 = vst [vmem:[#allocation2 + $0x70] sm:$0xf8] 0.0
  %107 = vst [vmem:[#allocation2 + $0x78] sm:$0xf8] 0.0
  %v108 = vld [vmem:[%s0] sm:$0x77]
  %v109 = vld [vmem:[%s0 + $0x8] sm:$0x77]
  %v110 = vld [vmem:[%s0 + $0x10] sm:$0x77]
  %v111 = vld [vmem:[%s0 + $0x18] sm:$0x77]
  %v112 = vld [vmem:[%s0 + $0x20] sm:$0x77]
  %v113 = vld [vmem:[%s0 + $0x28] sm:$0x77]
  %v114 = vld [vmem:[%s0 + $0x30] sm:$0x77]
  %v115 = vld [vmem:[%s0 + $0x38] sm:$0x77]
  %v116 = vld [vmem:[%s0 + $0x40] sm:$0x7]
  %v126 = vcombine.high %v108, %v108
  %v127 = vcombine.high %v109, %v109
  %v128 = vcombine.high %v110, %v110
  %v129 = vcombine.high %v111, %v111
  %v130 = vcombine.high %v112, %v112
  %v131 = vcombine.high %v113, %v113
  %v132 = vcombine.high %v114, %v114
  %v133 = vcombine.high %v115, %v115
  %134 = vrot.lane.b32.xlu0 %v108, 126
  %v135 = vpop.permute.xlu0 %134
  %136 = vrot.lane.b32.xlu0 %v126, 126
  %v137 = vpop.permute.xlu0 %136
  %138 = vrot.lane.b32.xlu0 %v109, 126
  %v139 = vpop.permute.xlu0 %138
  %140 = vrot.lane.b32.xlu0 %v127, 126
  %v141 = vpop.permute.xlu0 %140
  %142 = vrot.lane.b32.xlu0 %v110, 126
  %v143 = vpop.permute.xlu0 %142
  %144 = vrot.lane.b32.xlu0 %v128, 126
  %v145 = vpop.permute.xlu0 %144
  %146 = vrot.lane.b32.xlu0 %v111, 126
  %v147 = vpop.permute.xlu0 %146
  %148 = vrot.lane.b32.xlu0 %v129, 126
  %v149 = vpop.permute.xlu0 %148
  %150 = vrot.lane.b32.xlu0 %v112, 126
  %v151 = vpop.permute.xlu0 %150
  %152 = vrot.lane.b32.xlu0 %v130, 126
  %v153 = vpop.permute.xlu0 %152
  %154 = vrot.lane.b32.xlu0 %v113, 126
  %v155 = vpop.permute.xlu0 %154
  %156 = vrot.lane.b32.xlu0 %v131, 126
  %v157 = vpop.permute.xlu0 %156
  %158 = vrot.lane.b32.xlu0 %v114, 126
  %v159 = vpop.permute.xlu0 %158
  %160 = vrot.lane.b32.xlu0 %v132, 126
  %v161 = vpop.permute.xlu0 %160
  %162 = vrot.lane.b32.xlu0 %v115, 126
  %v163 = vpop.permute.xlu0 %162
  %164 = vrot.lane.b32.xlu0 %v133, 126
  %v165 = vpop.permute.xlu0 %164
  %166 = vrot.lane.b32.xlu0 %v116, 126
  %v167 = vpop.permute.xlu0 %166
  %vm168 = vcmask 1031168
  %v169 = vsel %vm168, %v135, %v137
  %v170 = vsel %vm168, %v137, %v139
  %v171 = vsel %vm168, %v139, %v141
  %v172 = vsel %vm168, %v141, %v143
  %v173 = vsel %vm168, %v143, %v145
  %v174 = vsel %vm168, %v145, %v147
  %v175 = vsel %vm168, %v147, %v149
  %v176 = vsel %vm168, %v149, %v151
  %v177 = vsel %vm168, %v151, %v153
  %v178 = vsel %vm168, %v153, %v155
  %v179 = vsel %vm168, %v155, %v157
  %v180 = vsel %vm168, %v157, %v159
  %v181 = vsel %vm168, %v159, %v161
  %v182 = vsel %vm168, %v161, %v163
  %v183 = vsel %vm168, %v163, %v165
  %v184 = vsel %vm168, %v165, %v167
  %201 = vst [vmem:[#allocation2 + $0x80] sm:$0x7] %v169
  %202 = vst [vmem:[#allocation2 + $0x88] sm:$0x7] %v170
  %203 = vst [vmem:[#allocation2 + $0x90] sm:$0x7] %v171
  %204 = vst [vmem:[#allocation2 + $0x98] sm:$0x7] %v172
  %205 = vst [vmem:[#allocation2 + $0xa0] sm:$0x7] %v173
  %206 = vst [vmem:[#allocation2 + $0xa8] sm:$0x7] %v174
  %207 = vst [vmem:[#allocation2 + $0xb0] sm:$0x7] %v175
  %208 = vst [vmem:[#allocation2 + $0xb8] sm:$0x7] %v176
  %209 = vst [vmem:[#allocation2 + $0xc0] sm:$0x7] %v177
  %210 = vst [vmem:[#allocation2 + $0xc8] sm:$0x7] %v178
  %211 = vst [vmem:[#allocation2 + $0xd0] sm:$0x7] %v179
  %212 = vst [vmem:[#allocation2 + $0xd8] sm:$0x7] %v180
  %213 = vst [vmem:[#allocation2 + $0xe0] sm:$0x7] %v181
  %214 = vst [vmem:[#allocation2 + $0xe8] sm:$0x7] %v182
  %215 = vst [vmem:[#allocation2 + $0xf0] sm:$0x7] %v183
  %216 = vst [vmem:[#allocation2 + $0xf8] sm:$0x7] %v184
  %217 = vst [vmem:[#allocation2 + $0x80] sm:$0xf8] 0.0
  %218 = vst [vmem:[#allocation2 + $0x88] sm:$0xf8] 0.0
  %219 = vst [vmem:[#allocation2 + $0x90] sm:$0xf8] 0.0
  %220 = vst [vmem:[#allocation2 + $0x98] sm:$0xf8] 0.0
  %221 = vst [vmem:[#allocation2 + $0xa0] sm:$0xf8] 0.0
  %222 = vst [vmem:[#allocation2 + $0xa8] sm:$0xf8] 0.0
  %223 = vst [vmem:[#allocation2 + $0xb0] sm:$0xf8] 0.0
  %224 = vst [vmem:[#allocation2 + $0xb8] sm:$0xf8] 0.0
  %225 = vst [vmem:[#allocation2 + $0xc0] sm:$0xf8] 0.0
  %226 = vst [vmem:[#allocation2 + $0xc8] sm:$0xf8] 0.0
  %227 = vst [vmem:[#allocation2 + $0xd0] sm:$0xf8] 0.0
  %228 = vst [vmem:[#allocation2 + $0xd8] sm:$0xf8] 0.0
  %229 = vst [vmem:[#allocation2 + $0xe0] sm:$0xf8] 0.0
  %230 = vst [vmem:[#allocation2 + $0xe8] sm:$0xf8] 0.0
  %231 = vst [vmem:[#allocation2 + $0xf0] sm:$0xf8] 0.0
  %232 = vst [vmem:[#allocation2 + $0xf8] sm:$0xf8] 0.0
  %v233 = vld [vmem:[%s0] sm:$0x77]
  %v234 = vld [vmem:[%s0 + $0x8] sm:$0x77]
  %v235 = vld [vmem:[%s0 + $0x10] sm:$0x77]
  %v236 = vld [vmem:[%s0 + $0x18] sm:$0x77]
  %v237 = vld [vmem:[%s0 + $0x20] sm:$0x77]
  %v238 = vld [vmem:[%s0 + $0x28] sm:$0x77]
  %v239 = vld [vmem:[%s0 + $0x30] sm:$0x77]
  %v240 = vld [vmem:[%s0 + $0x38] sm:$0x77]
  %v241 = vld [vmem:[%s0 + $0x40] sm:$0x7]
  %v251 = vcombine.high %v233, %v233
  %v252 = vcombine.high %v234, %v234
  %v253 = vcombine.high %v235, %v235
  %v254 = vcombine.high %v236, %v236
  %v255 = vcombine.high %v237, %v237
  %v256 = vcombine.high %v238, %v238
  %v257 = vcombine.high %v239, %v239
  %v258 = vcombine.high %v240, %v240
  %259 = vrot.lane.b32.xlu0 %v233, 124
  %v260 = vpop.permute.xlu0 %259
  %261 = vrot.lane.b32.xlu0 %v251, 124
  %v262 = vpop.permute.xlu0 %261
  %263 = vrot.lane.b32.xlu0 %v234, 124
  %v264 = vpop.permute.xlu0 %263
  %265 = vrot.lane.b32.xlu0 %v252, 124
  %v266 = vpop.permute.xlu0 %265
  %267 = vrot.lane.b32.xlu0 %v235, 124
  %v268 = vpop.permute.xlu0 %267
  %269 = vrot.lane.b32.xlu0 %v253, 124
  %v270 = vpop.permute.xlu0 %269
  %271 = vrot.lane.b32.xlu0 %v236, 124
  %v272 = vpop.permute.xlu0 %271
  %273 = vrot.lane.b32.xlu0 %v254, 124
  %v274 = vpop.permute.xlu0 %273
  %275 = vrot.lane.b32.xlu0 %v237, 124
  %v276 = vpop.permute.xlu0 %275
  %277 = vrot.lane.b32.xlu0 %v255, 124
  %v278 = vpop.permute.xlu0 %277
  %279 = vrot.lane.b32.xlu0 %v238, 124
  %v280 = vpop.permute.xlu0 %279
  %281 = vrot.lane.b32.xlu0 %v256, 124
  %v282 = vpop.permute.xlu0 %281
  %283 = vrot.lane.b32.xlu0 %v239, 124
  %v284 = vpop.permute.xlu0 %283
  %285 = vrot.lane.b32.xlu0 %v257, 124
  %v286 = vpop.permute.xlu0 %285
  %287 = vrot.lane.b32.xlu0 %v240, 124
  %v288 = vpop.permute.xlu0 %287
  %289 = vrot.lane.b32.xlu0 %v258, 124
  %v290 = vpop.permute.xlu0 %289
  %291 = vrot.lane.b32.xlu0 %v241, 124
  %v292 = vpop.permute.xlu0 %291
  %vm293 = vcmask 1014784
  %v294 = vsel %vm293, %v260, %v262
  %v295 = vsel %vm293, %v262, %v264
  %v296 = vsel %vm293, %v264, %v266
  %v297 = vsel %vm293, %v266, %v268
  %v298 = vsel %vm293, %v268, %v270
  %v299 = vsel %vm293, %v270, %v272
  %v300 = vsel %vm293, %v272, %v274
  %v301 = vsel %vm293, %v274, %v276
  %v302 = vsel %vm293, %v276, %v278
  %v303 = vsel %vm293, %v278, %v280
  %v304 = vsel %vm293, %v280, %v282
  %v305 = vsel %vm293, %v282, %v284
  %v306 = vsel %vm293, %v284, %v286
  %v307 = vsel %vm293, %v286, %v288
  %v308 = vsel %vm293, %v288, %v290
  %v309 = vsel %vm293, %v290, %v292
  %326 = vst [vmem:[#allocation2 + $0x100] sm:$0x7] %v294
  %327 = vst [vmem:[#allocation2 + $0x108] sm:$0x7] %v295
  %328 = vst [vmem:[#allocation2 + $0x110] sm:$0x7] %v296
  %329 = vst [vmem:[#allocation2 + $0x118] sm:$0x7] %v297
  %330 = vst [vmem:[#allocation2 + $0x120] sm:$0x7] %v298
  %331 = vst [vmem:[#allocation2 + $0x128] sm:$0x7] %v299
  %332 = vst [vmem:[#allocation2 + $0x130] sm:$0x7] %v300
  %333 = vst [vmem:[#allocation2 + $0x138] sm:$0x7] %v301
  %334 = vst [vmem:[#allocation2 + $0x140] sm:$0x7] %v302
  %335 = vst [vmem:[#allocation2 + $0x148] sm:$0x7] %v303
  %336 = vst [vmem:[#allocation2 + $0x150] sm:$0x7] %v304
  %337 = vst [vmem:[#allocation2 + $0x158] sm:$0x7] %v305
  %338 = vst [vmem:[#allocation2 + $0x160] sm:$0x7] %v306
  %339 = vst [vmem:[#allocation2 + $0x168] sm:$0x7] %v307
  %340 = vst [vmem:[#allocation2 + $0x170] sm:$0x7] %v308
  %341 = vst [vmem:[#allocation2 + $0x178] sm:$0x7] %v309
  %342 = vst [vmem:[#allocation2 + $0x100] sm:$0xf8] 0.0
  %343 = vst [vmem:[#allocation2 + $0x108] sm:$0xf8] 0.0
  %344 = vst [vmem:[#allocation2 + $0x110] sm:$0xf8] 0.0
  %345 = vst [vmem:[#allocation2 + $0x118] sm:$0xf8] 0.0
  %346 = vst [vmem:[#allocation2 + $0x120] sm:$0xf8] 0.0
  %347 = vst [vmem:[#allocation2 + $0x128] sm:$0xf8] 0.0
  %348 = vst [vmem:[#allocation2 + $0x130] sm:$0xf8] 0.0
  %349 = vst [vmem:[#allocation2 + $0x138] sm:$0xf8] 0.0
  %350 = vst [vmem:[#allocation2 + $0x140] sm:$0xf8] 0.0
  %351 = vst [vmem:[#allocation2 + $0x148] sm:$0xf8] 0.0
  %352 = vst [vmem:[#allocation2 + $0x150] sm:$0xf8] 0.0
  %353 = vst [vmem:[#allocation2 + $0x158] sm:$0xf8] 0.0
  %354 = vst [vmem:[#allocation2 + $0x160] sm:$0xf8] 0.0
  %355 = vst [vmem:[#allocation2 + $0x168] sm:$0xf8] 0.0
  %356 = vst [vmem:[#allocation2 + $0x170] sm:$0xf8] 0.0
  %357 = vst [vmem:[#allocation2 + $0x178] sm:$0xf8] 0.0
  %v358 = vld [vmem:[%s0] sm:$0x77]
  %v359 = vld [vmem:[%s0 + $0x8] sm:$0x77]
  %v360 = vld [vmem:[%s0 + $0x10] sm:$0x77]
  %v361 = vld [vmem:[%s0 + $0x18] sm:$0x77]
  %v362 = vld [vmem:[%s0 + $0x20] sm:$0x77]
  %v363 = vld [vmem:[%s0 + $0x28] sm:$0x77]
  %v364 = vld [vmem:[%s0 + $0x30] sm:$0x77]
  %v365 = vld [vmem:[%s0 + $0x38] sm:$0x77]
  %v366 = vld [vmem:[%s0 + $0x40] sm:$0x7]
  %v376 = vcombine.high %v358, %v358
  %v377 = vcombine.high %v359, %v359
  %v378 = vcombine.high %v360, %v360
  %v379 = vcombine.high %v361, %v361
  %v380 = vcombine.high %v362, %v362
  %v381 = vcombine.high %v363, %v363
  %v382 = vcombine.high %v364, %v364
  %v383 = vcombine.high %v365, %v365
  %384 = vrot.lane.b32.xlu0 %v358, 122
  %v385 = vpop.permute.xlu0 %384
  %386 = vrot.lane.b32.xlu0 %v376, 122
  %v387 = vpop.permute.xlu0 %386
  %388 = vrot.lane.b32.xlu0 %v359, 122
  %v389 = vpop.permute.xlu0 %388
  %390 = vrot.lane.b32.xlu0 %v377, 122
  %v391 = vpop.permute.xlu0 %390
  %392 = vrot.lane.b32.xlu0 %v360, 122
  %v393 = vpop.permute.xlu0 %392
  %394 = vrot.lane.b32.xlu0 %v378, 122
  %v395 = vpop.permute.xlu0 %394
  %396 = vrot.lane.b32.xlu0 %v361, 122
  %v397 = vpop.permute.xlu0 %396
  %398 = vrot.lane.b32.xlu0 %v379, 122
  %v399 = vpop.permute.xlu0 %398
  %400 = vrot.lane.b32.xlu0 %v362, 122
  %v401 = vpop.permute.xlu0 %400
  %402 = vrot.lane.b32.xlu0 %v380, 122
  %v403 = vpop.permute.xlu0 %402
  %404 = vrot.lane.b32.xlu0 %v363, 122
  %v405 = vpop.permute.xlu0 %404
  %406 = vrot.lane.b32.xlu0 %v381, 122
  %v407 = vpop.permute.xlu0 %406
  %408 = vrot.lane.b32.xlu0 %v364, 122
  %v409 = vpop.permute.xlu0 %408
  %410 = vrot.lane.b32.xlu0 %v382, 122
  %v411 = vpop.permute.xlu0 %410
  %412 = vrot.lane.b32.xlu0 %v365, 122
  %v413 = vpop.permute.xlu0 %412
  %414 = vrot.lane.b32.xlu0 %v383, 122
  %v415 = vpop.permute.xlu0 %414
  %416 = vrot.lane.b32.xlu0 %v366, 122
  %v417 = vpop.permute.xlu0 %416
  %vm418 = vcmask 998400
  %v419 = vsel %vm418, %v385, %v387
  %v420 = vsel %vm418, %v387, %v389
  %v421 = vsel %vm418, %v389, %v391
  %v422 = vsel %vm418, %v391, %v393
  %v423 = vsel %vm418, %v393, %v395
  %v424 = vsel %vm418, %v395, %v397
  %v425 = vsel %vm418, %v397, %v399
  %v426 = vsel %vm418, %v399, %v401
  %v427 = vsel %vm418, %v401, %v403
  %v428 = vsel %vm418, %v403, %v405
  %v429 = vsel %vm418, %v405, %v407
  %v430 = vsel %vm418, %v407, %v409
  %v431 = vsel %vm418, %v409, %v411
  %v432 = vsel %vm418, %v411, %v413
  %v433 = vsel %vm418, %v413, %v415
  %v434 = vsel %vm418, %v415, %v417
  %451 = vst [vmem:[#allocation2 + $0x180] sm:$0x7] %v419
  %452 = vst [vmem:[#allocation2 + $0x188] sm:$0x7] %v420
  %453 = vst [vmem:[#allocation2 + $0x190] sm:$0x7] %v421
  %454 = vst [vmem:[#allocation2 + $0x198] sm:$0x7] %v422
  %455 = vst [vmem:[#allocation2 + $0x1a0] sm:$0x7] %v423
  %456 = vst [vmem:[#allocation2 + $0x1a8] sm:$0x7] %v424
  %457 = vst [vmem:[#allocation2 + $0x1b0] sm:$0x7] %v425
  %458 = vst [vmem:[#allocation2 + $0x1b8] sm:$0x7] %v426
  %459 = vst [vmem:[#allocation2 + $0x1c0] sm:$0x7] %v427
  %460 = vst [vmem:[#allocation2 + $0x1c8] sm:$0x7] %v428
  %461 = vst [vmem:[#allocation2 + $0x1d0] sm:$0x7] %v429
  %462 = vst [vmem:[#allocation2 + $0x1d8] sm:$0x7] %v430
  %463 = vst [vmem:[#allocation2 + $0x1e0] sm:$0x7] %v431
  %464 = vst [vmem:[#allocation2 + $0x1e8] sm:$0x7] %v432
  %465 = vst [vmem:[#allocation2 + $0x1f0] sm:$0x7] %v433
  %466 = vst [vmem:[#allocation2 + $0x1f8] sm:$0x7] %v434
  %467 = vst [vmem:[#allocation2 + $0x180] sm:$0xf8] 0.0
  %468 = vst [vmem:[#allocation2 + $0x188] sm:$0xf8] 0.0
  %469 = vst [vmem:[#allocation2 + $0x190] sm:$0xf8] 0.0
  %470 = vst [vmem:[#allocation2 + $0x198] sm:$0xf8] 0.0
  %471 = vst [vmem:[#allocation2 + $0x1a0] sm:$0xf8] 0.0
  %472 = vst [vmem:[#allocation2 + $0x1a8] sm:$0xf8] 0.0
  %473 = vst [vmem:[#allocation2 + $0x1b0] sm:$0xf8] 0.0
  %474 = vst [vmem:[#allocation2 + $0x1b8] sm:$0xf8] 0.0
  %475 = vst [vmem:[#allocation2 + $0x1c0] sm:$0xf8] 0.0
  %476 = vst [vmem:[#allocation2 + $0x1c8] sm:$0xf8] 0.0
  %477 = vst [vmem:[#allocation2 + $0x1d0] sm:$0xf8] 0.0
  %478 = vst [vmem:[#allocation2 + $0x1d8] sm:$0xf8] 0.0
  %479 = vst [vmem:[#allocation2 + $0x1e0] sm:$0xf8] 0.0
  %480 = vst [vmem:[#allocation2 + $0x1e8] sm:$0xf8] 0.0
  %481 = vst [vmem:[#allocation2 + $0x1f0] sm:$0xf8] 0.0
  %482 = vst [vmem:[#allocation2 + $0x1f8] sm:$0xf8] 0.0
  %v483 = vld [vmem:[%s0] sm:$0x77]
  %v484 = vld [vmem:[%s0 + $0x8] sm:$0x77]
  %v485 = vld [vmem:[%s0 + $0x10] sm:$0x77]
  %v486 = vld [vmem:[%s0 + $0x18] sm:$0x77]
  %v487 = vld [vmem:[%s0 + $0x20] sm:$0x77]
  %v488 = vld [vmem:[%s0 + $0x28] sm:$0x77]
  %v489 = vld [vmem:[%s0 + $0x30] sm:$0x77]
  %v490 = vld [vmem:[%s0 + $0x38] sm:$0x77]
  %v491 = vld [vmem:[%s0 + $0x40] sm:$0x7]
  %v501 = vcombine.high %v483, %v483
  %v502 = vcombine.high %v484, %v484
  %v503 = vcombine.high %v485, %v485
  %v504 = vcombine.high %v486, %v486
  %v505 = vcombine.high %v487, %v487
  %v506 = vcombine.high %v488, %v488
  %v507 = vcombine.high %v489, %v489
  %v508 = vcombine.high %v490, %v490
  %509 = vrot.lane.b32.xlu0 %v483, 120
  %v510 = vpop.permute.xlu0 %509
  %511 = vrot.lane.b32.xlu0 %v501, 120
  %v512 = vpop.permute.xlu0 %511
  %513 = vrot.lane.b32.xlu0 %v484, 120
  %v514 = vpop.permute.xlu0 %513
  %515 = vrot.lane.b32.xlu0 %v502, 120
  %v516 = vpop.permute.xlu0 %515
  %517 = vrot.lane.b32.xlu0 %v485, 120
  %v518 = vpop.permute.xlu0 %517
  %519 = vrot.lane.b32.xlu0 %v503, 120
  %v520 = vpop.permute.xlu0 %519
  %521 = vrot.lane.b32.xlu0 %v486, 120
  %v522 = vpop.permute.xlu0 %521
  %523 = vrot.lane.b32.xlu0 %v504, 120
  %v524 = vpop.permute.xlu0 %523
  %525 = vrot.lane.b32.xlu0 %v487, 120
  %v526 = vpop.permute.xlu0 %525
  %527 = vrot.lane.b32.xlu0 %v505, 120
  %v528 = vpop.permute.xlu0 %527
  %529 = vrot.lane.b32.xlu0 %v488, 120
  %v530 = vpop.permute.xlu0 %529
  %531 = vrot.lane.b32.xlu0 %v506, 120
  %v532 = vpop.permute.xlu0 %531
  %533 = vrot.lane.b32.xlu0 %v489, 120
  %v534 = vpop.permute.xlu0 %533
  %535 = vrot.lane.b32.xlu0 %v507, 120
  %v536 = vpop.permute.xlu0 %535
  %537 = vrot.lane.b32.xlu0 %v490, 120
  %v538 = vpop.permute.xlu0 %537
  %539 = vrot.lane.b32.xlu0 %v508, 120
  %v540 = vpop.permute.xlu0 %539
  %541 = vrot.lane.b32.xlu0 %v491, 120
  %v542 = vpop.permute.xlu0 %541
  %vm543 = vcmask 982016
  %v544 = vsel %vm543, %v510, %v512
  %v545 = vsel %vm543, %v512, %v514
  %v546 = vsel %vm543, %v514, %v516
  %v547 = vsel %vm543, %v516, %v518
  %v548 = vsel %vm543, %v518, %v520
  %v549 = vsel %vm543, %v520, %v522
  %v550 = vsel %vm543, %v522, %v524
  %v551 = vsel %vm543, %v524, %v526
  %v552 = vsel %vm543, %v526, %v528
  %v553 = vsel %vm543, %v528, %v530
  %v554 = vsel %vm543, %v530, %v532
  %v555 = vsel %vm543, %v532, %v534
  %v556 = vsel %vm543, %v534, %v536
  %v557 = vsel %vm543, %v536, %v538
  %v558 = vsel %vm543, %v538, %v540
  %v559 = vsel %vm543, %v540, %v542
  %576 = vst [vmem:[#allocation2 + $0x200] sm:$0x7] %v544
  %577 = vst [vmem:[#allocation2 + $0x208] sm:$0x7] %v545
  %578 = vst [vmem:[#allocation2 + $0x210] sm:$0x7] %v546
  %579 = vst [vmem:[#allocation2 + $0x218] sm:$0x7] %v547
  %580 = vst [vmem:[#allocation2 + $0x220] sm:$0x7] %v548
  %581 = vst [vmem:[#allocation2 + $0x228] sm:$0x7] %v549
  %582 = vst [vmem:[#allocation2 + $0x230] sm:$0x7] %v550
  %583 = vst [vmem:[#allocation2 + $0x238] sm:$0x7] %v551
  %584 = vst [vmem:[#allocation2 + $0x240] sm:$0x7] %v552
  %585 = vst [vmem:[#allocation2 + $0x248] sm:$0x7] %v553
  %586 = vst [vmem:[#allocation2 + $0x250] sm:$0x7] %v554
  %587 = vst [vmem:[#allocation2 + $0x258] sm:$0x7] %v555
  %588 = vst [vmem:[#allocation2 + $0x260] sm:$0x7] %v556
  %589 = vst [vmem:[#allocation2 + $0x268] sm:$0x7] %v557
  %590 = vst [vmem:[#allocation2 + $0x270] sm:$0x7] %v558
  %591 = vst [vmem:[#allocation2 + $0x278] sm:$0x7] %v559
  %592 = vst [vmem:[#allocation2 + $0x200] sm:$0xf8] 0.0
  %593 = vst [vmem:[#allocation2 + $0x208] sm:$0xf8] 0.0
  %594 = vst [vmem:[#allocation2 + $0x210] sm:$0xf8] 0.0
  %595 = vst [vmem:[#allocation2 + $0x218] sm:$0xf8] 0.0
  %596 = vst [vmem:[#allocation2 + $0x220] sm:$0xf8] 0.0
  %597 = vst [vmem:[#allocation2 + $0x228] sm:$0xf8] 0.0
  %598 = vst [vmem:[#allocation2 + $0x230] sm:$0xf8] 0.0
  %599 = vst [vmem:[#allocation2 + $0x238] sm:$0xf8] 0.0
  %600 = vst [vmem:[#allocation2 + $0x240] sm:$0xf8] 0.0
  %601 = vst [vmem:[#allocation2 + $0x248] sm:$0xf8] 0.0
  %602 = vst [vmem:[#allocation2 + $0x250] sm:$0xf8] 0.0
  %603 = vst [vmem:[#allocation2 + $0x258] sm:$0xf8] 0.0
  %604 = vst [vmem:[#allocation2 + $0x260] sm:$0xf8] 0.0
  %605 = vst [vmem:[#allocation2 + $0x268] sm:$0xf8] 0.0
  %606 = vst [vmem:[#allocation2 + $0x270] sm:$0xf8] 0.0
  %607 = vst [vmem:[#allocation2 + $0x278] sm:$0xf8] 0.0
  %v608 = vld [vmem:[%s0] sm:$0x77]
  %v609 = vld [vmem:[%s0 + $0x8] sm:$0x77]
  %v610 = vld [vmem:[%s0 + $0x10] sm:$0x77]
  %v611 = vld [vmem:[%s0 + $0x18] sm:$0x77]
  %v612 = vld [vmem:[%s0 + $0x20] sm:$0x77]
  %v613 = vld [vmem:[%s0 + $0x28] sm:$0x77]
  %v614 = vld [vmem:[%s0 + $0x30] sm:$0x77]
  %v615 = vld [vmem:[%s0 + $0x38] sm:$0x77]
  %v616 = vld [vmem:[%s0 + $0x40] sm:$0x7]
  %v626 = vcombine.high %v608, %v608
  %v627 = vcombine.high %v609, %v609
  %v628 = vcombine.high %v610, %v610
  %v629 = vcombine.high %v611, %v611
  %v630 = vcombine.high %v612, %v612
  %v631 = vcombine.high %v613, %v613
  %v632 = vcombine.high %v614, %v614
  %v633 = vcombine.high %v615, %v615
  %634 = vrot.lane.b32.xlu0 %v608, 64
  %v635 = vpop.permute.xlu0 %634
  %636 = vrot.lane.b32.xlu0 %v626, 64
  %v637 = vpop.permute.xlu0 %636
  %638 = vrot.lane.b32.xlu0 %v609, 64
  %v639 = vpop.permute.xlu0 %638
  %640 = vrot.lane.b32.xlu0 %v627, 64
  %v641 = vpop.permute.xlu0 %640
  %642 = vrot.lane.b32.xlu0 %v610, 64
  %v643 = vpop.permute.xlu0 %642
  %644 = vrot.lane.b32.xlu0 %v628, 64
  %v645 = vpop.permute.xlu0 %644
  %646 = vrot.lane.b32.xlu0 %v611, 64
  %v647 = vpop.permute.xlu0 %646
  %648 = vrot.lane.b32.xlu0 %v629, 64
  %v649 = vpop.permute.xlu0 %648
  %650 = vrot.lane.b32.xlu0 %v612, 64
  %v651 = vpop.permute.xlu0 %650
  %652 = vrot.lane.b32.xlu0 %v630, 64
  %v653 = vpop.permute.xlu0 %652
  %654 = vrot.lane.b32.xlu0 %v613, 64
  %v655 = vpop.permute.xlu0 %654
  %656 = vrot.lane.b32.xlu0 %v631, 64
  %v657 = vpop.permute.xlu0 %656
  %658 = vrot.lane.b32.xlu0 %v614, 64
  %v659 = vpop.permute.xlu0 %658
  %660 = vrot.lane.b32.xlu0 %v632, 64
  %v661 = vpop.permute.xlu0 %660
  %662 = vrot.lane.b32.xlu0 %v615, 64
  %v663 = vpop.permute.xlu0 %662
  %664 = vrot.lane.b32.xlu0 %v633, 64
  %v665 = vpop.permute.xlu0 %664
  %666 = vrot.lane.b32.xlu0 %v616, 64
  %v667 = vpop.permute.xlu0 %666
  %vm668 = vcmask 523264
  %v669 = vsel %vm668, %v635, %v637
  %v670 = vsel %vm668, %v637, %v639
  %v671 = vsel %vm668, %v639, %v641
  %v672 = vsel %vm668, %v641, %v643
  %v673 = vsel %vm668, %v643, %v645
  %v674 = vsel %vm668, %v645, %v647
  %v675 = vsel %vm668, %v647, %v649
  %v676 = vsel %vm668, %v649, %v651
  %v677 = vsel %vm668, %v651, %v653
  %v678 = vsel %vm668, %v653, %v655
  %v679 = vsel %vm668, %v655, %v657
  %v680 = vsel %vm668, %v657, %v659
  %v681 = vsel %vm668, %v659, %v661
  %v682 = vsel %vm668, %v661, %v663
  %v683 = vsel %vm668, %v663, %v665
  %v684 = vsel %vm668, %v665, %v667
  %701 = vst [vmem:[#allocation2 + $0x280] sm:$0x7] %v669
  %702 = vst [vmem:[#allocation2 + $0x288] sm:$0x7] %v670
  %703 = vst [vmem:[#allocation2 + $0x290] sm:$0x7] %v671
  %704 = vst [vmem:[#allocation2 + $0x298] sm:$0x7] %v672
  %705 = vst [vmem:[#allocation2 + $0x2a0] sm:$0x7] %v673
  %706 = vst [vmem:[#allocation2 + $0x2a8] sm:$0x7] %v674
  %707 = vst [vmem:[#allocation2 + $0x2b0] sm:$0x7] %v675
  %708 = vst [vmem:[#allocation2 + $0x2b8] sm:$0x7] %v676
  %709 = vst [vmem:[#allocation2 + $0x2c0] sm:$0x7] %v677
  %710 = vst [vmem:[#allocation2 + $0x2c8] sm:$0x7] %v678
  %711 = vst [vmem:[#allocation2 + $0x2d0] sm:$0x7] %v679
  %712 = vst [vmem:[#allocation2 + $0x2d8] sm:$0x7] %v680
  %713 = vst [vmem:[#allocation2 + $0x2e0] sm:$0x7] %v681
  %714 = vst [vmem:[#allocation2 + $0x2e8] sm:$0x7] %v682
  %715 = vst [vmem:[#allocation2 + $0x2f0] sm:$0x7] %v683
  %716 = vst [vmem:[#allocation2 + $0x2f8] sm:$0x7] %v684
  %717 = vst [vmem:[#allocation2 + $0x280] sm:$0xf8] 0.0
  %718 = vst [vmem:[#allocation2 + $0x288] sm:$0xf8] 0.0
  %719 = vst [vmem:[#allocation2 + $0x290] sm:$0xf8] 0.0
  %720 = vst [vmem:[#allocation2 + $0x298] sm:$0xf8] 0.0
  %721 = vst [vmem:[#allocation2 + $0x2a0] sm:$0xf8] 0.0
  %722 = vst [vmem:[#allocation2 + $0x2a8] sm:$0xf8] 0.0
  %723 = vst [vmem:[#allocation2 + $0x2b0] sm:$0xf8] 0.0
  %724 = vst [vmem:[#allocation2 + $0x2b8] sm:$0xf8] 0.0
  %725 = vst [vmem:[#allocation2 + $0x2c0] sm:$0xf8] 0.0
  %726 = vst [vmem:[#allocation2 + $0x2c8] sm:$0xf8] 0.0
  %727 = vst [vmem:[#allocation2 + $0x2d0] sm:$0xf8] 0.0
  %728 = vst [vmem:[#allocation2 + $0x2d8] sm:$0xf8] 0.0
  %729 = vst [vmem:[#allocation2 + $0x2e0] sm:$0xf8] 0.0
  %730 = vst [vmem:[#allocation2 + $0x2e8] sm:$0xf8] 0.0
  %731 = vst [vmem:[#allocation2 + $0x2f0] sm:$0xf8] 0.0
  %732 = vst [vmem:[#allocation2 + $0x2f8] sm:$0xf8] 0.0
  %v733 = vld [vmem:[%s0] sm:$0x77]
  %v734 = vld [vmem:[%s0 + $0x8] sm:$0x77]
  %v735 = vld [vmem:[%s0 + $0x10] sm:$0x77]
  %v736 = vld [vmem:[%s0 + $0x18] sm:$0x77]
  %v737 = vld [vmem:[%s0 + $0x20] sm:$0x77]
  %v738 = vld [vmem:[%s0 + $0x28] sm:$0x77]
  %v739 = vld [vmem:[%s0 + $0x30] sm:$0x77]
  %v740 = vld [vmem:[%s0 + $0x38] sm:$0x77]
  %v741 = vld [vmem:[%s0 + $0x40] sm:$0x7]
  %v751 = vcombine.high %v733, %v733
  %v752 = vcombine.high %v734, %v734
  %v753 = vcombine.high %v735, %v735
  %v754 = vcombine.high %v736, %v736
  %v755 = vcombine.high %v737, %v737
  %v756 = vcombine.high %v738, %v738
  %v757 = vcombine.high %v739, %v739
  %v758 = vcombine.high %v740, %v740
  %759 = vrot.lane.b32.xlu0 %v733, 62
  %v760 = vpop.permute.xlu0 %759
  %761 = vrot.lane.b32.xlu0 %v751, 62
  %v762 = vpop.permute.xlu0 %761
  %763 = vrot.lane.b32.xlu0 %v734, 62
  %v764 = vpop.permute.xlu0 %763
  %765 = vrot.lane.b32.xlu0 %v752, 62
  %v766 = vpop.permute.xlu0 %765
  %767 = vrot.lane.b32.xlu0 %v735, 62
  %v768 = vpop.permute.xlu0 %767
  %769 = vrot.lane.b32.xlu0 %v753, 62
  %v770 = vpop.permute.xlu0 %769
  %771 = vrot.lane.b32.xlu0 %v736, 62
  %v772 = vpop.permute.xlu0 %771
  %773 = vrot.lane.b32.xlu0 %v754, 62
  %v774 = vpop.permute.xlu0 %773
  %775 = vrot.lane.b32.xlu0 %v737, 62
  %v776 = vpop.permute.xlu0 %775
  %777 = vrot.lane.b32.xlu0 %v755, 62
  %v778 = vpop.permute.xlu0 %777
  %779 = vrot.lane.b32.xlu0 %v738, 62
  %v780 = vpop.permute.xlu0 %779
  %781 = vrot.lane.b32.xlu0 %v756, 62
  %v782 = vpop.permute.xlu0 %781
  %783 = vrot.lane.b32.xlu0 %v739, 62
  %v784 = vpop.permute.xlu0 %783
  %785 = vrot.lane.b32.xlu0 %v757, 62
  %v786 = vpop.permute.xlu0 %785
  %787 = vrot.lane.b32.xlu0 %v740, 62
  %v788 = vpop.permute.xlu0 %787
  %789 = vrot.lane.b32.xlu0 %v758, 62
  %v790 = vpop.permute.xlu0 %789
  %791 = vrot.lane.b32.xlu0 %v741, 62
  %v792 = vpop.permute.xlu0 %791
  %vm793 = vcmask 506880
  %v794 = vsel %vm793, %v760, %v762
  %v795 = vsel %vm793, %v762, %v764
  %v796 = vsel %vm793, %v764, %v766
  %v797 = vsel %vm793, %v766, %v768
  %v798 = vsel %vm793, %v768, %v770
  %v799 = vsel %vm793, %v770, %v772
  %v800 = vsel %vm793, %v772, %v774
  %v801 = vsel %vm793, %v774, %v776
  %v802 = vsel %vm793, %v776, %v778
  %v803 = vsel %vm793, %v778, %v780
  %v804 = vsel %vm793, %v780, %v782
  %v805 = vsel %vm793, %v782, %v784
  %v806 = vsel %vm793, %v784, %v786
  %v807 = vsel %vm793, %v786, %v788
  %v808 = vsel %vm793, %v788, %v790
  %v809 = vsel %vm793, %v790, %v792
  %826 = vst [vmem:[#allocation2 + $0x300] sm:$0x7] %v794
  %827 = vst [vmem:[#allocation2 + $0x308] sm:$0x7] %v795
  %828 = vst [vmem:[#allocation2 + $0x310] sm:$0x7] %v796
  %829 = vst [vmem:[#allocation2 + $0x318] sm:$0x7] %v797
  %830 = vst [vmem:[#allocation2 + $0x320] sm:$0x7] %v798
  %831 = vst [vmem:[#allocation2 + $0x328] sm:$0x7] %v799
  %832 = vst [vmem:[#allocation2 + $0x330] sm:$0x7] %v800
  %833 = vst [vmem:[#allocation2 + $0x338] sm:$0x7] %v801
  %834 = vst [vmem:[#allocation2 + $0x340] sm:$0x7] %v802
  %835 = vst [vmem:[#allocation2 + $0x348] sm:$0x7] %v803
  %836 = vst [vmem:[#allocation2 + $0x350] sm:$0x7] %v804
  %837 = vst [vmem:[#allocation2 + $0x358] sm:$0x7] %v805
  %838 = vst [vmem:[#allocation2 + $0x360] sm:$0x7] %v806
  %839 = vst [vmem:[#allocation2 + $0x368] sm:$0x7] %v807
  %840 = vst [vmem:[#allocation2 + $0x370] sm:$0x7] %v808
  %841 = vst [vmem:[#allocation2 + $0x378] sm:$0x7] %v809
  %842 = vst [vmem:[#allocation2 + $0x300] sm:$0xf8] 0.0
  %843 = vst [vmem:[#allocation2 + $0x308] sm:$0xf8] 0.0
  %844 = vst [vmem:[#allocation2 + $0x310] sm:$0xf8] 0.0
  %845 = vst [vmem:[#allocation2 + $0x318] sm:$0xf8] 0.0
  %846 = vst [vmem:[#allocation2 + $0x320] sm:$0xf8] 0.0
  %847 = vst [vmem:[#allocation2 + $0x328] sm:$0xf8] 0.0
  %848 = vst [vmem:[#allocation2 + $0x330] sm:$0xf8] 0.0
  %849 = vst [vmem:[#allocation2 + $0x338] sm:$0xf8] 0.0
  %850 = vst [vmem:[#allocation2 + $0x340] sm:$0xf8] 0.0
  %851 = vst [vmem:[#allocation2 + $0x348] sm:$0xf8] 0.0
  %852 = vst [vmem:[#allocation2 + $0x350] sm:$0xf8] 0.0
  %853 = vst [vmem:[#allocation2 + $0x358] sm:$0xf8] 0.0
  %854 = vst [vmem:[#allocation2 + $0x360] sm:$0xf8] 0.0
  %855 = vst [vmem:[#allocation2 + $0x368] sm:$0xf8] 0.0
  %856 = vst [vmem:[#allocation2 + $0x370] sm:$0xf8] 0.0
  %857 = vst [vmem:[#allocation2 + $0x378] sm:$0xf8] 0.0
  %v858 = vld [vmem:[%s0] sm:$0x77]
  %v859 = vld [vmem:[%s0 + $0x8] sm:$0x77]
  %v860 = vld [vmem:[%s0 + $0x10] sm:$0x77]
  %v861 = vld [vmem:[%s0 + $0x18] sm:$0x77]
  %v862 = vld [vmem:[%s0 + $0x20] sm:$0x77]
  %v863 = vld [vmem:[%s0 + $0x28] sm:$0x77]
  %v864 = vld [vmem:[%s0 + $0x30] sm:$0x77]
  %v865 = vld [vmem:[%s0 + $0x38] sm:$0x77]
  %v866 = vld [vmem:[%s0 + $0x40] sm:$0x7]
  %v876 = vcombine.high %v858, %v858
  %v877 = vcombine.high %v859, %v859
  %v878 = vcombine.high %v860, %v860
  %v879 = vcombine.high %v861, %v861
  %v880 = vcombine.high %v862, %v862
  %v881 = vcombine.high %v863, %v863
  %v882 = vcombine.high %v864, %v864
  %v883 = vcombine.high %v865, %v865
  %884 = vrot.lane.b32.xlu0 %v858, 60
  %v885 = vpop.permute.xlu0 %884
  %886 = vrot.lane.b32.xlu0 %v876, 60
  %v887 = vpop.permute.xlu0 %886
  %888 = vrot.lane.b32.xlu0 %v859, 60
  %v889 = vpop.permute.xlu0 %888
  %890 = vrot.lane.b32.xlu0 %v877, 60
  %v891 = vpop.permute.xlu0 %890
  %892 = vrot.lane.b32.xlu0 %v860, 60
  %v893 = vpop.permute.xlu0 %892
  %894 = vrot.lane.b32.xlu0 %v878, 60
  %v895 = vpop.permute.xlu0 %894
  %896 = vrot.lane.b32.xlu0 %v861, 60
  %v897 = vpop.permute.xlu0 %896
  %898 = vrot.lane.b32.xlu0 %v879, 60
  %v899 = vpop.permute.xlu0 %898
  %900 = vrot.lane.b32.xlu0 %v862, 60
  %v901 = vpop.permute.xlu0 %900
  %902 = vrot.lane.b32.xlu0 %v880, 60
  %v903 = vpop.permute.xlu0 %902
  %904 = vrot.lane.b32.xlu0 %v863, 60
  %v905 = vpop.permute.xlu0 %904
  %906 = vrot.lane.b32.xlu0 %v881, 60
  %v907 = vpop.permute.xlu0 %906
  %908 = vrot.lane.b32.xlu0 %v864, 60
  %v909 = vpop.permute.xlu0 %908
  %910 = vrot.lane.b32.xlu0 %v882, 60
  %v911 = vpop.permute.xlu0 %910
  %912 = vrot.lane.b32.xlu0 %v865, 60
  %v913 = vpop.permute.xlu0 %912
  %914 = vrot.lane.b32.xlu0 %v883, 60
  %v915 = vpop.permute.xlu0 %914
  %916 = vrot.lane.b32.xlu0 %v866, 60
  %v917 = vpop.permute.xlu0 %916
  %vm918 = vcmask 490496
  %v919 = vsel %vm918, %v885, %v887
  %v920 = vsel %vm918, %v887, %v889
  %v921 = vsel %vm918, %v889, %v891
  %v922 = vsel %vm918, %v891, %v893
  %v923 = vsel %vm918, %v893, %v895
  %v924 = vsel %vm918, %v895, %v897
  %v925 = vsel %vm918, %v897, %v899
  %v926 = vsel %vm918, %v899, %v901
  %v927 = vsel %vm918, %v901, %v903
  %v928 = vsel %vm918, %v903, %v905
  %v929 = vsel %vm918, %v905, %v907
  %v930 = vsel %vm918, %v907, %v909
  %v931 = vsel %vm918, %v909, %v911
  %v932 = vsel %vm918, %v911, %v913
  %v933 = vsel %vm918, %v913, %v915
  %v934 = vsel %vm918, %v915, %v917
  %951 = vst [vmem:[#allocation2 + $0x380] sm:$0x7] %v919
  %952 = vst [vmem:[#allocation2 + $0x388] sm:$0x7] %v920
  %953 = vst [vmem:[#allocation2 + $0x390] sm:$0x7] %v921
  %954 = vst [vmem:[#allocation2 + $0x398] sm:$0x7] %v922
  %955 = vst [vmem:[#allocation2 + $0x3a0] sm:$0x7] %v923
  %956 = vst [vmem:[#allocation2 + $0x3a8] sm:$0x7] %v924
  %957 = vst [vmem:[#allocation2 + $0x3b0] sm:$0x7] %v925
  %958 = vst [vmem:[#allocation2 + $0x3b8] sm:$0x7] %v926
  %959 = vst [vmem:[#allocation2 + $0x3c0] sm:$0x7] %v927
  %960 = vst [vmem:[#allocation2 + $0x3c8] sm:$0x7] %v928
  %961 = vst [vmem:[#allocation2 + $0x3d0] sm:$0x7] %v929
  %962 = vst [vmem:[#allocation2 + $0x3d8] sm:$0x7] %v930
  %963 = vst [vmem:[#allocation2 + $0x3e0] sm:$0x7] %v931
  %964 = vst [vmem:[#allocation2 + $0x3e8] sm:$0x7] %v932
  %965 = vst [vmem:[#allocation2 + $0x3f0] sm:$0x7] %v933
  %966 = vst [vmem:[#allocation2 + $0x3f8] sm:$0x7] %v934
  %967 = vst [vmem:[#allocation2 + $0x380] sm:$0xf8] 0.0
  %968 = vst [vmem:[#allocation2 + $0x388] sm:$0xf8] 0.0
  %969 = vst [vmem:[#allocation2 + $0x390] sm:$0xf8] 0.0
  %970 = vst [vmem:[#allocation2 + $0x398] sm:$0xf8] 0.0
  %971 = vst [vmem:[#allocation2 + $0x3a0] sm:$0xf8] 0.0
  %972 = vst [vmem:[#allocation2 + $0x3a8] sm:$0xf8] 0.0
  %973 = vst [vmem:[#allocation2 + $0x3b0] sm:$0xf8] 0.0
  %974 = vst [vmem:[#allocation2 + $0x3b8] sm:$0xf8] 0.0
  %975 = vst [vmem:[#allocation2 + $0x3c0] sm:$0xf8] 0.0
  %976 = vst [vmem:[#allocation2 + $0x3c8] sm:$0xf8] 0.0
  %977 = vst [vmem:[#allocation2 + $0x3d0] sm:$0xf8] 0.0
  %978 = vst [vmem:[#allocation2 + $0x3d8] sm:$0xf8] 0.0
  %979 = vst [vmem:[#allocation2 + $0x3e0] sm:$0xf8] 0.0
  %980 = vst [vmem:[#allocation2 + $0x3e8] sm:$0xf8] 0.0
  %981 = vst [vmem:[#allocation2 + $0x3f0] sm:$0xf8] 0.0
  %982 = vst [vmem:[#allocation2 + $0x3f8] sm:$0xf8] 0.0
  %v983 = vld [vmem:[%s0] sm:$0x77]
  %v984 = vld [vmem:[%s0 + $0x8] sm:$0x77]
  %v985 = vld [vmem:[%s0 + $0x10] sm:$0x77]
  %v986 = vld [vmem:[%s0 + $0x18] sm:$0x77]
  %v987 = vld [vmem:[%s0 + $0x20] sm:$0x77]
  %v988 = vld [vmem:[%s0 + $0x28] sm:$0x77]
  %v989 = vld [vmem:[%s0 + $0x30] sm:$0x77]
  %v990 = vld [vmem:[%s0 + $0x38] sm:$0x77]
  %v991 = vld [vmem:[%s0 + $0x40] sm:$0x7]
  %v1001 = vcombine.high %v983, %v983
  %v1002 = vcombine.high %v984, %v984
  %v1003 = vcombine.high %v985, %v985
  %v1004 = vcombine.high %v986, %v986
  %v1005 = vcombine.high %v987, %v987
  %v1006 = vcombine.high %v988, %v988
  %v1007 = vcombine.high %v989, %v989
  %v1008 = vcombine.high %v990, %v990
  %1009 = vrot.lane.b32.xlu0 %v983, 58
  %v1010 = vpop.permute.xlu0 %1009
  %1011 = vrot.lane.b32.xlu0 %v1001, 58
  %v1012 = vpop.permute.xlu0 %1011
  %1013 = vrot.lane.b32.xlu0 %v984, 58
  %v1014 = vpop.permute.xlu0 %1013
  %1015 = vrot.lane.b32.xlu0 %v1002, 58
  %v1016 = vpop.permute.xlu0 %1015
  %1017 = vrot.lane.b32.xlu0 %v985, 58
  %v1018 = vpop.permute.xlu0 %1017
  %1019 = vrot.lane.b32.xlu0 %v1003, 58
  %v1020 = vpop.permute.xlu0 %1019
  %1021 = vrot.lane.b32.xlu0 %v986, 58
  %v1022 = vpop.permute.xlu0 %1021
  %1023 = vrot.lane.b32.xlu0 %v1004, 58
  %v1024 = vpop.permute.xlu0 %1023
  %1025 = vrot.lane.b32.xlu0 %v987, 58
  %v1026 = vpop.permute.xlu0 %1025
  %1027 = vrot.lane.b32.xlu0 %v1005, 58
  %v1028 = vpop.permute.xlu0 %1027
  %1029 = vrot.lane.b32.xlu0 %v988, 58
  %v1030 = vpop.permute.xlu0 %1029
  %1031 = vrot.lane.b32.xlu0 %v1006, 58
  %v1032 = vpop.permute.xlu0 %1031
  %1033 = vrot.lane.b32.xlu0 %v989, 58
  %v1034 = vpop.permute.xlu0 %1033
  %1035 = vrot.lane.b32.xlu0 %v1007, 58
  %v1036 = vpop.permute.xlu0 %1035
  %1037 = vrot.lane.b32.xlu0 %v990, 58
  %v1038 = vpop.permute.xlu0 %1037
  %1039 = vrot.lane.b32.xlu0 %v1008, 58
  %v1040 = vpop.permute.xlu0 %1039
  %1041 = vrot.lane.b32.xlu0 %v991, 58
  %v1042 = vpop.permute.xlu0 %1041
  %vm1043 = vcmask 474112
  %v1044 = vsel %vm1043, %v1010, %v1012
  %v1045 = vsel %vm1043, %v1012, %v1014
  %v1046 = vsel %vm1043, %v1014, %v1016
  %v1047 = vsel %vm1043, %v1016, %v1018
  %v1048 = vsel %vm1043, %v1018, %v1020
  %v1049 = vsel %vm1043, %v1020, %v1022
  %v1050 = vsel %vm1043, %v1022, %v1024
  %v1051 = vsel %vm1043, %v1024, %v1026
  %v1052 = vsel %vm1043, %v1026, %v1028
  %v1053 = vsel %vm1043, %v1028, %v1030
  %v1054 = vsel %vm1043, %v1030, %v1032
  %v1055 = vsel %vm1043, %v1032, %v1034
  %v1056 = vsel %vm1043, %v1034, %v1036
  %v1057 = vsel %vm1043, %v1036, %v1038
  %v1058 = vsel %vm1043, %v1038, %v1040
  %v1059 = vsel %vm1043, %v1040, %v1042
  %1076 = vst [vmem:[#allocation2 + $0x400] sm:$0x7] %v1044
  %1077 = vst [vmem:[#allocation2 + $0x408] sm:$0x7] %v1045
  %1078 = vst [vmem:[#allocation2 + $0x410] sm:$0x7] %v1046
  %1079 = vst [vmem:[#allocation2 + $0x418] sm:$0x7] %v1047
  %1080 = vst [vmem:[#allocation2 + $0x420] sm:$0x7] %v1048
  %1081 = vst [vmem:[#allocation2 + $0x428] sm:$0x7] %v1049
  %1082 = vst [vmem:[#allocation2 + $0x430] sm:$0x7] %v1050
  %1083 = vst [vmem:[#allocation2 + $0x438] sm:$0x7] %v1051
  %1084 = vst [vmem:[#allocation2 + $0x440] sm:$0x7] %v1052
  %1085 = vst [vmem:[#allocation2 + $0x448] sm:$0x7] %v1053
  %1086 = vst [vmem:[#allocation2 + $0x450] sm:$0x7] %v1054
  %1087 = vst [vmem:[#allocation2 + $0x458] sm:$0x7] %v1055
  %1088 = vst [vmem:[#allocation2 + $0x460] sm:$0x7] %v1056
  %1089 = vst [vmem:[#allocation2 + $0x468] sm:$0x7] %v1057
  %1090 = vst [vmem:[#allocation2 + $0x470] sm:$0x7] %v1058
  %1091 = vst [vmem:[#allocation2 + $0x478] sm:$0x7] %v1059
  %1092 = vst [vmem:[#allocation2 + $0x400] sm:$0xf8] 0.0
  %1093 = vst [vmem:[#allocation2 + $0x408] sm:$0xf8] 0.0
  %1094 = vst [vmem:[#allocation2 + $0x410] sm:$0xf8] 0.0
  %1095 = vst [vmem:[#allocation2 + $0x418] sm:$0xf8] 0.0
  %1096 = vst [vmem:[#allocation2 + $0x420] sm:$0xf8] 0.0
  %1097 = vst [vmem:[#allocation2 + $0x428] sm:$0xf8] 0.0
  %1098 = vst [vmem:[#allocation2 + $0x430] sm:$0xf8] 0.0
  %1099 = vst [vmem:[#allocation2 + $0x438] sm:$0xf8] 0.0
  %1100 = vst [vmem:[#allocation2 + $0x440] sm:$0xf8] 0.0
  %1101 = vst [vmem:[#allocation2 + $0x448] sm:$0xf8] 0.0
  %1102 = vst [vmem:[#allocation2 + $0x450] sm:$0xf8] 0.0
  %1103 = vst [vmem:[#allocation2 + $0x458] sm:$0xf8] 0.0
  %1104 = vst [vmem:[#allocation2 + $0x460] sm:$0xf8] 0.0
  %1105 = vst [vmem:[#allocation2 + $0x468] sm:$0xf8] 0.0
  %1106 = vst [vmem:[#allocation2 + $0x470] sm:$0xf8] 0.0
  %1107 = vst [vmem:[#allocation2 + $0x478] sm:$0xf8] 0.0
  %v1108 = vld [vmem:[%s0] sm:$0x77]
  %v1109 = vld [vmem:[%s0 + $0x8] sm:$0x77]
  %v1110 = vld [vmem:[%s0 + $0x10] sm:$0x77]
  %v1111 = vld [vmem:[%s0 + $0x18] sm:$0x77]
  %v1112 = vld [vmem:[%s0 + $0x20] sm:$0x77]
  %v1113 = vld [vmem:[%s0 + $0x28] sm:$0x77]
  %v1114 = vld [vmem:[%s0 + $0x30] sm:$0x77]
  %v1115 = vld [vmem:[%s0 + $0x38] sm:$0x77]
  %v1116 = vld [vmem:[%s0 + $0x40] sm:$0x7]
  %v1126 = vcombine.high %v1108, %v1108
  %v1127 = vcombine.high %v1109, %v1109
  %v1128 = vcombine.high %v1110, %v1110
  %v1129 = vcombine.high %v1111, %v1111
  %v1130 = vcombine.high %v1112, %v1112
  %v1131 = vcombine.high %v1113, %v1113
  %v1132 = vcombine.high %v1114, %v1114
  %v1133 = vcombine.high %v1115, %v1115
  %1134 = vrot.lane.b32.xlu0 %v1108, 56
  %v1135 = vpop.permute.xlu0 %1134
  %1136 = vrot.lane.b32.xlu0 %v1126, 56
  %v1137 = vpop.permute.xlu0 %1136
  %1138 = vrot.lane.b32.xlu0 %v1109, 56
  %v1139 = vpop.permute.xlu0 %1138
  %1140 = vrot.lane.b32.xlu0 %v1127, 56
  %v1141 = vpop.permute.xlu0 %1140
  %1142 = vrot.lane.b32.xlu0 %v1110, 56
  %v1143 = vpop.permute.xlu0 %1142
  %1144 = vrot.lane.b32.xlu0 %v1128, 56
  %v1145 = vpop.permute.xlu0 %1144
  %1146 = vrot.lane.b32.xlu0 %v1111, 56
  %v1147 = vpop.permute.xlu0 %1146
  %1148 = vrot.lane.b32.xlu0 %v1129, 56
  %v1149 = vpop.permute.xlu0 %1148
  %1150 = vrot.lane.b32.xlu0 %v1112, 56
  %v1151 = vpop.permute.xlu0 %1150
  %1152 = vrot.lane.b32.xlu0 %v1130, 56
  %v1153 = vpop.permute.xlu0 %1152
  %1154 = vrot.lane.b32.xlu0 %v1113, 56
  %v1155 = vpop.permute.xlu0 %1154
  %1156 = vrot.lane.b32.xlu0 %v1131, 56
  %v1157 = vpop.permute.xlu0 %1156
  %1158 = vrot.lane.b32.xlu0 %v1114, 56
  %v1159 = vpop.permute.xlu0 %1158
  %1160 = vrot.lane.b32.xlu0 %v1132, 56
  %v1161 = vpop.permute.xlu0 %1160
  %1162 = vrot.lane.b32.xlu0 %v1115, 56
  %v1163 = vpop.permute.xlu0 %1162
  %1164 = vrot.lane.b32.xlu0 %v1133, 56
  %v1165 = vpop.permute.xlu0 %1164
  %1166 = vrot.lane.b32.xlu0 %v1116, 56
  %v1167 = vpop.permute.xlu0 %1166
  %vm1168 = vcmask 457728
  %v1169 = vsel %vm1168, %v1135, %v1137
  %v1170 = vsel %vm1168, %v1137, %v1139
  %v1171 = vsel %vm1168, %v1139, %v1141
  %v1172 = vsel %vm1168, %v1141, %v1143
  %v1173 = vsel %vm1168, %v1143, %v1145
  %v1174 = vsel %vm1168, %v1145, %v1147
  %v1175 = vsel %vm1168, %v1147, %v1149
  %v1176 = vsel %vm1168, %v1149, %v1151
  %v1177 = vsel %vm1168, %v1151, %v1153
  %v1178 = vsel %vm1168, %v1153, %v1155
  %v1179 = vsel %vm1168, %v1155, %v1157
  %v1180 = vsel %vm1168, %v1157, %v1159
  %v1181 = vsel %vm1168, %v1159, %v1161
  %v1182 = vsel %vm1168, %v1161, %v1163
  %v1183 = vsel %vm1168, %v1163, %v1165
  %v1184 = vsel %vm1168, %v1165, %v1167
  %1201 = vst [vmem:[#allocation2 + $0x480] sm:$0x7] %v1169
  %1202 = vst [vmem:[#allocation2 + $0x488] sm:$0x7] %v1170
  %1203 = vst [vmem:[#allocation2 + $0x490] sm:$0x7] %v1171
  %1204 = vst [vmem:[#allocation2 + $0x498] sm:$0x7] %v1172
  %1205 = vst [vmem:[#allocation2 + $0x4a0] sm:$0x7] %v1173
  %1206 = vst [vmem:[#allocation2 + $0x4a8] sm:$0x7] %v1174
  %1207 = vst [vmem:[#allocation2 + $0x4b0] sm:$0x7] %v1175
  %1208 = vst [vmem:[#allocation2 + $0x4b8] sm:$0x7] %v1176
  %1209 = vst [vmem:[#allocation2 + $0x4c0] sm:$0x7] %v1177
  %1210 = vst [vmem:[#allocation2 + $0x4c8] sm:$0x7] %v1178
  %1211 = vst [vmem:[#allocation2 + $0x4d0] sm:$0x7] %v1179
  %1212 = vst [vmem:[#allocation2 + $0x4d8] sm:$0x7] %v1180
  %1213 = vst [vmem:[#allocation2 + $0x4e0] sm:$0x7] %v1181
  %1214 = vst [vmem:[#allocation2 + $0x4e8] sm:$0x7] %v1182
  %1215 = vst [vmem:[#allocation2 + $0x4f0] sm:$0x7] %v1183
  %1216 = vst [vmem:[#allocation2 + $0x4f8] sm:$0x7] %v1184
  %1217 = vst [vmem:[#allocation2 + $0x480] sm:$0xf8] 0.0
  %1218 = vst [vmem:[#allocation2 + $0x488] sm:$0xf8] 0.0
  %1219 = vst [vmem:[#allocation2 + $0x490] sm:$0xf8] 0.0
  %1220 = vst [vmem:[#allocation2 + $0x498] sm:$0xf8] 0.0
  %1221 = vst [vmem:[#allocation2 + $0x4a0] sm:$0xf8] 0.0
  %1222 = vst [vmem:[#allocation2 + $0x4a8] sm:$0xf8] 0.0
  %1223 = vst [vmem:[#allocation2 + $0x4b0] sm:$0xf8] 0.0
  %1224 = vst [vmem:[#allocation2 + $0x4b8] sm:$0xf8] 0.0
  %1225 = vst [vmem:[#allocation2 + $0x4c0] sm:$0xf8] 0.0
  %1226 = vst [vmem:[#allocation2 + $0x4c8] sm:$0xf8] 0.0
  %1227 = vst [vmem:[#allocation2 + $0x4d0] sm:$0xf8] 0.0
  %1228 = vst [vmem:[#allocation2 + $0x4d8] sm:$0xf8] 0.0
  %1229 = vst [vmem:[#allocation2 + $0x4e0] sm:$0xf8] 0.0
  %1230 = vst [vmem:[#allocation2 + $0x4e8] sm:$0xf8] 0.0
  %1231 = vst [vmem:[#allocation2 + $0x4f0] sm:$0xf8] 0.0
  %1232 = vst [vmem:[#allocation2 + $0x4f8] sm:$0xf8] 0.0
  %v1233 = vld [vmem:[%s0 + $0x4] sm:$0x77]
  %v1234 = vld [vmem:[%s0 + $0xc] sm:$0x77]
  %v1235 = vld [vmem:[%s0 + $0x14] sm:$0x77]
  %v1236 = vld [vmem:[%s0 + $0x1c] sm:$0x77]
  %v1237 = vld [vmem:[%s0 + $0x24] sm:$0x77]
  %v1238 = vld [vmem:[%s0 + $0x2c] sm:$0x77]
  %v1239 = vld [vmem:[%s0 + $0x34] sm:$0x77]
  %v1240 = vld [vmem:[%s0 + $0x3c] sm:$0x77]
  %v1249 = vcombine.high %v1233, %v1233
  %v1250 = vcombine.high %v1234, %v1234
  %v1251 = vcombine.high %v1235, %v1235
  %v1252 = vcombine.high %v1236, %v1236
  %v1253 = vcombine.high %v1237, %v1237
  %v1254 = vcombine.high %v1238, %v1238
  %v1255 = vcombine.high %v1239, %v1239
  %v1256 = vcombine.high %v1240, %v1240
  %1265 = vst [vmem:[#allocation2 + $0x500] sm:$0x7] %v1233
  %1266 = vst [vmem:[#allocation2 + $0x508] sm:$0x7] %v1249
  %1267 = vst [vmem:[#allocation2 + $0x510] sm:$0x7] %v1234
  %1268 = vst [vmem:[#allocation2 + $0x518] sm:$0x7] %v1250
  %1269 = vst [vmem:[#allocation2 + $0x520] sm:$0x7] %v1235
  %1270 = vst [vmem:[#allocation2 + $0x528] sm:$0x7] %v1251
  %1271 = vst [vmem:[#allocation2 + $0x530] sm:$0x7] %v1236
  %1272 = vst [vmem:[#allocation2 + $0x538] sm:$0x7] %v1252
  %1273 = vst [vmem:[#allocation2 + $0x540] sm:$0x7] %v1237
  %1274 = vst [vmem:[#allocation2 + $0x548] sm:$0x7] %v1253
  %1275 = vst [vmem:[#allocation2 + $0x550] sm:$0x7] %v1238
  %1276 = vst [vmem:[#allocation2 + $0x558] sm:$0x7] %v1254
  %1277 = vst [vmem:[#allocation2 + $0x560] sm:$0x7] %v1239
  %1278 = vst [vmem:[#allocation2 + $0x568] sm:$0x7] %v1255
  %1279 = vst [vmem:[#allocation2 + $0x570] sm:$0x7] %v1240
  %1280 = vst [vmem:[#allocation2 + $0x578] sm:$0x7] %v1256
  %1281 = vst [vmem:[#allocation2 + $0x500] sm:$0xf8] 0.0
  %1282 = vst [vmem:[#allocation2 + $0x508] sm:$0xf8] 0.0
  %1283 = vst [vmem:[#allocation2 + $0x510] sm:$0xf8] 0.0
  %1284 = vst [vmem:[#allocation2 + $0x518] sm:$0xf8] 0.0
  %1285 = vst [vmem:[#allocation2 + $0x520] sm:$0xf8] 0.0
  %1286 = vst [vmem:[#allocation2 + $0x528] sm:$0xf8] 0.0
  %1287 = vst [vmem:[#allocation2 + $0x530] sm:$0xf8] 0.0
  %1288 = vst [vmem:[#allocation2 + $0x538] sm:$0xf8] 0.0
  %1289 = vst [vmem:[#allocation2 + $0x540] sm:$0xf8] 0.0
  %1290 = vst [vmem:[#allocation2 + $0x548] sm:$0xf8] 0.0
  %1291 = vst [vmem:[#allocation2 + $0x550] sm:$0xf8] 0.0
  %1292 = vst [vmem:[#allocation2 + $0x558] sm:$0xf8] 0.0
  %1293 = vst [vmem:[#allocation2 + $0x560] sm:$0xf8] 0.0
  %1294 = vst [vmem:[#allocation2 + $0x568] sm:$0xf8] 0.0
  %1295 = vst [vmem:[#allocation2 + $0x570] sm:$0xf8] 0.0
  %1296 = vst [vmem:[#allocation2 + $0x578] sm:$0xf8] 0.0
  %v1297 = vld [vmem:[%s0 + $0x4] sm:$0x77]
  %v1298 = vld [vmem:[%s0 + $0xc] sm:$0x77]
  %v1299 = vld [vmem:[%s0 + $0x14] sm:$0x77]
  %v1300 = vld [vmem:[%s0 + $0x1c] sm:$0x77]
  %v1301 = vld [vmem:[%s0 + $0x24] sm:$0x77]
  %v1302 = vld [vmem:[%s0 + $0x2c] sm:$0x77]
  %v1303 = vld [vmem:[%s0 + $0x34] sm:$0x77]
  %v1304 = vld [vmem:[%s0 + $0x3c] sm:$0x77]
  %v1305 = vld [vmem:[%s0 + $0x44] sm:$0x7]
  %v1315 = vcombine.high %v1297, %v1297
  %v1316 = vcombine.high %v1298, %v1298
  %v1317 = vcombine.high %v1299, %v1299
  %v1318 = vcombine.high %v1300, %v1300
  %v1319 = vcombine.high %v1301, %v1301
  %v1320 = vcombine.high %v1302, %v1302
  %v1321 = vcombine.high %v1303, %v1303
  %v1322 = vcombine.high %v1304, %v1304
  %1323 = vrot.lane.b32.xlu0 %v1297, 126
  %v1324 = vpop.permute.xlu0 %1323
  %1325 = vrot.lane.b32.xlu0 %v1315, 126
  %v1326 = vpop.permute.xlu0 %1325
  %1327 = vrot.lane.b32.xlu0 %v1298, 126
  %v1328 = vpop.permute.xlu0 %1327
  %1329 = vrot.lane.b32.xlu0 %v1316, 126
  %v1330 = vpop.permute.xlu0 %1329
  %1331 = vrot.lane.b32.xlu0 %v1299, 126
  %v1332 = vpop.permute.xlu0 %1331
  %1333 = vrot.lane.b32.xlu0 %v1317, 126
  %v1334 = vpop.permute.xlu0 %1333
  %1335 = vrot.lane.b32.xlu0 %v1300, 126
  %v1336 = vpop.permute.xlu0 %1335
  %1337 = vrot.lane.b32.xlu0 %v1318, 126
  %v1338 = vpop.permute.xlu0 %1337
  %1339 = vrot.lane.b32.xlu0 %v1301, 126
  %v1340 = vpop.permute.xlu0 %1339
  %1341 = vrot.lane.b32.xlu0 %v1319, 126
  %v1342 = vpop.permute.xlu0 %1341
  %1343 = vrot.lane.b32.xlu0 %v1302, 126
  %v1344 = vpop.permute.xlu0 %1343
  %1345 = vrot.lane.b32.xlu0 %v1320, 126
  %v1346 = vpop.permute.xlu0 %1345
  %1347 = vrot.lane.b32.xlu0 %v1303, 126
  %v1348 = vpop.permute.xlu0 %1347
  %1349 = vrot.lane.b32.xlu0 %v1321, 126
  %v1350 = vpop.permute.xlu0 %1349
  %1351 = vrot.lane.b32.xlu0 %v1304, 126
  %v1352 = vpop.permute.xlu0 %1351
  %1353 = vrot.lane.b32.xlu0 %v1322, 126
  %v1354 = vpop.permute.xlu0 %1353
  %1355 = vrot.lane.b32.xlu0 %v1305, 126
  %v1356 = vpop.permute.xlu0 %1355
  %v1357 = vsel %vm168, %v1324, %v1326
  %v1358 = vsel %vm168, %v1326, %v1328
  %v1359 = vsel %vm168, %v1328, %v1330
  %v1360 = vsel %vm168, %v1330, %v1332
  %v1361 = vsel %vm168, %v1332, %v1334
  %v1362 = vsel %vm168, %v1334, %v1336
  %v1363 = vsel %vm168, %v1336, %v1338
  %v1364 = vsel %vm168, %v1338, %v1340
  %v1365 = vsel %vm168, %v1340, %v1342
  %v1366 = vsel %vm168, %v1342, %v1344
  %v1367 = vsel %vm168, %v1344, %v1346
  %v1368 = vsel %vm168, %v1346, %v1348
  %v1369 = vsel %vm168, %v1348, %v1350
  %v1370 = vsel %vm168, %v1350, %v1352
  %v1371 = vsel %vm168, %v1352, %v1354
  %v1372 = vsel %vm168, %v1354, %v1356
  %1389 = vst [vmem:[#allocation2 + $0x580] sm:$0x7] %v1357
  %1390 = vst [vmem:[#allocation2 + $0x588] sm:$0x7] %v1358
  %1391 = vst [vmem:[#allocation2 + $0x590] sm:$0x7] %v1359
  %1392 = vst [vmem:[#allocation2 + $0x598] sm:$0x7] %v1360
  %1393 = vst [vmem:[#allocation2 + $0x5a0] sm:$0x7] %v1361
  %1394 = vst [vmem:[#allocation2 + $0x5a8] sm:$0x7] %v1362
  %1395 = vst [vmem:[#allocation2 + $0x5b0] sm:$0x7] %v1363
  %1396 = vst [vmem:[#allocation2 + $0x5b8] sm:$0x7] %v1364
  %1397 = vst [vmem:[#allocation2 + $0x5c0] sm:$0x7] %v1365
  %1398 = vst [vmem:[#allocation2 + $0x5c8] sm:$0x7] %v1366
  %1399 = vst [vmem:[#allocation2 + $0x5d0] sm:$0x7] %v1367
  %1400 = vst [vmem:[#allocation2 + $0x5d8] sm:$0x7] %v1368
  %1401 = vst [vmem:[#allocation2 + $0x5e0] sm:$0x7] %v1369
  %1402 = vst [vmem:[#allocation2 + $0x5e8] sm:$0x7] %v1370
  %1403 = vst [vmem:[#allocation2 + $0x5f0] sm:$0x7] %v1371
  %1404 = vst [vmem:[#allocation2 + $0x5f8] sm:$0x7] %v1372
  %1405 = vst [vmem:[#allocation2 + $0x580] sm:$0xf8] 0.0
  %1406 = vst [vmem:[#allocation2 + $0x588] sm:$0xf8] 0.0
  %1407 = vst [vmem:[#allocation2 + $0x590] sm:$0xf8] 0.0
  %1408 = vst [vmem:[#allocation2 + $0x598] sm:$0xf8] 0.0
  %1409 = vst [vmem:[#allocation2 + $0x5a0] sm:$0xf8] 0.0
  %1410 = vst [vmem:[#allocation2 + $0x5a8] sm:$0xf8] 0.0
  %1411 = vst [vmem:[#allocation2 + $0x5b0] sm:$0xf8] 0.0
  %1412 = vst [vmem:[#allocation2 + $0x5b8] sm:$0xf8] 0.0
  %1413 = vst [vmem:[#allocation2 + $0x5c0] sm:$0xf8] 0.0
  %1414 = vst [vmem:[#allocation2 + $0x5c8] sm:$0xf8] 0.0
  %1415 = vst [vmem:[#allocation2 + $0x5d0] sm:$0xf8] 0.0
  %1416 = vst [vmem:[#allocation2 + $0x5d8] sm:$0xf8] 0.0
  %1417 = vst [vmem:[#allocation2 + $0x5e0] sm:$0xf8] 0.0
  %1418 = vst [vmem:[#allocation2 + $0x5e8] sm:$0xf8] 0.0
  %1419 = vst [vmem:[#allocation2 + $0x5f0] sm:$0xf8] 0.0
  %1420 = vst [vmem:[#allocation2 + $0x5f8] sm:$0xf8] 0.0
  %v1421 = vld [vmem:[%s0 + $0x4] sm:$0x77]
  %v1422 = vld [vmem:[%s0 + $0xc] sm:$0x77]
  %v1423 = vld [vmem:[%s0 + $0x14] sm:$0x77]
  %v1424 = vld [vmem:[%s0 + $0x1c] sm:$0x77]
  %v1425 = vld [vmem:[%s0 + $0x24] sm:$0x77]
  %v1426 = vld [vmem:[%s0 + $0x2c] sm:$0x77]
  %v1427 = vld [vmem:[%s0 + $0x34] sm:$0x77]
  %v1428 = vld [vmem:[%s0 + $0x3c] sm:$0x77]
  %v1429 = vld [vmem:[%s0 + $0x44] sm:$0x7]
  %v1439 = vcombine.high %v1421, %v1421
  %v1440 = vcombine.high %v1422, %v1422
  %v1441 = vcombine.high %v1423, %v1423
  %v1442 = vcombine.high %v1424, %v1424
  %v1443 = vcombine.high %v1425, %v1425
  %v1444 = vcombine.high %v1426, %v1426
  %v1445 = vcombine.high %v1427, %v1427
  %v1446 = vcombine.high %v1428, %v1428
  %1447 = vrot.lane.b32.xlu0 %v1421, 124
  %v1448 = vpop.permute.xlu0 %1447
  %1449 = vrot.lane.b32.xlu0 %v1439, 124
  %v1450 = vpop.permute.xlu0 %1449
  %1451 = vrot.lane.b32.xlu0 %v1422, 124
  %v1452 = vpop.permute.xlu0 %1451
  %1453 = vrot.lane.b32.xlu0 %v1440, 124
  %v1454 = vpop.permute.xlu0 %1453
  %1455 = vrot.lane.b32.xlu0 %v1423, 124
  %v1456 = vpop.permute.xlu0 %1455
  %1457 = vrot.lane.b32.xlu0 %v1441, 124
  %v1458 = vpop.permute.xlu0 %1457
  %1459 = vrot.lane.b32.xlu0 %v1424, 124
  %v1460 = vpop.permute.xlu0 %1459
  %1461 = vrot.lane.b32.xlu0 %v1442, 124
  %v1462 = vpop.permute.xlu0 %1461
  %1463 = vrot.lane.b32.xlu0 %v1425, 124
  %v1464 = vpop.permute.xlu0 %1463
  %1465 = vrot.lane.b32.xlu0 %v1443, 124
  %v1466 = vpop.permute.xlu0 %1465
  %1467 = vrot.lane.b32.xlu0 %v1426, 124
  %v1468 = vpop.permute.xlu0 %1467
  %1469 = vrot.lane.b32.xlu0 %v1444, 124
  %v1470 = vpop.permute.xlu0 %1469
  %1471 = vrot.lane.b32.xlu0 %v1427, 124
  %v1472 = vpop.permute.xlu0 %1471
  %1473 = vrot.lane.b32.xlu0 %v1445, 124
  %v1474 = vpop.permute.xlu0 %1473
  %1475 = vrot.lane.b32.xlu0 %v1428, 124
  %v1476 = vpop.permute.xlu0 %1475
  %1477 = vrot.lane.b32.xlu0 %v1446, 124
  %v1478 = vpop.permute.xlu0 %1477
  %1479 = vrot.lane.b32.xlu0 %v1429, 124
  %v1480 = vpop.permute.xlu0 %1479
  %v1481 = vsel %vm293, %v1448, %v1450
  %v1482 = vsel %vm293, %v1450, %v1452
  %v1483 = vsel %vm293, %v1452, %v1454
  %v1484 = vsel %vm293, %v1454, %v1456
  %v1485 = vsel %vm293, %v1456, %v1458
  %v1486 = vsel %vm293, %v1458, %v1460
  %v1487 = vsel %vm293, %v1460, %v1462
  %v1488 = vsel %vm293, %v1462, %v1464
  %v1489 = vsel %vm293, %v1464, %v1466
  %v1490 = vsel %vm293, %v1466, %v1468
  %v1491 = vsel %vm293, %v1468, %v1470
  %v1492 = vsel %vm293, %v1470, %v1472
  %v1493 = vsel %vm293, %v1472, %v1474
  %v1494 = vsel %vm293, %v1474, %v1476
  %v1495 = vsel %vm293, %v1476, %v1478
  %v1496 = vsel %vm293, %v1478, %v1480
  %1513 = vst [vmem:[#allocation2 + $0x600] sm:$0x7] %v1481
  %1514 = vst [vmem:[#allocation2 + $0x608] sm:$0x7] %v1482
  %1515 = vst [vmem:[#allocation2 + $0x610] sm:$0x7] %v1483
  %1516 = vst [vmem:[#allocation2 + $0x618] sm:$0x7] %v1484
  %1517 = vst [vmem:[#allocation2 + $0x620] sm:$0x7] %v1485
  %1518 = vst [vmem:[#allocation2 + $0x628] sm:$0x7] %v1486
  %1519 = vst [vmem:[#allocation2 + $0x630] sm:$0x7] %v1487
  %1520 = vst [vmem:[#allocation2 + $0x638] sm:$0x7] %v1488
  %1521 = vst [vmem:[#allocation2 + $0x640] sm:$0x7] %v1489
  %1522 = vst [vmem:[#allocation2 + $0x648] sm:$0x7] %v1490
  %1523 = vst [vmem:[#allocation2 + $0x650] sm:$0x7] %v1491
  %1524 = vst [vmem:[#allocation2 + $0x658] sm:$0x7] %v1492
  %1525 = vst [vmem:[#allocation2 + $0x660] sm:$0x7] %v1493
  %1526 = vst [vmem:[#allocation2 + $0x668] sm:$0x7] %v1494
  %1527 = vst [vmem:[#allocation2 + $0x670] sm:$0x7] %v1495
  %1528 = vst [vmem:[#allocation2 + $0x678] sm:$0x7] %v1496
  %1529 = vst [vmem:[#allocation2 + $0x600] sm:$0xf8] 0.0
  %1530 = vst [vmem:[#allocation2 + $0x608] sm:$0xf8] 0.0
  %1531 = vst [vmem:[#allocation2 + $0x610] sm:$0xf8] 0.0
  %1532 = vst [vmem:[#allocation2 + $0x618] sm:$0xf8] 0.0
  %1533 = vst [vmem:[#allocation2 + $0x620] sm:$0xf8] 0.0
  %1534 = vst [vmem:[#allocation2 + $0x628] sm:$0xf8] 0.0
  %1535 = vst [vmem:[#allocation2 + $0x630] sm:$0xf8] 0.0
  %1536 = vst [vmem:[#allocation2 + $0x638] sm:$0xf8] 0.0
  %1537 = vst [vmem:[#allocation2 + $0x640] sm:$0xf8] 0.0
  %1538 = vst [vmem:[#allocation2 + $0x648] sm:$0xf8] 0.0
  %1539 = vst [vmem:[#allocation2 + $0x650] sm:$0xf8] 0.0
  %1540 = vst [vmem:[#allocation2 + $0x658] sm:$0xf8] 0.0
  %1541 = vst [vmem:[#allocation2 + $0x660] sm:$0xf8] 0.0
  %1542 = vst [vmem:[#allocation2 + $0x668] sm:$0xf8] 0.0
  %1543 = vst [vmem:[#allocation2 + $0x670] sm:$0xf8] 0.0
  %1544 = vst [vmem:[#allocation2 + $0x678] sm:$0xf8] 0.0
  %v1545 = vld [vmem:[%s0 + $0x4] sm:$0x77]
  %v1546 = vld [vmem:[%s0 + $0xc] sm:$0x77]
  %v1547 = vld [vmem:[%s0 + $0x14] sm:$0x77]
  %v1548 = vld [vmem:[%s0 + $0x1c] sm:$0x77]
  %v1549 = vld [vmem:[%s0 + $0x24] sm:$0x77]
  %v1550 = vld [vmem:[%s0 + $0x2c] sm:$0x77]
  %v1551 = vld [vmem:[%s0 + $0x34] sm:$0x77]
  %v1552 = vld [vmem:[%s0 + $0x3c] sm:$0x77]
  %v1553 = vld [vmem:[%s0 + $0x44] sm:$0x7]
  %v1563 = vcombine.high %v1545, %v1545
  %v1564 = vcombine.high %v1546, %v1546
  %v1565 = vcombine.high %v1547, %v1547
  %v1566 = vcombine.high %v1548, %v1548
  %v1567 = vcombine.high %v1549, %v1549
  %v1568 = vcombine.high %v1550, %v1550
  %v1569 = vcombine.high %v1551, %v1551
  %v1570 = vcombine.high %v1552, %v1552
  %1571 = vrot.lane.b32.xlu0 %v1545, 122
  %v1572 = vpop.permute.xlu0 %1571
  %1573 = vrot.lane.b32.xlu0 %v1563, 122
  %v1574 = vpop.permute.xlu0 %1573
  %1575 = vrot.lane.b32.xlu0 %v1546, 122
  %v1576 = vpop.permute.xlu0 %1575
  %1577 = vrot.lane.b32.xlu0 %v1564, 122
  %v1578 = vpop.permute.xlu0 %1577
  %1579 = vrot.lane.b32.xlu0 %v1547, 122
  %v1580 = vpop.permute.xlu0 %1579
  %1581 = vrot.lane.b32.xlu0 %v1565, 122
  %v1582 = vpop.permute.xlu0 %1581
  %1583 = vrot.lane.b32.xlu0 %v1548, 122
  %v1584 = vpop.permute.xlu0 %1583
  %1585 = vrot.lane.b32.xlu0 %v1566, 122
  %v1586 = vpop.permute.xlu0 %1585
  %1587 = vrot.lane.b32.xlu0 %v1549, 122
  %v1588 = vpop.permute.xlu0 %1587
  %1589 = vrot.lane.b32.xlu0 %v1567, 122
  %v1590 = vpop.permute.xlu0 %1589
  %1591 = vrot.lane.b32.xlu0 %v1550, 122
  %v1592 = vpop.permute.xlu0 %1591
  %1593 = vrot.lane.b32.xlu0 %v1568, 122
  %v1594 = vpop.permute.xlu0 %1593
  %1595 = vrot.lane.b32.xlu0 %v1551, 122
  %v1596 = vpop.permute.xlu0 %1595
  %1597 = vrot.lane.b32.xlu0 %v1569, 122
  %v1598 = vpop.permute.xlu0 %1597
  %1599 = vrot.lane.b32.xlu0 %v1552, 122
  %v1600 = vpop.permute.xlu0 %1599
  %1601 = vrot.lane.b32.xlu0 %v1570, 122
  %v1602 = vpop.permute.xlu0 %1601
  %1603 = vrot.lane.b32.xlu0 %v1553, 122
  %v1604 = vpop.permute.xlu0 %1603
  %v1605 = vsel %vm418, %v1572, %v1574
  %v1606 = vsel %vm418, %v1574, %v1576
  %v1607 = vsel %vm418, %v1576, %v1578
  %v1608 = vsel %vm418, %v1578, %v1580
  %v1609 = vsel %vm418, %v1580, %v1582
  %v1610 = vsel %vm418, %v1582, %v1584
  %v1611 = vsel %vm418, %v1584, %v1586
  %v1612 = vsel %vm418, %v1586, %v1588
  %v1613 = vsel %vm418, %v1588, %v1590
  %v1614 = vsel %vm418, %v1590, %v1592
  %v1615 = vsel %vm418, %v1592, %v1594
  %v1616 = vsel %vm418, %v1594, %v1596
  %v1617 = vsel %vm418, %v1596, %v1598
  %v1618 = vsel %vm418, %v1598, %v1600
  %v1619 = vsel %vm418, %v1600, %v1602
  %v1620 = vsel %vm418, %v1602, %v1604
  %1637 = vst [vmem:[#allocation2 + $0x680] sm:$0x7] %v1605
  %1638 = vst [vmem:[#allocation2 + $0x688] sm:$0x7] %v1606
  %1639 = vst [vmem:[#allocation2 + $0x690] sm:$0x7] %v1607
  %1640 = vst [vmem:[#allocation2 + $0x698] sm:$0x7] %v1608
  %1641 = vst [vmem:[#allocation2 + $0x6a0] sm:$0x7] %v1609
  %1642 = vst [vmem:[#allocation2 + $0x6a8] sm:$0x7] %v1610
  %1643 = vst [vmem:[#allocation2 + $0x6b0] sm:$0x7] %v1611
  %1644 = vst [vmem:[#allocation2 + $0x6b8] sm:$0x7] %v1612
  %1645 = vst [vmem:[#allocation2 + $0x6c0] sm:$0x7] %v1613
  %1646 = vst [vmem:[#allocation2 + $0x6c8] sm:$0x7] %v1614
  %1647 = vst [vmem:[#allocation2 + $0x6d0] sm:$0x7] %v1615
  %1648 = vst [vmem:[#allocation2 + $0x6d8] sm:$0x7] %v1616
  %1649 = vst [vmem:[#allocation2 + $0x6e0] sm:$0x7] %v1617
  %1650 = vst [vmem:[#allocation2 + $0x6e8] sm:$0x7] %v1618
  %1651 = vst [vmem:[#allocation2 + $0x6f0] sm:$0x7] %v1619
  %1652 = vst [vmem:[#allocation2 + $0x6f8] sm:$0x7] %v1620
  %1653 = vst [vmem:[#allocation2 + $0x680] sm:$0xf8] 0.0
  %1654 = vst [vmem:[#allocation2 + $0x688] sm:$0xf8] 0.0
  %1655 = vst [vmem:[#allocation2 + $0x690] sm:$0xf8] 0.0
  %1656 = vst [vmem:[#allocation2 + $0x698] sm:$0xf8] 0.0
  %1657 = vst [vmem:[#allocation2 + $0x6a0] sm:$0xf8] 0.0
  %1658 = vst [vmem:[#allocation2 + $0x6a8] sm:$0xf8] 0.0
  %1659 = vst [vmem:[#allocation2 + $0x6b0] sm:$0xf8] 0.0
  %1660 = vst [vmem:[#allocation2 + $0x6b8] sm:$0xf8] 0.0
  %1661 = vst [vmem:[#allocation2 + $0x6c0] sm:$0xf8] 0.0
  %1662 = vst [vmem:[#allocation2 + $0x6c8] sm:$0xf8] 0.0
  %1663 = vst [vmem:[#allocation2 + $0x6d0] sm:$0xf8] 0.0
  %1664 = vst [vmem:[#allocation2 + $0x6d8] sm:$0xf8] 0.0
  %1665 = vst [vmem:[#allocation2 + $0x6e0] sm:$0xf8] 0.0
  %1666 = vst [vmem:[#allocation2 + $0x6e8] sm:$0xf8] 0.0
  %1667 = vst [vmem:[#allocation2 + $0x6f0] sm:$0xf8] 0.0
  %1668 = vst [vmem:[#allocation2 + $0x6f8] sm:$0xf8] 0.0
  %v1669 = vld [vmem:[%s0 + $0x4] sm:$0x77]
  %v1670 = vld [vmem:[%s0 + $0xc] sm:$0x77]
  %v1671 = vld [vmem:[%s0 + $0x14] sm:$0x77]
  %v1672 = vld [vmem:[%s0 + $0x1c] sm:$0x77]
  %v1673 = vld [vmem:[%s0 + $0x24] sm:$0x77]
  %v1674 = vld [vmem:[%s0 + $0x2c] sm:$0x77]
  %v1675 = vld [vmem:[%s0 + $0x34] sm:$0x77]
  %v1676 = vld [vmem:[%s0 + $0x3c] sm:$0x77]
  %v1677 = vld [vmem:[%s0 + $0x44] sm:$0x7]
  %v1687 = vcombine.high %v1669, %v1669
  %v1688 = vcombine.high %v1670, %v1670
  %v1689 = vcombine.high %v1671, %v1671
  %v1690 = vcombine.high %v1672, %v1672
  %v1691 = vcombine.high %v1673, %v1673
  %v1692 = vcombine.high %v1674, %v1674
  %v1693 = vcombine.high %v1675, %v1675
  %v1694 = vcombine.high %v1676, %v1676
  %1695 = vrot.lane.b32.xlu0 %v1669, 120
  %v1696 = vpop.permute.xlu0 %1695
  %1697 = vrot.lane.b32.xlu0 %v1687, 120
  %v1698 = vpop.permute.xlu0 %1697
  %1699 = vrot.lane.b32.xlu0 %v1670, 120
  %v1700 = vpop.permute.xlu0 %1699
  %1701 = vrot.lane.b32.xlu0 %v1688, 120
  %v1702 = vpop.permute.xlu0 %1701
  %1703 = vrot.lane.b32.xlu0 %v1671, 120
  %v1704 = vpop.permute.xlu0 %1703
  %1705 = vrot.lane.b32.xlu0 %v1689, 120
  %v1706 = vpop.permute.xlu0 %1705
  %1707 = vrot.lane.b32.xlu0 %v1672, 120
  %v1708 = vpop.permute.xlu0 %1707
  %1709 = vrot.lane.b32.xlu0 %v1690, 120
  %v1710 = vpop.permute.xlu0 %1709
  %1711 = vrot.lane.b32.xlu0 %v1673, 120
  %v1712 = vpop.permute.xlu0 %1711
  %1713 = vrot.lane.b32.xlu0 %v1691, 120
  %v1714 = vpop.permute.xlu0 %1713
  %1715 = vrot.lane.b32.xlu0 %v1674, 120
  %v1716 = vpop.permute.xlu0 %1715
  %1717 = vrot.lane.b32.xlu0 %v1692, 120
  %v1718 = vpop.permute.xlu0 %1717
  %1719 = vrot.lane.b32.xlu0 %v1675, 120
  %v1720 = vpop.permute.xlu0 %1719
  %1721 = vrot.lane.b32.xlu0 %v1693, 120
  %v1722 = vpop.permute.xlu0 %1721
  %1723 = vrot.lane.b32.xlu0 %v1676, 120
  %v1724 = vpop.permute.xlu0 %1723
  %1725 = vrot.lane.b32.xlu0 %v1694, 120
  %v1726 = vpop.permute.xlu0 %1725
  %1727 = vrot.lane.b32.xlu0 %v1677, 120
  %v1728 = vpop.permute.xlu0 %1727
  %v1729 = vsel %vm543, %v1696, %v1698
  %v1730 = vsel %vm543, %v1698, %v1700
  %v1731 = vsel %vm543, %v1700, %v1702
  %v1732 = vsel %vm543, %v1702, %v1704
  %v1733 = vsel %vm543, %v1704, %v1706
  %v1734 = vsel %vm543, %v1706, %v1708
  %v1735 = vsel %vm543, %v1708, %v1710
  %v1736 = vsel %vm543, %v1710, %v1712
  %v1737 = vsel %vm543, %v1712, %v1714
  %v1738 = vsel %vm543, %v1714, %v1716
  %v1739 = vsel %vm543, %v1716, %v1718
  %v1740 = vsel %vm543, %v1718, %v1720
  %v1741 = vsel %vm543, %v1720, %v1722
  %v1742 = vsel %vm543, %v1722, %v1724
  %v1743 = vsel %vm543, %v1724, %v1726
  %v1744 = vsel %vm543, %v1726, %v1728
  %1761 = vst [vmem:[#allocation2 + $0x700] sm:$0x7] %v1729
  %1762 = vst [vmem:[#allocation2 + $0x708] sm:$0x7] %v1730
  %1763 = vst [vmem:[#allocation2 + $0x710] sm:$0x7] %v1731
  %1764 = vst [vmem:[#allocation2 + $0x718] sm:$0x7] %v1732
  %1765 = vst [vmem:[#allocation2 + $0x720] sm:$0x7] %v1733
  %1766 = vst [vmem:[#allocation2 + $0x728] sm:$0x7] %v1734
  %1767 = vst [vmem:[#allocation2 + $0x730] sm:$0x7] %v1735
  %1768 = vst [vmem:[#allocation2 + $0x738] sm:$0x7] %v1736
  %1769 = vst [vmem:[#allocation2 + $0x740] sm:$0x7] %v1737
  %1770 = vst [vmem:[#allocation2 + $0x748] sm:$0x7] %v1738
  %1771 = vst [vmem:[#allocation2 + $0x750] sm:$0x7] %v1739
  %1772 = vst [vmem:[#allocation2 + $0x758] sm:$0x7] %v1740
  %1773 = vst [vmem:[#allocation2 + $0x760] sm:$0x7] %v1741
  %1774 = vst [vmem:[#allocation2 + $0x768] sm:$0x7] %v1742
  %1775 = vst [vmem:[#allocation2 + $0x770] sm:$0x7] %v1743
  %1776 = vst [vmem:[#allocation2 + $0x778] sm:$0x7] %v1744
  %1777 = vst [vmem:[#allocation2 + $0x700] sm:$0xf8] 0.0
  %1778 = vst [vmem:[#allocation2 + $0x708] sm:$0xf8] 0.0
  %1779 = vst [vmem:[#allocation2 + $0x710] sm:$0xf8] 0.0
  %1780 = vst [vmem:[#allocation2 + $0x718] sm:$0xf8] 0.0
  %1781 = vst [vmem:[#allocation2 + $0x720] sm:$0xf8] 0.0
  %1782 = vst [vmem:[#allocation2 + $0x728] sm:$0xf8] 0.0
  %1783 = vst [vmem:[#allocation2 + $0x730] sm:$0xf8] 0.0
  %1784 = vst [vmem:[#allocation2 + $0x738] sm:$0xf8] 0.0
  %1785 = vst [vmem:[#allocation2 + $0x740] sm:$0xf8] 0.0
  %1786 = vst [vmem:[#allocation2 + $0x748] sm:$0xf8] 0.0
  %1787 = vst [vmem:[#allocation2 + $0x750] sm:$0xf8] 0.0
  %1788 = vst [vmem:[#allocation2 + $0x758] sm:$0xf8] 0.0
  %1789 = vst [vmem:[#allocation2 + $0x760] sm:$0xf8] 0.0
  %1790 = vst [vmem:[#allocation2 + $0x768] sm:$0xf8] 0.0
  %1791 = vst [vmem:[#allocation2 + $0x770] sm:$0xf8] 0.0
  %1792 = vst [vmem:[#allocation2 + $0x778] sm:$0xf8] 0.0
  %v1793 = vld [vmem:[%s0 + $0x4] sm:$0x77]
  %v1794 = vld [vmem:[%s0 + $0xc] sm:$0x77]
  %v1795 = vld [vmem:[%s0 + $0x14] sm:$0x77]
  %v1796 = vld [vmem:[%s0 + $0x1c] sm:$0x77]
  %v1797 = vld [vmem:[%s0 + $0x24] sm:$0x77]
  %v1798 = vld [vmem:[%s0 + $0x2c] sm:$0x77]
  %v1799 = vld [vmem:[%s0 + $0x34] sm:$0x77]
  %v1800 = vld [vmem:[%s0 + $0x3c] sm:$0x77]
  %v1801 = vld [vmem:[%s0 + $0x44] sm:$0x7]
  %v1811 = vcombine.high %v1793, %v1793
  %v1812 = vcombine.high %v1794, %v1794
  %v1813 = vcombine.high %v1795, %v1795
  %v1814 = vcombine.high %v1796, %v1796
  %v1815 = vcombine.high %v1797, %v1797
  %v1816 = vcombine.high %v1798, %v1798
  %v1817 = vcombine.high %v1799, %v1799
  %v1818 = vcombine.high %v1800, %v1800
  %1819 = vrot.lane.b32.xlu0 %v1793, 64
  %v1820 = vpop.permute.xlu0 %1819
  %1821 = vrot.lane.b32.xlu0 %v1811, 64
  %v1822 = vpop.permute.xlu0 %1821
  %1823 = vrot.lane.b32.xlu0 %v1794, 64
  %v1824 = vpop.permute.xlu0 %1823
  %1825 = vrot.lane.b32.xlu0 %v1812, 64
  %v1826 = vpop.permute.xlu0 %1825
  %1827 = vrot.lane.b32.xlu0 %v1795, 64
  %v1828 = vpop.permute.xlu0 %1827
  %1829 = vrot.lane.b32.xlu0 %v1813, 64
  %v1830 = vpop.permute.xlu0 %1829
  %1831 = vrot.lane.b32.xlu0 %v1796, 64
  %v1832 = vpop.permute.xlu0 %1831
  %1833 = vrot.lane.b32.xlu0 %v1814, 64
  %v1834 = vpop.permute.xlu0 %1833
  %1835 = vrot.lane.b32.xlu0 %v1797, 64
  %v1836 = vpop.permute.xlu0 %1835
  %1837 = vrot.lane.b32.xlu0 %v1815, 64
  %v1838 = vpop.permute.xlu0 %1837
  %1839 = vrot.lane.b32.xlu0 %v1798, 64
  %v1840 = vpop.permute.xlu0 %1839
  %1841 = vrot.lane.b32.xlu0 %v1816, 64
  %v1842 = vpop.permute.xlu0 %1841
  %1843 = vrot.lane.b32.xlu0 %v1799, 64
  %v1844 = vpop.permute.xlu0 %1843
  %1845 = vrot.lane.b32.xlu0 %v1817, 64
  %v1846 = vpop.permute.xlu0 %1845
  %1847 = vrot.lane.b32.xlu0 %v1800, 64
  %v1848 = vpop.permute.xlu0 %1847
  %1849 = vrot.lane.b32.xlu0 %v1818, 64
  %v1850 = vpop.permute.xlu0 %1849
  %1851 = vrot.lane.b32.xlu0 %v1801, 64
  %v1852 = vpop.permute.xlu0 %1851
  %v1853 = vsel %vm668, %v1820, %v1822
  %v1854 = vsel %vm668, %v1822, %v1824
  %v1855 = vsel %vm668, %v1824, %v1826
  %v1856 = vsel %vm668, %v1826, %v1828
  %v1857 = vsel %vm668, %v1828, %v1830
  %v1858 = vsel %vm668, %v1830, %v1832
  %v1859 = vsel %vm668, %v1832, %v1834
  %v1860 = vsel %vm668, %v1834, %v1836
  %v1861 = vsel %vm668, %v1836, %v1838
  %v1862 = vsel %vm668, %v1838, %v1840
  %v1863 = vsel %vm668, %v1840, %v1842
  %v1864 = vsel %vm668, %v1842, %v1844
  %v1865 = vsel %vm668, %v1844, %v1846
  %v1866 = vsel %vm668, %v1846, %v1848
  %v1867 = vsel %vm668, %v1848, %v1850
  %v1868 = vsel %vm668, %v1850, %v1852
  %1885 = vst [vmem:[#allocation2 + $0x780] sm:$0x7] %v1853
  %1886 = vst [vmem:[#allocation2 + $0x788] sm:$0x7] %v1854
  %1887 = vst [vmem:[#allocation2 + $0x790] sm:$0x7] %v1855
  %1888 = vst [vmem:[#allocation2 + $0x798] sm:$0x7] %v1856
  %1889 = vst [vmem:[#allocation2 + $0x7a0] sm:$0x7] %v1857
  %1890 = vst [vmem:[#allocation2 + $0x7a8] sm:$0x7] %v1858
  %1891 = vst [vmem:[#allocation2 + $0x7b0] sm:$0x7] %v1859
  %1892 = vst [vmem:[#allocation2 + $0x7b8] sm:$0x7] %v1860
  %1893 = vst [vmem:[#allocation2 + $0x7c0] sm:$0x7] %v1861
  %1894 = vst [vmem:[#allocation2 + $0x7c8] sm:$0x7] %v1862
  %1895 = vst [vmem:[#allocation2 + $0x7d0] sm:$0x7] %v1863
  %1896 = vst [vmem:[#allocation2 + $0x7d8] sm:$0x7] %v1864
  %1897 = vst [vmem:[#allocation2 + $0x7e0] sm:$0x7] %v1865
  %1898 = vst [vmem:[#allocation2 + $0x7e8] sm:$0x7] %v1866
  %1899 = vst [vmem:[#allocation2 + $0x7f0] sm:$0x7] %v1867
  %1900 = vst [vmem:[#allocation2 + $0x7f8] sm:$0x7] %v1868
  %1901 = vst [vmem:[#allocation2 + $0x780] sm:$0xf8] 0.0
  %1902 = vst [vmem:[#allocation2 + $0x788] sm:$0xf8] 0.0
  %1903 = vst [vmem:[#allocation2 + $0x790] sm:$0xf8] 0.0
  %1904 = vst [vmem:[#allocation2 + $0x798] sm:$0xf8] 0.0
  %1905 = vst [vmem:[#allocation2 + $0x7a0] sm:$0xf8] 0.0
  %1906 = vst [vmem:[#allocation2 + $0x7a8] sm:$0xf8] 0.0
  %1907 = vst [vmem:[#allocation2 + $0x7b0] sm:$0xf8] 0.0
  %1908 = vst [vmem:[#allocation2 + $0x7b8] sm:$0xf8] 0.0
  %1909 = vst [vmem:[#allocation2 + $0x7c0] sm:$0xf8] 0.0
  %1910 = vst [vmem:[#allocation2 + $0x7c8] sm:$0xf8] 0.0
  %1911 = vst [vmem:[#allocation2 + $0x7d0] sm:$0xf8] 0.0
  %1912 = vst [vmem:[#allocation2 + $0x7d8] sm:$0xf8] 0.0
  %1913 = vst [vmem:[#allocation2 + $0x7e0] sm:$0xf8] 0.0
  %1914 = vst [vmem:[#allocation2 + $0x7e8] sm:$0xf8] 0.0
  %1915 = vst [vmem:[#allocation2 + $0x7f0] sm:$0xf8] 0.0
  %1916 = vst [vmem:[#allocation2 + $0x7f8] sm:$0xf8] 0.0
  %v1917 = vld [vmem:[%s0 + $0x4] sm:$0x77]
  %v1918 = vld [vmem:[%s0 + $0xc] sm:$0x77]
  %v1919 = vld [vmem:[%s0 + $0x14] sm:$0x77]
  %v1920 = vld [vmem:[%s0 + $0x1c] sm:$0x77]
  %v1921 = vld [vmem:[%s0 + $0x24] sm:$0x77]
  %v1922 = vld [vmem:[%s0 + $0x2c] sm:$0x77]
  %v1923 = vld [vmem:[%s0 + $0x34] sm:$0x77]
  %v1924 = vld [vmem:[%s0 + $0x3c] sm:$0x77]
  %v1925 = vld [vmem:[%s0 + $0x44] sm:$0x7]
  %v1935 = vcombine.high %v1917, %v1917
  %v1936 = vcombine.high %v1918, %v1918
  %v1937 = vcombine.high %v1919, %v1919
  %v1938 = vcombine.high %v1920, %v1920
  %v1939 = vcombine.high %v1921, %v1921
  %v1940 = vcombine.high %v1922, %v1922
  %v1941 = vcombine.high %v1923, %v1923
  %v1942 = vcombine.high %v1924, %v1924
  %1943 = vrot.lane.b32.xlu0 %v1917, 62
  %v1944 = vpop.permute.xlu0 %1943
  %1945 = vrot.lane.b32.xlu0 %v1935, 62
  %v1946 = vpop.permute.xlu0 %1945
  %1947 = vrot.lane.b32.xlu0 %v1918, 62
  %v1948 = vpop.permute.xlu0 %1947
  %1949 = vrot.lane.b32.xlu0 %v1936, 62
  %v1950 = vpop.permute.xlu0 %1949
  %1951 = vrot.lane.b32.xlu0 %v1919, 62
  %v1952 = vpop.permute.xlu0 %1951
  %1953 = vrot.lane.b32.xlu0 %v1937, 62
  %v1954 = vpop.permute.xlu0 %1953
  %1955 = vrot.lane.b32.xlu0 %v1920, 62
  %v1956 = vpop.permute.xlu0 %1955
  %1957 = vrot.lane.b32.xlu0 %v1938, 62
  %v1958 = vpop.permute.xlu0 %1957
  %1959 = vrot.lane.b32.xlu0 %v1921, 62
  %v1960 = vpop.permute.xlu0 %1959
  %1961 = vrot.lane.b32.xlu0 %v1939, 62
  %v1962 = vpop.permute.xlu0 %1961
  %1963 = vrot.lane.b32.xlu0 %v1922, 62
  %v1964 = vpop.permute.xlu0 %1963
  %1965 = vrot.lane.b32.xlu0 %v1940, 62
  %v1966 = vpop.permute.xlu0 %1965
  %1967 = vrot.lane.b32.xlu0 %v1923, 62
  %v1968 = vpop.permute.xlu0 %1967
  %1969 = vrot.lane.b32.xlu0 %v1941, 62
  %v1970 = vpop.permute.xlu0 %1969
  %1971 = vrot.lane.b32.xlu0 %v1924, 62
  %v1972 = vpop.permute.xlu0 %1971
  %1973 = vrot.lane.b32.xlu0 %v1942, 62
  %v1974 = vpop.permute.xlu0 %1973
  %1975 = vrot.lane.b32.xlu0 %v1925, 62
  %v1976 = vpop.permute.xlu0 %1975
  %v1977 = vsel %vm793, %v1944, %v1946
  %v1978 = vsel %vm793, %v1946, %v1948
  %v1979 = vsel %vm793, %v1948, %v1950
  %v1980 = vsel %vm793, %v1950, %v1952
  %v1981 = vsel %vm793, %v1952, %v1954
  %v1982 = vsel %vm793, %v1954, %v1956
  %v1983 = vsel %vm793, %v1956, %v1958
  %v1984 = vsel %vm793, %v1958, %v1960
  %v1985 = vsel %vm793, %v1960, %v1962
  %v1986 = vsel %vm793, %v1962, %v1964
  %v1987 = vsel %vm793, %v1964, %v1966
  %v1988 = vsel %vm793, %v1966, %v1968
  %v1989 = vsel %vm793, %v1968, %v1970
  %v1990 = vsel %vm793, %v1970, %v1972
  %v1991 = vsel %vm793, %v1972, %v1974
  %v1992 = vsel %vm793, %v1974, %v1976
  %2009 = vst [vmem:[#allocation2 + $0x800] sm:$0x7] %v1977
  %2010 = vst [vmem:[#allocation2 + $0x808] sm:$0x7] %v1978
  %2011 = vst [vmem:[#allocation2 + $0x810] sm:$0x7] %v1979
  %2012 = vst [vmem:[#allocation2 + $0x818] sm:$0x7] %v1980
  %2013 = vst [vmem:[#allocation2 + $0x820] sm:$0x7] %v1981
  %2014 = vst [vmem:[#allocation2 + $0x828] sm:$0x7] %v1982
  %2015 = vst [vmem:[#allocation2 + $0x830] sm:$0x7] %v1983
  %2016 = vst [vmem:[#allocation2 + $0x838] sm:$0x7] %v1984
  %2017 = vst [vmem:[#allocation2 + $0x840] sm:$0x7] %v1985
  %2018 = vst [vmem:[#allocation2 + $0x848] sm:$0x7] %v1986
  %2019 = vst [vmem:[#allocation2 + $0x850] sm:$0x7] %v1987
  %2020 = vst [vmem:[#allocation2 + $0x858] sm:$0x7] %v1988
  %2021 = vst [vmem:[#allocation2 + $0x860] sm:$0x7] %v1989
  %2022 = vst [vmem:[#allocation2 + $0x868] sm:$0x7] %v1990
  %2023 = vst [vmem:[#allocation2 + $0x870] sm:$0x7] %v1991
  %2024 = vst [vmem:[#allocation2 + $0x878] sm:$0x7] %v1992
  %2025 = vst [vmem:[#allocation2 + $0x800] sm:$0xf8] 0.0
  %2026 = vst [vmem:[#allocation2 + $0x808] sm:$0xf8] 0.0
  %2027 = vst [vmem:[#allocation2 + $0x810] sm:$0xf8] 0.0
  %2028 = vst [vmem:[#allocation2 + $0x818] sm:$0xf8] 0.0
  %2029 = vst [vmem:[#allocation2 + $0x820] sm:$0xf8] 0.0
  %2030 = vst [vmem:[#allocation2 + $0x828] sm:$0xf8] 0.0
  %2031 = vst [vmem:[#allocation2 + $0x830] sm:$0xf8] 0.0
  %2032 = vst [vmem:[#allocation2 + $0x838] sm:$0xf8] 0.0
  %2033 = vst [vmem:[#allocation2 + $0x840] sm:$0xf8] 0.0
  %2034 = vst [vmem:[#allocation2 + $0x848] sm:$0xf8] 0.0
  %2035 = vst [vmem:[#allocation2 + $0x850] sm:$0xf8] 0.0
  %2036 = vst [vmem:[#allocation2 + $0x858] sm:$0xf8] 0.0
  %2037 = vst [vmem:[#allocation2 + $0x860] sm:$0xf8] 0.0
  %2038 = vst [vmem:[#allocation2 + $0x868] sm:$0xf8] 0.0
  %2039 = vst [vmem:[#allocation2 + $0x870] sm:$0xf8] 0.0
  %2040 = vst [vmem:[#allocation2 + $0x878] sm:$0xf8] 0.0
  %v2041 = vld [vmem:[%s0 + $0x4] sm:$0x77]
  %v2042 = vld [vmem:[%s0 + $0xc] sm:$0x77]
  %v2043 = vld [vmem:[%s0 + $0x14] sm:$0x77]
  %v2044 = vld [vmem:[%s0 + $0x1c] sm:$0x77]
  %v2045 = vld [vmem:[%s0 + $0x24] sm:$0x77]
  %v2046 = vld [vmem:[%s0 + $0x2c] sm:$0x77]
  %v2047 = vld [vmem:[%s0 + $0x34] sm:$0x77]
  %v2048 = vld [vmem:[%s0 + $0x3c] sm:$0x77]
  %v2049 = vld [vmem:[%s0 + $0x44] sm:$0x7]
  %v2059 = vcombine.high %v2041, %v2041
  %v2060 = vcombine.high %v2042, %v2042
  %v2061 = vcombine.high %v2043, %v2043
  %v2062 = vcombine.high %v2044, %v2044
  %v2063 = vcombine.high %v2045, %v2045
  %v2064 = vcombine.high %v2046, %v2046
  %v2065 = vcombine.high %v2047, %v2047
  %v2066 = vcombine.high %v2048, %v2048
  %2067 = vrot.lane.b32.xlu0 %v2041, 60
  %v2068 = vpop.permute.xlu0 %2067
  %2069 = vrot.lane.b32.xlu0 %v2059, 60
  %v2070 = vpop.permute.xlu0 %2069
  %2071 = vrot.lane.b32.xlu0 %v2042, 60
  %v2072 = vpop.permute.xlu0 %2071
  %2073 = vrot.lane.b32.xlu0 %v2060, 60
  %v2074 = vpop.permute.xlu0 %2073
  %2075 = vrot.lane.b32.xlu0 %v2043, 60
  %v2076 = vpop.permute.xlu0 %2075
  %2077 = vrot.lane.b32.xlu0 %v2061, 60
  %v2078 = vpop.permute.xlu0 %2077
  %2079 = vrot.lane.b32.xlu0 %v2044, 60
  %v2080 = vpop.permute.xlu0 %2079
  %2081 = vrot.lane.b32.xlu0 %v2062, 60
  %v2082 = vpop.permute.xlu0 %2081
  %2083 = vrot.lane.b32.xlu0 %v2045, 60
  %v2084 = vpop.permute.xlu0 %2083
  %2085 = vrot.lane.b32.xlu0 %v2063, 60
  %v2086 = vpop.permute.xlu0 %2085
  %2087 = vrot.lane.b32.xlu0 %v2046, 60
  %v2088 = vpop.permute.xlu0 %2087
  %2089 = vrot.lane.b32.xlu0 %v2064, 60
  %v2090 = vpop.permute.xlu0 %2089
  %2091 = vrot.lane.b32.xlu0 %v2047, 60
  %v2092 = vpop.permute.xlu0 %2091
  %2093 = vrot.lane.b32.xlu0 %v2065, 60
  %v2094 = vpop.permute.xlu0 %2093
  %2095 = vrot.lane.b32.xlu0 %v2048, 60
  %v2096 = vpop.permute.xlu0 %2095
  %2097 = vrot.lane.b32.xlu0 %v2066, 60
  %v2098 = vpop.permute.xlu0 %2097
  %2099 = vrot.lane.b32.xlu0 %v2049, 60
  %v2100 = vpop.permute.xlu0 %2099
  %v2101 = vsel %vm918, %v2068, %v2070
  %v2102 = vsel %vm918, %v2070, %v2072
  %v2103 = vsel %vm918, %v2072, %v2074
  %v2104 = vsel %vm918, %v2074, %v2076
  %v2105 = vsel %vm918, %v2076, %v2078
  %v2106 = vsel %vm918, %v2078, %v2080
  %v2107 = vsel %vm918, %v2080, %v2082
  %v2108 = vsel %vm918, %v2082, %v2084
  %v2109 = vsel %vm918, %v2084, %v2086
  %v2110 = vsel %vm918, %v2086, %v2088
  %v2111 = vsel %vm918, %v2088, %v2090
  %v2112 = vsel %vm918, %v2090, %v2092
  %v2113 = vsel %vm918, %v2092, %v2094
  %v2114 = vsel %vm918, %v2094, %v2096
  %v2115 = vsel %vm918, %v2096, %v2098
  %v2116 = vsel %vm918, %v2098, %v2100
  %2133 = vst [vmem:[#allocation2 + $0x880] sm:$0x7] %v2101
  %2134 = vst [vmem:[#allocation2 + $0x888] sm:$0x7] %v2102
  %2135 = vst [vmem:[#allocation2 + $0x890] sm:$0x7] %v2103
  %2136 = vst [vmem:[#allocation2 + $0x898] sm:$0x7] %v2104
  %2137 = vst [vmem:[#allocation2 + $0x8a0] sm:$0x7] %v2105
  %2138 = vst [vmem:[#allocation2 + $0x8a8] sm:$0x7] %v2106
  %2139 = vst [vmem:[#allocation2 + $0x8b0] sm:$0x7] %v2107
  %2140 = vst [vmem:[#allocation2 + $0x8b8] sm:$0x7] %v2108
  %2141 = vst [vmem:[#allocation2 + $0x8c0] sm:$0x7] %v2109
  %2142 = vst [vmem:[#allocation2 + $0x8c8] sm:$0x7] %v2110
  %2143 = vst [vmem:[#allocation2 + $0x8d0] sm:$0x7] %v2111
  %2144 = vst [vmem:[#allocation2 + $0x8d8] sm:$0x7] %v2112
  %2145 = vst [vmem:[#allocation2 + $0x8e0] sm:$0x7] %v2113
  %2146 = vst [vmem:[#allocation2 + $0x8e8] sm:$0x7] %v2114
  %2147 = vst [vmem:[#allocation2 + $0x8f0] sm:$0x7] %v2115
  %2148 = vst [vmem:[#allocation2 + $0x8f8] sm:$0x7] %v2116
  %2149 = vst [vmem:[#allocation2 + $0x880] sm:$0xf8] 0.0
  %2150 = vst [vmem:[#allocation2 + $0x888] sm:$0xf8] 0.0
  %2151 = vst [vmem:[#allocation2 + $0x890] sm:$0xf8] 0.0
  %2152 = vst [vmem:[#allocation2 + $0x898] sm:$0xf8] 0.0
  %2153 = vst [vmem:[#allocation2 + $0x8a0] sm:$0xf8] 0.0
  %2154 = vst [vmem:[#allocation2 + $0x8a8] sm:$0xf8] 0.0
  %2155 = vst [vmem:[#allocation2 + $0x8b0] sm:$0xf8] 0.0
  %2156 = vst [vmem:[#allocation2 + $0x8b8] sm:$0xf8] 0.0
  %2157 = vst [vmem:[#allocation2 + $0x8c0] sm:$0xf8] 0.0
  %2158 = vst [vmem:[#allocation2 + $0x8c8] sm:$0xf8] 0.0
  %2159 = vst [vmem:[#allocation2 + $0x8d0] sm:$0xf8] 0.0
  %2160 = vst [vmem:[#allocation2 + $0x8d8] sm:$0xf8] 0.0
  %2161 = vst [vmem:[#allocation2 + $0x8e0] sm:$0xf8] 0.0
  %2162 = vst [vmem:[#allocation2 + $0x8e8] sm:$0xf8] 0.0
  %2163 = vst [vmem:[#allocation2 + $0x8f0] sm:$0xf8] 0.0
  %2164 = vst [vmem:[#allocation2 + $0x8f8] sm:$0xf8] 0.0
  %v2165 = vld [vmem:[%s0 + $0x4] sm:$0x77]
  %v2166 = vld [vmem:[%s0 + $0xc] sm:$0x77]
  %v2167 = vld [vmem:[%s0 + $0x14] sm:$0x77]
  %v2168 = vld [vmem:[%s0 + $0x1c] sm:$0x77]
  %v2169 = vld [vmem:[%s0 + $0x24] sm:$0x77]
  %v2170 = vld [vmem:[%s0 + $0x2c] sm:$0x77]
  %v2171 = vld [vmem:[%s0 + $0x34] sm:$0x77]
  %v2172 = vld [vmem:[%s0 + $0x3c] sm:$0x77]
  %v2173 = vld [vmem:[%s0 + $0x44] sm:$0x7]
  %v2183 = vcombine.high %v2165, %v2165
  %v2184 = vcombine.high %v2166, %v2166
  %v2185 = vcombine.high %v2167, %v2167
  %v2186 = vcombine.high %v2168, %v2168
  %v2187 = vcombine.high %v2169, %v2169
  %v2188 = vcombine.high %v2170, %v2170
  %v2189 = vcombine.high %v2171, %v2171
  %v2190 = vcombine.high %v2172, %v2172
  %2191 = vrot.lane.b32.xlu0 %v2165, 58
  %v2192 = vpop.permute.xlu0 %2191
  %2193 = vrot.lane.b32.xlu0 %v2183, 58
  %v2194 = vpop.permute.xlu0 %2193
  %2195 = vrot.lane.b32.xlu0 %v2166, 58
  %v2196 = vpop.permute.xlu0 %2195
  %2197 = vrot.lane.b32.xlu0 %v2184, 58
  %v2198 = vpop.permute.xlu0 %2197
  %2199 = vrot.lane.b32.xlu0 %v2167, 58
  %v2200 = vpop.permute.xlu0 %2199
  %2201 = vrot.lane.b32.xlu0 %v2185, 58
  %v2202 = vpop.permute.xlu0 %2201
  %2203 = vrot.lane.b32.xlu0 %v2168, 58
  %v2204 = vpop.permute.xlu0 %2203
  %2205 = vrot.lane.b32.xlu0 %v2186, 58
  %v2206 = vpop.permute.xlu0 %2205
  %2207 = vrot.lane.b32.xlu0 %v2169, 58
  %v2208 = vpop.permute.xlu0 %2207
  %2209 = vrot.lane.b32.xlu0 %v2187, 58
  %v2210 = vpop.permute.xlu0 %2209
  %2211 = vrot.lane.b32.xlu0 %v2170, 58
  %v2212 = vpop.permute.xlu0 %2211
  %2213 = vrot.lane.b32.xlu0 %v2188, 58
  %v2214 = vpop.permute.xlu0 %2213
  %2215 = vrot.lane.b32.xlu0 %v2171, 58
  %v2216 = vpop.permute.xlu0 %2215
  %2217 = vrot.lane.b32.xlu0 %v2189, 58
  %v2218 = vpop.permute.xlu0 %2217
  %2219 = vrot.lane.b32.xlu0 %v2172, 58
  %v2220 = vpop.permute.xlu0 %2219
  %2221 = vrot.lane.b32.xlu0 %v2190, 58
  %v2222 = vpop.permute.xlu0 %2221
  %2223 = vrot.lane.b32.xlu0 %v2173, 58
  %v2224 = vpop.permute.xlu0 %2223
  %v2225 = vsel %vm1043, %v2192, %v2194
  %v2226 = vsel %vm1043, %v2194, %v2196
  %v2227 = vsel %vm1043, %v2196, %v2198
  %v2228 = vsel %vm1043, %v2198, %v2200
  %v2229 = vsel %vm1043, %v2200, %v2202
  %v2230 = vsel %vm1043, %v2202, %v2204
  %v2231 = vsel %vm1043, %v2204, %v2206
  %v2232 = vsel %vm1043, %v2206, %v2208
  %v2233 = vsel %vm1043, %v2208, %v2210
  %v2234 = vsel %vm1043, %v2210, %v2212
  %v2235 = vsel %vm1043, %v2212, %v2214
  %v2236 = vsel %vm1043, %v2214, %v2216
  %v2237 = vsel %vm1043, %v2216, %v2218
  %v2238 = vsel %vm1043, %v2218, %v2220
  %v2239 = vsel %vm1043, %v2220, %v2222
  %v2240 = vsel %vm1043, %v2222, %v2224
  %2257 = vst [vmem:[#allocation2 + $0x900] sm:$0x7] %v2225
  %2258 = vst [vmem:[#allocation2 + $0x908] sm:$0x7] %v2226
  %2259 = vst [vmem:[#allocation2 + $0x910] sm:$0x7] %v2227
  %2260 = vst [vmem:[#allocation2 + $0x918] sm:$0x7] %v2228
  %2261 = vst [vmem:[#allocation2 + $0x920] sm:$0x7] %v2229
  %2262 = vst [vmem:[#allocation2 + $0x928] sm:$0x7] %v2230
  %2263 = vst [vmem:[#allocation2 + $0x930] sm:$0x7] %v2231
  %2264 = vst [vmem:[#allocation2 + $0x938] sm:$0x7] %v2232
  %2265 = vst [vmem:[#allocation2 + $0x940] sm:$0x7] %v2233
  %2266 = vst [vmem:[#allocation2 + $0x948] sm:$0x7] %v2234
  %2267 = vst [vmem:[#allocation2 + $0x950] sm:$0x7] %v2235
  %2268 = vst [vmem:[#allocation2 + $0x958] sm:$0x7] %v2236
  %2269 = vst [vmem:[#allocation2 + $0x960] sm:$0x7] %v2237
  %2270 = vst [vmem:[#allocation2 + $0x968] sm:$0x7] %v2238
  %2271 = vst [vmem:[#allocation2 + $0x970] sm:$0x7] %v2239
  %2272 = vst [vmem:[#allocation2 + $0x978] sm:$0x7] %v2240
  %2273 = vst [vmem:[#allocation2 + $0x900] sm:$0xf8] 0.0
  %2274 = vst [vmem:[#allocation2 + $0x908] sm:$0xf8] 0.0
  %2275 = vst [vmem:[#allocation2 + $0x910] sm:$0xf8] 0.0
  %2276 = vst [vmem:[#allocation2 + $0x918] sm:$0xf8] 0.0
  %2277 = vst [vmem:[#allocation2 + $0x920] sm:$0xf8] 0.0
  %2278 = vst [vmem:[#allocation2 + $0x928] sm:$0xf8] 0.0
  %2279 = vst [vmem:[#allocation2 + $0x930] sm:$0xf8] 0.0
  %2280 = vst [vmem:[#allocation2 + $0x938] sm:$0xf8] 0.0
  %2281 = vst [vmem:[#allocation2 + $0x940] sm:$0xf8] 0.0
  %2282 = vst [vmem:[#allocation2 + $0x948] sm:$0xf8] 0.0
  %2283 = vst [vmem:[#allocation2 + $0x950] sm:$0xf8] 0.0
  %2284 = vst [vmem:[#allocation2 + $0x958] sm:$0xf8] 0.0
  %2285 = vst [vmem:[#allocation2 + $0x960] sm:$0xf8] 0.0
  %2286 = vst [vmem:[#allocation2 + $0x968] sm:$0xf8] 0.0
  %2287 = vst [vmem:[#allocation2 + $0x970] sm:$0xf8] 0.0
  %2288 = vst [vmem:[#allocation2 + $0x978] sm:$0xf8] 0.0
  %v2289 = vld [vmem:[%s0 + $0x4] sm:$0x77]
  %v2290 = vld [vmem:[%s0 + $0xc] sm:$0x77]
  %v2291 = vld [vmem:[%s0 + $0x14] sm:$0x77]
  %v2292 = vld [vmem:[%s0 + $0x1c] sm:$0x77]
  %v2293 = vld [vmem:[%s0 + $0x24] sm:$0x77]
  %v2294 = vld [vmem:[%s0 + $0x2c] sm:$0x77]
  %v2295 = vld [vmem:[%s0 + $0x34] sm:$0x77]
  %v2296 = vld [vmem:[%s0 + $0x3c] sm:$0x77]
  %v2297 = vld [vmem:[%s0 + $0x44] sm:$0x7]
  %v2307 = vcombine.high %v2289, %v2289
  %v2308 = vcombine.high %v2290, %v2290
  %v2309 = vcombine.high %v2291, %v2291
  %v2310 = vcombine.high %v2292, %v2292
  %v2311 = vcombine.high %v2293, %v2293
  %v2312 = vcombine.high %v2294, %v2294
  %v2313 = vcombine.high %v2295, %v2295
  %v2314 = vcombine.high %v2296, %v2296
  %2315 = vrot.lane.b32.xlu0 %v2289, 56
  %v2316 = vpop.permute.xlu0 %2315
  %2317 = vrot.lane.b32.xlu0 %v2307, 56
  %v2318 = vpop.permute.xlu0 %2317
  %2319 = vrot.lane.b32.xlu0 %v2290, 56
  %v2320 = vpop.permute.xlu0 %2319
  %2321 = vrot.lane.b32.xlu0 %v2308, 56
  %v2322 = vpop.permute.xlu0 %2321
  %2323 = vrot.lane.b32.xlu0 %v2291, 56
  %v2324 = vpop.permute.xlu0 %2323
  %2325 = vrot.lane.b32.xlu0 %v2309, 56
  %v2326 = vpop.permute.xlu0 %2325
  %2327 = vrot.lane.b32.xlu0 %v2292, 56
  %v2328 = vpop.permute.xlu0 %2327
  %2329 = vrot.lane.b32.xlu0 %v2310, 56
  %v2330 = vpop.permute.xlu0 %2329
  %2331 = vrot.lane.b32.xlu0 %v2293, 56
  %v2332 = vpop.permute.xlu0 %2331
  %2333 = vrot.lane.b32.xlu0 %v2311, 56
  %v2334 = vpop.permute.xlu0 %2333
  %2335 = vrot.lane.b32.xlu0 %v2294, 56
  %v2336 = vpop.permute.xlu0 %2335
  %2337 = vrot.lane.b32.xlu0 %v2312, 56
  %v2338 = vpop.permute.xlu0 %2337
  %2339 = vrot.lane.b32.xlu0 %v2295, 56
  %v2340 = vpop.permute.xlu0 %2339
  %2341 = vrot.lane.b32.xlu0 %v2313, 56
  %v2342 = vpop.permute.xlu0 %2341
  %2343 = vrot.lane.b32.xlu0 %v2296, 56
  %v2344 = vpop.permute.xlu0 %2343
  %2345 = vrot.lane.b32.xlu0 %v2314, 56
  %v2346 = vpop.permute.xlu0 %2345
  %2347 = vrot.lane.b32.xlu0 %v2297, 56
  %v2348 = vpop.permute.xlu0 %2347
  %v2349 = vsel %vm1168, %v2316, %v2318
  %v2350 = vsel %vm1168, %v2318, %v2320
  %v2351 = vsel %vm1168, %v2320, %v2322
  %v2352 = vsel %vm1168, %v2322, %v2324
  %v2353 = vsel %vm1168, %v2324, %v2326
  %v2354 = vsel %vm1168, %v2326, %v2328
  %v2355 = vsel %vm1168, %v2328, %v2330
  %v2356 = vsel %vm1168, %v2330, %v2332
  %v2357 = vsel %vm1168, %v2332, %v2334
  %v2358 = vsel %vm1168, %v2334, %v2336
  %v2359 = vsel %vm1168, %v2336, %v2338
  %v2360 = vsel %vm1168, %v2338, %v2340
  %v2361 = vsel %vm1168, %v2340, %v2342
  %v2362 = vsel %vm1168, %v2342, %v2344
  %v2363 = vsel %vm1168, %v2344, %v2346
  %v2364 = vsel %vm1168, %v2346, %v2348
  %2381 = vst [vmem:[#allocation2 + $0x980] sm:$0x7] %v2349
  %2382 = vst [vmem:[#allocation2 + $0x988] sm:$0x7] %v2350
  %2383 = vst [vmem:[#allocation2 + $0x990] sm:$0x7] %v2351
  %2384 = vst [vmem:[#allocation2 + $0x998] sm:$0x7] %v2352
  %2385 = vst [vmem:[#allocation2 + $0x9a0] sm:$0x7] %v2353
  %2386 = vst [vmem:[#allocation2 + $0x9a8] sm:$0x7] %v2354
  %2387 = vst [vmem:[#allocation2 + $0x9b0] sm:$0x7] %v2355
  %2388 = vst [vmem:[#allocation2 + $0x9b8] sm:$0x7] %v2356
  %2389 = vst [vmem:[#allocation2 + $0x9c0] sm:$0x7] %v2357
  %2390 = vst [vmem:[#allocation2 + $0x9c8] sm:$0x7] %v2358
  %2391 = vst [vmem:[#allocation2 + $0x9d0] sm:$0x7] %v2359
  %2392 = vst [vmem:[#allocation2 + $0x9d8] sm:$0x7] %v2360
  %2393 = vst [vmem:[#allocation2 + $0x9e0] sm:$0x7] %v2361
  %2394 = vst [vmem:[#allocation2 + $0x9e8] sm:$0x7] %v2362
  %2395 = vst [vmem:[#allocation2 + $0x9f0] sm:$0x7] %v2363
  %2396 = vst [vmem:[#allocation2 + $0x9f8] sm:$0x7] %v2364
  %2397 = vst [vmem:[#allocation2 + $0x980] sm:$0xf8] 0.0
  %2398 = vst [vmem:[#allocation2 + $0x988] sm:$0xf8] 0.0
  %2399 = vst [vmem:[#allocation2 + $0x990] sm:$0xf8] 0.0
  %2400 = vst [vmem:[#allocation2 + $0x998] sm:$0xf8] 0.0
  %2401 = vst [vmem:[#allocation2 + $0x9a0] sm:$0xf8] 0.0
  %2402 = vst [vmem:[#allocation2 + $0x9a8] sm:$0xf8] 0.0
  %2403 = vst [vmem:[#allocation2 + $0x9b0] sm:$0xf8] 0.0
  %2404 = vst [vmem:[#allocation2 + $0x9b8] sm:$0xf8] 0.0
  %2405 = vst [vmem:[#allocation2 + $0x9c0] sm:$0xf8] 0.0
  %2406 = vst [vmem:[#allocation2 + $0x9c8] sm:$0xf8] 0.0
  %2407 = vst [vmem:[#allocation2 + $0x9d0] sm:$0xf8] 0.0
  %2408 = vst [vmem:[#allocation2 + $0x9d8] sm:$0xf8] 0.0
  %2409 = vst [vmem:[#allocation2 + $0x9e0] sm:$0xf8] 0.0
  %2410 = vst [vmem:[#allocation2 + $0x9e8] sm:$0xf8] 0.0
  %2411 = vst [vmem:[#allocation2 + $0x9f0] sm:$0xf8] 0.0
  %2412 = vst [vmem:[#allocation2 + $0x9f8] sm:$0xf8] 0.0
  %v2413 = vld [vmem:[%s0 + $0x8] sm:$0x77]
  %v2414 = vld [vmem:[%s0 + $0x10] sm:$0x77]
  %v2415 = vld [vmem:[%s0 + $0x18] sm:$0x77]
  %v2416 = vld [vmem:[%s0 + $0x20] sm:$0x77]
  %v2417 = vld [vmem:[%s0 + $0x28] sm:$0x77]
  %v2418 = vld [vmem:[%s0 + $0x30] sm:$0x77]
  %v2419 = vld [vmem:[%s0 + $0x38] sm:$0x77]
  %v2420 = vld [vmem:[%s0 + $0x40] sm:$0x77]
  %v2429 = vcombine.high %v2413, %v2413
  %v2430 = vcombine.high %v2414, %v2414
  %v2431 = vcombine.high %v2415, %v2415
  %v2432 = vcombine.high %v2416, %v2416
  %v2433 = vcombine.high %v2417, %v2417
  %v2434 = vcombine.high %v2418, %v2418
  %v2435 = vcombine.high %v2419, %v2419
  %v2436 = vcombine.high %v2420, %v2420
  %2445 = vst [vmem:[#allocation2 + $0xa00] sm:$0x7] %v2413
  %2446 = vst [vmem:[#allocation2 + $0xa08] sm:$0x7] %v2429
  %2447 = vst [vmem:[#allocation2 + $0xa10] sm:$0x7] %v2414
  %2448 = vst [vmem:[#allocation2 + $0xa18] sm:$0x7] %v2430
  %2449 = vst [vmem:[#allocation2 + $0xa20] sm:$0x7] %v2415
  %2450 = vst [vmem:[#allocation2 + $0xa28] sm:$0x7] %v2431
  %2451 = vst [vmem:[#allocation2 + $0xa30] sm:$0x7] %v2416
  %2452 = vst [vmem:[#allocation2 + $0xa38] sm:$0x7] %v2432
  %2453 = vst [vmem:[#allocation2 + $0xa40] sm:$0x7] %v2417
  %2454 = vst [vmem:[#allocation2 + $0xa48] sm:$0x7] %v2433
  %2455 = vst [vmem:[#allocation2 + $0xa50] sm:$0x7] %v2418
  %2456 = vst [vmem:[#allocation2 + $0xa58] sm:$0x7] %v2434
  %2457 = vst [vmem:[#allocation2 + $0xa60] sm:$0x7] %v2419
  %2458 = vst [vmem:[#allocation2 + $0xa68] sm:$0x7] %v2435
  %2459 = vst [vmem:[#allocation2 + $0xa70] sm:$0x7] %v2420
  %2460 = vst [vmem:[#allocation2 + $0xa78] sm:$0x7] %v2436
  %2461 = vst [vmem:[#allocation2 + $0xa00] sm:$0xf8] 0.0
  %2462 = vst [vmem:[#allocation2 + $0xa08] sm:$0xf8] 0.0
  %2463 = vst [vmem:[#allocation2 + $0xa10] sm:$0xf8] 0.0
  %2464 = vst [vmem:[#allocation2 + $0xa18] sm:$0xf8] 0.0
  %2465 = vst [vmem:[#allocation2 + $0xa20] sm:$0xf8] 0.0
  %2466 = vst [vmem:[#allocation2 + $0xa28] sm:$0xf8] 0.0
  %2467 = vst [vmem:[#allocation2 + $0xa30] sm:$0xf8] 0.0
  %2468 = vst [vmem:[#allocation2 + $0xa38] sm:$0xf8] 0.0
  %2469 = vst [vmem:[#allocation2 + $0xa40] sm:$0xf8] 0.0
  %2470 = vst [vmem:[#allocation2 + $0xa48] sm:$0xf8] 0.0
  %2471 = vst [vmem:[#allocation2 + $0xa50] sm:$0xf8] 0.0
  %2472 = vst [vmem:[#allocation2 + $0xa58] sm:$0xf8] 0.0
  %2473 = vst [vmem:[#allocation2 + $0xa60] sm:$0xf8] 0.0
  %2474 = vst [vmem:[#allocation2 + $0xa68] sm:$0xf8] 0.0
  %2475 = vst [vmem:[#allocation2 + $0xa70] sm:$0xf8] 0.0
  %2476 = vst [vmem:[#allocation2 + $0xa78] sm:$0xf8] 0.0
  %v2477 = vld [vmem:[%s0 + $0x8] sm:$0x77]
  %v2478 = vld [vmem:[%s0 + $0x10] sm:$0x77]
  %v2479 = vld [vmem:[%s0 + $0x18] sm:$0x77]
  %v2480 = vld [vmem:[%s0 + $0x20] sm:$0x77]
  %v2481 = vld [vmem:[%s0 + $0x28] sm:$0x77]
  %v2482 = vld [vmem:[%s0 + $0x30] sm:$0x77]
  %v2483 = vld [vmem:[%s0 + $0x38] sm:$0x77]
  %v2484 = vld [vmem:[%s0 + $0x40] sm:$0x77]
  %v2485 = vld [vmem:[%s0 + $0x48] sm:$0x7]
  %v2495 = vcombine.high %v2477, %v2477
  %v2496 = vcombine.high %v2478, %v2478
  %v2497 = vcombine.high %v2479, %v2479
  %v2498 = vcombine.high %v2480, %v2480
  %v2499 = vcombine.high %v2481, %v2481
  %v2500 = vcombine.high %v2482, %v2482
  %v2501 = vcombine.high %v2483, %v2483
  %v2502 = vcombine.high %v2484, %v2484
  %2503 = vrot.lane.b32.xlu0 %v2477, 126
  %v2504 = vpop.permute.xlu0 %2503
  %2505 = vrot.lane.b32.xlu0 %v2495, 126
  %v2506 = vpop.permute.xlu0 %2505
  %2507 = vrot.lane.b32.xlu0 %v2478, 126
  %v2508 = vpop.permute.xlu0 %2507
  %2509 = vrot.lane.b32.xlu0 %v2496, 126
  %v2510 = vpop.permute.xlu0 %2509
  %2511 = vrot.lane.b32.xlu0 %v2479, 126
  %v2512 = vpop.permute.xlu0 %2511
  %2513 = vrot.lane.b32.xlu0 %v2497, 126
  %v2514 = vpop.permute.xlu0 %2513
  %2515 = vrot.lane.b32.xlu0 %v2480, 126
  %v2516 = vpop.permute.xlu0 %2515
  %2517 = vrot.lane.b32.xlu0 %v2498, 126
  %v2518 = vpop.permute.xlu0 %2517
  %2519 = vrot.lane.b32.xlu0 %v2481, 126
  %v2520 = vpop.permute.xlu0 %2519
  %2521 = vrot.lane.b32.xlu0 %v2499, 126
  %v2522 = vpop.permute.xlu0 %2521
  %2523 = vrot.lane.b32.xlu0 %v2482, 126
  %v2524 = vpop.permute.xlu0 %2523
  %2525 = vrot.lane.b32.xlu0 %v2500, 126
  %v2526 = vpop.permute.xlu0 %2525
  %2527 = vrot.lane.b32.xlu0 %v2483, 126
  %v2528 = vpop.permute.xlu0 %2527
  %2529 = vrot.lane.b32.xlu0 %v2501, 126
  %v2530 = vpop.permute.xlu0 %2529
  %2531 = vrot.lane.b32.xlu0 %v2484, 126
  %v2532 = vpop.permute.xlu0 %2531
  %2533 = vrot.lane.b32.xlu0 %v2502, 126
  %v2534 = vpop.permute.xlu0 %2533
  %2535 = vrot.lane.b32.xlu0 %v2485, 126
  %v2536 = vpop.permute.xlu0 %2535
  %v2537 = vsel %vm168, %v2504, %v2506
  %v2538 = vsel %vm168, %v2506, %v2508
  %v2539 = vsel %vm168, %v2508, %v2510
  %v2540 = vsel %vm168, %v2510, %v2512
  %v2541 = vsel %vm168, %v2512, %v2514
  %v2542 = vsel %vm168, %v2514, %v2516
  %v2543 = vsel %vm168, %v2516, %v2518
  %v2544 = vsel %vm168, %v2518, %v2520
  %v2545 = vsel %vm168, %v2520, %v2522
  %v2546 = vsel %vm168, %v2522, %v2524
  %v2547 = vsel %vm168, %v2524, %v2526
  %v2548 = vsel %vm168, %v2526, %v2528
  %v2549 = vsel %vm168, %v2528, %v2530
  %v2550 = vsel %vm168, %v2530, %v2532
  %v2551 = vsel %vm168, %v2532, %v2534
  %v2552 = vsel %vm168, %v2534, %v2536
  %2569 = vst [vmem:[#allocation2 + $0xa80] sm:$0x7] %v2537
  %2570 = vst [vmem:[#allocation2 + $0xa88] sm:$0x7] %v2538
  %2571 = vst [vmem:[#allocation2 + $0xa90] sm:$0x7] %v2539
  %2572 = vst [vmem:[#allocation2 + $0xa98] sm:$0x7] %v2540
  %2573 = vst [vmem:[#allocation2 + $0xaa0] sm:$0x7] %v2541
  %2574 = vst [vmem:[#allocation2 + $0xaa8] sm:$0x7] %v2542
  %2575 = vst [vmem:[#allocation2 + $0xab0] sm:$0x7] %v2543
  %2576 = vst [vmem:[#allocation2 + $0xab8] sm:$0x7] %v2544
  %2577 = vst [vmem:[#allocation2 + $0xac0] sm:$0x7] %v2545
  %2578 = vst [vmem:[#allocation2 + $0xac8] sm:$0x7] %v2546
  %2579 = vst [vmem:[#allocation2 + $0xad0] sm:$0x7] %v2547
  %2580 = vst [vmem:[#allocation2 + $0xad8] sm:$0x7] %v2548
  %2581 = vst [vmem:[#allocation2 + $0xae0] sm:$0x7] %v2549
  %2582 = vst [vmem:[#allocation2 + $0xae8] sm:$0x7] %v2550
  %2583 = vst [vmem:[#allocation2 + $0xaf0] sm:$0x7] %v2551
  %2584 = vst [vmem:[#allocation2 + $0xaf8] sm:$0x7] %v2552
  %2585 = vst [vmem:[#allocation2 + $0xa80] sm:$0xf8] 0.0
  %2586 = vst [vmem:[#allocation2 + $0xa88] sm:$0xf8] 0.0
  %2587 = vst [vmem:[#allocation2 + $0xa90] sm:$0xf8] 0.0
  %2588 = vst [vmem:[#allocation2 + $0xa98] sm:$0xf8] 0.0
  %2589 = vst [vmem:[#allocation2 + $0xaa0] sm:$0xf8] 0.0
  %2590 = vst [vmem:[#allocation2 + $0xaa8] sm:$0xf8] 0.0
  %2591 = vst [vmem:[#allocation2 + $0xab0] sm:$0xf8] 0.0
  %2592 = vst [vmem:[#allocation2 + $0xab8] sm:$0xf8] 0.0
  %2593 = vst [vmem:[#allocation2 + $0xac0] sm:$0xf8] 0.0
  %2594 = vst [vmem:[#allocation2 + $0xac8] sm:$0xf8] 0.0
  %2595 = vst [vmem:[#allocation2 + $0xad0] sm:$0xf8] 0.0
  %2596 = vst [vmem:[#allocation2 + $0xad8] sm:$0xf8] 0.0
  %2597 = vst [vmem:[#allocation2 + $0xae0] sm:$0xf8] 0.0
  %2598 = vst [vmem:[#allocation2 + $0xae8] sm:$0xf8] 0.0
  %2599 = vst [vmem:[#allocation2 + $0xaf0] sm:$0xf8] 0.0
  %2600 = vst [vmem:[#allocation2 + $0xaf8] sm:$0xf8] 0.0
  %v2601 = vld [vmem:[%s0 + $0x8] sm:$0x77]
  %v2602 = vld [vmem:[%s0 + $0x10] sm:$0x77]
  %v2603 = vld [vmem:[%s0 + $0x18] sm:$0x77]
  %v2604 = vld [vmem:[%s0 + $0x20] sm:$0x77]
  %v2605 = vld [vmem:[%s0 + $0x28] sm:$0x77]
  %v2606 = vld [vmem:[%s0 + $0x30] sm:$0x77]
  %v2607 = vld [vmem:[%s0 + $0x38] sm:$0x77]
  %v2608 = vld [vmem:[%s0 + $0x40] sm:$0x77]
  %v2609 = vld [vmem:[%s0 + $0x48] sm:$0x7]
  %v2619 = vcombine.high %v2601, %v2601
  %v2620 = vcombine.high %v2602, %v2602
  %v2621 = vcombine.high %v2603, %v2603
  %v2622 = vcombine.high %v2604, %v2604
  %v2623 = vcombine.high %v2605, %v2605
  %v2624 = vcombine.high %v2606, %v2606
  %v2625 = vcombine.high %v2607, %v2607
  %v2626 = vcombine.high %v2608, %v2608
  %2627 = vrot.lane.b32.xlu0 %v2601, 124
  %v2628 = vpop.permute.xlu0 %2627
  %2629 = vrot.lane.b32.xlu0 %v2619, 124
  %v2630 = vpop.permute.xlu0 %2629
  %2631 = vrot.lane.b32.xlu0 %v2602, 124
  %v2632 = vpop.permute.xlu0 %2631
  %2633 = vrot.lane.b32.xlu0 %v2620, 124
  %v2634 = vpop.permute.xlu0 %2633
  %2635 = vrot.lane.b32.xlu0 %v2603, 124
  %v2636 = vpop.permute.xlu0 %2635
  %2637 = vrot.lane.b32.xlu0 %v2621, 124
  %v2638 = vpop.permute.xlu0 %2637
  %2639 = vrot.lane.b32.xlu0 %v2604, 124
  %v2640 = vpop.permute.xlu0 %2639
  %2641 = vrot.lane.b32.xlu0 %v2622, 124
  %v2642 = vpop.permute.xlu0 %2641
  %2643 = vrot.lane.b32.xlu0 %v2605, 124
  %v2644 = vpop.permute.xlu0 %2643
  %2645 = vrot.lane.b32.xlu0 %v2623, 124
  %v2646 = vpop.permute.xlu0 %2645
  %2647 = vrot.lane.b32.xlu0 %v2606, 124
  %v2648 = vpop.permute.xlu0 %2647
  %2649 = vrot.lane.b32.xlu0 %v2624, 124
  %v2650 = vpop.permute.xlu0 %2649
  %2651 = vrot.lane.b32.xlu0 %v2607, 124
  %v2652 = vpop.permute.xlu0 %2651
  %2653 = vrot.lane.b32.xlu0 %v2625, 124
  %v2654 = vpop.permute.xlu0 %2653
  %2655 = vrot.lane.b32.xlu0 %v2608, 124
  %v2656 = vpop.permute.xlu0 %2655
  %2657 = vrot.lane.b32.xlu0 %v2626, 124
  %v2658 = vpop.permute.xlu0 %2657
  %2659 = vrot.lane.b32.xlu0 %v2609, 124
  %v2660 = vpop.permute.xlu0 %2659
  %v2661 = vsel %vm293, %v2628, %v2630
  %v2662 = vsel %vm293, %v2630, %v2632
  %v2663 = vsel %vm293, %v2632, %v2634
  %v2664 = vsel %vm293, %v2634, %v2636
  %v2665 = vsel %vm293, %v2636, %v2638
  %v2666 = vsel %vm293, %v2638, %v2640
  %v2667 = vsel %vm293, %v2640, %v2642
  %v2668 = vsel %vm293, %v2642, %v2644
  %v2669 = vsel %vm293, %v2644, %v2646
  %v2670 = vsel %vm293, %v2646, %v2648
  %v2671 = vsel %vm293, %v2648, %v2650
  %v2672 = vsel %vm293, %v2650, %v2652
  %v2673 = vsel %vm293, %v2652, %v2654
  %v2674 = vsel %vm293, %v2654, %v2656
  %v2675 = vsel %vm293, %v2656, %v2658
  %v2676 = vsel %vm293, %v2658, %v2660
  %2693 = vst [vmem:[#allocation2 + $0xb00] sm:$0x7] %v2661
  %2694 = vst [vmem:[#allocation2 + $0xb08] sm:$0x7] %v2662
  %2695 = vst [vmem:[#allocation2 + $0xb10] sm:$0x7] %v2663
  %2696 = vst [vmem:[#allocation2 + $0xb18] sm:$0x7] %v2664
  %2697 = vst [vmem:[#allocation2 + $0xb20] sm:$0x7] %v2665
  %2698 = vst [vmem:[#allocation2 + $0xb28] sm:$0x7] %v2666
  %2699 = vst [vmem:[#allocation2 + $0xb30] sm:$0x7] %v2667
  %2700 = vst [vmem:[#allocation2 + $0xb38] sm:$0x7] %v2668
  %2701 = vst [vmem:[#allocation2 + $0xb40] sm:$0x7] %v2669
  %2702 = vst [vmem:[#allocation2 + $0xb48] sm:$0x7] %v2670
  %2703 = vst [vmem:[#allocation2 + $0xb50] sm:$0x7] %v2671
  %2704 = vst [vmem:[#allocation2 + $0xb58] sm:$0x7] %v2672
  %2705 = vst [vmem:[#allocation2 + $0xb60] sm:$0x7] %v2673
  %2706 = vst [vmem:[#allocation2 + $0xb68] sm:$0x7] %v2674
  %2707 = vst [vmem:[#allocation2 + $0xb70] sm:$0x7] %v2675
  %2708 = vst [vmem:[#allocation2 + $0xb78] sm:$0x7] %v2676
  %2709 = vst [vmem:[#allocation2 + $0xb00] sm:$0xf8] 0.0
  %2710 = vst [vmem:[#allocation2 + $0xb08] sm:$0xf8] 0.0
  %2711 = vst [vmem:[#allocation2 + $0xb10] sm:$0xf8] 0.0
  %2712 = vst [vmem:[#allocation2 + $0xb18] sm:$0xf8] 0.0
  %2713 = vst [vmem:[#allocation2 + $0xb20] sm:$0xf8] 0.0
  %2714 = vst [vmem:[#allocation2 + $0xb28] sm:$0xf8] 0.0
  %2715 = vst [vmem:[#allocation2 + $0xb30] sm:$0xf8] 0.0
  %2716 = vst [vmem:[#allocation2 + $0xb38] sm:$0xf8] 0.0
  %2717 = vst [vmem:[#allocation2 + $0xb40] sm:$0xf8] 0.0
  %2718 = vst [vmem:[#allocation2 + $0xb48] sm:$0xf8] 0.0
  %2719 = vst [vmem:[#allocation2 + $0xb50] sm:$0xf8] 0.0
  %2720 = vst [vmem:[#allocation2 + $0xb58] sm:$0xf8] 0.0
  %2721 = vst [vmem:[#allocation2 + $0xb60] sm:$0xf8] 0.0
  %2722 = vst [vmem:[#allocation2 + $0xb68] sm:$0xf8] 0.0
  %2723 = vst [vmem:[#allocation2 + $0xb70] sm:$0xf8] 0.0
  %2724 = vst [vmem:[#allocation2 + $0xb78] sm:$0xf8] 0.0
  %v2725 = vld [vmem:[%s0 + $0x8] sm:$0x77]
  %v2726 = vld [vmem:[%s0 + $0x10] sm:$0x77]
  %v2727 = vld [vmem:[%s0 + $0x18] sm:$0x77]
  %v2728 = vld [vmem:[%s0 + $0x20] sm:$0x77]
  %v2729 = vld [vmem:[%s0 + $0x28] sm:$0x77]
  %v2730 = vld [vmem:[%s0 + $0x30] sm:$0x77]
  %v2731 = vld [vmem:[%s0 + $0x38] sm:$0x77]
  %v2732 = vld [vmem:[%s0 + $0x40] sm:$0x77]
  %v2733 = vld [vmem:[%s0 + $0x48] sm:$0x7]
  %v2743 = vcombine.high %v2725, %v2725
  %v2744 = vcombine.high %v2726, %v2726
  %v2745 = vcombine.high %v2727, %v2727
  %v2746 = vcombine.high %v2728, %v2728
  %v2747 = vcombine.high %v2729, %v2729
  %v2748 = vcombine.high %v2730, %v2730
  %v2749 = vcombine.high %v2731, %v2731
  %v2750 = vcombine.high %v2732, %v2732
  %2751 = vrot.lane.b32.xlu0 %v2725, 122
  %v2752 = vpop.permute.xlu0 %2751
  %2753 = vrot.lane.b32.xlu0 %v2743, 122
  %v2754 = vpop.permute.xlu0 %2753
  %2755 = vrot.lane.b32.xlu0 %v2726, 122
  %v2756 = vpop.permute.xlu0 %2755
  %2757 = vrot.lane.b32.xlu0 %v2744, 122
  %v2758 = vpop.permute.xlu0 %2757
  %2759 = vrot.lane.b32.xlu0 %v2727, 122
  %v2760 = vpop.permute.xlu0 %2759
  %2761 = vrot.lane.b32.xlu0 %v2745, 122
  %v2762 = vpop.permute.xlu0 %2761
  %2763 = vrot.lane.b32.xlu0 %v2728, 122
  %v2764 = vpop.permute.xlu0 %2763
  %2765 = vrot.lane.b32.xlu0 %v2746, 122
  %v2766 = vpop.permute.xlu0 %2765
  %2767 = vrot.lane.b32.xlu0 %v2729, 122
  %v2768 = vpop.permute.xlu0 %2767
  %2769 = vrot.lane.b32.xlu0 %v2747, 122
  %v2770 = vpop.permute.xlu0 %2769
  %2771 = vrot.lane.b32.xlu0 %v2730, 122
  %v2772 = vpop.permute.xlu0 %2771
  %2773 = vrot.lane.b32.xlu0 %v2748, 122
  %v2774 = vpop.permute.xlu0 %2773
  %2775 = vrot.lane.b32.xlu0 %v2731, 122
  %v2776 = vpop.permute.xlu0 %2775
  %2777 = vrot.lane.b32.xlu0 %v2749, 122
  %v2778 = vpop.permute.xlu0 %2777
  %2779 = vrot.lane.b32.xlu0 %v2732, 122
  %v2780 = vpop.permute.xlu0 %2779
  %2781 = vrot.lane.b32.xlu0 %v2750, 122
  %v2782 = vpop.permute.xlu0 %2781
  %2783 = vrot.lane.b32.xlu0 %v2733, 122
  %v2784 = vpop.permute.xlu0 %2783
  %v2785 = vsel %vm418, %v2752, %v2754
  %v2786 = vsel %vm418, %v2754, %v2756
  %v2787 = vsel %vm418, %v2756, %v2758
  %v2788 = vsel %vm418, %v2758, %v2760
  %v2789 = vsel %vm418, %v2760, %v2762
  %v2790 = vsel %vm418, %v2762, %v2764
  %v2791 = vsel %vm418, %v2764, %v2766
  %v2792 = vsel %vm418, %v2766, %v2768
  %v2793 = vsel %vm418, %v2768, %v2770
  %v2794 = vsel %vm418, %v2770, %v2772
  %v2795 = vsel %vm418, %v2772, %v2774
  %v2796 = vsel %vm418, %v2774, %v2776
  %v2797 = vsel %vm418, %v2776, %v2778
  %v2798 = vsel %vm418, %v2778, %v2780
  %v2799 = vsel %vm418, %v2780, %v2782
  %v2800 = vsel %vm418, %v2782, %v2784
  %2817 = vst [vmem:[#allocation2 + $0xb80] sm:$0x7] %v2785
  %2818 = vst [vmem:[#allocation2 + $0xb88] sm:$0x7] %v2786
  %2819 = vst [vmem:[#allocation2 + $0xb90] sm:$0x7] %v2787
  %2820 = vst [vmem:[#allocation2 + $0xb98] sm:$0x7] %v2788
  %2821 = vst [vmem:[#allocation2 + $0xba0] sm:$0x7] %v2789
  %2822 = vst [vmem:[#allocation2 + $0xba8] sm:$0x7] %v2790
  %2823 = vst [vmem:[#allocation2 + $0xbb0] sm:$0x7] %v2791
  %2824 = vst [vmem:[#allocation2 + $0xbb8] sm:$0x7] %v2792
  %2825 = vst [vmem:[#allocation2 + $0xbc0] sm:$0x7] %v2793
  %2826 = vst [vmem:[#allocation2 + $0xbc8] sm:$0x7] %v2794
  %2827 = vst [vmem:[#allocation2 + $0xbd0] sm:$0x7] %v2795
  %2828 = vst [vmem:[#allocation2 + $0xbd8] sm:$0x7] %v2796
  %2829 = vst [vmem:[#allocation2 + $0xbe0] sm:$0x7] %v2797
  %2830 = vst [vmem:[#allocation2 + $0xbe8] sm:$0x7] %v2798
  %2831 = vst [vmem:[#allocation2 + $0xbf0] sm:$0x7] %v2799
  %2832 = vst [vmem:[#allocation2 + $0xbf8] sm:$0x7] %v2800
  %2833 = vst [vmem:[#allocation2 + $0xb80] sm:$0xf8] 0.0
  %2834 = vst [vmem:[#allocation2 + $0xb88] sm:$0xf8] 0.0
  %2835 = vst [vmem:[#allocation2 + $0xb90] sm:$0xf8] 0.0
  %2836 = vst [vmem:[#allocation2 + $0xb98] sm:$0xf8] 0.0
  %2837 = vst [vmem:[#allocation2 + $0xba0] sm:$0xf8] 0.0
  %2838 = vst [vmem:[#allocation2 + $0xba8] sm:$0xf8] 0.0
  %2839 = vst [vmem:[#allocation2 + $0xbb0] sm:$0xf8] 0.0
  %2840 = vst [vmem:[#allocation2 + $0xbb8] sm:$0xf8] 0.0
  %2841 = vst [vmem:[#allocation2 + $0xbc0] sm:$0xf8] 0.0
  %2842 = vst [vmem:[#allocation2 + $0xbc8] sm:$0xf8] 0.0
  %2843 = vst [vmem:[#allocation2 + $0xbd0] sm:$0xf8] 0.0
  %2844 = vst [vmem:[#allocation2 + $0xbd8] sm:$0xf8] 0.0
  %2845 = vst [vmem:[#allocation2 + $0xbe0] sm:$0xf8] 0.0
  %2846 = vst [vmem:[#allocation2 + $0xbe8] sm:$0xf8] 0.0
  %2847 = vst [vmem:[#allocation2 + $0xbf0] sm:$0xf8] 0.0
  %2848 = vst [vmem:[#allocation2 + $0xbf8] sm:$0xf8] 0.0
  %v2849 = vld [vmem:[%s0 + $0x8] sm:$0x77]
  %v2850 = vld [vmem:[%s0 + $0x10] sm:$0x77]
  %v2851 = vld [vmem:[%s0 + $0x18] sm:$0x77]
  %v2852 = vld [vmem:[%s0 + $0x20] sm:$0x77]
  %v2853 = vld [vmem:[%s0 + $0x28] sm:$0x77]
  %v2854 = vld [vmem:[%s0 + $0x30] sm:$0x77]
  %v2855 = vld [vmem:[%s0 + $0x38] sm:$0x77]
  %v2856 = vld [vmem:[%s0 + $0x40] sm:$0x77]
  %v2857 = vld [vmem:[%s0 + $0x48] sm:$0x7]
  %v2867 = vcombine.high %v2849, %v2849
  %v2868 = vcombine.high %v2850, %v2850
  %v2869 = vcombine.high %v2851, %v2851
  %v2870 = vcombine.high %v2852, %v2852
  %v2871 = vcombine.high %v2853, %v2853
  %v2872 = vcombine.high %v2854, %v2854
  %v2873 = vcombine.high %v2855, %v2855
  %v2874 = vcombine.high %v2856, %v2856
  %2875 = vrot.lane.b32.xlu0 %v2849, 120
  %v2876 = vpop.permute.xlu0 %2875
  %2877 = vrot.lane.b32.xlu0 %v2867, 120
  %v2878 = vpop.permute.xlu0 %2877
  %2879 = vrot.lane.b32.xlu0 %v2850, 120
  %v2880 = vpop.permute.xlu0 %2879
  %2881 = vrot.lane.b32.xlu0 %v2868, 120
  %v2882 = vpop.permute.xlu0 %2881
  %2883 = vrot.lane.b32.xlu0 %v2851, 120
  %v2884 = vpop.permute.xlu0 %2883
  %2885 = vrot.lane.b32.xlu0 %v2869, 120
  %v2886 = vpop.permute.xlu0 %2885
  %2887 = vrot.lane.b32.xlu0 %v2852, 120
  %v2888 = vpop.permute.xlu0 %2887
  %2889 = vrot.lane.b32.xlu0 %v2870, 120
  %v2890 = vpop.permute.xlu0 %2889
  %2891 = vrot.lane.b32.xlu0 %v2853, 120
  %v2892 = vpop.permute.xlu0 %2891
  %2893 = vrot.lane.b32.xlu0 %v2871, 120
  %v2894 = vpop.permute.xlu0 %2893
  %2895 = vrot.lane.b32.xlu0 %v2854, 120
  %v2896 = vpop.permute.xlu0 %2895
  %2897 = vrot.lane.b32.xlu0 %v2872, 120
  %v2898 = vpop.permute.xlu0 %2897
  %2899 = vrot.lane.b32.xlu0 %v2855, 120
  %v2900 = vpop.permute.xlu0 %2899
  %2901 = vrot.lane.b32.xlu0 %v2873, 120
  %v2902 = vpop.permute.xlu0 %2901
  %2903 = vrot.lane.b32.xlu0 %v2856, 120
  %v2904 = vpop.permute.xlu0 %2903
  %2905 = vrot.lane.b32.xlu0 %v2874, 120
  %v2906 = vpop.permute.xlu0 %2905
  %2907 = vrot.lane.b32.xlu0 %v2857, 120
  %v2908 = vpop.permute.xlu0 %2907
  %v2909 = vsel %vm543, %v2876, %v2878
  %v2910 = vsel %vm543, %v2878, %v2880
  %v2911 = vsel %vm543, %v2880, %v2882
  %v2912 = vsel %vm543, %v2882, %v2884
  %v2913 = vsel %vm543, %v2884, %v2886
  %v2914 = vsel %vm543, %v2886, %v2888
  %v2915 = vsel %vm543, %v2888, %v2890
  %v2916 = vsel %vm543, %v2890, %v2892
  %v2917 = vsel %vm543, %v2892, %v2894
  %v2918 = vsel %vm543, %v2894, %v2896
  %v2919 = vsel %vm543, %v2896, %v2898
  %v2920 = vsel %vm543, %v2898, %v2900
  %v2921 = vsel %vm543, %v2900, %v2902
  %v2922 = vsel %vm543, %v2902, %v2904
  %v2923 = vsel %vm543, %v2904, %v2906
  %v2924 = vsel %vm543, %v2906, %v2908
  %2941 = vst [vmem:[#allocation2 + $0xc00] sm:$0x7] %v2909
  %2942 = vst [vmem:[#allocation2 + $0xc08] sm:$0x7] %v2910
  %2943 = vst [vmem:[#allocation2 + $0xc10] sm:$0x7] %v2911
  %2944 = vst [vmem:[#allocation2 + $0xc18] sm:$0x7] %v2912
  %2945 = vst [vmem:[#allocation2 + $0xc20] sm:$0x7] %v2913
  %2946 = vst [vmem:[#allocation2 + $0xc28] sm:$0x7] %v2914
  %2947 = vst [vmem:[#allocation2 + $0xc30] sm:$0x7] %v2915
  %2948 = vst [vmem:[#allocation2 + $0xc38] sm:$0x7] %v2916
  %2949 = vst [vmem:[#allocation2 + $0xc40] sm:$0x7] %v2917
  %2950 = vst [vmem:[#allocation2 + $0xc48] sm:$0x7] %v2918
  %2951 = vst [vmem:[#allocation2 + $0xc50] sm:$0x7] %v2919
  %2952 = vst [vmem:[#allocation2 + $0xc58] sm:$0x7] %v2920
  %2953 = vst [vmem:[#allocation2 + $0xc60] sm:$0x7] %v2921
  %2954 = vst [vmem:[#allocation2 + $0xc68] sm:$0x7] %v2922
  %2955 = vst [vmem:[#allocation2 + $0xc70] sm:$0x7] %v2923
  %2956 = vst [vmem:[#allocation2 + $0xc78] sm:$0x7] %v2924
  %2957 = vst [vmem:[#allocation2 + $0xc00] sm:$0xf8] 0.0
  %2958 = vst [vmem:[#allocation2 + $0xc08] sm:$0xf8] 0.0
  %2959 = vst [vmem:[#allocation2 + $0xc10] sm:$0xf8] 0.0
  %2960 = vst [vmem:[#allocation2 + $0xc18] sm:$0xf8] 0.0
  %2961 = vst [vmem:[#allocation2 + $0xc20] sm:$0xf8] 0.0
  %2962 = vst [vmem:[#allocation2 + $0xc28] sm:$0xf8] 0.0
  %2963 = vst [vmem:[#allocation2 + $0xc30] sm:$0xf8] 0.0
  %2964 = vst [vmem:[#allocation2 + $0xc38] sm:$0xf8] 0.0
  %2965 = vst [vmem:[#allocation2 + $0xc40] sm:$0xf8] 0.0
  %2966 = vst [vmem:[#allocation2 + $0xc48] sm:$0xf8] 0.0
  %2967 = vst [vmem:[#allocation2 + $0xc50] sm:$0xf8] 0.0
  %2968 = vst [vmem:[#allocation2 + $0xc58] sm:$0xf8] 0.0
  %2969 = vst [vmem:[#allocation2 + $0xc60] sm:$0xf8] 0.0
  %2970 = vst [vmem:[#allocation2 + $0xc68] sm:$0xf8] 0.0
  %2971 = vst [vmem:[#allocation2 + $0xc70] sm:$0xf8] 0.0
  %2972 = vst [vmem:[#allocation2 + $0xc78] sm:$0xf8] 0.0
  %v2973 = vld [vmem:[%s1] sm:$0x3f]
  %v2974 = vld [vmem:[%s1 + $0x8] sm:$0x3f]
  %v2975 = vld [vmem:[#allocation2] sm:$0xff]
  %v2976 = vld [vmem:[#allocation2 + $0x8] sm:$0xff]
  %v2977 = vld [vmem:[#allocation2 + $0x10] sm:$0xff]
  %v2978 = vld [vmem:[#allocation2 + $0x18] sm:$0xff]
  %v2979 = vld [vmem:[#allocation2 + $0x20] sm:$0xff]
  %v2980 = vld [vmem:[#allocation2 + $0x28] sm:$0xff]
  %v2981 = vld [vmem:[#allocation2 + $0x30] sm:$0xff]
  %v2982 = vld [vmem:[#allocation2 + $0x38] sm:$0xff]
  %v2983 = vld [vmem:[#allocation2 + $0x40] sm:$0xff]
  %v2984 = vld [vmem:[#allocation2 + $0x48] sm:$0xff]
  %v2985 = vld [vmem:[#allocation2 + $0x50] sm:$0xff]
  %v2986 = vld [vmem:[#allocation2 + $0x58] sm:$0xff]
  %v2987 = vld [vmem:[#allocation2 + $0x60] sm:$0xff]
  %v2988 = vld [vmem:[#allocation2 + $0x68] sm:$0xff]
  %v2989 = vld [vmem:[#allocation2 + $0x70] sm:$0xff]
  %v2990 = vld [vmem:[#allocation2 + $0x78] sm:$0xff]
  %v2991 = vld [vmem:[#allocation2 + $0x80] sm:$0xff]
  %v2992 = vld [vmem:[#allocation2 + $0x88] sm:$0xff]
  %v2993 = vld [vmem:[#allocation2 + $0x90] sm:$0xff]
  %v2994 = vld [vmem:[#allocation2 + $0x98] sm:$0xff]
  %v2995 = vld [vmem:[#allocation2 + $0xa0] sm:$0xff]
  %v2996 = vld [vmem:[#allocation2 + $0xa8] sm:$0xff]
  %v2997 = vld [vmem:[#allocation2 + $0xb0] sm:$0xff]
  %v2998 = vld [vmem:[#allocation2 + $0xb8] sm:$0xff]
  %v2999 = vld [vmem:[#allocation2 + $0xc0] sm:$0xff]
  %v3000 = vld [vmem:[#allocation2 + $0xc8] sm:$0xff]
  %v3001 = vld [vmem:[#allocation2 + $0xd0] sm:$0xff]
  %v3002 = vld [vmem:[#allocation2 + $0xd8] sm:$0xff]
  %v3003 = vld [vmem:[#allocation2 + $0xe0] sm:$0xff]
  %v3004 = vld [vmem:[#allocation2 + $0xe8] sm:$0xff]
  %v3005 = vld [vmem:[#allocation2 + $0xf0] sm:$0xff]
  %v3006 = vld [vmem:[#allocation2 + $0xf8] sm:$0xff]
  %v3007 = vld [vmem:[#allocation2 + $0x100] sm:$0xff]
  %v3008 = vld [vmem:[#allocation2 + $0x108] sm:$0xff]
  %v3009 = vld [vmem:[#allocation2 + $0x110] sm:$0xff]
  %v3010 = vld [vmem:[#allocation2 + $0x118] sm:$0xff]
  %v3011 = vld [vmem:[#allocation2 + $0x120] sm:$0xff]
  %v3012 = vld [vmem:[#allocation2 + $0x128] sm:$0xff]
  %v3013 = vld [vmem:[#allocation2 + $0x130] sm:$0xff]
  %v3014 = vld [vmem:[#allocation2 + $0x138] sm:$0xff]
  %v3015 = vld [vmem:[#allocation2 + $0x140] sm:$0xff]
  %v3016 = vld [vmem:[#allocation2 + $0x148] sm:$0xff]
  %v3017 = vld [vmem:[#allocation2 + $0x150] sm:$0xff]
  %v3018 = vld [vmem:[#allocation2 + $0x158] sm:$0xff]
  %v3019 = vld [vmem:[#allocation2 + $0x160] sm:$0xff]
  %v3020 = vld [vmem:[#allocation2 + $0x168] sm:$0xff]
  %v3021 = vld [vmem:[#allocation2 + $0x170] sm:$0xff]
  %v3022 = vld [vmem:[#allocation2 + $0x178] sm:$0xff]
  %v3023 = vld [vmem:[#allocation2 + $0x180] sm:$0xff]
  %v3024 = vld [vmem:[#allocation2 + $0x188] sm:$0xff]
  %v3025 = vld [vmem:[#allocation2 + $0x190] sm:$0xff]
  %v3026 = vld [vmem:[#allocation2 + $0x198] sm:$0xff]
  %v3027 = vld [vmem:[#allocation2 + $0x1a0] sm:$0xff]
  %v3028 = vld [vmem:[#allocation2 + $0x1a8] sm:$0xff]
  %v3029 = vld [vmem:[#allocation2 + $0x1b0] sm:$0xff]
  %v3030 = vld [vmem:[#allocation2 + $0x1b8] sm:$0xff]
  %v3031 = vld [vmem:[#allocation2 + $0x1c0] sm:$0xff]
  %v3032 = vld [vmem:[#allocation2 + $0x1c8] sm:$0xff]
  %v3033 = vld [vmem:[#allocation2 + $0x1d0] sm:$0xff]
  %v3034 = vld [vmem:[#allocation2 + $0x1d8] sm:$0xff]
  %v3035 = vld [vmem:[#allocation2 + $0x1e0] sm:$0xff]
  %v3036 = vld [vmem:[#allocation2 + $0x1e8] sm:$0xff]
  %v3037 = vld [vmem:[#allocation2 + $0x1f0] sm:$0xff]
  %v3038 = vld [vmem:[#allocation2 + $0x1f8] sm:$0xff]
  %v3039 = vld [vmem:[#allocation2 + $0x200] sm:$0xff]
  %v3040 = vld [vmem:[#allocation2 + $0x208] sm:$0xff]
  %v3041 = vld [vmem:[#allocation2 + $0x210] sm:$0xff]
  %v3042 = vld [vmem:[#allocation2 + $0x218] sm:$0xff]
  %v3043 = vld [vmem:[#allocation2 + $0x220] sm:$0xff]
  %v3044 = vld [vmem:[#allocation2 + $0x228] sm:$0xff]
  %v3045 = vld [vmem:[#allocation2 + $0x230] sm:$0xff]
  %v3046 = vld [vmem:[#allocation2 + $0x238] sm:$0xff]
  %v3047 = vld [vmem:[#allocation2 + $0x240] sm:$0xff]
  %v3048 = vld [vmem:[#allocation2 + $0x248] sm:$0xff]
  %v3049 = vld [vmem:[#allocation2 + $0x250] sm:$0xff]
  %v3050 = vld [vmem:[#allocation2 + $0x258] sm:$0xff]
  %v3051 = vld [vmem:[#allocation2 + $0x260] sm:$0xff]
  %v3052 = vld [vmem:[#allocation2 + $0x268] sm:$0xff]
  %v3053 = vld [vmem:[#allocation2 + $0x270] sm:$0xff]
  %v3054 = vld [vmem:[#allocation2 + $0x278] sm:$0xff]
  %v3055 = vld [vmem:[#allocation2 + $0x280] sm:$0xff]
  %v3056 = vld [vmem:[#allocation2 + $0x288] sm:$0xff]
  %v3057 = vld [vmem:[#allocation2 + $0x290] sm:$0xff]
  %v3058 = vld [vmem:[#allocation2 + $0x298] sm:$0xff]
  %v3059 = vld [vmem:[#allocation2 + $0x2a0] sm:$0xff]
  %v3060 = vld [vmem:[#allocation2 + $0x2a8] sm:$0xff]
  %v3061 = vld [vmem:[#allocation2 + $0x2b0] sm:$0xff]
  %v3062 = vld [vmem:[#allocation2 + $0x2b8] sm:$0xff]
  %v3063 = vld [vmem:[#allocation2 + $0x2c0] sm:$0xff]
  %v3064 = vld [vmem:[#allocation2 + $0x2c8] sm:$0xff]
  %v3065 = vld [vmem:[#allocation2 + $0x2d0] sm:$0xff]
  %v3066 = vld [vmem:[#allocation2 + $0x2d8] sm:$0xff]
  %v3067 = vld [vmem:[#allocation2 + $0x2e0] sm:$0xff]
  %v3068 = vld [vmem:[#allocation2 + $0x2e8] sm:$0xff]
  %v3069 = vld [vmem:[#allocation2 + $0x2f0] sm:$0xff]
  %v3070 = vld [vmem:[#allocation2 + $0x2f8] sm:$0xff]
  %v3071 = vld [vmem:[#allocation2 + $0x300] sm:$0xff]
  %v3072 = vld [vmem:[#allocation2 + $0x308] sm:$0xff]
  %v3073 = vld [vmem:[#allocation2 + $0x310] sm:$0xff]
  %v3074 = vld [vmem:[#allocation2 + $0x318] sm:$0xff]
  %v3075 = vld [vmem:[#allocation2 + $0x320] sm:$0xff]
  %v3076 = vld [vmem:[#allocation2 + $0x328] sm:$0xff]
  %v3077 = vld [vmem:[#allocation2 + $0x330] sm:$0xff]
  %v3078 = vld [vmem:[#allocation2 + $0x338] sm:$0xff]
  %v3079 = vld [vmem:[#allocation2 + $0x340] sm:$0xff]
  %v3080 = vld [vmem:[#allocation2 + $0x348] sm:$0xff]
  %v3081 = vld [vmem:[#allocation2 + $0x350] sm:$0xff]
  %v3082 = vld [vmem:[#allocation2 + $0x358] sm:$0xff]
  %v3083 = vld [vmem:[#allocation2 + $0x360] sm:$0xff]
  %v3084 = vld [vmem:[#allocation2 + $0x368] sm:$0xff]
  %v3085 = vld [vmem:[#allocation2 + $0x370] sm:$0xff]
  %v3086 = vld [vmem:[#allocation2 + $0x378] sm:$0xff]
  %v3087 = vld [vmem:[#allocation2 + $0x380] sm:$0xff]
  %v3088 = vld [vmem:[#allocation2 + $0x388] sm:$0xff]
  %v3089 = vld [vmem:[#allocation2 + $0x390] sm:$0xff]
  %v3090 = vld [vmem:[#allocation2 + $0x398] sm:$0xff]
  %v3091 = vld [vmem:[#allocation2 + $0x3a0] sm:$0xff]
  %v3092 = vld [vmem:[#allocation2 + $0x3a8] sm:$0xff]
  %v3093 = vld [vmem:[#allocation2 + $0x3b0] sm:$0xff]
  %v3094 = vld [vmem:[#allocation2 + $0x3b8] sm:$0xff]
  %v3095 = vld [vmem:[#allocation2 + $0x3c0] sm:$0xff]
  %v3096 = vld [vmem:[#allocation2 + $0x3c8] sm:$0xff]
  %v3097 = vld [vmem:[#allocation2 + $0x3d0] sm:$0xff]
  %v3098 = vld [vmem:[#allocation2 + $0x3d8] sm:$0xff]
  %v3099 = vld [vmem:[#allocation2 + $0x3e0] sm:$0xff]
  %v3100 = vld [vmem:[#allocation2 + $0x3e8] sm:$0xff]
  %v3101 = vld [vmem:[#allocation2 + $0x3f0] sm:$0xff]
  %v3102 = vld [vmem:[#allocation2 + $0x3f8] sm:$0xff]
  %v3103 = vld [vmem:[#allocation2 + $0x400] sm:$0xff]
  %v3104 = vld [vmem:[#allocation2 + $0x408] sm:$0xff]
  %v3105 = vld [vmem:[#allocation2 + $0x410] sm:$0xff]
  %v3106 = vld [vmem:[#allocation2 + $0x418] sm:$0xff]
  %v3107 = vld [vmem:[#allocation2 + $0x420] sm:$0xff]
  %v3108 = vld [vmem:[#allocation2 + $0x428] sm:$0xff]
  %v3109 = vld [vmem:[#allocation2 + $0x430] sm:$0xff]
  %v3110 = vld [vmem:[#allocation2 + $0x438] sm:$0xff]
  %v3111 = vld [vmem:[#allocation2 + $0x440] sm:$0xff]
  %v3112 = vld [vmem:[#allocation2 + $0x448] sm:$0xff]
  %v3113 = vld [vmem:[#allocation2 + $0x450] sm:$0xff]
  %v3114 = vld [vmem:[#allocation2 + $0x458] sm:$0xff]
  %v3115 = vld [vmem:[#allocation2 + $0x460] sm:$0xff]
  %v3116 = vld [vmem:[#allocation2 + $0x468] sm:$0xff]
  %v3117 = vld [vmem:[#allocation2 + $0x470] sm:$0xff]
  %v3118 = vld [vmem:[#allocation2 + $0x478] sm:$0xff]
  %v3119 = vld [vmem:[#allocation2 + $0x480] sm:$0xff]
  %v3120 = vld [vmem:[#allocation2 + $0x488] sm:$0xff]
  %v3121 = vld [vmem:[#allocation2 + $0x490] sm:$0xff]
  %v3122 = vld [vmem:[#allocation2 + $0x498] sm:$0xff]
  %v3123 = vld [vmem:[#allocation2 + $0x4a0] sm:$0xff]
  %v3124 = vld [vmem:[#allocation2 + $0x4a8] sm:$0xff]
  %v3125 = vld [vmem:[#allocation2 + $0x4b0] sm:$0xff]
  %v3126 = vld [vmem:[#allocation2 + $0x4b8] sm:$0xff]
  %v3127 = vld [vmem:[#allocation2 + $0x4c0] sm:$0xff]
  %v3128 = vld [vmem:[#allocation2 + $0x4c8] sm:$0xff]
  %v3129 = vld [vmem:[#allocation2 + $0x4d0] sm:$0xff]
  %v3130 = vld [vmem:[#allocation2 + $0x4d8] sm:$0xff]
  %v3131 = vld [vmem:[#allocation2 + $0x4e0] sm:$0xff]
  %v3132 = vld [vmem:[#allocation2 + $0x4e8] sm:$0xff]
  %v3133 = vld [vmem:[#allocation2 + $0x4f0] sm:$0xff]
  %v3134 = vld [vmem:[#allocation2 + $0x4f8] sm:$0xff]
  %v3135 = vld [vmem:[#allocation2 + $0x500] sm:$0xff]
  %v3136 = vld [vmem:[#allocation2 + $0x508] sm:$0xff]
  %v3137 = vld [vmem:[#allocation2 + $0x510] sm:$0xff]
  %v3138 = vld [vmem:[#allocation2 + $0x518] sm:$0xff]
  %v3139 = vld [vmem:[#allocation2 + $0x520] sm:$0xff]
  %v3140 = vld [vmem:[#allocation2 + $0x528] sm:$0xff]
  %v3141 = vld [vmem:[#allocation2 + $0x530] sm:$0xff]
  %v3142 = vld [vmem:[#allocation2 + $0x538] sm:$0xff]
  %v3143 = vld [vmem:[#allocation2 + $0x540] sm:$0xff]
  %v3144 = vld [vmem:[#allocation2 + $0x548] sm:$0xff]
  %v3145 = vld [vmem:[#allocation2 + $0x550] sm:$0xff]
  %v3146 = vld [vmem:[#allocation2 + $0x558] sm:$0xff]
  %v3147 = vld [vmem:[#allocation2 + $0x560] sm:$0xff]
  %v3148 = vld [vmem:[#allocation2 + $0x568] sm:$0xff]
  %v3149 = vld [vmem:[#allocation2 + $0x570] sm:$0xff]
  %v3150 = vld [vmem:[#allocation2 + $0x578] sm:$0xff]
  %v3151 = vld [vmem:[#allocation2 + $0x580] sm:$0xff]
  %v3152 = vld [vmem:[#allocation2 + $0x588] sm:$0xff]
  %v3153 = vld [vmem:[#allocation2 + $0x590] sm:$0xff]
  %v3154 = vld [vmem:[#allocation2 + $0x598] sm:$0xff]
  %v3155 = vld [vmem:[#allocation2 + $0x5a0] sm:$0xff]
  %v3156 = vld [vmem:[#allocation2 + $0x5a8] sm:$0xff]
  %v3157 = vld [vmem:[#allocation2 + $0x5b0] sm:$0xff]
  %v3158 = vld [vmem:[#allocation2 + $0x5b8] sm:$0xff]
  %v3159 = vld [vmem:[#allocation2 + $0x5c0] sm:$0xff]
  %v3160 = vld [vmem:[#allocation2 + $0x5c8] sm:$0xff]
  %v3161 = vld [vmem:[#allocation2 + $0x5d0] sm:$0xff]
  %v3162 = vld [vmem:[#allocation2 + $0x5d8] sm:$0xff]
  %v3163 = vld [vmem:[#allocation2 + $0x5e0] sm:$0xff]
  %v3164 = vld [vmem:[#allocation2 + $0x5e8] sm:$0xff]
  %v3165 = vld [vmem:[#allocation2 + $0x5f0] sm:$0xff]
  %v3166 = vld [vmem:[#allocation2 + $0x5f8] sm:$0xff]
  %v3167 = vld [vmem:[#allocation2 + $0x600] sm:$0xff]
  %v3168 = vld [vmem:[#allocation2 + $0x608] sm:$0xff]
  %v3169 = vld [vmem:[#allocation2 + $0x610] sm:$0xff]
  %v3170 = vld [vmem:[#allocation2 + $0x618] sm:$0xff]
  %v3171 = vld [vmem:[#allocation2 + $0x620] sm:$0xff]
  %v3172 = vld [vmem:[#allocation2 + $0x628] sm:$0xff]
  %v3173 = vld [vmem:[#allocation2 + $0x630] sm:$0xff]
  %v3174 = vld [vmem:[#allocation2 + $0x638] sm:$0xff]
  %v3175 = vld [vmem:[#allocation2 + $0x640] sm:$0xff]
  %v3176 = vld [vmem:[#allocation2 + $0x648] sm:$0xff]
  %v3177 = vld [vmem:[#allocation2 + $0x650] sm:$0xff]
  %v3178 = vld [vmem:[#allocation2 + $0x658] sm:$0xff]
  %v3179 = vld [vmem:[#allocation2 + $0x660] sm:$0xff]
  %v3180 = vld [vmem:[#allocation2 + $0x668] sm:$0xff]
  %v3181 = vld [vmem:[#allocation2 + $0x670] sm:$0xff]
  %v3182 = vld [vmem:[#allocation2 + $0x678] sm:$0xff]
  %v3183 = vld [vmem:[#allocation2 + $0x680] sm:$0xff]
  %v3184 = vld [vmem:[#allocation2 + $0x688] sm:$0xff]
  %v3185 = vld [vmem:[#allocation2 + $0x690] sm:$0xff]
  %v3186 = vld [vmem:[#allocation2 + $0x698] sm:$0xff]
  %v3187 = vld [vmem:[#allocation2 + $0x6a0] sm:$0xff]
  %v3188 = vld [vmem:[#allocation2 + $0x6a8] sm:$0xff]
  %v3189 = vld [vmem:[#allocation2 + $0x6b0] sm:$0xff]
  %v3190 = vld [vmem:[#allocation2 + $0x6b8] sm:$0xff]
  %v3191 = vld [vmem:[#allocation2 + $0x6c0] sm:$0xff]
  %v3192 = vld [vmem:[#allocation2 + $0x6c8] sm:$0xff]
  %v3193 = vld [vmem:[#allocation2 + $0x6d0] sm:$0xff]
  %v3194 = vld [vmem:[#allocation2 + $0x6d8] sm:$0xff]
  %v3195 = vld [vmem:[#allocation2 + $0x6e0] sm:$0xff]
  %v3196 = vld [vmem:[#allocation2 + $0x6e8] sm:$0xff]
  %v3197 = vld [vmem:[#allocation2 + $0x6f0] sm:$0xff]
  %v3198 = vld [vmem:[#allocation2 + $0x6f8] sm:$0xff]
  %v3199 = vld [vmem:[#allocation2 + $0x700] sm:$0xff]
  %v3200 = vld [vmem:[#allocation2 + $0x708] sm:$0xff]
  %v3201 = vld [vmem:[#allocation2 + $0x710] sm:$0xff]
  %v3202 = vld [vmem:[#allocation2 + $0x718] sm:$0xff]
  %v3203 = vld [vmem:[#allocation2 + $0x720] sm:$0xff]
  %v3204 = vld [vmem:[#allocation2 + $0x728] sm:$0xff]
  %v3205 = vld [vmem:[#allocation2 + $0x730] sm:$0xff]
  %v3206 = vld [vmem:[#allocation2 + $0x738] sm:$0xff]
  %v3207 = vld [vmem:[#allocation2 + $0x740] sm:$0xff]
  %v3208 = vld [vmem:[#allocation2 + $0x748] sm:$0xff]
  %v3209 = vld [vmem:[#allocation2 + $0x750] sm:$0xff]
  %v3210 = vld [vmem:[#allocation2 + $0x758] sm:$0xff]
  %v3211 = vld [vmem:[#allocation2 + $0x760] sm:$0xff]
  %v3212 = vld [vmem:[#allocation2 + $0x768] sm:$0xff]
  %v3213 = vld [vmem:[#allocation2 + $0x770] sm:$0xff]
  %v3214 = vld [vmem:[#allocation2 + $0x778] sm:$0xff]
  %v3215 = vld [vmem:[#allocation2 + $0x780] sm:$0xff]
  %v3216 = vld [vmem:[#allocation2 + $0x788] sm:$0xff]
  %v3217 = vld [vmem:[#allocation2 + $0x790] sm:$0xff]
  %v3218 = vld [vmem:[#allocation2 + $0x798] sm:$0xff]
  %v3219 = vld [vmem:[#allocation2 + $0x7a0] sm:$0xff]
  %v3220 = vld [vmem:[#allocation2 + $0x7a8] sm:$0xff]
  %v3221 = vld [vmem:[#allocation2 + $0x7b0] sm:$0xff]
  %v3222 = vld [vmem:[#allocation2 + $0x7b8] sm:$0xff]
  %v3223 = vld [vmem:[#allocation2 + $0x7c0] sm:$0xff]
  %v3224 = vld [vmem:[#allocation2 + $0x7c8] sm:$0xff]
  %v3225 = vld [vmem:[#allocation2 + $0x7d0] sm:$0xff]
  %v3226 = vld [vmem:[#allocation2 + $0x7d8] sm:$0xff]
  %v3227 = vld [vmem:[#allocation2 + $0x7e0] sm:$0xff]
  %v3228 = vld [vmem:[#allocation2 + $0x7e8] sm:$0xff]
  %v3229 = vld [vmem:[#allocation2 + $0x7f0] sm:$0xff]
  %v3230 = vld [vmem:[#allocation2 + $0x7f8] sm:$0xff]
  %v3231 = vld [vmem:[#allocation2 + $0x800] sm:$0xff]
  %v3232 = vld [vmem:[#allocation2 + $0x808] sm:$0xff]
  %v3233 = vld [vmem:[#allocation2 + $0x810] sm:$0xff]
  %v3234 = vld [vmem:[#allocation2 + $0x818] sm:$0xff]
  %v3235 = vld [vmem:[#allocation2 + $0x820] sm:$0xff]
  %v3236 = vld [vmem:[#allocation2 + $0x828] sm:$0xff]
  %v3237 = vld [vmem:[#allocation2 + $0x830] sm:$0xff]
  %v3238 = vld [vmem:[#allocation2 + $0x838] sm:$0xff]
  %v3239 = vld [vmem:[#allocation2 + $0x840] sm:$0xff]
  %v3240 = vld [vmem:[#allocation2 + $0x848] sm:$0xff]
  %v3241 = vld [vmem:[#allocation2 + $0x850] sm:$0xff]
  %v3242 = vld [vmem:[#allocation2 + $0x858] sm:$0xff]
  %v3243 = vld [vmem:[#allocation2 + $0x860] sm:$0xff]
  %v3244 = vld [vmem:[#allocation2 + $0x868] sm:$0xff]
  %v3245 = vld [vmem:[#allocation2 + $0x870] sm:$0xff]
  %v3246 = vld [vmem:[#allocation2 + $0x878] sm:$0xff]
  %v3247 = vld [vmem:[#allocation2 + $0x880] sm:$0xff]
  %v3248 = vld [vmem:[#allocation2 + $0x888] sm:$0xff]
  %v3249 = vld [vmem:[#allocation2 + $0x890] sm:$0xff]
  %v3250 = vld [vmem:[#allocation2 + $0x898] sm:$0xff]
  %v3251 = vld [vmem:[#allocation2 + $0x8a0] sm:$0xff]
  %v3252 = vld [vmem:[#allocation2 + $0x8a8] sm:$0xff]
  %v3253 = vld [vmem:[#allocation2 + $0x8b0] sm:$0xff]
  %v3254 = vld [vmem:[#allocation2 + $0x8b8] sm:$0xff]
  %v3255 = vld [vmem:[#allocation2 + $0x8c0] sm:$0xff]
  %v3256 = vld [vmem:[#allocation2 + $0x8c8] sm:$0xff]
  %v3257 = vld [vmem:[#allocation2 + $0x8d0] sm:$0xff]
  %v3258 = vld [vmem:[#allocation2 + $0x8d8] sm:$0xff]
  %v3259 = vld [vmem:[#allocation2 + $0x8e0] sm:$0xff]
  %v3260 = vld [vmem:[#allocation2 + $0x8e8] sm:$0xff]
  %v3261 = vld [vmem:[#allocation2 + $0x8f0] sm:$0xff]
  %v3262 = vld [vmem:[#allocation2 + $0x8f8] sm:$0xff]
  %v3263 = vld [vmem:[#allocation2 + $0x900] sm:$0xff]
  %v3264 = vld [vmem:[#allocation2 + $0x908] sm:$0xff]
  %v3265 = vld [vmem:[#allocation2 + $0x910] sm:$0xff]
  %v3266 = vld [vmem:[#allocation2 + $0x918] sm:$0xff]
  %v3267 = vld [vmem:[#allocation2 + $0x920] sm:$0xff]
  %v3268 = vld [vmem:[#allocation2 + $0x928] sm:$0xff]
  %v3269 = vld [vmem:[#allocation2 + $0x930] sm:$0xff]
  %v3270 = vld [vmem:[#allocation2 + $0x938] sm:$0xff]
  %v3271 = vld [vmem:[#allocation2 + $0x940] sm:$0xff]
  %v3272 = vld [vmem:[#allocation2 + $0x948] sm:$0xff]
  %v3273 = vld [vmem:[#allocation2 + $0x950] sm:$0xff]
  %v3274 = vld [vmem:[#allocation2 + $0x958] sm:$0xff]
  %v3275 = vld [vmem:[#allocation2 + $0x960] sm:$0xff]
  %v3276 = vld [vmem:[#allocation2 + $0x968] sm:$0xff]
  %v3277 = vld [vmem:[#allocation2 + $0x970] sm:$0xff]
  %v3278 = vld [vmem:[#allocation2 + $0x978] sm:$0xff]
  %v3279 = vld [vmem:[#allocation2 + $0x980] sm:$0xff]
  %v3280 = vld [vmem:[#allocation2 + $0x988] sm:$0xff]
  %v3281 = vld [vmem:[#allocation2 + $0x990] sm:$0xff]
  %v3282 = vld [vmem:[#allocation2 + $0x998] sm:$0xff]
  %v3283 = vld [vmem:[#allocation2 + $0x9a0] sm:$0xff]
  %v3284 = vld [vmem:[#allocation2 + $0x9a8] sm:$0xff]
  %v3285 = vld [vmem:[#allocation2 + $0x9b0] sm:$0xff]
  %v3286 = vld [vmem:[#allocation2 + $0x9b8] sm:$0xff]
  %v3287 = vld [vmem:[#allocation2 + $0x9c0] sm:$0xff]
  %v3288 = vld [vmem:[#allocation2 + $0x9c8] sm:$0xff]
  %v3289 = vld [vmem:[#allocation2 + $0x9d0] sm:$0xff]
  %v3290 = vld [vmem:[#allocation2 + $0x9d8] sm:$0xff]
  %v3291 = vld [vmem:[#allocation2 + $0x9e0] sm:$0xff]
  %v3292 = vld [vmem:[#allocation2 + $0x9e8] sm:$0xff]
  %v3293 = vld [vmem:[#allocation2 + $0x9f0] sm:$0xff]
  %v3294 = vld [vmem:[#allocation2 + $0x9f8] sm:$0xff]
  %v3295 = vld [vmem:[#allocation2 + $0xa00] sm:$0xff]
  %v3296 = vld [vmem:[#allocation2 + $0xa08] sm:$0xff]
  %v3297 = vld [vmem:[#allocation2 + $0xa10] sm:$0xff]
  %v3298 = vld [vmem:[#allocation2 + $0xa18] sm:$0xff]
  %v3299 = vld [vmem:[#allocation2 + $0xa20] sm:$0xff]
  %v3300 = vld [vmem:[#allocation2 + $0xa28] sm:$0xff]
  %v3301 = vld [vmem:[#allocation2 + $0xa30] sm:$0xff]
  %v3302 = vld [vmem:[#allocation2 + $0xa38] sm:$0xff]
  %v3303 = vld [vmem:[#allocation2 + $0xa40] sm:$0xff]
  %v3304 = vld [vmem:[#allocation2 + $0xa48] sm:$0xff]
  %v3305 = vld [vmem:[#allocation2 + $0xa50] sm:$0xff]
  %v3306 = vld [vmem:[#allocation2 + $0xa58] sm:$0xff]
  %v3307 = vld [vmem:[#allocation2 + $0xa60] sm:$0xff]
  %v3308 = vld [vmem:[#allocation2 + $0xa68] sm:$0xff]
  %v3309 = vld [vmem:[#allocation2 + $0xa70] sm:$0xff]
  %v3310 = vld [vmem:[#allocation2 + $0xa78] sm:$0xff]
  %v3311 = vld [vmem:[#allocation2 + $0xa80] sm:$0xff]
  %v3312 = vld [vmem:[#allocation2 + $0xa88] sm:$0xff]
  %v3313 = vld [vmem:[#allocation2 + $0xa90] sm:$0xff]
  %v3314 = vld [vmem:[#allocation2 + $0xa98] sm:$0xff]
  %v3315 = vld [vmem:[#allocation2 + $0xaa0] sm:$0xff]
  %v3316 = vld [vmem:[#allocation2 + $0xaa8] sm:$0xff]
  %v3317 = vld [vmem:[#allocation2 + $0xab0] sm:$0xff]
  %v3318 = vld [vmem:[#allocation2 + $0xab8] sm:$0xff]
  %v3319 = vld [vmem:[#allocation2 + $0xac0] sm:$0xff]
  %v3320 = vld [vmem:[#allocation2 + $0xac8] sm:$0xff]
  %v3321 = vld [vmem:[#allocation2 + $0xad0] sm:$0xff]
  %v3322 = vld [vmem:[#allocation2 + $0xad8] sm:$0xff]
  %v3323 = vld [vmem:[#allocation2 + $0xae0] sm:$0xff]
  %v3324 = vld [vmem:[#allocation2 + $0xae8] sm:$0xff]
  %v3325 = vld [vmem:[#allocation2 + $0xaf0] sm:$0xff]
  %v3326 = vld [vmem:[#allocation2 + $0xaf8] sm:$0xff]
  %v3327 = vld [vmem:[#allocation2 + $0xb00] sm:$0xff]
  %v3328 = vld [vmem:[#allocation2 + $0xb08] sm:$0xff]
  %v3329 = vld [vmem:[#allocation2 + $0xb10] sm:$0xff]
  %v3330 = vld [vmem:[#allocation2 + $0xb18] sm:$0xff]
  %v3331 = vld [vmem:[#allocation2 + $0xb20] sm:$0xff]
  %v3332 = vld [vmem:[#allocation2 + $0xb28] sm:$0xff]
  %v3333 = vld [vmem:[#allocation2 + $0xb30] sm:$0xff]
  %v3334 = vld [vmem:[#allocation2 + $0xb38] sm:$0xff]
  %v3335 = vld [vmem:[#allocation2 + $0xb40] sm:$0xff]
  %v3336 = vld [vmem:[#allocation2 + $0xb48] sm:$0xff]
  %v3337 = vld [vmem:[#allocation2 + $0xb50] sm:$0xff]
  %v3338 = vld [vmem:[#allocation2 + $0xb58] sm:$0xff]
  %v3339 = vld [vmem:[#allocation2 + $0xb60] sm:$0xff]
  %v3340 = vld [vmem:[#allocation2 + $0xb68] sm:$0xff]
  %v3341 = vld [vmem:[#allocation2 + $0xb70] sm:$0xff]
  %v3342 = vld [vmem:[#allocation2 + $0xb78] sm:$0xff]
  %v3343 = vld [vmem:[#allocation2 + $0xb80] sm:$0xff]
  %v3344 = vld [vmem:[#allocation2 + $0xb88] sm:$0xff]
  %v3345 = vld [vmem:[#allocation2 + $0xb90] sm:$0xff]
  %v3346 = vld [vmem:[#allocation2 + $0xb98] sm:$0xff]
  %v3347 = vld [vmem:[#allocation2 + $0xba0] sm:$0xff]
  %v3348 = vld [vmem:[#allocation2 + $0xba8] sm:$0xff]
  %v3349 = vld [vmem:[#allocation2 + $0xbb0] sm:$0xff]
  %v3350 = vld [vmem:[#allocation2 + $0xbb8] sm:$0xff]
  %v3351 = vld [vmem:[#allocation2 + $0xbc0] sm:$0xff]
  %v3352 = vld [vmem:[#allocation2 + $0xbc8] sm:$0xff]
  %v3353 = vld [vmem:[#allocation2 + $0xbd0] sm:$0xff]
  %v3354 = vld [vmem:[#allocation2 + $0xbd8] sm:$0xff]
  %v3355 = vld [vmem:[#allocation2 + $0xbe0] sm:$0xff]
  %v3356 = vld [vmem:[#allocation2 + $0xbe8] sm:$0xff]
  %v3357 = vld [vmem:[#allocation2 + $0xbf0] sm:$0xff]
  %v3358 = vld [vmem:[#allocation2 + $0xbf8] sm:$0xff]
  %v3359 = vld [vmem:[#allocation2 + $0xc00] sm:$0xff]
  %v3360 = vld [vmem:[#allocation2 + $0xc08] sm:$0xff]
  %v3361 = vld [vmem:[#allocation2 + $0xc10] sm:$0xff]
  %v3362 = vld [vmem:[#allocation2 + $0xc18] sm:$0xff]
  %v3363 = vld [vmem:[#allocation2 + $0xc20] sm:$0xff]
  %v3364 = vld [vmem:[#allocation2 + $0xc28] sm:$0xff]
  %v3365 = vld [vmem:[#allocation2 + $0xc30] sm:$0xff]
  %v3366 = vld [vmem:[#allocation2 + $0xc38] sm:$0xff]
  %v3367 = vld [vmem:[#allocation2 + $0xc40] sm:$0xff]
  %v3368 = vld [vmem:[#allocation2 + $0xc48] sm:$0xff]
  %v3369 = vld [vmem:[#allocation2 + $0xc50] sm:$0xff]
  %v3370 = vld [vmem:[#allocation2 + $0xc58] sm:$0xff]
  %v3371 = vld [vmem:[#allocation2 + $0xc60] sm:$0xff]
  %v3372 = vld [vmem:[#allocation2 + $0xc68] sm:$0xff]
  %v3373 = vld [vmem:[#allocation2 + $0xc70] sm:$0xff]
  %v3374 = vld [vmem:[#allocation2 + $0xc78] sm:$0xff]
  %v3375 = vld [vmem:[%s2] sm:$0x3f]
  %3377 = vset.pattern.permute.xlu0 0
  %3378 = vperm.xlu0 %3377, %v3375
  %v3379 = vpop.permute.xlu0 %3378
  %vm3381 = vcmask 588800
  %v3383 = vsel %vm3381, %v2974, 0
  %3385 = vmatprep.subr.mxu0 %v2976
  %3386 = vmatpush1.msra.mxu0 %v2975
  %3387 = vmatprep.subr.mxu0 %v2992
  %3388 = vmatpush1.msra.mxu0 %v2991
  %3389 = vmatprep.subr.mxu0 %v3008
  %3390 = vmatpush1.msra.mxu0 %v3007
  %3391 = vmatprep.subr.mxu0 %v3024
  %3392 = vmatpush1.msra.mxu0 %v3023
  %3393 = vmatprep.subr.mxu0 %v3040
  %3394 = vmatpush1.msra.mxu0 %v3039
  %3395 = vmatprep.subr.mxu0 %v3056
  %3396 = vmatpush1.msra.mxu0 %v3055
  %3397 = vmatprep.subr.mxu0 %v3072
  %3398 = vmatpush1.msra.mxu0 %v3071
  %3399 = vmatprep.subr.mxu0 %v3088
  %3400 = vmatpush1.msra.mxu0 %v3087
  %3401 = vmatprep.subr.mxu0 %v3104
  %3402 = vmatpush1.msra.mxu0 %v3103
  %3403 = vmatprep.subr.mxu0 %v3120
  %3404 = vmatpush1.msra.mxu0 %v3119
  %3405 = vmatprep.subr.mxu0 %v3136
  %3406 = vmatpush1.msra.mxu0 %v3135
  %3407 = vmatprep.subr.mxu0 %v3152
  %3408 = vmatpush1.msra.mxu0 %v3151
  %3409 = vmatprep.subr.mxu0 %v3168
  %3410 = vmatpush1.msra.mxu0 %v3167
  %3411 = vmatprep.subr.mxu0 %v3184
  %3412 = vmatpush1.msra.mxu0 %v3183
  %3413 = vmatprep.subr.mxu0 %v3200
  %3414 = vmatpush1.msra.mxu0 %v3199
  %3415 = vmatprep.subr.mxu0 %v3216
  %3416 = vmatpush1.msra.mxu0 %v3215
  %3417 = vmatprep.subr.mxu0 %v3232
  %3418 = vmatpush1.msra.mxu0 %v3231
  %3419 = vmatprep.subr.mxu0 %v3248
  %3420 = vmatpush1.msra.mxu0 %v3247
  %3421 = vmatprep.subr.mxu0 %v3264
  %3422 = vmatpush1.msra.mxu0 %v3263
  %3423 = vmatprep.subr.mxu0 %v3280
  %3424 = vmatpush1.msra.mxu0 %v3279
  %3425 = vmatprep.subr.mxu0 %v3296
  %3426 = vmatpush1.msra.mxu0 %v3295
  %3427 = vmatprep.subr.mxu0 %v3312
  %3428 = vmatpush1.msra.mxu0 %v3311
  %3429 = vmatprep.subr.mxu0 %v3328
  %3430 = vmatpush1.msra.mxu0 %v3327
  %3431 = vmatprep.subr.mxu0 %v3344
  %3432 = vmatpush1.msra.mxu0 %v3343
  %3433 = vmatprep.subr.mxu0 %v3360
  %3434 = vmatpush1.msra.mxu0 %v3359
  %3435 = vmatprep.subr.mxu0 0.0
  %3436 = vmatpush1.msra.mxu0 0.0
  %3437 = vmatprep.subr.mxu0 0.0
  %3438 = vmatpush1.msra.mxu0 0.0
  %3439 = vmatprep.subr.mxu0 0.0
  %3440 = vmatpush1.msra.mxu0 0.0
  %3441 = vmatprep.subr.mxu0 0.0
  %3442 = vmatpush1.msra.mxu0 0.0
  %3443 = vmatprep.subr.mxu0 0.0
  %3444 = vmatpush1.msra.mxu0 0.0
  %3445 = vmatprep.subr.mxu0 0.0
  %3446 = vmatpush1.msra.mxu0 0.0
  %3447 = vmatprep.subr.mxu0 0.0
  %3448 = vmatpush1.msra.mxu0 0.0
  %3449 = vmatprep.mubr.f32.mxu0 %v3383
  %3450 = vmatmul.mubr.f32.gmra.mrb[0].mxu0 %v2973
  %v3451 = vpop.f32.mrb[0].mxu0
  %v3452 = vadd.f32 %v3379, %v3451
  %v3453 = vpop.f32.mrb[0].mxu0
  %v3454 = vadd.f32 %v3379, %v3453
  %3455 = vdwg.mxu0
  %3456 = vmatprep.subr.mxu0 %v2978
  %3457 = vmatpush1.msra.mxu0 %v2977
  %3458 = vmatprep.subr.mxu0 %v2994
  %3459 = vmatpush1.msra.mxu0 %v2993
  %3460 = vmatprep.subr.mxu0 %v3010
  %3461 = vmatpush1.msra.mxu0 %v3009
  %3462 = vmatprep.subr.mxu0 %v3026
  %3463 = vmatpush1.msra.mxu0 %v3025
  %3464 = vmatprep.subr.mxu0 %v3042
  %3465 = vmatpush1.msra.mxu0 %v3041
  %3466 = vmatprep.subr.mxu0 %v3058
  %3467 = vmatpush1.msra.mxu0 %v3057
  %3468 = vmatprep.subr.mxu0 %v3074
  %3469 = vmatpush1.msra.mxu0 %v3073
  %3470 = vmatprep.subr.mxu0 %v3090
  %3471 = vmatpush1.msra.mxu0 %v3089
  %3472 = vmatprep.subr.mxu0 %v3106
  %3473 = vmatpush1.msra.mxu0 %v3105
  %3474 = vmatprep.subr.mxu0 %v3122
  %3475 = vmatpush1.msra.mxu0 %v3121
  %3476 = vmatprep.subr.mxu0 %v3138
  %3477 = vmatpush1.msra.mxu0 %v3137
  %3478 = vmatprep.subr.mxu0 %v3154
  %3479 = vmatpush1.msra.mxu0 %v3153
  %3480 = vmatprep.subr.mxu0 %v3170
  %3481 = vmatpush1.msra.mxu0 %v3169
  %3482 = vmatprep.subr.mxu0 %v3186
  %3483 = vmatpush1.msra.mxu0 %v3185
  %3484 = vmatprep.subr.mxu0 %v3202
  %3485 = vmatpush1.msra.mxu0 %v3201
  %3486 = vmatprep.subr.mxu0 %v3218
  %3487 = vmatpush1.msra.mxu0 %v3217
  %3488 = vmatprep.subr.mxu0 %v3234
  %3489 = vmatpush1.msra.mxu0 %v3233
  %3490 = vmatprep.subr.mxu0 %v3250
  %3491 = vmatpush1.msra.mxu0 %v3249
  %3492 = vmatprep.subr.mxu0 %v3266
  %3493 = vmatpush1.msra.mxu0 %v3265
  %3494 = vmatprep.subr.mxu0 %v3282
  %3495 = vmatpush1.msra.mxu0 %v3281
  %3496 = vmatprep.subr.mxu0 %v3298
  %3497 = vmatpush1.msra.mxu0 %v3297
  %3498 = vmatprep.subr.mxu0 %v3314
  %3499 = vmatpush1.msra.mxu0 %v3313
  %3500 = vmatprep.subr.mxu0 %v3330
  %3501 = vmatpush1.msra.mxu0 %v3329
  %3502 = vmatprep.subr.mxu0 %v3346
  %3503 = vmatpush1.msra.mxu0 %v3345
  %3504 = vmatprep.subr.mxu0 %v3362
  %3505 = vmatpush1.msra.mxu0 %v3361
  %3506 = vmatprep.subr.mxu0 0.0
  %3507 = vmatpush1.msra.mxu0 0.0
  %3508 = vmatprep.subr.mxu0 0.0
  %3509 = vmatpush1.msra.mxu0 0.0
  %3510 = vmatprep.subr.mxu0 0.0
  %3511 = vmatpush1.msra.mxu0 0.0
  %3512 = vmatprep.subr.mxu0 0.0
  %3513 = vmatpush1.msra.mxu0 0.0
  %3514 = vmatprep.subr.mxu0 0.0
  %3515 = vmatpush1.msra.mxu0 0.0
  %3516 = vmatprep.subr.mxu0 0.0
  %3517 = vmatpush1.msra.mxu0 0.0
  %3518 = vmatprep.subr.mxu0 0.0
  %3519 = vmatpush1.msra.mxu0 0.0
  %3520 = vmatprep.mubr.f32.mxu0 %v3383
  %3521 = vmatmul.mubr.f32.gmra.mrb[0].mxu0 %v2973
  %v3522 = vpop.f32.mrb[0].mxu0
  %v3523 = vadd.f32 %v3379, %v3522
  %v3524 = vpop.f32.mrb[0].mxu0
  %v3525 = vadd.f32 %v3379, %v3524
  %3526 = vdwg.mxu0
  %3527 = vmatprep.subr.mxu0 %v2980
  %3528 = vmatpush1.msra.mxu0 %v2979
  %3529 = vmatprep.subr.mxu0 %v2996
  %3530 = vmatpush1.msra.mxu0 %v2995
  %3531 = vmatprep.subr.mxu0 %v3012
  %3532 = vmatpush1.msra.mxu0 %v3011
  %3533 = vmatprep.subr.mxu0 %v3028
  %3534 = vmatpush1.msra.mxu0 %v3027
  %3535 = vmatprep.subr.mxu0 %v3044
  %3536 = vmatpush1.msra.mxu0 %v3043
  %3537 = vmatprep.subr.mxu0 %v3060
  %3538 = vmatpush1.msra.mxu0 %v3059
  %3539 = vmatprep.subr.mxu0 %v3076
  %3540 = vmatpush1.msra.mxu0 %v3075
  %3541 = vmatprep.subr.mxu0 %v3092
  %3542 = vmatpush1.msra.mxu0 %v3091
  %3543 = vmatprep.subr.mxu0 %v3108
  %3544 = vmatpush1.msra.mxu0 %v3107
  %3545 = vmatprep.subr.mxu0 %v3124
  %3546 = vmatpush1.msra.mxu0 %v3123
  %3547 = vmatprep.subr.mxu0 %v3140
  %3548 = vmatpush1.msra.mxu0 %v3139
  %3549 = vmatprep.subr.mxu0 %v3156
  %3550 = vmatpush1.msra.mxu0 %v3155
  %3551 = vmatprep.subr.mxu0 %v3172
  %3552 = vmatpush1.msra.mxu0 %v3171
  %3553 = vmatprep.subr.mxu0 %v3188
  %3554 = vmatpush1.msra.mxu0 %v3187
  %3555 = vmatprep.subr.mxu0 %v3204
  %3556 = vmatpush1.msra.mxu0 %v3203
  %3557 = vmatprep.subr.mxu0 %v3220
  %3558 = vmatpush1.msra.mxu0 %v3219
  %3559 = vmatprep.subr.mxu0 %v3236
  %3560 = vmatpush1.msra.mxu0 %v3235
  %3561 = vmatprep.subr.mxu0 %v3252
  %3562 = vmatpush1.msra.mxu0 %v3251
  %3563 = vmatprep.subr.mxu0 %v3268
  %3564 = vmatpush1.msra.mxu0 %v3267
  %3565 = vmatprep.subr.mxu0 %v3284
  %3566 = vmatpush1.msra.mxu0 %v3283
  %3567 = vmatprep.subr.mxu0 %v3300
  %3568 = vmatpush1.msra.mxu0 %v3299
  %3569 = vmatprep.subr.mxu0 %v3316
  %3570 = vmatpush1.msra.mxu0 %v3315
  %3571 = vmatprep.subr.mxu0 %v3332
  %3572 = vmatpush1.msra.mxu0 %v3331
  %3573 = vmatprep.subr.mxu0 %v3348
  %3574 = vmatpush1.msra.mxu0 %v3347
  %3575 = vmatprep.subr.mxu0 %v3364
  %3576 = vmatpush1.msra.mxu0 %v3363
  %3577 = vmatprep.subr.mxu0 0.0
  %3578 = vmatpush1.msra.mxu0 0.0
  %3579 = vmatprep.subr.mxu0 0.0
  %3580 = vmatpush1.msra.mxu0 0.0
  %3581 = vmatprep.subr.mxu0 0.0
  %3582 = vmatpush1.msra.mxu0 0.0
  %3583 = vmatprep.subr.mxu0 0.0
  %3584 = vmatpush1.msra.mxu0 0.0
  %3585 = vmatprep.subr.mxu0 0.0
  %3586 = vmatpush1.msra.mxu0 0.0
  %3587 = vmatprep.subr.mxu0 0.0
  %3588 = vmatpush1.msra.mxu0 0.0
  %3589 = vmatprep.subr.mxu0 0.0
  %3590 = vmatpush1.msra.mxu0 0.0
  %3591 = vmatprep.mubr.f32.mxu0 %v3383
  %3592 = vmatmul.mubr.f32.gmra.mrb[0].mxu0 %v2973
  %v3593 = vpop.f32.mrb[0].mxu0
  %v3594 = vadd.f32 %v3379, %v3593
  %v3595 = vpop.f32.mrb[0].mxu0
  %v3596 = vadd.f32 %v3379, %v3595
  %3597 = vdwg.mxu0
  %3598 = vmatprep.subr.mxu0 %v2982
  %3599 = vmatpush1.msra.mxu0 %v2981
  %3600 = vmatprep.subr.mxu0 %v2998
  %3601 = vmatpush1.msra.mxu0 %v2997
  %3602 = vmatprep.subr.mxu0 %v3014
  %3603 = vmatpush1.msra.mxu0 %v3013
  %3604 = vmatprep.subr.mxu0 %v3030
  %3605 = vmatpush1.msra.mxu0 %v3029
  %3606 = vmatprep.subr.mxu0 %v3046
  %3607 = vmatpush1.msra.mxu0 %v3045
  %3608 = vmatprep.subr.mxu0 %v3062
  %3609 = vmatpush1.msra.mxu0 %v3061
  %3610 = vmatprep.subr.mxu0 %v3078
  %3611 = vmatpush1.msra.mxu0 %v3077
  %3612 = vmatprep.subr.mxu0 %v3094
  %3613 = vmatpush1.msra.mxu0 %v3093
  %3614 = vmatprep.subr.mxu0 %v3110
  %3615 = vmatpush1.msra.mxu0 %v3109
  %3616 = vmatprep.subr.mxu0 %v3126
  %3617 = vmatpush1.msra.mxu0 %v3125
  %3618 = vmatprep.subr.mxu0 %v3142
  %3619 = vmatpush1.msra.mxu0 %v3141
  %3620 = vmatprep.subr.mxu0 %v3158
  %3621 = vmatpush1.msra.mxu0 %v3157
  %3622 = vmatprep.subr.mxu0 %v3174
  %3623 = vmatpush1.msra.mxu0 %v3173
  %3624 = vmatprep.subr.mxu0 %v3190
  %3625 = vmatpush1.msra.mxu0 %v3189
  %3626 = vmatprep.subr.mxu0 %v3206
  %3627 = vmatpush1.msra.mxu0 %v3205
  %3628 = vmatprep.subr.mxu0 %v3222
  %3629 = vmatpush1.msra.mxu0 %v3221
  %3630 = vmatprep.subr.mxu0 %v3238
  %3631 = vmatpush1.msra.mxu0 %v3237
  %3632 = vmatprep.subr.mxu0 %v3254
  %3633 = vmatpush1.msra.mxu0 %v3253
  %3634 = vmatprep.subr.mxu0 %v3270
  %3635 = vmatpush1.msra.mxu0 %v3269
  %3636 = vmatprep.subr.mxu0 %v3286
  %3637 = vmatpush1.msra.mxu0 %v3285
  %3638 = vmatprep.subr.mxu0 %v3302
  %3639 = vmatpush1.msra.mxu0 %v3301
  %3640 = vmatprep.subr.mxu0 %v3318
  %3641 = vmatpush1.msra.mxu0 %v3317
  %3642 = vmatprep.subr.mxu0 %v3334
  %3643 = vmatpush1.msra.mxu0 %v3333
  %3644 = vmatprep.subr.mxu0 %v3350
  %3645 = vmatpush1.msra.mxu0 %v3349
  %3646 = vmatprep.subr.mxu0 %v3366
  %3647 = vmatpush1.msra.mxu0 %v3365
  %3648 = vmatprep.subr.mxu0 0.0
  %3649 = vmatpush1.msra.mxu0 0.0
  %3650 = vmatprep.subr.mxu0 0.0
  %3651 = vmatpush1.msra.mxu0 0.0
  %3652 = vmatprep.subr.mxu0 0.0
  %3653 = vmatpush1.msra.mxu0 0.0
  %3654 = vmatprep.subr.mxu0 0.0
  %3655 = vmatpush1.msra.mxu0 0.0
  %3656 = vmatprep.subr.mxu0 0.0
  %3657 = vmatpush1.msra.mxu0 0.0
  %3658 = vmatprep.subr.mxu0 0.0
  %3659 = vmatpush1.msra.mxu0 0.0
  %3660 = vmatprep.subr.mxu0 0.0
  %3661 = vmatpush1.msra.mxu0 0.0
  %3662 = vmatprep.mubr.f32.mxu0 %v3383
  %3663 = vmatmul.mubr.f32.gmra.mrb[0].mxu0 %v2973
  %v3664 = vpop.f32.mrb[0].mxu0
  %v3665 = vadd.f32 %v3379, %v3664
  %v3666 = vpop.f32.mrb[0].mxu0
  %v3667 = vadd.f32 %v3379, %v3666
  %3668 = vdwg.mxu0
  %3669 = vmatprep.subr.mxu0 %v2984
  %3670 = vmatpush1.msra.mxu0 %v2983
  %3671 = vmatprep.subr.mxu0 %v3000
  %3672 = vmatpush1.msra.mxu0 %v2999
  %3673 = vmatprep.subr.mxu0 %v3016
  %3674 = vmatpush1.msra.mxu0 %v3015
  %3675 = vmatprep.subr.mxu0 %v3032
  %3676 = vmatpush1.msra.mxu0 %v3031
  %3677 = vmatprep.subr.mxu0 %v3048
  %3678 = vmatpush1.msra.mxu0 %v3047
  %3679 = vmatprep.subr.mxu0 %v3064
  %3680 = vmatpush1.msra.mxu0 %v3063
  %3681 = vmatprep.subr.mxu0 %v3080
  %3682 = vmatpush1.msra.mxu0 %v3079
  %3683 = vmatprep.subr.mxu0 %v3096
  %3684 = vmatpush1.msra.mxu0 %v3095
  %3685 = vmatprep.subr.mxu0 %v3112
  %3686 = vmatpush1.msra.mxu0 %v3111
  %3687 = vmatprep.subr.mxu0 %v3128
  %3688 = vmatpush1.msra.mxu0 %v3127
  %3689 = vmatprep.subr.mxu0 %v3144
  %3690 = vmatpush1.msra.mxu0 %v3143
  %3691 = vmatprep.subr.mxu0 %v3160
  %3692 = vmatpush1.msra.mxu0 %v3159
  %3693 = vmatprep.subr.mxu0 %v3176
  %3694 = vmatpush1.msra.mxu0 %v3175
  %3695 = vmatprep.subr.mxu0 %v3192
  %3696 = vmatpush1.msra.mxu0 %v3191
  %3697 = vmatprep.subr.mxu0 %v3208
  %3698 = vmatpush1.msra.mxu0 %v3207
  %3699 = vmatprep.subr.mxu0 %v3224
  %3700 = vmatpush1.msra.mxu0 %v3223
  %3701 = vmatprep.subr.mxu0 %v3240
  %3702 = vmatpush1.msra.mxu0 %v3239
  %3703 = vmatprep.subr.mxu0 %v3256
  %3704 = vmatpush1.msra.mxu0 %v3255
  %3705 = vmatprep.subr.mxu0 %v3272
  %3706 = vmatpush1.msra.mxu0 %v3271
  %3707 = vmatprep.subr.mxu0 %v3288
  %3708 = vmatpush1.msra.mxu0 %v3287
  %3709 = vmatprep.subr.mxu0 %v3304
  %3710 = vmatpush1.msra.mxu0 %v3303
  %3711 = vmatprep.subr.mxu0 %v3320
  %3712 = vmatpush1.msra.mxu0 %v3319
  %3713 = vmatprep.subr.mxu0 %v3336
  %3714 = vmatpush1.msra.mxu0 %v3335
  %3715 = vmatprep.subr.mxu0 %v3352
  %3716 = vmatpush1.msra.mxu0 %v3351
  %3717 = vmatprep.subr.mxu0 %v3368
  %3718 = vmatpush1.msra.mxu0 %v3367
  %3719 = vmatprep.subr.mxu0 0.0
  %3720 = vmatpush1.msra.mxu0 0.0
  %3721 = vmatprep.subr.mxu0 0.0
  %3722 = vmatpush1.msra.mxu0 0.0
  %3723 = vmatprep.subr.mxu0 0.0
  %3724 = vmatpush1.msra.mxu0 0.0
  %3725 = vmatprep.subr.mxu0 0.0
  %3726 = vmatpush1.msra.mxu0 0.0
  %3727 = vmatprep.subr.mxu0 0.0
  %3728 = vmatpush1.msra.mxu0 0.0
  %3729 = vmatprep.subr.mxu0 0.0
  %3730 = vmatpush1.msra.mxu0 0.0
  %3731 = vmatprep.subr.mxu0 0.0
  %3732 = vmatpush1.msra.mxu0 0.0
  %3733 = vmatprep.mubr.f32.mxu0 %v3383
  %3734 = vmatmul.mubr.f32.gmra.mrb[0].mxu0 %v2973
  %v3735 = vpop.f32.mrb[0].mxu0
  %v3736 = vadd.f32 %v3379, %v3735
  %v3737 = vpop.f32.mrb[0].mxu0
  %v3738 = vadd.f32 %v3379, %v3737
  %3739 = vdwg.mxu0
  %3740 = vmatprep.subr.mxu0 %v2986
  %3741 = vmatpush1.msra.mxu0 %v2985
  %3742 = vmatprep.subr.mxu0 %v3002
  %3743 = vmatpush1.msra.mxu0 %v3001
  %3744 = vmatprep.subr.mxu0 %v3018
  %3745 = vmatpush1.msra.mxu0 %v3017
  %3746 = vmatprep.subr.mxu0 %v3034
  %3747 = vmatpush1.msra.mxu0 %v3033
  %3748 = vmatprep.subr.mxu0 %v3050
  %3749 = vmatpush1.msra.mxu0 %v3049
  %3750 = vmatprep.subr.mxu0 %v3066
  %3751 = vmatpush1.msra.mxu0 %v3065
  %3752 = vmatprep.subr.mxu0 %v3082
  %3753 = vmatpush1.msra.mxu0 %v3081
  %3754 = vmatprep.subr.mxu0 %v3098
  %3755 = vmatpush1.msra.mxu0 %v3097
  %3756 = vmatprep.subr.mxu0 %v3114
  %3757 = vmatpush1.msra.mxu0 %v3113
  %3758 = vmatprep.subr.mxu0 %v3130
  %3759 = vmatpush1.msra.mxu0 %v3129
  %3760 = vmatprep.subr.mxu0 %v3146
  %3761 = vmatpush1.msra.mxu0 %v3145
  %3762 = vmatprep.subr.mxu0 %v3162
  %3763 = vmatpush1.msra.mxu0 %v3161
  %3764 = vmatprep.subr.mxu0 %v3178
  %3765 = vmatpush1.msra.mxu0 %v3177
  %3766 = vmatprep.subr.mxu0 %v3194
  %3767 = vmatpush1.msra.mxu0 %v3193
  %3768 = vmatprep.subr.mxu0 %v3210
  %3769 = vmatpush1.msra.mxu0 %v3209
  %3770 = vmatprep.subr.mxu0 %v3226
  %3771 = vmatpush1.msra.mxu0 %v3225
  %3772 = vmatprep.subr.mxu0 %v3242
  %3773 = vmatpush1.msra.mxu0 %v3241
  %3774 = vmatprep.subr.mxu0 %v3258
  %3775 = vmatpush1.msra.mxu0 %v3257
  %3776 = vmatprep.subr.mxu0 %v3274
  %3777 = vmatpush1.msra.mxu0 %v3273
  %3778 = vmatprep.subr.mxu0 %v3290
  %3779 = vmatpush1.msra.mxu0 %v3289
  %3780 = vmatprep.subr.mxu0 %v3306
  %3781 = vmatpush1.msra.mxu0 %v3305
  %3782 = vmatprep.subr.mxu0 %v3322
  %3783 = vmatpush1.msra.mxu0 %v3321
  %3784 = vmatprep.subr.mxu0 %v3338
  %3785 = vmatpush1.msra.mxu0 %v3337
  %3786 = vmatprep.subr.mxu0 %v3354
  %3787 = vmatpush1.msra.mxu0 %v3353
  %3788 = vmatprep.subr.mxu0 %v3370
  %3789 = vmatpush1.msra.mxu0 %v3369
  %3790 = vmatprep.subr.mxu0 0.0
  %3791 = vmatpush1.msra.mxu0 0.0
  %3792 = vmatprep.subr.mxu0 0.0
  %3793 = vmatpush1.msra.mxu0 0.0
  %3794 = vmatprep.subr.mxu0 0.0
  %3795 = vmatpush1.msra.mxu0 0.0
  %3796 = vmatprep.subr.mxu0 0.0
  %3797 = vmatpush1.msra.mxu0 0.0
  %3798 = vmatprep.subr.mxu0 0.0
  %3799 = vmatpush1.msra.mxu0 0.0
  %3800 = vmatprep.subr.mxu0 0.0
  %3801 = vmatpush1.msra.mxu0 0.0
  %3802 = vmatprep.subr.mxu0 0.0
  %3803 = vmatpush1.msra.mxu0 0.0
  %3804 = vmatprep.mubr.f32.mxu0 %v3383
  %3805 = vmatmul.mubr.f32.gmra.mrb[0].mxu0 %v2973
  %v3806 = vpop.f32.mrb[0].mxu0
  %v3807 = vadd.f32 %v3379, %v3806
  %v3808 = vpop.f32.mrb[0].mxu0
  %v3809 = vadd.f32 %v3379, %v3808
  %3810 = vdwg.mxu0
  %3811 = vmatprep.subr.mxu0 %v2988
  %3812 = vmatpush1.msra.mxu0 %v2987
  %3813 = vmatprep.subr.mxu0 %v3004
  %3814 = vmatpush1.msra.mxu0 %v3003
  %3815 = vmatprep.subr.mxu0 %v3020
  %3816 = vmatpush1.msra.mxu0 %v3019
  %3817 = vmatprep.subr.mxu0 %v3036
  %3818 = vmatpush1.msra.mxu0 %v3035
  %3819 = vmatprep.subr.mxu0 %v3052
  %3820 = vmatpush1.msra.mxu0 %v3051
  %3821 = vmatprep.subr.mxu0 %v3068
  %3822 = vmatpush1.msra.mxu0 %v3067
  %3823 = vmatprep.subr.mxu0 %v3084
  %3824 = vmatpush1.msra.mxu0 %v3083
  %3825 = vmatprep.subr.mxu0 %v3100
  %3826 = vmatpush1.msra.mxu0 %v3099
  %3827 = vmatprep.subr.mxu0 %v3116
  %3828 = vmatpush1.msra.mxu0 %v3115
  %3829 = vmatprep.subr.mxu0 %v3132
  %3830 = vmatpush1.msra.mxu0 %v3131
  %3831 = vmatprep.subr.mxu0 %v3148
  %3832 = vmatpush1.msra.mxu0 %v3147
  %3833 = vmatprep.subr.mxu0 %v3164
  %3834 = vmatpush1.msra.mxu0 %v3163
  %3835 = vmatprep.subr.mxu0 %v3180
  %3836 = vmatpush1.msra.mxu0 %v3179
  %3837 = vmatprep.subr.mxu0 %v3196
  %3838 = vmatpush1.msra.mxu0 %v3195
  %3839 = vmatprep.subr.mxu0 %v3212
  %3840 = vmatpush1.msra.mxu0 %v3211
  %3841 = vmatprep.subr.mxu0 %v3228
  %3842 = vmatpush1.msra.mxu0 %v3227
  %3843 = vmatprep.subr.mxu0 %v3244
  %3844 = vmatpush1.msra.mxu0 %v3243
  %3845 = vmatprep.subr.mxu0 %v3260
  %3846 = vmatpush1.msra.mxu0 %v3259
  %3847 = vmatprep.subr.mxu0 %v3276
  %3848 = vmatpush1.msra.mxu0 %v3275
  %3849 = vmatprep.subr.mxu0 %v3292
  %3850 = vmatpush1.msra.mxu0 %v3291
  %3851 = vmatprep.subr.mxu0 %v3308
  %3852 = vmatpush1.msra.mxu0 %v3307
  %3853 = vmatprep.subr.mxu0 %v3324
  %3854 = vmatpush1.msra.mxu0 %v3323
  %3855 = vmatprep.subr.mxu0 %v3340
  %3856 = vmatpush1.msra.mxu0 %v3339
  %3857 = vmatprep.subr.mxu0 %v3356
  %3858 = vmatpush1.msra.mxu0 %v3355
  %3859 = vmatprep.subr.mxu0 %v3372
  %3860 = vmatpush1.msra.mxu0 %v3371
  %3861 = vmatprep.subr.mxu0 0.0
  %3862 = vmatpush1.msra.mxu0 0.0
  %3863 = vmatprep.subr.mxu0 0.0
  %3864 = vmatpush1.msra.mxu0 0.0
  %3865 = vmatprep.subr.mxu0 0.0
  %3866 = vmatpush1.msra.mxu0 0.0
  %3867 = vmatprep.subr.mxu0 0.0
  %3868 = vmatpush1.msra.mxu0 0.0
  %3869 = vmatprep.subr.mxu0 0.0
  %3870 = vmatpush1.msra.mxu0 0.0
  %3871 = vmatprep.subr.mxu0 0.0
  %3872 = vmatpush1.msra.mxu0 0.0
  %3873 = vmatprep.subr.mxu0 0.0
  %3874 = vmatpush1.msra.mxu0 0.0
  %3875 = vmatprep.mubr.f32.mxu0 %v3383
  %3876 = vmatmul.mubr.f32.gmra.mrb[0].mxu0 %v2973
  %v3877 = vpop.f32.mrb[0].mxu0
  %v3878 = vadd.f32 %v3379, %v3877
  %v3879 = vpop.f32.mrb[0].mxu0
  %v3880 = vadd.f32 %v3379, %v3879
  %3881 = vdwg.mxu0
  %3882 = vmatprep.subr.mxu0 %v2990
  %3883 = vmatpush1.msra.mxu0 %v2989
  %3884 = vmatprep.subr.mxu0 %v3006
  %3885 = vmatpush1.msra.mxu0 %v3005
  %3886 = vmatprep.subr.mxu0 %v3022
  %3887 = vmatpush1.msra.mxu0 %v3021
  %3888 = vmatprep.subr.mxu0 %v3038
  %3889 = vmatpush1.msra.mxu0 %v3037
  %3890 = vmatprep.subr.mxu0 %v3054
  %3891 = vmatpush1.msra.mxu0 %v3053
  %3892 = vmatprep.subr.mxu0 %v3070
  %3893 = vmatpush1.msra.mxu0 %v3069
  %3894 = vmatprep.subr.mxu0 %v3086
  %3895 = vmatpush1.msra.mxu0 %v3085
  %3896 = vmatprep.subr.mxu0 %v3102
  %3897 = vmatpush1.msra.mxu0 %v3101
  %3898 = vmatprep.subr.mxu0 %v3118
  %3899 = vmatpush1.msra.mxu0 %v3117
  %3900 = vmatprep.subr.mxu0 %v3134
  %3901 = vmatpush1.msra.mxu0 %v3133
  %3902 = vmatprep.subr.mxu0 %v3150
  %3903 = vmatpush1.msra.mxu0 %v3149
  %3904 = vmatprep.subr.mxu0 %v3166
  %3905 = vmatpush1.msra.mxu0 %v3165
  %3906 = vmatprep.subr.mxu0 %v3182
  %3907 = vmatpush1.msra.mxu0 %v3181
  %3908 = vmatprep.subr.mxu0 %v3198
  %3909 = vmatpush1.msra.mxu0 %v3197
  %3910 = vmatprep.subr.mxu0 %v3214
  %3911 = vmatpush1.msra.mxu0 %v3213
  %3912 = vmatprep.subr.mxu0 %v3230
  %3913 = vmatpush1.msra.mxu0 %v3229
  %3914 = vmatprep.subr.mxu0 %v3246
  %3915 = vmatpush1.msra.mxu0 %v3245
  %3916 = vmatprep.subr.mxu0 %v3262
  %3917 = vmatpush1.msra.mxu0 %v3261
  %3918 = vmatprep.subr.mxu0 %v3278
  %3919 = vmatpush1.msra.mxu0 %v3277
  %3920 = vmatprep.subr.mxu0 %v3294
  %3921 = vmatpush1.msra.mxu0 %v3293
  %3922 = vmatprep.subr.mxu0 %v3310
  %3923 = vmatpush1.msra.mxu0 %v3309
  %3924 = vmatprep.subr.mxu0 %v3326
  %3925 = vmatpush1.msra.mxu0 %v3325
  %3926 = vmatprep.subr.mxu0 %v3342
  %3927 = vmatpush1.msra.mxu0 %v3341
  %3928 = vmatprep.subr.mxu0 %v3358
  %3929 = vmatpush1.msra.mxu0 %v3357
  %3930 = vmatprep.subr.mxu0 %v3374
  %3931 = vmatpush1.msra.mxu0 %v3373
  %3932 = vmatprep.subr.mxu0 0.0
  %3933 = vmatpush1.msra.mxu0 0.0
  %3934 = vmatprep.subr.mxu0 0.0
  %3935 = vmatpush1.msra.mxu0 0.0
  %3936 = vmatprep.subr.mxu0 0.0
  %3937 = vmatpush1.msra.mxu0 0.0
  %3938 = vmatprep.subr.mxu0 0.0
  %3939 = vmatpush1.msra.mxu0 0.0
  %3940 = vmatprep.subr.mxu0 0.0
  %3941 = vmatpush1.msra.mxu0 0.0
  %3942 = vmatprep.subr.mxu0 0.0
  %3943 = vmatpush1.msra.mxu0 0.0
  %3944 = vmatprep.subr.mxu0 0.0
  %3945 = vmatpush1.msra.mxu0 0.0
  %3946 = vmatprep.mubr.f32.mxu0 %v3383
  %3947 = vmatmul.mubr.f32.gmra.mrb[0].mxu0 %v2973
  %v3948 = vpop.f32.mrb[0].mxu0
  %v3949 = vadd.f32 %v3379, %v3948
  %v3950 = vpop.f32.mrb[0].mxu0
  %v3951 = vadd.f32 %v3379, %v3950
  %3952 = vdwg.mxu0
  %v3953 = vmax.f32 %v3452, 0.0
  %v3954 = vmax.f32 %v3454, 0.0
  %v3955 = vmax.f32 %v3523, 0.0
  %v3956 = vmax.f32 %v3525, 0.0
  %v3957 = vmax.f32 %v3594, 0.0
  %v3958 = vmax.f32 %v3596, 0.0
  %v3959 = vmax.f32 %v3665, 0.0
  %v3960 = vmax.f32 %v3667, 0.0
  %v3961 = vmax.f32 %v3736, 0.0
  %v3962 = vmax.f32 %v3738, 0.0
  %v3963 = vmax.f32 %v3807, 0.0
  %v3964 = vmax.f32 %v3809, 0.0
  %v3965 = vmax.f32 %v3878, 0.0
  %v3966 = vmax.f32 %v3880, 0.0
  %v3967 = vmax.f32 %v3949, 0.0
  %v3968 = vmax.f32 %v3951, 0.0
  %3969 = vst [vmem:[#allocation3] sm:$0x3f] %v3953
  %3970 = vst [vmem:[#allocation3 + $0x8] sm:$0x3f] %v3954
  %3971 = vst [vmem:[#allocation3 + $0x10] sm:$0x3f] %v3955
  %3972 = vst [vmem:[#allocation3 + $0x18] sm:$0x3f] %v3956
  %3973 = vst [vmem:[#allocation3 + $0x20] sm:$0x3f] %v3957
  %3974 = vst [vmem:[#allocation3 + $0x28] sm:$0x3f] %v3958
  %3975 = vst [vmem:[#allocation3 + $0x30] sm:$0x3f] %v3959
  %3976 = vst [vmem:[#allocation3 + $0x38] sm:$0x3f] %v3960
  %3977 = vst [vmem:[#allocation3 + $0x40] sm:$0x3f] %v3961
  %3978 = vst [vmem:[#allocation3 + $0x48] sm:$0x3f] %v3962
  %3979 = vst [vmem:[#allocation3 + $0x50] sm:$0x3f] %v3963
  %3980 = vst [vmem:[#allocation3 + $0x58] sm:$0x3f] %v3964
  %3981 = vst [vmem:[#allocation3 + $0x60] sm:$0x3f] %v3965
  %3982 = vst [vmem:[#allocation3 + $0x68] sm:$0x3f] %v3966
  %3983 = vst [vmem:[#allocation3 + $0x70] sm:$0x3f] %v3967
  %3984 = vst [vmem:[#allocation3 + $0x78] sm:$0x3f] %v3968
  %v3985 = vld [vmem:[#allocation3] sm:$0x3f]
  %v3986 = vld [vmem:[#allocation3 + $0x8] sm:$0x3f]
  %v3987 = vld [vmem:[#allocation3 + $0x10] sm:$0x3f]
  %v3988 = vld [vmem:[#allocation3 + $0x18] sm:$0x3f]
  %v3989 = vld [vmem:[#allocation3 + $0x20] sm:$0x3f]
  %v3990 = vld [vmem:[#allocation3 + $0x28] sm:$0x3f]
  %v3991 = vld [vmem:[#allocation3 + $0x30] sm:$0x3f]
  %v3992 = vld [vmem:[#allocation3 + $0x38] sm:$0x3f]
  %v3993 = vld [vmem:[#allocation3 + $0x40] sm:$0x3f]
  %v3994 = vld [vmem:[#allocation3 + $0x48] sm:$0x3f]
  %v3995 = vld [vmem:[#allocation3 + $0x50] sm:$0x3f]
  %v3996 = vld [vmem:[#allocation3 + $0x58] sm:$0x3f]
  %v3997 = vld [vmem:[#allocation3 + $0x60] sm:$0x3f]
  %v3998 = vld [vmem:[#allocation3 + $0x68] sm:$0x3f]
  %v3999 = vld [vmem:[#allocation3 + $0x70] sm:$0x3f]
  %v4000 = vld [vmem:[#allocation3 + $0x78] sm:$0x3f]
  %v4001 = vld [vmem:[#allocation3 + $0x80] sm:$0x3f]
  %4019 = vrot.lane.b32.xlu0 %v3985, 126
  %v4020 = vpop.permute.xlu0 %4019
  %4021 = vrot.lane.b32.xlu0 %v3986, 126
  %v4022 = vpop.permute.xlu0 %4021
  %4023 = vrot.lane.b32.xlu0 %v3987, 126
  %v4024 = vpop.permute.xlu0 %4023
  %4025 = vrot.lane.b32.xlu0 %v3988, 126
  %v4026 = vpop.permute.xlu0 %4025
  %4027 = vrot.lane.b32.xlu0 %v3989, 126
  %v4028 = vpop.permute.xlu0 %4027
  %4029 = vrot.lane.b32.xlu0 %v3990, 126
  %v4030 = vpop.permute.xlu0 %4029
  %4031 = vrot.lane.b32.xlu0 %v3991, 126
  %v4032 = vpop.permute.xlu0 %4031
  %4033 = vrot.lane.b32.xlu0 %v3992, 126
  %v4034 = vpop.permute.xlu0 %4033
  %4035 = vrot.lane.b32.xlu0 %v3993, 126
  %v4036 = vpop.permute.xlu0 %4035
  %4037 = vrot.lane.b32.xlu0 %v3994, 126
  %v4038 = vpop.permute.xlu0 %4037
  %4039 = vrot.lane.b32.xlu0 %v3995, 126
  %v4040 = vpop.permute.xlu0 %4039
  %4041 = vrot.lane.b32.xlu0 %v3996, 126
  %v4042 = vpop.permute.xlu0 %4041
  %4043 = vrot.lane.b32.xlu0 %v3997, 126
  %v4044 = vpop.permute.xlu0 %4043
  %4045 = vrot.lane.b32.xlu0 %v3998, 126
  %v4046 = vpop.permute.xlu0 %4045
  %4047 = vrot.lane.b32.xlu0 %v3999, 126
  %v4048 = vpop.permute.xlu0 %4047
  %4049 = vrot.lane.b32.xlu0 %v4000, 126
  %v4050 = vpop.permute.xlu0 %4049
  %4051 = vrot.lane.b32.xlu0 %v4001, 126
  %v4052 = vpop.permute.xlu0 %4051
  %v4053 = vsel %vm168, %v4020, %v4022
  %v4054 = vsel %vm168, %v4022, %v4024
  %v4055 = vsel %vm168, %v4024, %v4026
  %v4056 = vsel %vm168, %v4026, %v4028
  %v4057 = vsel %vm168, %v4028, %v4030
  %v4058 = vsel %vm168, %v4030, %v4032
  %v4059 = vsel %vm168, %v4032, %v4034
  %v4060 = vsel %vm168, %v4034, %v4036
  %v4061 = vsel %vm168, %v4036, %v4038
  %v4062 = vsel %vm168, %v4038, %v4040
  %v4063 = vsel %vm168, %v4040, %v4042
  %v4064 = vsel %vm168, %v4042, %v4044
  %v4065 = vsel %vm168, %v4044, %v4046
  %v4066 = vsel %vm168, %v4046, %v4048
  %v4067 = vsel %vm168, %v4048, %v4050
  %v4068 = vsel %vm168, %v4050, %v4052
  %v4085 = vmax.f32 %v3985, %v4053
  %v4086 = vmax.f32 %v3986, %v4054
  %v4087 = vmax.f32 %v3987, %v4055
  %v4088 = vmax.f32 %v3988, %v4056
  %v4089 = vmax.f32 %v3989, %v4057
  %v4090 = vmax.f32 %v3990, %v4058
  %v4091 = vmax.f32 %v3991, %v4059
  %v4092 = vmax.f32 %v3992, %v4060
  %v4093 = vmax.f32 %v3993, %v4061
  %v4094 = vmax.f32 %v3994, %v4062
  %v4095 = vmax.f32 %v3995, %v4063
  %v4096 = vmax.f32 %v3996, %v4064
  %v4097 = vmax.f32 %v3997, %v4065
  %v4098 = vmax.f32 %v3998, %v4066
  %v4099 = vmax.f32 %v3999, %v4067
  %v4100 = vmax.f32 %v4000, %v4068
  %v4102 = vmax.f32 %v4001, %v4052
  %4120 = vrot.lane.b32.xlu0 %v4085, 64
  %v4121 = vpop.permute.xlu0 %4120
  %4122 = vrot.lane.b32.xlu0 %v4086, 64
  %v4123 = vpop.permute.xlu0 %4122
  %4124 = vrot.lane.b32.xlu0 %v4087, 64
  %v4125 = vpop.permute.xlu0 %4124
  %4126 = vrot.lane.b32.xlu0 %v4088, 64
  %v4127 = vpop.permute.xlu0 %4126
  %4128 = vrot.lane.b32.xlu0 %v4089, 64
  %v4129 = vpop.permute.xlu0 %4128
  %4130 = vrot.lane.b32.xlu0 %v4090, 64
  %v4131 = vpop.permute.xlu0 %4130
  %4132 = vrot.lane.b32.xlu0 %v4091, 64
  %v4133 = vpop.permute.xlu0 %4132
  %4134 = vrot.lane.b32.xlu0 %v4092, 64
  %v4135 = vpop.permute.xlu0 %4134
  %4136 = vrot.lane.b32.xlu0 %v4093, 64
  %v4137 = vpop.permute.xlu0 %4136
  %4138 = vrot.lane.b32.xlu0 %v4094, 64
  %v4139 = vpop.permute.xlu0 %4138
  %4140 = vrot.lane.b32.xlu0 %v4095, 64
  %v4141 = vpop.permute.xlu0 %4140
  %4142 = vrot.lane.b32.xlu0 %v4096, 64
  %v4143 = vpop.permute.xlu0 %4142
  %4144 = vrot.lane.b32.xlu0 %v4097, 64
  %v4145 = vpop.permute.xlu0 %4144
  %4146 = vrot.lane.b32.xlu0 %v4098, 64
  %v4147 = vpop.permute.xlu0 %4146
  %4148 = vrot.lane.b32.xlu0 %v4099, 64
  %v4149 = vpop.permute.xlu0 %4148
  %4150 = vrot.lane.b32.xlu0 %v4100, 64
  %v4151 = vpop.permute.xlu0 %4150
  %4152 = vrot.lane.b32.xlu0 %v4102, 64
  %v4153 = vpop.permute.xlu0 %4152
  %v4154 = vsel %vm668, %v4121, %v4123
  %v4155 = vsel %vm668, %v4123, %v4125
  %v4156 = vsel %vm668, %v4125, %v4127
  %v4157 = vsel %vm668, %v4127, %v4129
  %v4158 = vsel %vm668, %v4129, %v4131
  %v4159 = vsel %vm668, %v4131, %v4133
  %v4160 = vsel %vm668, %v4133, %v4135
  %v4161 = vsel %vm668, %v4135, %v4137
  %v4162 = vsel %vm668, %v4137, %v4139
  %v4163 = vsel %vm668, %v4139, %v4141
  %v4164 = vsel %vm668, %v4141, %v4143
  %v4165 = vsel %vm668, %v4143, %v4145
  %v4166 = vsel %vm668, %v4145, %v4147
  %v4167 = vsel %vm668, %v4147, %v4149
  %v4168 = vsel %vm668, %v4149, %v4151
  %v4169 = vsel %vm668, %v4151, %v4153
  %v4186 = vmax.f32 %v4085, %v4154
  %v4187 = vmax.f32 %v4086, %v4155
  %v4188 = vmax.f32 %v4087, %v4156
  %v4189 = vmax.f32 %v4088, %v4157
  %v4190 = vmax.f32 %v4089, %v4158
  %v4191 = vmax.f32 %v4090, %v4159
  %v4192 = vmax.f32 %v4091, %v4160
  %v4193 = vmax.f32 %v4092, %v4161
  %v4194 = vmax.f32 %v4093, %v4162
  %v4195 = vmax.f32 %v4094, %v4163
  %v4196 = vmax.f32 %v4095, %v4164
  %v4197 = vmax.f32 %v4096, %v4165
  %v4198 = vmax.f32 %v4097, %v4166
  %v4199 = vmax.f32 %v4098, %v4167
  %v4200 = vmax.f32 %v4099, %v4168
  %v4201 = vmax.f32 %v4100, %v4169
  %4202 = vst [vmem:[#allocation4] sm:$0x3f] %v4186
  %4203 = vst [vmem:[#allocation4 + $0x8] sm:$0x3f] %v4187
  %4204 = vst [vmem:[#allocation4 + $0x10] sm:$0x3f] %v4188
  %4205 = vst [vmem:[#allocation4 + $0x18] sm:$0x3f] %v4189
  %4206 = vst [vmem:[#allocation4 + $0x20] sm:$0x3f] %v4190
  %4207 = vst [vmem:[#allocation4 + $0x28] sm:$0x3f] %v4191
  %4208 = vst [vmem:[#allocation4 + $0x30] sm:$0x3f] %v4192
  %4209 = vst [vmem:[#allocation4 + $0x38] sm:$0x3f] %v4193
  %4210 = vst [vmem:[#allocation4 + $0x40] sm:$0x3f] %v4194
  %4211 = vst [vmem:[#allocation4 + $0x48] sm:$0x3f] %v4195
  %4212 = vst [vmem:[#allocation4 + $0x50] sm:$0x3f] %v4196
  %4213 = vst [vmem:[#allocation4 + $0x58] sm:$0x3f] %v4197
  %4214 = vst [vmem:[#allocation4 + $0x60] sm:$0x3f] %v4198
  %4215 = vst [vmem:[#allocation4 + $0x68] sm:$0x3f] %v4199
  %4216 = vst [vmem:[#allocation4 + $0x70] sm:$0x3f] %v4200
  %4217 = vst [vmem:[#allocation4 + $0x78] sm:$0x3f] %v4201
  %v4218 = vld [vmem:[#allocation4] sm:$0x3f]
  %v4219 = vld [vmem:[#allocation4 + $0x8] sm:$0x3f]
  %v4220 = vld [vmem:[#allocation4 + $0x10] sm:$0x3f]
  %v4221 = vld [vmem:[#allocation4 + $0x18] sm:$0x3f]
  %v4222 = vld [vmem:[#allocation4 + $0x20] sm:$0x3f]
  %v4223 = vld [vmem:[#allocation4 + $0x28] sm:$0x3f]
  %v4224 = vld [vmem:[#allocation4 + $0x30] sm:$0x3f]
  %v4225 = vld [vmem:[#allocation4 + $0x38] sm:$0x3f]
  %v4226 = vld [vmem:[#allocation4 + $0x40] sm:$0x3f]
  %v4227 = vld [vmem:[#allocation4 + $0x48] sm:$0x3f]
  %v4228 = vld [vmem:[#allocation4 + $0x50] sm:$0x3f]
  %v4229 = vld [vmem:[#allocation4 + $0x58] sm:$0x3f]
  %v4230 = vld [vmem:[#allocation4 + $0x60] sm:$0x3f]
  %v4231 = vld [vmem:[#allocation4 + $0x68] sm:$0x3f]
  %v4232 = vld [vmem:[#allocation4 + $0x70] sm:$0x3f]
  %v4233 = vld [vmem:[#allocation4 + $0x78] sm:$0x3f]
  %4234 = vst [vmem:[#allocation2] sm:$0x3f] %v4218
  %4235 = vst [vmem:[#allocation2 + $0x8] sm:$0x3f] %v4219
  %4236 = vst [vmem:[#allocation2 + $0x10] sm:$0x3f] %v4220
  %4237 = vst [vmem:[#allocation2 + $0x18] sm:$0x3f] %v4221
  %4238 = vst [vmem:[#allocation2 + $0x20] sm:$0x3f] %v4222
  %4239 = vst [vmem:[#allocation2 + $0x28] sm:$0x3f] %v4223
  %4240 = vst [vmem:[#allocation2 + $0x30] sm:$0x3f] %v4224
  %4241 = vst [vmem:[#allocation2 + $0x38] sm:$0x3f] %v4225
  %4242 = vst [vmem:[#allocation2 + $0x40] sm:$0x3f] %v4226
  %4243 = vst [vmem:[#allocation2 + $0x48] sm:$0x3f] %v4227
  %4244 = vst [vmem:[#allocation2 + $0x50] sm:$0x3f] %v4228
  %4245 = vst [vmem:[#allocation2 + $0x58] sm:$0x3f] %v4229
  %4246 = vst [vmem:[#allocation2 + $0x60] sm:$0x3f] %v4230
  %4247 = vst [vmem:[#allocation2 + $0x68] sm:$0x3f] %v4231
  %4248 = vst [vmem:[#allocation2 + $0x70] sm:$0x3f] %v4232
  %4249 = vst [vmem:[#allocation2 + $0x78] sm:$0x3f] %v4233
  %v4250 = vld [vmem:[#allocation4] sm:$0x3f]
  %v4251 = vld [vmem:[#allocation4 + $0x8] sm:$0x3f]
  %v4252 = vld [vmem:[#allocation4 + $0x10] sm:$0x3f]
  %v4253 = vld [vmem:[#allocation4 + $0x18] sm:$0x3f]
  %v4254 = vld [vmem:[#allocation4 + $0x20] sm:$0x3f]
  %v4255 = vld [vmem:[#allocation4 + $0x28] sm:$0x3f]
  %v4256 = vld [vmem:[#allocation4 + $0x30] sm:$0x3f]
  %v4257 = vld [vmem:[#allocation4 + $0x38] sm:$0x3f]
  %v4258 = vld [vmem:[#allocation4 + $0x40] sm:$0x3f]
  %v4259 = vld [vmem:[#allocation4 + $0x48] sm:$0x3f]
  %v4260 = vld [vmem:[#allocation4 + $0x50] sm:$0x3f]
  %v4261 = vld [vmem:[#allocation4 + $0x58] sm:$0x3f]
  %v4262 = vld [vmem:[#allocation4 + $0x60] sm:$0x3f]
  %v4263 = vld [vmem:[#allocation4 + $0x68] sm:$0x3f]
  %v4264 = vld [vmem:[#allocation4 + $0x70] sm:$0x3f]
  %v4265 = vld [vmem:[#allocation4 + $0x78] sm:$0x3f]
  %v4266 = vld [vmem:[#allocation4 + $0x80] sm:$0x3f]
  %4284 = vrot.lane.b32.xlu0 %v4250, 124
  %v4285 = vpop.permute.xlu0 %4284
  %4286 = vrot.lane.b32.xlu0 %v4251, 124
  %v4287 = vpop.permute.xlu0 %4286
  %4288 = vrot.lane.b32.xlu0 %v4252, 124
  %v4289 = vpop.permute.xlu0 %4288
  %4290 = vrot.lane.b32.xlu0 %v4253, 124
  %v4291 = vpop.permute.xlu0 %4290
  %4292 = vrot.lane.b32.xlu0 %v4254, 124
  %v4293 = vpop.permute.xlu0 %4292
  %4294 = vrot.lane.b32.xlu0 %v4255, 124
  %v4295 = vpop.permute.xlu0 %4294
  %4296 = vrot.lane.b32.xlu0 %v4256, 124
  %v4297 = vpop.permute.xlu0 %4296
  %4298 = vrot.lane.b32.xlu0 %v4257, 124
  %v4299 = vpop.permute.xlu0 %4298
  %4300 = vrot.lane.b32.xlu0 %v4258, 124
  %v4301 = vpop.permute.xlu0 %4300
  %4302 = vrot.lane.b32.xlu0 %v4259, 124
  %v4303 = vpop.permute.xlu0 %4302
  %4304 = vrot.lane.b32.xlu0 %v4260, 124
  %v4305 = vpop.permute.xlu0 %4304
  %4306 = vrot.lane.b32.xlu0 %v4261, 124
  %v4307 = vpop.permute.xlu0 %4306
  %4308 = vrot.lane.b32.xlu0 %v4262, 124
  %v4309 = vpop.permute.xlu0 %4308
  %4310 = vrot.lane.b32.xlu0 %v4263, 124
  %v4311 = vpop.permute.xlu0 %4310
  %4312 = vrot.lane.b32.xlu0 %v4264, 124
  %v4313 = vpop.permute.xlu0 %4312
  %4314 = vrot.lane.b32.xlu0 %v4265, 124
  %v4315 = vpop.permute.xlu0 %4314
  %4316 = vrot.lane.b32.xlu0 %v4266, 124
  %v4317 = vpop.permute.xlu0 %4316
  %v4318 = vsel %vm293, %v4285, %v4287
  %v4319 = vsel %vm293, %v4287, %v4289
  %v4320 = vsel %vm293, %v4289, %v4291
  %v4321 = vsel %vm293, %v4291, %v4293
  %v4322 = vsel %vm293, %v4293, %v4295
  %v4323 = vsel %vm293, %v4295, %v4297
  %v4324 = vsel %vm293, %v4297, %v4299
  %v4325 = vsel %vm293, %v4299, %v4301
  %v4326 = vsel %vm293, %v4301, %v4303
  %v4327 = vsel %vm293, %v4303, %v4305
  %v4328 = vsel %vm293, %v4305, %v4307
  %v4329 = vsel %vm293, %v4307, %v4309
  %v4330 = vsel %vm293, %v4309, %v4311
  %v4331 = vsel %vm293, %v4311, %v4313
  %v4332 = vsel %vm293, %v4313, %v4315
  %v4333 = vsel %vm293, %v4315, %v4317
  %4350 = vst [vmem:[#allocation2 + $0x80] sm:$0x3f] %v4318
  %4351 = vst [vmem:[#allocation2 + $0x88] sm:$0x3f] %v4319
  %4352 = vst [vmem:[#allocation2 + $0x90] sm:$0x3f] %v4320
  %4353 = vst [vmem:[#allocation2 + $0x98] sm:$0x3f] %v4321
  %4354 = vst [vmem:[#allocation2 + $0xa0] sm:$0x3f] %v4322
  %4355 = vst [vmem:[#allocation2 + $0xa8] sm:$0x3f] %v4323
  %4356 = vst [vmem:[#allocation2 + $0xb0] sm:$0x3f] %v4324
  %4357 = vst [vmem:[#allocation2 + $0xb8] sm:$0x3f] %v4325
  %4358 = vst [vmem:[#allocation2 + $0xc0] sm:$0x3f] %v4326
  %4359 = vst [vmem:[#allocation2 + $0xc8] sm:$0x3f] %v4327
  %4360 = vst [vmem:[#allocation2 + $0xd0] sm:$0x3f] %v4328
  %4361 = vst [vmem:[#allocation2 + $0xd8] sm:$0x3f] %v4329
  %4362 = vst [vmem:[#allocation2 + $0xe0] sm:$0x3f] %v4330
  %4363 = vst [vmem:[#allocation2 + $0xe8] sm:$0x3f] %v4331
  %4364 = vst [vmem:[#allocation2 + $0xf0] sm:$0x3f] %v4332
  %4365 = vst [vmem:[#allocation2 + $0xf8] sm:$0x3f] %v4333
  %v4366 = vld [vmem:[#allocation4] sm:$0x3f]
  %v4367 = vld [vmem:[#allocation4 + $0x8] sm:$0x3f]
  %v4368 = vld [vmem:[#allocation4 + $0x10] sm:$0x3f]
  %v4369 = vld [vmem:[#allocation4 + $0x18] sm:$0x3f]
  %v4370 = vld [vmem:[#allocation4 + $0x20] sm:$0x3f]
  %v4371 = vld [vmem:[#allocation4 + $0x28] sm:$0x3f]
  %v4372 = vld [vmem:[#allocation4 + $0x30] sm:$0x3f]
  %v4373 = vld [vmem:[#allocation4 + $0x38] sm:$0x3f]
  %v4374 = vld [vmem:[#allocation4 + $0x40] sm:$0x3f]
  %v4375 = vld [vmem:[#allocation4 + $0x48] sm:$0x3f]
  %v4376 = vld [vmem:[#allocation4 + $0x50] sm:$0x3f]
  %v4377 = vld [vmem:[#allocation4 + $0x58] sm:$0x3f]
  %v4378 = vld [vmem:[#allocation4 + $0x60] sm:$0x3f]
  %v4379 = vld [vmem:[#allocation4 + $0x68] sm:$0x3f]
  %v4380 = vld [vmem:[#allocation4 + $0x70] sm:$0x3f]
  %v4381 = vld [vmem:[#allocation4 + $0x78] sm:$0x3f]
  %v4382 = vld [vmem:[#allocation4 + $0x80] sm:$0x3f]
  %4400 = vrot.lane.b32.xlu0 %v4366, 120
  %v4401 = vpop.permute.xlu0 %4400
  %4402 = vrot.lane.b32.xlu0 %v4367, 120
  %v4403 = vpop.permute.xlu0 %4402
  %4404 = vrot.lane.b32.xlu0 %v4368, 120
  %v4405 = vpop.permute.xlu0 %4404
  %4406 = vrot.lane.b32.xlu0 %v4369, 120
  %v4407 = vpop.permute.xlu0 %4406
  %4408 = vrot.lane.b32.xlu0 %v4370, 120
  %v4409 = vpop.permute.xlu0 %4408
  %4410 = vrot.lane.b32.xlu0 %v4371, 120
  %v4411 = vpop.permute.xlu0 %4410
  %4412 = vrot.lane.b32.xlu0 %v4372, 120
  %v4413 = vpop.permute.xlu0 %4412
  %4414 = vrot.lane.b32.xlu0 %v4373, 120
  %v4415 = vpop.permute.xlu0 %4414
  %4416 = vrot.lane.b32.xlu0 %v4374, 120
  %v4417 = vpop.permute.xlu0 %4416
  %4418 = vrot.lane.b32.xlu0 %v4375, 120
  %v4419 = vpop.permute.xlu0 %4418
  %4420 = vrot.lane.b32.xlu0 %v4376, 120
  %v4421 = vpop.permute.xlu0 %4420
  %4422 = vrot.lane.b32.xlu0 %v4377, 120
  %v4423 = vpop.permute.xlu0 %4422
  %4424 = vrot.lane.b32.xlu0 %v4378, 120
  %v4425 = vpop.permute.xlu0 %4424
  %4426 = vrot.lane.b32.xlu0 %v4379, 120
  %v4427 = vpop.permute.xlu0 %4426
  %4428 = vrot.lane.b32.xlu0 %v4380, 120
  %v4429 = vpop.permute.xlu0 %4428
  %4430 = vrot.lane.b32.xlu0 %v4381, 120
  %v4431 = vpop.permute.xlu0 %4430
  %4432 = vrot.lane.b32.xlu0 %v4382, 120
  %v4433 = vpop.permute.xlu0 %4432
  %v4434 = vsel %vm543, %v4401, %v4403
  %v4435 = vsel %vm543, %v4403, %v4405
  %v4436 = vsel %vm543, %v4405, %v4407
  %v4437 = vsel %vm543, %v4407, %v4409
  %v4438 = vsel %vm543, %v4409, %v4411
  %v4439 = vsel %vm543, %v4411, %v4413
  %v4440 = vsel %vm543, %v4413, %v4415
  %v4441 = vsel %vm543, %v4415, %v4417
  %v4442 = vsel %vm543, %v4417, %v4419
  %v4443 = vsel %vm543, %v4419, %v4421
  %v4444 = vsel %vm543, %v4421, %v4423
  %v4445 = vsel %vm543, %v4423, %v4425
  %v4446 = vsel %vm543, %v4425, %v4427
  %v4447 = vsel %vm543, %v4427, %v4429
  %v4448 = vsel %vm543, %v4429, %v4431
  %v4449 = vsel %vm543, %v4431, %v4433
  %4466 = vst [vmem:[#allocation2 + $0x100] sm:$0x3f] %v4434
  %4467 = vst [vmem:[#allocation2 + $0x108] sm:$0x3f] %v4435
  %4468 = vst [vmem:[#allocation2 + $0x110] sm:$0x3f] %v4436
  %4469 = vst [vmem:[#allocation2 + $0x118] sm:$0x3f] %v4437
  %4470 = vst [vmem:[#allocation2 + $0x120] sm:$0x3f] %v4438
  %4471 = vst [vmem:[#allocation2 + $0x128] sm:$0x3f] %v4439
  %4472 = vst [vmem:[#allocation2 + $0x130] sm:$0x3f] %v4440
  %4473 = vst [vmem:[#allocation2 + $0x138] sm:$0x3f] %v4441
  %4474 = vst [vmem:[#allocation2 + $0x140] sm:$0x3f] %v4442
  %4475 = vst [vmem:[#allocation2 + $0x148] sm:$0x3f] %v4443
  %4476 = vst [vmem:[#allocation2 + $0x150] sm:$0x3f] %v4444
  %4477 = vst [vmem:[#allocation2 + $0x158] sm:$0x3f] %v4445
  %4478 = vst [vmem:[#allocation2 + $0x160] sm:$0x3f] %v4446
  %4479 = vst [vmem:[#allocation2 + $0x168] sm:$0x3f] %v4447
  %4480 = vst [vmem:[#allocation2 + $0x170] sm:$0x3f] %v4448
  %4481 = vst [vmem:[#allocation2 + $0x178] sm:$0x3f] %v4449
  %v4482 = vld [vmem:[#allocation4] sm:$0x3f]
  %v4483 = vld [vmem:[#allocation4 + $0x8] sm:$0x3f]
  %v4484 = vld [vmem:[#allocation4 + $0x10] sm:$0x3f]
  %v4485 = vld [vmem:[#allocation4 + $0x18] sm:$0x3f]
  %v4486 = vld [vmem:[#allocation4 + $0x20] sm:$0x3f]
  %v4487 = vld [vmem:[#allocation4 + $0x28] sm:$0x3f]
  %v4488 = vld [vmem:[#allocation4 + $0x30] sm:$0x3f]
  %v4489 = vld [vmem:[#allocation4 + $0x38] sm:$0x3f]
  %v4490 = vld [vmem:[#allocation4 + $0x40] sm:$0x3f]
  %v4491 = vld [vmem:[#allocation4 + $0x48] sm:$0x3f]
  %v4492 = vld [vmem:[#allocation4 + $0x50] sm:$0x3f]
  %v4493 = vld [vmem:[#allocation4 + $0x58] sm:$0x3f]
  %v4494 = vld [vmem:[#allocation4 + $0x60] sm:$0x3f]
  %v4495 = vld [vmem:[#allocation4 + $0x68] sm:$0x3f]
  %v4496 = vld [vmem:[#allocation4 + $0x70] sm:$0x3f]
  %v4497 = vld [vmem:[#allocation4 + $0x78] sm:$0x3f]
  %v4498 = vld [vmem:[#allocation4 + $0x80] sm:$0x3f]
  %4516 = vrot.lane.b32.xlu0 %v4482, 116
  %v4517 = vpop.permute.xlu0 %4516
  %4518 = vrot.lane.b32.xlu0 %v4483, 116
  %v4519 = vpop.permute.xlu0 %4518
  %4520 = vrot.lane.b32.xlu0 %v4484, 116
  %v4521 = vpop.permute.xlu0 %4520
  %4522 = vrot.lane.b32.xlu0 %v4485, 116
  %v4523 = vpop.permute.xlu0 %4522
  %4524 = vrot.lane.b32.xlu0 %v4486, 116
  %v4525 = vpop.permute.xlu0 %4524
  %4526 = vrot.lane.b32.xlu0 %v4487, 116
  %v4527 = vpop.permute.xlu0 %4526
  %4528 = vrot.lane.b32.xlu0 %v4488, 116
  %v4529 = vpop.permute.xlu0 %4528
  %4530 = vrot.lane.b32.xlu0 %v4489, 116
  %v4531 = vpop.permute.xlu0 %4530
  %4532 = vrot.lane.b32.xlu0 %v4490, 116
  %v4533 = vpop.permute.xlu0 %4532
  %4534 = vrot.lane.b32.xlu0 %v4491, 116
  %v4535 = vpop.permute.xlu0 %4534
  %4536 = vrot.lane.b32.xlu0 %v4492, 116
  %v4537 = vpop.permute.xlu0 %4536
  %4538 = vrot.lane.b32.xlu0 %v4493, 116
  %v4539 = vpop.permute.xlu0 %4538
  %4540 = vrot.lane.b32.xlu0 %v4494, 116
  %v4541 = vpop.permute.xlu0 %4540
  %4542 = vrot.lane.b32.xlu0 %v4495, 116
  %v4543 = vpop.permute.xlu0 %4542
  %4544 = vrot.lane.b32.xlu0 %v4496, 116
  %v4545 = vpop.permute.xlu0 %4544
  %4546 = vrot.lane.b32.xlu0 %v4497, 116
  %v4547 = vpop.permute.xlu0 %4546
  %4548 = vrot.lane.b32.xlu0 %v4498, 116
  %v4549 = vpop.permute.xlu0 %4548
  %vm4550 = vcmask 949248
  %v4551 = vsel %vm4550, %v4517, %v4519
  %v4552 = vsel %vm4550, %v4519, %v4521
  %v4553 = vsel %vm4550, %v4521, %v4523
  %v4554 = vsel %vm4550, %v4523, %v4525
  %v4555 = vsel %vm4550, %v4525, %v4527
  %v4556 = vsel %vm4550, %v4527, %v4529
  %v4557 = vsel %vm4550, %v4529, %v4531
  %v4558 = vsel %vm4550, %v4531, %v4533
  %v4559 = vsel %vm4550, %v4533, %v4535
  %v4560 = vsel %vm4550, %v4535, %v4537
  %v4561 = vsel %vm4550, %v4537, %v4539
  %v4562 = vsel %vm4550, %v4539, %v4541
  %v4563 = vsel %vm4550, %v4541, %v4543
  %v4564 = vsel %vm4550, %v4543, %v4545
  %v4565 = vsel %vm4550, %v4545, %v4547
  %v4566 = vsel %vm4550, %v4547, %v4549
  %4583 = vst [vmem:[#allocation2 + $0x180] sm:$0x3f] %v4551
  %4584 = vst [vmem:[#allocation2 + $0x188] sm:$0x3f] %v4552
  %4585 = vst [vmem:[#allocation2 + $0x190] sm:$0x3f] %v4553
  %4586 = vst [vmem:[#allocation2 + $0x198] sm:$0x3f] %v4554
  %4587 = vst [vmem:[#allocation2 + $0x1a0] sm:$0x3f] %v4555
  %4588 = vst [vmem:[#allocation2 + $0x1a8] sm:$0x3f] %v4556
  %4589 = vst [vmem:[#allocation2 + $0x1b0] sm:$0x3f] %v4557
  %4590 = vst [vmem:[#allocation2 + $0x1b8] sm:$0x3f] %v4558
  %4591 = vst [vmem:[#allocation2 + $0x1c0] sm:$0x3f] %v4559
  %4592 = vst [vmem:[#allocation2 + $0x1c8] sm:$0x3f] %v4560
  %4593 = vst [vmem:[#allocation2 + $0x1d0] sm:$0x3f] %v4561
  %4594 = vst [vmem:[#allocation2 + $0x1d8] sm:$0x3f] %v4562
  %4595 = vst [vmem:[#allocation2 + $0x1e0] sm:$0x3f] %v4563
  %4596 = vst [vmem:[#allocation2 + $0x1e8] sm:$0x3f] %v4564
  %4597 = vst [vmem:[#allocation2 + $0x1f0] sm:$0x3f] %v4565
  %4598 = vst [vmem:[#allocation2 + $0x1f8] sm:$0x3f] %v4566
  %v4599 = vld [vmem:[#allocation4] sm:$0x3f]
  %v4600 = vld [vmem:[#allocation4 + $0x8] sm:$0x3f]
  %v4601 = vld [vmem:[#allocation4 + $0x10] sm:$0x3f]
  %v4602 = vld [vmem:[#allocation4 + $0x18] sm:$0x3f]
  %v4603 = vld [vmem:[#allocation4 + $0x20] sm:$0x3f]
  %v4604 = vld [vmem:[#allocation4 + $0x28] sm:$0x3f]
  %v4605 = vld [vmem:[#allocation4 + $0x30] sm:$0x3f]
  %v4606 = vld [vmem:[#allocation4 + $0x38] sm:$0x3f]
  %v4607 = vld [vmem:[#allocation4 + $0x40] sm:$0x3f]
  %v4608 = vld [vmem:[#allocation4 + $0x48] sm:$0x3f]
  %v4609 = vld [vmem:[#allocation4 + $0x50] sm:$0x3f]
  %v4610 = vld [vmem:[#allocation4 + $0x58] sm:$0x3f]
  %v4611 = vld [vmem:[#allocation4 + $0x60] sm:$0x3f]
  %v4612 = vld [vmem:[#allocation4 + $0x68] sm:$0x3f]
  %v4613 = vld [vmem:[#allocation4 + $0x70] sm:$0x3f]
  %v4614 = vld [vmem:[#allocation4 + $0x78] sm:$0x3f]
  %v4615 = vld [vmem:[#allocation4 + $0x80] sm:$0x3f]
  %4633 = vrot.lane.b32.xlu0 %v4599, 112
  %v4634 = vpop.permute.xlu0 %4633
  %4635 = vrot.lane.b32.xlu0 %v4600, 112
  %v4636 = vpop.permute.xlu0 %4635
  %4637 = vrot.lane.b32.xlu0 %v4601, 112
  %v4638 = vpop.permute.xlu0 %4637
  %4639 = vrot.lane.b32.xlu0 %v4602, 112
  %v4640 = vpop.permute.xlu0 %4639
  %4641 = vrot.lane.b32.xlu0 %v4603, 112
  %v4642 = vpop.permute.xlu0 %4641
  %4643 = vrot.lane.b32.xlu0 %v4604, 112
  %v4644 = vpop.permute.xlu0 %4643
  %4645 = vrot.lane.b32.xlu0 %v4605, 112
  %v4646 = vpop.permute.xlu0 %4645
  %4647 = vrot.lane.b32.xlu0 %v4606, 112
  %v4648 = vpop.permute.xlu0 %4647
  %4649 = vrot.lane.b32.xlu0 %v4607, 112
  %v4650 = vpop.permute.xlu0 %4649
  %4651 = vrot.lane.b32.xlu0 %v4608, 112
  %v4652 = vpop.permute.xlu0 %4651
  %4653 = vrot.lane.b32.xlu0 %v4609, 112
  %v4654 = vpop.permute.xlu0 %4653
  %4655 = vrot.lane.b32.xlu0 %v4610, 112
  %v4656 = vpop.permute.xlu0 %4655
  %4657 = vrot.lane.b32.xlu0 %v4611, 112
  %v4658 = vpop.permute.xlu0 %4657
  %4659 = vrot.lane.b32.xlu0 %v4612, 112
  %v4660 = vpop.permute.xlu0 %4659
  %4661 = vrot.lane.b32.xlu0 %v4613, 112
  %v4662 = vpop.permute.xlu0 %4661
  %4663 = vrot.lane.b32.xlu0 %v4614, 112
  %v4664 = vpop.permute.xlu0 %4663
  %4665 = vrot.lane.b32.xlu0 %v4615, 112
  %v4666 = vpop.permute.xlu0 %4665
  %vm4667 = vcmask 916480
  %v4668 = vsel %vm4667, %v4634, %v4636
  %v4669 = vsel %vm4667, %v4636, %v4638
  %v4670 = vsel %vm4667, %v4638, %v4640
  %v4671 = vsel %vm4667, %v4640, %v4642
  %v4672 = vsel %vm4667, %v4642, %v4644
  %v4673 = vsel %vm4667, %v4644, %v4646
  %v4674 = vsel %vm4667, %v4646, %v4648
  %v4675 = vsel %vm4667, %v4648, %v4650
  %v4676 = vsel %vm4667, %v4650, %v4652
  %v4677 = vsel %vm4667, %v4652, %v4654
  %v4678 = vsel %vm4667, %v4654, %v4656
  %v4679 = vsel %vm4667, %v4656, %v4658
  %v4680 = vsel %vm4667, %v4658, %v4660
  %v4681 = vsel %vm4667, %v4660, %v4662
  %v4682 = vsel %vm4667, %v4662, %v4664
  %v4683 = vsel %vm4667, %v4664, %v4666
  %4700 = vst [vmem:[#allocation2 + $0x200] sm:$0x3f] %v4668
  %4701 = vst [vmem:[#allocation2 + $0x208] sm:$0x3f] %v4669
  %4702 = vst [vmem:[#allocation2 + $0x210] sm:$0x3f] %v4670
  %4703 = vst [vmem:[#allocation2 + $0x218] sm:$0x3f] %v4671
  %4704 = vst [vmem:[#allocation2 + $0x220] sm:$0x3f] %v4672
  %4705 = vst [vmem:[#allocation2 + $0x228] sm:$0x3f] %v4673
  %4706 = vst [vmem:[#allocation2 + $0x230] sm:$0x3f] %v4674
  %4707 = vst [vmem:[#allocation2 + $0x238] sm:$0x3f] %v4675
  %4708 = vst [vmem:[#allocation2 + $0x240] sm:$0x3f] %v4676
  %4709 = vst [vmem:[#allocation2 + $0x248] sm:$0x3f] %v4677
  %4710 = vst [vmem:[#allocation2 + $0x250] sm:$0x3f] %v4678
  %4711 = vst [vmem:[#allocation2 + $0x258] sm:$0x3f] %v4679
  %4712 = vst [vmem:[#allocation2 + $0x260] sm:$0x3f] %v4680
  %4713 = vst [vmem:[#allocation2 + $0x268] sm:$0x3f] %v4681
  %4714 = vst [vmem:[#allocation2 + $0x270] sm:$0x3f] %v4682
  %4715 = vst [vmem:[#allocation2 + $0x278] sm:$0x3f] %v4683
  %v4716 = vld [vmem:[#allocation4 + $0x8] sm:$0x3f]
  %v4717 = vld [vmem:[#allocation4 + $0x10] sm:$0x3f]
  %v4718 = vld [vmem:[#allocation4 + $0x18] sm:$0x3f]
  %v4719 = vld [vmem:[#allocation4 + $0x20] sm:$0x3f]
  %v4720 = vld [vmem:[#allocation4 + $0x28] sm:$0x3f]
  %v4721 = vld [vmem:[#allocation4 + $0x30] sm:$0x3f]
  %v4722 = vld [vmem:[#allocation4 + $0x38] sm:$0x3f]
  %v4723 = vld [vmem:[#allocation4 + $0x40] sm:$0x3f]
  %v4724 = vld [vmem:[#allocation4 + $0x48] sm:$0x3f]
  %v4725 = vld [vmem:[#allocation4 + $0x50] sm:$0x3f]
  %v4726 = vld [vmem:[#allocation4 + $0x58] sm:$0x3f]
  %v4727 = vld [vmem:[#allocation4 + $0x60] sm:$0x3f]
  %v4728 = vld [vmem:[#allocation4 + $0x68] sm:$0x3f]
  %v4729 = vld [vmem:[#allocation4 + $0x70] sm:$0x3f]
  %v4730 = vld [vmem:[#allocation4 + $0x78] sm:$0x3f]
  %v4731 = vld [vmem:[#allocation4 + $0x80] sm:$0x3f]
  %4732 = vst [vmem:[#allocation2 + $0x280] sm:$0x3f] %v4716
  %4733 = vst [vmem:[#allocation2 + $0x288] sm:$0x3f] %v4717
  %4734 = vst [vmem:[#allocation2 + $0x290] sm:$0x3f] %v4718
  %4735 = vst [vmem:[#allocation2 + $0x298] sm:$0x3f] %v4719
  %4736 = vst [vmem:[#allocation2 + $0x2a0] sm:$0x3f] %v4720
  %4737 = vst [vmem:[#allocation2 + $0x2a8] sm:$0x3f] %v4721
  %4738 = vst [vmem:[#allocation2 + $0x2b0] sm:$0x3f] %v4722
  %4739 = vst [vmem:[#allocation2 + $0x2b8] sm:$0x3f] %v4723
  %4740 = vst [vmem:[#allocation2 + $0x2c0] sm:$0x3f] %v4724
  %4741 = vst [vmem:[#allocation2 + $0x2c8] sm:$0x3f] %v4725
  %4742 = vst [vmem:[#allocation2 + $0x2d0] sm:$0x3f] %v4726
  %4743 = vst [vmem:[#allocation2 + $0x2d8] sm:$0x3f] %v4727
  %4744 = vst [vmem:[#allocation2 + $0x2e0] sm:$0x3f] %v4728
  %4745 = vst [vmem:[#allocation2 + $0x2e8] sm:$0x3f] %v4729
  %4746 = vst [vmem:[#allocation2 + $0x2f0] sm:$0x3f] %v4730
  %4747 = vst [vmem:[#allocation2 + $0x2f8] sm:$0x3f] %v4731
  %v4748 = vld [vmem:[#allocation4 + $0x8] sm:$0x3f]
  %v4749 = vld [vmem:[#allocation4 + $0x10] sm:$0x3f]
  %v4750 = vld [vmem:[#allocation4 + $0x18] sm:$0x3f]
  %v4751 = vld [vmem:[#allocation4 + $0x20] sm:$0x3f]
  %v4752 = vld [vmem:[#allocation4 + $0x28] sm:$0x3f]
  %v4753 = vld [vmem:[#allocation4 + $0x30] sm:$0x3f]
  %v4754 = vld [vmem:[#allocation4 + $0x38] sm:$0x3f]
  %v4755 = vld [vmem:[#allocation4 + $0x40] sm:$0x3f]
  %v4756 = vld [vmem:[#allocation4 + $0x48] sm:$0x3f]
  %v4757 = vld [vmem:[#allocation4 + $0x50] sm:$0x3f]
  %v4758 = vld [vmem:[#allocation4 + $0x58] sm:$0x3f]
  %v4759 = vld [vmem:[#allocation4 + $0x60] sm:$0x3f]
  %v4760 = vld [vmem:[#allocation4 + $0x68] sm:$0x3f]
  %v4761 = vld [vmem:[#allocation4 + $0x70] sm:$0x3f]
  %v4762 = vld [vmem:[#allocation4 + $0x78] sm:$0x3f]
  %v4763 = vld [vmem:[#allocation4 + $0x80] sm:$0x3f]
  %v4764 = vld [vmem:[#allocation4 + $0x88] sm:$0x3f]
  %4782 = vrot.lane.b32.xlu0 %v4748, 124
  %v4783 = vpop.permute.xlu0 %4782
  %4784 = vrot.lane.b32.xlu0 %v4749, 124
  %v4785 = vpop.permute.xlu0 %4784
  %4786 = vrot.lane.b32.xlu0 %v4750, 124
  %v4787 = vpop.permute.xlu0 %4786
  %4788 = vrot.lane.b32.xlu0 %v4751, 124
  %v4789 = vpop.permute.xlu0 %4788
  %4790 = vrot.lane.b32.xlu0 %v4752, 124
  %v4791 = vpop.permute.xlu0 %4790
  %4792 = vrot.lane.b32.xlu0 %v4753, 124
  %v4793 = vpop.permute.xlu0 %4792
  %4794 = vrot.lane.b32.xlu0 %v4754, 124
  %v4795 = vpop.permute.xlu0 %4794
  %4796 = vrot.lane.b32.xlu0 %v4755, 124
  %v4797 = vpop.permute.xlu0 %4796
  %4798 = vrot.lane.b32.xlu0 %v4756, 124
  %v4799 = vpop.permute.xlu0 %4798
  %4800 = vrot.lane.b32.xlu0 %v4757, 124
  %v4801 = vpop.permute.xlu0 %4800
  %4802 = vrot.lane.b32.xlu0 %v4758, 124
  %v4803 = vpop.permute.xlu0 %4802
  %4804 = vrot.lane.b32.xlu0 %v4759, 124
  %v4805 = vpop.permute.xlu0 %4804
  %4806 = vrot.lane.b32.xlu0 %v4760, 124
  %v4807 = vpop.permute.xlu0 %4806
  %4808 = vrot.lane.b32.xlu0 %v4761, 124
  %v4809 = vpop.permute.xlu0 %4808
  %4810 = vrot.lane.b32.xlu0 %v4762, 124
  %v4811 = vpop.permute.xlu0 %4810
  %4812 = vrot.lane.b32.xlu0 %v4763, 124
  %v4813 = vpop.permute.xlu0 %4812
  %4814 = vrot.lane.b32.xlu0 %v4764, 124
  %v4815 = vpop.permute.xlu0 %4814
  %v4816 = vsel %vm293, %v4783, %v4785
  %v4817 = vsel %vm293, %v4785, %v4787
  %v4818 = vsel %vm293, %v4787, %v4789
  %v4819 = vsel %vm293, %v4789, %v4791
  %v4820 = vsel %vm293, %v4791, %v4793
  %v4821 = vsel %vm293, %v4793, %v4795
  %v4822 = vsel %vm293, %v4795, %v4797
  %v4823 = vsel %vm293, %v4797, %v4799
  %v4824 = vsel %vm293, %v4799, %v4801
  %v4825 = vsel %vm293, %v4801, %v4803
  %v4826 = vsel %vm293, %v4803, %v4805
  %v4827 = vsel %vm293, %v4805, %v4807
  %v4828 = vsel %vm293, %v4807, %v4809
  %v4829 = vsel %vm293, %v4809, %v4811
  %v4830 = vsel %vm293, %v4811, %v4813
  %v4831 = vsel %vm293, %v4813, %v4815
  %4848 = vst [vmem:[#allocation2 + $0x300] sm:$0x3f] %v4816
  %4849 = vst [vmem:[#allocation2 + $0x308] sm:$0x3f] %v4817
  %4850 = vst [vmem:[#allocation2 + $0x310] sm:$0x3f] %v4818
  %4851 = vst [vmem:[#allocation2 + $0x318] sm:$0x3f] %v4819
  %4852 = vst [vmem:[#allocation2 + $0x320] sm:$0x3f] %v4820
  %4853 = vst [vmem:[#allocation2 + $0x328] sm:$0x3f] %v4821
  %4854 = vst [vmem:[#allocation2 + $0x330] sm:$0x3f] %v4822
  %4855 = vst [vmem:[#allocation2 + $0x338] sm:$0x3f] %v4823
  %4856 = vst [vmem:[#allocation2 + $0x340] sm:$0x3f] %v4824
  %4857 = vst [vmem:[#allocation2 + $0x348] sm:$0x3f] %v4825
  %4858 = vst [vmem:[#allocation2 + $0x350] sm:$0x3f] %v4826
  %4859 = vst [vmem:[#allocation2 + $0x358] sm:$0x3f] %v4827
  %4860 = vst [vmem:[#allocation2 + $0x360] sm:$0x3f] %v4828
  %4861 = vst [vmem:[#allocation2 + $0x368] sm:$0x3f] %v4829
  %4862 = vst [vmem:[#allocation2 + $0x370] sm:$0x3f] %v4830
  %4863 = vst [vmem:[#allocation2 + $0x378] sm:$0x3f] %v4831
  %v4864 = vld [vmem:[#allocation4 + $0x8] sm:$0x3f]
  %v4865 = vld [vmem:[#allocation4 + $0x10] sm:$0x3f]
  %v4866 = vld [vmem:[#allocation4 + $0x18] sm:$0x3f]
  %v4867 = vld [vmem:[#allocation4 + $0x20] sm:$0x3f]
  %v4868 = vld [vmem:[#allocation4 + $0x28] sm:$0x3f]
  %v4869 = vld [vmem:[#allocation4 + $0x30] sm:$0x3f]
  %v4870 = vld [vmem:[#allocation4 + $0x38] sm:$0x3f]
  %v4871 = vld [vmem:[#allocation4 + $0x40] sm:$0x3f]
  %v4872 = vld [vmem:[#allocation4 + $0x48] sm:$0x3f]
  %v4873 = vld [vmem:[#allocation4 + $0x50] sm:$0x3f]
  %v4874 = vld [vmem:[#allocation4 + $0x58] sm:$0x3f]
  %v4875 = vld [vmem:[#allocation4 + $0x60] sm:$0x3f]
  %v4876 = vld [vmem:[#allocation4 + $0x68] sm:$0x3f]
  %v4877 = vld [vmem:[#allocation4 + $0x70] sm:$0x3f]
  %v4878 = vld [vmem:[#allocation4 + $0x78] sm:$0x3f]
  %v4879 = vld [vmem:[#allocation4 + $0x80] sm:$0x3f]
  %v4880 = vld [vmem:[#allocation4 + $0x88] sm:$0x3f]
  %4898 = vrot.lane.b32.xlu0 %v4864, 120
  %v4899 = vpop.permute.xlu0 %4898
  %4900 = vrot.lane.b32.xlu0 %v4865, 120
  %v4901 = vpop.permute.xlu0 %4900
  %4902 = vrot.lane.b32.xlu0 %v4866, 120
  %v4903 = vpop.permute.xlu0 %4902
  %4904 = vrot.lane.b32.xlu0 %v4867, 120
  %v4905 = vpop.permute.xlu0 %4904
  %4906 = vrot.lane.b32.xlu0 %v4868, 120
  %v4907 = vpop.permute.xlu0 %4906
  %4908 = vrot.lane.b32.xlu0 %v4869, 120
  %v4909 = vpop.permute.xlu0 %4908
  %4910 = vrot.lane.b32.xlu0 %v4870, 120
  %v4911 = vpop.permute.xlu0 %4910
  %4912 = vrot.lane.b32.xlu0 %v4871, 120
  %v4913 = vpop.permute.xlu0 %4912
  %4914 = vrot.lane.b32.xlu0 %v4872, 120
  %v4915 = vpop.permute.xlu0 %4914
  %4916 = vrot.lane.b32.xlu0 %v4873, 120
  %v4917 = vpop.permute.xlu0 %4916
  %4918 = vrot.lane.b32.xlu0 %v4874, 120
  %v4919 = vpop.permute.xlu0 %4918
  %4920 = vrot.lane.b32.xlu0 %v4875, 120
  %v4921 = vpop.permute.xlu0 %4920
  %4922 = vrot.lane.b32.xlu0 %v4876, 120
  %v4923 = vpop.permute.xlu0 %4922
  %4924 = vrot.lane.b32.xlu0 %v4877, 120
  %v4925 = vpop.permute.xlu0 %4924
  %4926 = vrot.lane.b32.xlu0 %v4878, 120
  %v4927 = vpop.permute.xlu0 %4926
  %4928 = vrot.lane.b32.xlu0 %v4879, 120
  %v4929 = vpop.permute.xlu0 %4928
  %4930 = vrot.lane.b32.xlu0 %v4880, 120
  %v4931 = vpop.permute.xlu0 %4930
  %v4932 = vsel %vm543, %v4899, %v4901
  %v4933 = vsel %vm543, %v4901, %v4903
  %v4934 = vsel %vm543, %v4903, %v4905
  %v4935 = vsel %vm543, %v4905, %v4907
  %v4936 = vsel %vm543, %v4907, %v4909
  %v4937 = vsel %vm543, %v4909, %v4911
  %v4938 = vsel %vm543, %v4911, %v4913
  %v4939 = vsel %vm543, %v4913, %v4915
  %v4940 = vsel %vm543, %v4915, %v4917
  %v4941 = vsel %vm543, %v4917, %v4919
  %v4942 = vsel %vm543, %v4919, %v4921
  %v4943 = vsel %vm543, %v4921, %v4923
  %v4944 = vsel %vm543, %v4923, %v4925
  %v4945 = vsel %vm543, %v4925, %v4927
  %v4946 = vsel %vm543, %v4927, %v4929
  %v4947 = vsel %vm543, %v4929, %v4931
  %4964 = vst [vmem:[#allocation2 + $0x380] sm:$0x3f] %v4932
  %4965 = vst [vmem:[#allocation2 + $0x388] sm:$0x3f] %v4933
  %4966 = vst [vmem:[#allocation2 + $0x390] sm:$0x3f] %v4934
  %4967 = vst [vmem:[#allocation2 + $0x398] sm:$0x3f] %v4935
  %4968 = vst [vmem:[#allocation2 + $0x3a0] sm:$0x3f] %v4936
  %4969 = vst [vmem:[#allocation2 + $0x3a8] sm:$0x3f] %v4937
  %4970 = vst [vmem:[#allocation2 + $0x3b0] sm:$0x3f] %v4938
  %4971 = vst [vmem:[#allocation2 + $0x3b8] sm:$0x3f] %v4939
  %4972 = vst [vmem:[#allocation2 + $0x3c0] sm:$0x3f] %v4940
  %4973 = vst [vmem:[#allocation2 + $0x3c8] sm:$0x3f] %v4941
  %4974 = vst [vmem:[#allocation2 + $0x3d0] sm:$0x3f] %v4942
  %4975 = vst [vmem:[#allocation2 + $0x3d8] sm:$0x3f] %v4943
  %4976 = vst [vmem:[#allocation2 + $0x3e0] sm:$0x3f] %v4944
  %4977 = vst [vmem:[#allocation2 + $0x3e8] sm:$0x3f] %v4945
  %4978 = vst [vmem:[#allocation2 + $0x3f0] sm:$0x3f] %v4946
  %4979 = vst [vmem:[#allocation2 + $0x3f8] sm:$0x3f] %v4947
  %v4980 = vld [vmem:[#allocation4 + $0x8] sm:$0x3f]
  %v4981 = vld [vmem:[#allocation4 + $0x10] sm:$0x3f]
  %v4982 = vld [vmem:[#allocation4 + $0x18] sm:$0x3f]
  %v4983 = vld [vmem:[#allocation4 + $0x20] sm:$0x3f]
  %v4984 = vld [vmem:[#allocation4 + $0x28] sm:$0x3f]
  %v4985 = vld [vmem:[#allocation4 + $0x30] sm:$0x3f]
  %v4986 = vld [vmem:[#allocation4 + $0x38] sm:$0x3f]
  %v4987 = vld [vmem:[#allocation4 + $0x40] sm:$0x3f]
  %v4988 = vld [vmem:[#allocation4 + $0x48] sm:$0x3f]
  %v4989 = vld [vmem:[#allocation4 + $0x50] sm:$0x3f]
  %v4990 = vld [vmem:[#allocation4 + $0x58] sm:$0x3f]
  %v4991 = vld [vmem:[#allocation4 + $0x60] sm:$0x3f]
  %v4992 = vld [vmem:[#allocation4 + $0x68] sm:$0x3f]
  %v4993 = vld [vmem:[#allocation4 + $0x70] sm:$0x3f]
  %v4994 = vld [vmem:[#allocation4 + $0x78] sm:$0x3f]
  %v4995 = vld [vmem:[#allocation4 + $0x80] sm:$0x3f]
  %v4996 = vld [vmem:[#allocation4 + $0x88] sm:$0x3f]
  %5014 = vrot.lane.b32.xlu0 %v4980, 116
  %v5015 = vpop.permute.xlu0 %5014
  %5016 = vrot.lane.b32.xlu0 %v4981, 116
  %v5017 = vpop.permute.xlu0 %5016
  %5018 = vrot.lane.b32.xlu0 %v4982, 116
  %v5019 = vpop.permute.xlu0 %5018
  %5020 = vrot.lane.b32.xlu0 %v4983, 116
  %v5021 = vpop.permute.xlu0 %5020
  %5022 = vrot.lane.b32.xlu0 %v4984, 116
  %v5023 = vpop.permute.xlu0 %5022
  %5024 = vrot.lane.b32.xlu0 %v4985, 116
  %v5025 = vpop.permute.xlu0 %5024
  %5026 = vrot.lane.b32.xlu0 %v4986, 116
  %v5027 = vpop.permute.xlu0 %5026
  %5028 = vrot.lane.b32.xlu0 %v4987, 116
  %v5029 = vpop.permute.xlu0 %5028
  %5030 = vrot.lane.b32.xlu0 %v4988, 116
  %v5031 = vpop.permute.xlu0 %5030
  %5032 = vrot.lane.b32.xlu0 %v4989, 116
  %v5033 = vpop.permute.xlu0 %5032
  %5034 = vrot.lane.b32.xlu0 %v4990, 116
  %v5035 = vpop.permute.xlu0 %5034
  %5036 = vrot.lane.b32.xlu0 %v4991, 116
  %v5037 = vpop.permute.xlu0 %5036
  %5038 = vrot.lane.b32.xlu0 %v4992, 116
  %v5039 = vpop.permute.xlu0 %5038
  %5040 = vrot.lane.b32.xlu0 %v4993, 116
  %v5041 = vpop.permute.xlu0 %5040
  %5042 = vrot.lane.b32.xlu0 %v4994, 116
  %v5043 = vpop.permute.xlu0 %5042
  %5044 = vrot.lane.b32.xlu0 %v4995, 116
  %v5045 = vpop.permute.xlu0 %5044
  %5046 = vrot.lane.b32.xlu0 %v4996, 116
  %v5047 = vpop.permute.xlu0 %5046
  %v5048 = vsel %vm4550, %v5015, %v5017
  %v5049 = vsel %vm4550, %v5017, %v5019
  %v5050 = vsel %vm4550, %v5019, %v5021
  %v5051 = vsel %vm4550, %v5021, %v5023
  %v5052 = vsel %vm4550, %v5023, %v5025
  %v5053 = vsel %vm4550, %v5025, %v5027
  %v5054 = vsel %vm4550, %v5027, %v5029
  %v5055 = vsel %vm4550, %v5029, %v5031
  %v5056 = vsel %vm4550, %v5031, %v5033
  %v5057 = vsel %vm4550, %v5033, %v5035
  %v5058 = vsel %vm4550, %v5035, %v5037
  %v5059 = vsel %vm4550, %v5037, %v5039
  %v5060 = vsel %vm4550, %v5039, %v5041
  %v5061 = vsel %vm4550, %v5041, %v5043
  %v5062 = vsel %vm4550, %v5043, %v5045
  %v5063 = vsel %vm4550, %v5045, %v5047
  %5080 = vst [vmem:[#allocation2 + $0x400] sm:$0x3f] %v5048
  %5081 = vst [vmem:[#allocation2 + $0x408] sm:$0x3f] %v5049
  %5082 = vst [vmem:[#allocation2 + $0x410] sm:$0x3f] %v5050
  %5083 = vst [vmem:[#allocation2 + $0x418] sm:$0x3f] %v5051
  %5084 = vst [vmem:[#allocation2 + $0x420] sm:$0x3f] %v5052
  %5085 = vst [vmem:[#allocation2 + $0x428] sm:$0x3f] %v5053
  %5086 = vst [vmem:[#allocation2 + $0x430] sm:$0x3f] %v5054
  %5087 = vst [vmem:[#allocation2 + $0x438] sm:$0x3f] %v5055
  %5088 = vst [vmem:[#allocation2 + $0x440] sm:$0x3f] %v5056
  %5089 = vst [vmem:[#allocation2 + $0x448] sm:$0x3f] %v5057
  %5090 = vst [vmem:[#allocation2 + $0x450] sm:$0x3f] %v5058
  %5091 = vst [vmem:[#allocation2 + $0x458] sm:$0x3f] %v5059
  %5092 = vst [vmem:[#allocation2 + $0x460] sm:$0x3f] %v5060
  %5093 = vst [vmem:[#allocation2 + $0x468] sm:$0x3f] %v5061
  %5094 = vst [vmem:[#allocation2 + $0x470] sm:$0x3f] %v5062
  %5095 = vst [vmem:[#allocation2 + $0x478] sm:$0x3f] %v5063
  %v5096 = vld [vmem:[#allocation4 + $0x8] sm:$0x3f]
  %v5097 = vld [vmem:[#allocation4 + $0x10] sm:$0x3f]
  %v5098 = vld [vmem:[#allocation4 + $0x18] sm:$0x3f]
  %v5099 = vld [vmem:[#allocation4 + $0x20] sm:$0x3f]
  %v5100 = vld [vmem:[#allocation4 + $0x28] sm:$0x3f]
  %v5101 = vld [vmem:[#allocation4 + $0x30] sm:$0x3f]
  %v5102 = vld [vmem:[#allocation4 + $0x38] sm:$0x3f]
  %v5103 = vld [vmem:[#allocation4 + $0x40] sm:$0x3f]
  %v5104 = vld [vmem:[#allocation4 + $0x48] sm:$0x3f]
  %v5105 = vld [vmem:[#allocation4 + $0x50] sm:$0x3f]
  %v5106 = vld [vmem:[#allocation4 + $0x58] sm:$0x3f]
  %v5107 = vld [vmem:[#allocation4 + $0x60] sm:$0x3f]
  %v5108 = vld [vmem:[#allocation4 + $0x68] sm:$0x3f]
  %v5109 = vld [vmem:[#allocation4 + $0x70] sm:$0x3f]
  %v5110 = vld [vmem:[#allocation4 + $0x78] sm:$0x3f]
  %v5111 = vld [vmem:[#allocation4 + $0x80] sm:$0x3f]
  %v5112 = vld [vmem:[#allocation4 + $0x88] sm:$0x3f]
  %5130 = vrot.lane.b32.xlu0 %v5096, 112
  %v5131 = vpop.permute.xlu0 %5130
  %5132 = vrot.lane.b32.xlu0 %v5097, 112
  %v5133 = vpop.permute.xlu0 %5132
  %5134 = vrot.lane.b32.xlu0 %v5098, 112
  %v5135 = vpop.permute.xlu0 %5134
  %5136 = vrot.lane.b32.xlu0 %v5099, 112
  %v5137 = vpop.permute.xlu0 %5136
  %5138 = vrot.lane.b32.xlu0 %v5100, 112
  %v5139 = vpop.permute.xlu0 %5138
  %5140 = vrot.lane.b32.xlu0 %v5101, 112
  %v5141 = vpop.permute.xlu0 %5140
  %5142 = vrot.lane.b32.xlu0 %v5102, 112
  %v5143 = vpop.permute.xlu0 %5142
  %5144 = vrot.lane.b32.xlu0 %v5103, 112
  %v5145 = vpop.permute.xlu0 %5144
  %5146 = vrot.lane.b32.xlu0 %v5104, 112
  %v5147 = vpop.permute.xlu0 %5146
  %5148 = vrot.lane.b32.xlu0 %v5105, 112
  %v5149 = vpop.permute.xlu0 %5148
  %5150 = vrot.lane.b32.xlu0 %v5106, 112
  %v5151 = vpop.permute.xlu0 %5150
  %5152 = vrot.lane.b32.xlu0 %v5107, 112
  %v5153 = vpop.permute.xlu0 %5152
  %5154 = vrot.lane.b32.xlu0 %v5108, 112
  %v5155 = vpop.permute.xlu0 %5154
  %5156 = vrot.lane.b32.xlu0 %v5109, 112
  %v5157 = vpop.permute.xlu0 %5156
  %5158 = vrot.lane.b32.xlu0 %v5110, 112
  %v5159 = vpop.permute.xlu0 %5158
  %5160 = vrot.lane.b32.xlu0 %v5111, 112
  %v5161 = vpop.permute.xlu0 %5160
  %5162 = vrot.lane.b32.xlu0 %v5112, 112
  %v5163 = vpop.permute.xlu0 %5162
  %v5164 = vsel %vm4667, %v5131, %v5133
  %v5165 = vsel %vm4667, %v5133, %v5135
  %v5166 = vsel %vm4667, %v5135, %v5137
  %v5167 = vsel %vm4667, %v5137, %v5139
  %v5168 = vsel %vm4667, %v5139, %v5141
  %v5169 = vsel %vm4667, %v5141, %v5143
  %v5170 = vsel %vm4667, %v5143, %v5145
  %v5171 = vsel %vm4667, %v5145, %v5147
  %v5172 = vsel %vm4667, %v5147, %v5149
  %v5173 = vsel %vm4667, %v5149, %v5151
  %v5174 = vsel %vm4667, %v5151, %v5153
  %v5175 = vsel %vm4667, %v5153, %v5155
  %v5176 = vsel %vm4667, %v5155, %v5157
  %v5177 = vsel %vm4667, %v5157, %v5159
  %v5178 = vsel %vm4667, %v5159, %v5161
  %v5179 = vsel %vm4667, %v5161, %v5163
  %5196 = vst [vmem:[#allocation2 + $0x480] sm:$0x3f] %v5164
  %5197 = vst [vmem:[#allocation2 + $0x488] sm:$0x3f] %v5165
  %5198 = vst [vmem:[#allocation2 + $0x490] sm:$0x3f] %v5166
  %5199 = vst [vmem:[#allocation2 + $0x498] sm:$0x3f] %v5167
  %5200 = vst [vmem:[#allocation2 + $0x4a0] sm:$0x3f] %v5168
  %5201 = vst [vmem:[#allocation2 + $0x4a8] sm:$0x3f] %v5169
  %5202 = vst [vmem:[#allocation2 + $0x4b0] sm:$0x3f] %v5170
  %5203 = vst [vmem:[#allocation2 + $0x4b8] sm:$0x3f] %v5171
  %5204 = vst [vmem:[#allocation2 + $0x4c0] sm:$0x3f] %v5172
  %5205 = vst [vmem:[#allocation2 + $0x4c8] sm:$0x3f] %v5173
  %5206 = vst [vmem:[#allocation2 + $0x4d0] sm:$0x3f] %v5174
  %5207 = vst [vmem:[#allocation2 + $0x4d8] sm:$0x3f] %v5175
  %5208 = vst [vmem:[#allocation2 + $0x4e0] sm:$0x3f] %v5176
  %5209 = vst [vmem:[#allocation2 + $0x4e8] sm:$0x3f] %v5177
  %5210 = vst [vmem:[#allocation2 + $0x4f0] sm:$0x3f] %v5178
  %5211 = vst [vmem:[#allocation2 + $0x4f8] sm:$0x3f] %v5179
  %v5212 = vld [vmem:[#allocation4 + $0x10] sm:$0x3f]
  %v5213 = vld [vmem:[#allocation4 + $0x18] sm:$0x3f]
  %v5214 = vld [vmem:[#allocation4 + $0x20] sm:$0x3f]
  %v5215 = vld [vmem:[#allocation4 + $0x28] sm:$0x3f]
  %v5216 = vld [vmem:[#allocation4 + $0x30] sm:$0x3f]
  %v5217 = vld [vmem:[#allocation4 + $0x38] sm:$0x3f]
  %v5218 = vld [vmem:[#allocation4 + $0x40] sm:$0x3f]
  %v5219 = vld [vmem:[#allocation4 + $0x48] sm:$0x3f]
  %v5220 = vld [vmem:[#allocation4 + $0x50] sm:$0x3f]
  %v5221 = vld [vmem:[#allocation4 + $0x58] sm:$0x3f]
  %v5222 = vld [vmem:[#allocation4 + $0x60] sm:$0x3f]
  %v5223 = vld [vmem:[#allocation4 + $0x68] sm:$0x3f]
  %v5224 = vld [vmem:[#allocation4 + $0x70] sm:$0x3f]
  %v5225 = vld [vmem:[#allocation4 + $0x78] sm:$0x3f]
  %v5226 = vld [vmem:[#allocation4 + $0x80] sm:$0x3f]
  %v5227 = vld [vmem:[#allocation4 + $0x88] sm:$0x3f]
  %5228 = vst [vmem:[#allocation2 + $0x500] sm:$0x3f] %v5212
  %5229 = vst [vmem:[#allocation2 + $0x508] sm:$0x3f] %v5213
  %5230 = vst [vmem:[#allocation2 + $0x510] sm:$0x3f] %v5214
  %5231 = vst [vmem:[#allocation2 + $0x518] sm:$0x3f] %v5215
  %5232 = vst [vmem:[#allocation2 + $0x520] sm:$0x3f] %v5216
  %5233 = vst [vmem:[#allocation2 + $0x528] sm:$0x3f] %v5217
  %5234 = vst [vmem:[#allocation2 + $0x530] sm:$0x3f] %v5218
  %5235 = vst [vmem:[#allocation2 + $0x538] sm:$0x3f] %v5219
  %5236 = vst [vmem:[#allocation2 + $0x540] sm:$0x3f] %v5220
  %5237 = vst [vmem:[#allocation2 + $0x548] sm:$0x3f] %v5221
  %5238 = vst [vmem:[#allocation2 + $0x550] sm:$0x3f] %v5222
  %5239 = vst [vmem:[#allocation2 + $0x558] sm:$0x3f] %v5223
  %5240 = vst [vmem:[#allocation2 + $0x560] sm:$0x3f] %v5224
  %5241 = vst [vmem:[#allocation2 + $0x568] sm:$0x3f] %v5225
  %5242 = vst [vmem:[#allocation2 + $0x570] sm:$0x3f] %v5226
  %5243 = vst [vmem:[#allocation2 + $0x578] sm:$0x3f] %v5227
  %v5244 = vld [vmem:[#allocation4 + $0x10] sm:$0x3f]
  %v5245 = vld [vmem:[#allocation4 + $0x18] sm:$0x3f]
  %v5246 = vld [vmem:[#allocation4 + $0x20] sm:$0x3f]
  %v5247 = vld [vmem:[#allocation4 + $0x28] sm:$0x3f]
  %v5248 = vld [vmem:[#allocation4 + $0x30] sm:$0x3f]
  %v5249 = vld [vmem:[#allocation4 + $0x38] sm:$0x3f]
  %v5250 = vld [vmem:[#allocation4 + $0x40] sm:$0x3f]
  %v5251 = vld [vmem:[#allocation4 + $0x48] sm:$0x3f]
  %v5252 = vld [vmem:[#allocation4 + $0x50] sm:$0x3f]
  %v5253 = vld [vmem:[#allocation4 + $0x58] sm:$0x3f]
  %v5254 = vld [vmem:[#allocation4 + $0x60] sm:$0x3f]
  %v5255 = vld [vmem:[#allocation4 + $0x68] sm:$0x3f]
  %v5256 = vld [vmem:[#allocation4 + $0x70] sm:$0x3f]
  %v5257 = vld [vmem:[#allocation4 + $0x78] sm:$0x3f]
  %v5258 = vld [vmem:[#allocation4 + $0x80] sm:$0x3f]
  %v5259 = vld [vmem:[#allocation4 + $0x88] sm:$0x3f]
  %v5260 = vld [vmem:[#allocation4 + $0x90] sm:$0x3f]
  %5278 = vrot.lane.b32.xlu0 %v5244, 124
  %v5279 = vpop.permute.xlu0 %5278
  %5280 = vrot.lane.b32.xlu0 %v5245, 124
  %v5281 = vpop.permute.xlu0 %5280
  %5282 = vrot.lane.b32.xlu0 %v5246, 124
  %v5283 = vpop.permute.xlu0 %5282
  %5284 = vrot.lane.b32.xlu0 %v5247, 124
  %v5285 = vpop.permute.xlu0 %5284
  %5286 = vrot.lane.b32.xlu0 %v5248, 124
  %v5287 = vpop.permute.xlu0 %5286
  %5288 = vrot.lane.b32.xlu0 %v5249, 124
  %v5289 = vpop.permute.xlu0 %5288
  %5290 = vrot.lane.b32.xlu0 %v5250, 124
  %v5291 = vpop.permute.xlu0 %5290
  %5292 = vrot.lane.b32.xlu0 %v5251, 124
  %v5293 = vpop.permute.xlu0 %5292
  %5294 = vrot.lane.b32.xlu0 %v5252, 124
  %v5295 = vpop.permute.xlu0 %5294
  %5296 = vrot.lane.b32.xlu0 %v5253, 124
  %v5297 = vpop.permute.xlu0 %5296
  %5298 = vrot.lane.b32.xlu0 %v5254, 124
  %v5299 = vpop.permute.xlu0 %5298
  %5300 = vrot.lane.b32.xlu0 %v5255, 124
  %v5301 = vpop.permute.xlu0 %5300
  %5302 = vrot.lane.b32.xlu0 %v5256, 124
  %v5303 = vpop.permute.xlu0 %5302
  %5304 = vrot.lane.b32.xlu0 %v5257, 124
  %v5305 = vpop.permute.xlu0 %5304
  %5306 = vrot.lane.b32.xlu0 %v5258, 124
  %v5307 = vpop.permute.xlu0 %5306
  %5308 = vrot.lane.b32.xlu0 %v5259, 124
  %v5309 = vpop.permute.xlu0 %5308
  %5310 = vrot.lane.b32.xlu0 %v5260, 124
  %v5311 = vpop.permute.xlu0 %5310
  %v5312 = vsel %vm293, %v5279, %v5281
  %v5313 = vsel %vm293, %v5281, %v5283
  %v5314 = vsel %vm293, %v5283, %v5285
  %v5315 = vsel %vm293, %v5285, %v5287
  %v5316 = vsel %vm293, %v5287, %v5289
  %v5317 = vsel %vm293, %v5289, %v5291
  %v5318 = vsel %vm293, %v5291, %v5293
  %v5319 = vsel %vm293, %v5293, %v5295
  %v5320 = vsel %vm293, %v5295, %v5297
  %v5321 = vsel %vm293, %v5297, %v5299
  %v5322 = vsel %vm293, %v5299, %v5301
  %v5323 = vsel %vm293, %v5301, %v5303
  %v5324 = vsel %vm293, %v5303, %v5305
  %v5325 = vsel %vm293, %v5305, %v5307
  %v5326 = vsel %vm293, %v5307, %v5309
  %v5327 = vsel %vm293, %v5309, %v5311
  %5344 = vst [vmem:[#allocation2 + $0x580] sm:$0x3f] %v5312
  %5345 = vst [vmem:[#allocation2 + $0x588] sm:$0x3f] %v5313
  %5346 = vst [vmem:[#allocation2 + $0x590] sm:$0x3f] %v5314
  %5347 = vst [vmem:[#allocation2 + $0x598] sm:$0x3f] %v5315
  %5348 = vst [vmem:[#allocation2 + $0x5a0] sm:$0x3f] %v5316
  %5349 = vst [vmem:[#allocation2 + $0x5a8] sm:$0x3f] %v5317
  %5350 = vst [vmem:[#allocation2 + $0x5b0] sm:$0x3f] %v5318
  %5351 = vst [vmem:[#allocation2 + $0x5b8] sm:$0x3f] %v5319
  %5352 = vst [vmem:[#allocation2 + $0x5c0] sm:$0x3f] %v5320
  %5353 = vst [vmem:[#allocation2 + $0x5c8] sm:$0x3f] %v5321
  %5354 = vst [vmem:[#allocation2 + $0x5d0] sm:$0x3f] %v5322
  %5355 = vst [vmem:[#allocation2 + $0x5d8] sm:$0x3f] %v5323
  %5356 = vst [vmem:[#allocation2 + $0x5e0] sm:$0x3f] %v5324
  %5357 = vst [vmem:[#allocation2 + $0x5e8] sm:$0x3f] %v5325
  %5358 = vst [vmem:[#allocation2 + $0x5f0] sm:$0x3f] %v5326
  %5359 = vst [vmem:[#allocation2 + $0x5f8] sm:$0x3f] %v5327
  %v5360 = vld [vmem:[#allocation4 + $0x10] sm:$0x3f]
  %v5361 = vld [vmem:[#allocation4 + $0x18] sm:$0x3f]
  %v5362 = vld [vmem:[#allocation4 + $0x20] sm:$0x3f]
  %v5363 = vld [vmem:[#allocation4 + $0x28] sm:$0x3f]
  %v5364 = vld [vmem:[#allocation4 + $0x30] sm:$0x3f]
  %v5365 = vld [vmem:[#allocation4 + $0x38] sm:$0x3f]
  %v5366 = vld [vmem:[#allocation4 + $0x40] sm:$0x3f]
  %v5367 = vld [vmem:[#allocation4 + $0x48] sm:$0x3f]
  %v5368 = vld [vmem:[#allocation4 + $0x50] sm:$0x3f]
  %v5369 = vld [vmem:[#allocation4 + $0x58] sm:$0x3f]
  %v5370 = vld [vmem:[#allocation4 + $0x60] sm:$0x3f]
  %v5371 = vld [vmem:[#allocation4 + $0x68] sm:$0x3f]
  %v5372 = vld [vmem:[#allocation4 + $0x70] sm:$0x3f]
  %v5373 = vld [vmem:[#allocation4 + $0x78] sm:$0x3f]
  %v5374 = vld [vmem:[#allocation4 + $0x80] sm:$0x3f]
  %v5375 = vld [vmem:[#allocation4 + $0x88] sm:$0x3f]
  %v5376 = vld [vmem:[#allocation4 + $0x90] sm:$0x3f]
  %5394 = vrot.lane.b32.xlu0 %v5360, 120
  %v5395 = vpop.permute.xlu0 %5394
  %5396 = vrot.lane.b32.xlu0 %v5361, 120
  %v5397 = vpop.permute.xlu0 %5396
  %5398 = vrot.lane.b32.xlu0 %v5362, 120
  %v5399 = vpop.permute.xlu0 %5398
  %5400 = vrot.lane.b32.xlu0 %v5363, 120
  %v5401 = vpop.permute.xlu0 %5400
  %5402 = vrot.lane.b32.xlu0 %v5364, 120
  %v5403 = vpop.permute.xlu0 %5402
  %5404 = vrot.lane.b32.xlu0 %v5365, 120
  %v5405 = vpop.permute.xlu0 %5404
  %5406 = vrot.lane.b32.xlu0 %v5366, 120
  %v5407 = vpop.permute.xlu0 %5406
  %5408 = vrot.lane.b32.xlu0 %v5367, 120
  %v5409 = vpop.permute.xlu0 %5408
  %5410 = vrot.lane.b32.xlu0 %v5368, 120
  %v5411 = vpop.permute.xlu0 %5410
  %5412 = vrot.lane.b32.xlu0 %v5369, 120
  %v5413 = vpop.permute.xlu0 %5412
  %5414 = vrot.lane.b32.xlu0 %v5370, 120
  %v5415 = vpop.permute.xlu0 %5414
  %5416 = vrot.lane.b32.xlu0 %v5371, 120
  %v5417 = vpop.permute.xlu0 %5416
  %5418 = vrot.lane.b32.xlu0 %v5372, 120
  %v5419 = vpop.permute.xlu0 %5418
  %5420 = vrot.lane.b32.xlu0 %v5373, 120
  %v5421 = vpop.permute.xlu0 %5420
  %5422 = vrot.lane.b32.xlu0 %v5374, 120
  %v5423 = vpop.permute.xlu0 %5422
  %5424 = vrot.lane.b32.xlu0 %v5375, 120
  %v5425 = vpop.permute.xlu0 %5424
  %5426 = vrot.lane.b32.xlu0 %v5376, 120
  %v5427 = vpop.permute.xlu0 %5426
  %v5428 = vsel %vm543, %v5395, %v5397
  %v5429 = vsel %vm543, %v5397, %v5399
  %v5430 = vsel %vm543, %v5399, %v5401
  %v5431 = vsel %vm543, %v5401, %v5403
  %v5432 = vsel %vm543, %v5403, %v5405
  %v5433 = vsel %vm543, %v5405, %v5407
  %v5434 = vsel %vm543, %v5407, %v5409
  %v5435 = vsel %vm543, %v5409, %v5411
  %v5436 = vsel %vm543, %v5411, %v5413
  %v5437 = vsel %vm543, %v5413, %v5415
  %v5438 = vsel %vm543, %v5415, %v5417
  %v5439 = vsel %vm543, %v5417, %v5419
  %v5440 = vsel %vm543, %v5419, %v5421
  %v5441 = vsel %vm543, %v5421, %v5423
  %v5442 = vsel %vm543, %v5423, %v5425
  %v5443 = vsel %vm543, %v5425, %v5427
  %5460 = vst [vmem:[#allocation2 + $0x600] sm:$0x3f] %v5428
  %5461 = vst [vmem:[#allocation2 + $0x608] sm:$0x3f] %v5429
  %5462 = vst [vmem:[#allocation2 + $0x610] sm:$0x3f] %v5430
  %5463 = vst [vmem:[#allocation2 + $0x618] sm:$0x3f] %v5431
  %5464 = vst [vmem:[#allocation2 + $0x620] sm:$0x3f] %v5432
  %5465 = vst [vmem:[#allocation2 + $0x628] sm:$0x3f] %v5433
  %5466 = vst [vmem:[#allocation2 + $0x630] sm:$0x3f] %v5434
  %5467 = vst [vmem:[#allocation2 + $0x638] sm:$0x3f] %v5435
  %5468 = vst [vmem:[#allocation2 + $0x640] sm:$0x3f] %v5436
  %5469 = vst [vmem:[#allocation2 + $0x648] sm:$0x3f] %v5437
  %5470 = vst [vmem:[#allocation2 + $0x650] sm:$0x3f] %v5438
  %5471 = vst [vmem:[#allocation2 + $0x658] sm:$0x3f] %v5439
  %5472 = vst [vmem:[#allocation2 + $0x660] sm:$0x3f] %v5440
  %5473 = vst [vmem:[#allocation2 + $0x668] sm:$0x3f] %v5441
  %5474 = vst [vmem:[#allocation2 + $0x670] sm:$0x3f] %v5442
  %5475 = vst [vmem:[#allocation2 + $0x678] sm:$0x3f] %v5443
  %v5476 = vld [vmem:[#allocation4 + $0x10] sm:$0x3f]
  %v5477 = vld [vmem:[#allocation4 + $0x18] sm:$0x3f]
  %v5478 = vld [vmem:[#allocation4 + $0x20] sm:$0x3f]
  %v5479 = vld [vmem:[#allocation4 + $0x28] sm:$0x3f]
  %v5480 = vld [vmem:[#allocation4 + $0x30] sm:$0x3f]
  %v5481 = vld [vmem:[#allocation4 + $0x38] sm:$0x3f]
  %v5482 = vld [vmem:[#allocation4 + $0x40] sm:$0x3f]
  %v5483 = vld [vmem:[#allocation4 + $0x48] sm:$0x3f]
  %v5484 = vld [vmem:[#allocation4 + $0x50] sm:$0x3f]
  %v5485 = vld [vmem:[#allocation4 + $0x58] sm:$0x3f]
  %v5486 = vld [vmem:[#allocation4 + $0x60] sm:$0x3f]
  %v5487 = vld [vmem:[#allocation4 + $0x68] sm:$0x3f]
  %v5488 = vld [vmem:[#allocation4 + $0x70] sm:$0x3f]
  %v5489 = vld [vmem:[#allocation4 + $0x78] sm:$0x3f]
  %v5490 = vld [vmem:[#allocation4 + $0x80] sm:$0x3f]
  %v5491 = vld [vmem:[#allocation4 + $0x88] sm:$0x3f]
  %v5492 = vld [vmem:[#allocation4 + $0x90] sm:$0x3f]
  %5510 = vrot.lane.b32.xlu0 %v5476, 116
  %v5511 = vpop.permute.xlu0 %5510
  %5512 = vrot.lane.b32.xlu0 %v5477, 116
  %v5513 = vpop.permute.xlu0 %5512
  %5514 = vrot.lane.b32.xlu0 %v5478, 116
  %v5515 = vpop.permute.xlu0 %5514
  %5516 = vrot.lane.b32.xlu0 %v5479, 116
  %v5517 = vpop.permute.xlu0 %5516
  %5518 = vrot.lane.b32.xlu0 %v5480, 116
  %v5519 = vpop.permute.xlu0 %5518
  %5520 = vrot.lane.b32.xlu0 %v5481, 116
  %v5521 = vpop.permute.xlu0 %5520
  %5522 = vrot.lane.b32.xlu0 %v5482, 116
  %v5523 = vpop.permute.xlu0 %5522
  %5524 = vrot.lane.b32.xlu0 %v5483, 116
  %v5525 = vpop.permute.xlu0 %5524
  %5526 = vrot.lane.b32.xlu0 %v5484, 116
  %v5527 = vpop.permute.xlu0 %5526
  %5528 = vrot.lane.b32.xlu0 %v5485, 116
  %v5529 = vpop.permute.xlu0 %5528
  %5530 = vrot.lane.b32.xlu0 %v5486, 116
  %v5531 = vpop.permute.xlu0 %5530
  %5532 = vrot.lane.b32.xlu0 %v5487, 116
  %v5533 = vpop.permute.xlu0 %5532
  %5534 = vrot.lane.b32.xlu0 %v5488, 116
  %v5535 = vpop.permute.xlu0 %5534
  %5536 = vrot.lane.b32.xlu0 %v5489, 116
  %v5537 = vpop.permute.xlu0 %5536
  %5538 = vrot.lane.b32.xlu0 %v5490, 116
  %v5539 = vpop.permute.xlu0 %5538
  %5540 = vrot.lane.b32.xlu0 %v5491, 116
  %v5541 = vpop.permute.xlu0 %5540
  %5542 = vrot.lane.b32.xlu0 %v5492, 116
  %v5543 = vpop.permute.xlu0 %5542
  %v5544 = vsel %vm4550, %v5511, %v5513
  %v5545 = vsel %vm4550, %v5513, %v5515
  %v5546 = vsel %vm4550, %v5515, %v5517
  %v5547 = vsel %vm4550, %v5517, %v5519
  %v5548 = vsel %vm4550, %v5519, %v5521
  %v5549 = vsel %vm4550, %v5521, %v5523
  %v5550 = vsel %vm4550, %v5523, %v5525
  %v5551 = vsel %vm4550, %v5525, %v5527
  %v5552 = vsel %vm4550, %v5527, %v5529
  %v5553 = vsel %vm4550, %v5529, %v5531
  %v5554 = vsel %vm4550, %v5531, %v5533
  %v5555 = vsel %vm4550, %v5533, %v5535
  %v5556 = vsel %vm4550, %v5535, %v5537
  %v5557 = vsel %vm4550, %v5537, %v5539
  %v5558 = vsel %vm4550, %v5539, %v5541
  %v5559 = vsel %vm4550, %v5541, %v5543
  %5576 = vst [vmem:[#allocation2 + $0x680] sm:$0x3f] %v5544
  %5577 = vst [vmem:[#allocation2 + $0x688] sm:$0x3f] %v5545
  %5578 = vst [vmem:[#allocation2 + $0x690] sm:$0x3f] %v5546
  %5579 = vst [vmem:[#allocation2 + $0x698] sm:$0x3f] %v5547
  %5580 = vst [vmem:[#allocation2 + $0x6a0] sm:$0x3f] %v5548
  %5581 = vst [vmem:[#allocation2 + $0x6a8] sm:$0x3f] %v5549
  %5582 = vst [vmem:[#allocation2 + $0x6b0] sm:$0x3f] %v5550
  %5583 = vst [vmem:[#allocation2 + $0x6b8] sm:$0x3f] %v5551
  %5584 = vst [vmem:[#allocation2 + $0x6c0] sm:$0x3f] %v5552
  %5585 = vst [vmem:[#allocation2 + $0x6c8] sm:$0x3f] %v5553
  %5586 = vst [vmem:[#allocation2 + $0x6d0] sm:$0x3f] %v5554
  %5587 = vst [vmem:[#allocation2 + $0x6d8] sm:$0x3f] %v5555
  %5588 = vst [vmem:[#allocation2 + $0x6e0] sm:$0x3f] %v5556
  %5589 = vst [vmem:[#allocation2 + $0x6e8] sm:$0x3f] %v5557
  %5590 = vst [vmem:[#allocation2 + $0x6f0] sm:$0x3f] %v5558
  %5591 = vst [vmem:[#allocation2 + $0x6f8] sm:$0x3f] %v5559
  %v5592 = vld [vmem:[#allocation4 + $0x10] sm:$0x3f]
  %v5593 = vld [vmem:[#allocation4 + $0x18] sm:$0x3f]
  %v5594 = vld [vmem:[#allocation4 + $0x20] sm:$0x3f]
  %v5595 = vld [vmem:[#allocation4 + $0x28] sm:$0x3f]
  %v5596 = vld [vmem:[#allocation4 + $0x30] sm:$0x3f]
  %v5597 = vld [vmem:[#allocation4 + $0x38] sm:$0x3f]
  %v5598 = vld [vmem:[#allocation4 + $0x40] sm:$0x3f]
  %v5599 = vld [vmem:[#allocation4 + $0x48] sm:$0x3f]
  %v5600 = vld [vmem:[#allocation4 + $0x50] sm:$0x3f]
  %v5601 = vld [vmem:[#allocation4 + $0x58] sm:$0x3f]
  %v5602 = vld [vmem:[#allocation4 + $0x60] sm:$0x3f]
  %v5603 = vld [vmem:[#allocation4 + $0x68] sm:$0x3f]
  %v5604 = vld [vmem:[#allocation4 + $0x70] sm:$0x3f]
  %v5605 = vld [vmem:[#allocation4 + $0x78] sm:$0x3f]
  %v5606 = vld [vmem:[#allocation4 + $0x80] sm:$0x3f]
  %v5607 = vld [vmem:[#allocation4 + $0x88] sm:$0x3f]
  %v5608 = vld [vmem:[#allocation4 + $0x90] sm:$0x3f]
  %5626 = vrot.lane.b32.xlu0 %v5592, 112
  %v5627 = vpop.permute.xlu0 %5626
  %5628 = vrot.lane.b32.xlu0 %v5593, 112
  %v5629 = vpop.permute.xlu0 %5628
  %5630 = vrot.lane.b32.xlu0 %v5594, 112
  %v5631 = vpop.permute.xlu0 %5630
  %5632 = vrot.lane.b32.xlu0 %v5595, 112
  %v5633 = vpop.permute.xlu0 %5632
  %5634 = vrot.lane.b32.xlu0 %v5596, 112
  %v5635 = vpop.permute.xlu0 %5634
  %5636 = vrot.lane.b32.xlu0 %v5597, 112
  %v5637 = vpop.permute.xlu0 %5636
  %5638 = vrot.lane.b32.xlu0 %v5598, 112
  %v5639 = vpop.permute.xlu0 %5638
  %5640 = vrot.lane.b32.xlu0 %v5599, 112
  %v5641 = vpop.permute.xlu0 %5640
  %5642 = vrot.lane.b32.xlu0 %v5600, 112
  %v5643 = vpop.permute.xlu0 %5642
  %5644 = vrot.lane.b32.xlu0 %v5601, 112
  %v5645 = vpop.permute.xlu0 %5644
  %5646 = vrot.lane.b32.xlu0 %v5602, 112
  %v5647 = vpop.permute.xlu0 %5646
  %5648 = vrot.lane.b32.xlu0 %v5603, 112
  %v5649 = vpop.permute.xlu0 %5648
  %5650 = vrot.lane.b32.xlu0 %v5604, 112
  %v5651 = vpop.permute.xlu0 %5650
  %5652 = vrot.lane.b32.xlu0 %v5605, 112
  %v5653 = vpop.permute.xlu0 %5652
  %5654 = vrot.lane.b32.xlu0 %v5606, 112
  %v5655 = vpop.permute.xlu0 %5654
  %5656 = vrot.lane.b32.xlu0 %v5607, 112
  %v5657 = vpop.permute.xlu0 %5656
  %5658 = vrot.lane.b32.xlu0 %v5608, 112
  %v5659 = vpop.permute.xlu0 %5658
  %v5660 = vsel %vm4667, %v5627, %v5629
  %v5661 = vsel %vm4667, %v5629, %v5631
  %v5662 = vsel %vm4667, %v5631, %v5633
  %v5663 = vsel %vm4667, %v5633, %v5635
  %v5664 = vsel %vm4667, %v5635, %v5637
  %v5665 = vsel %vm4667, %v5637, %v5639
  %v5666 = vsel %vm4667, %v5639, %v5641
  %v5667 = vsel %vm4667, %v5641, %v5643
  %v5668 = vsel %vm4667, %v5643, %v5645
  %v5669 = vsel %vm4667, %v5645, %v5647
  %v5670 = vsel %vm4667, %v5647, %v5649
  %v5671 = vsel %vm4667, %v5649, %v5651
  %v5672 = vsel %vm4667, %v5651, %v5653
  %v5673 = vsel %vm4667, %v5653, %v5655
  %v5674 = vsel %vm4667, %v5655, %v5657
  %v5675 = vsel %vm4667, %v5657, %v5659
  %5692 = vst [vmem:[#allocation2 + $0x700] sm:$0x3f] %v5660
  %5693 = vst [vmem:[#allocation2 + $0x708] sm:$0x3f] %v5661
  %5694 = vst [vmem:[#allocation2 + $0x710] sm:$0x3f] %v5662
  %5695 = vst [vmem:[#allocation2 + $0x718] sm:$0x3f] %v5663
  %5696 = vst [vmem:[#allocation2 + $0x720] sm:$0x3f] %v5664
  %5697 = vst [vmem:[#allocation2 + $0x728] sm:$0x3f] %v5665
  %5698 = vst [vmem:[#allocation2 + $0x730] sm:$0x3f] %v5666
  %5699 = vst [vmem:[#allocation2 + $0x738] sm:$0x3f] %v5667
  %5700 = vst [vmem:[#allocation2 + $0x740] sm:$0x3f] %v5668
  %5701 = vst [vmem:[#allocation2 + $0x748] sm:$0x3f] %v5669
  %5702 = vst [vmem:[#allocation2 + $0x750] sm:$0x3f] %v5670
  %5703 = vst [vmem:[#allocation2 + $0x758] sm:$0x3f] %v5671
  %5704 = vst [vmem:[#allocation2 + $0x760] sm:$0x3f] %v5672
  %5705 = vst [vmem:[#allocation2 + $0x768] sm:$0x3f] %v5673
  %5706 = vst [vmem:[#allocation2 + $0x770] sm:$0x3f] %v5674
  %5707 = vst [vmem:[#allocation2 + $0x778] sm:$0x3f] %v5675
  %v5708 = vld [vmem:[#allocation4 + $0x18] sm:$0x3f]
  %v5709 = vld [vmem:[#allocation4 + $0x20] sm:$0x3f]
  %v5710 = vld [vmem:[#allocation4 + $0x28] sm:$0x3f]
  %v5711 = vld [vmem:[#allocation4 + $0x30] sm:$0x3f]
  %v5712 = vld [vmem:[#allocation4 + $0x38] sm:$0x3f]
  %v5713 = vld [vmem:[#allocation4 + $0x40] sm:$0x3f]
  %v5714 = vld [vmem:[#allocation4 + $0x48] sm:$0x3f]
  %v5715 = vld [vmem:[#allocation4 + $0x50] sm:$0x3f]
  %v5716 = vld [vmem:[#allocation4 + $0x58] sm:$0x3f]
  %v5717 = vld [vmem:[#allocation4 + $0x60] sm:$0x3f]
  %v5718 = vld [vmem:[#allocation4 + $0x68] sm:$0x3f]
  %v5719 = vld [vmem:[#allocation4 + $0x70] sm:$0x3f]
  %v5720 = vld [vmem:[#allocation4 + $0x78] sm:$0x3f]
  %v5721 = vld [vmem:[#allocation4 + $0x80] sm:$0x3f]
  %v5722 = vld [vmem:[#allocation4 + $0x88] sm:$0x3f]
  %v5723 = vld [vmem:[#allocation4 + $0x90] sm:$0x3f]
  %5724 = vst [vmem:[#allocation2 + $0x780] sm:$0x3f] %v5708
  %5725 = vst [vmem:[#allocation2 + $0x788] sm:$0x3f] %v5709
  %5726 = vst [vmem:[#allocation2 + $0x790] sm:$0x3f] %v5710
  %5727 = vst [vmem:[#allocation2 + $0x798] sm:$0x3f] %v5711
  %5728 = vst [vmem:[#allocation2 + $0x7a0] sm:$0x3f] %v5712
  %5729 = vst [vmem:[#allocation2 + $0x7a8] sm:$0x3f] %v5713
  %5730 = vst [vmem:[#allocation2 + $0x7b0] sm:$0x3f] %v5714
  %5731 = vst [vmem:[#allocation2 + $0x7b8] sm:$0x3f] %v5715
  %5732 = vst [vmem:[#allocation2 + $0x7c0] sm:$0x3f] %v5716
  %5733 = vst [vmem:[#allocation2 + $0x7c8] sm:$0x3f] %v5717
  %5734 = vst [vmem:[#allocation2 + $0x7d0] sm:$0x3f] %v5718
  %5735 = vst [vmem:[#allocation2 + $0x7d8] sm:$0x3f] %v5719
  %5736 = vst [vmem:[#allocation2 + $0x7e0] sm:$0x3f] %v5720
  %5737 = vst [vmem:[#allocation2 + $0x7e8] sm:$0x3f] %v5721
  %5738 = vst [vmem:[#allocation2 + $0x7f0] sm:$0x3f] %v5722
  %5739 = vst [vmem:[#allocation2 + $0x7f8] sm:$0x3f] %v5723
  %v5740 = vld [vmem:[#allocation4 + $0x18] sm:$0x3f]
  %v5741 = vld [vmem:[#allocation4 + $0x20] sm:$0x3f]
  %v5742 = vld [vmem:[#allocation4 + $0x28] sm:$0x3f]
  %v5743 = vld [vmem:[#allocation4 + $0x30] sm:$0x3f]
  %v5744 = vld [vmem:[#allocation4 + $0x38] sm:$0x3f]
  %v5745 = vld [vmem:[#allocation4 + $0x40] sm:$0x3f]
  %v5746 = vld [vmem:[#allocation4 + $0x48] sm:$0x3f]
  %v5747 = vld [vmem:[#allocation4 + $0x50] sm:$0x3f]
  %v5748 = vld [vmem:[#allocation4 + $0x58] sm:$0x3f]
  %v5749 = vld [vmem:[#allocation4 + $0x60] sm:$0x3f]
  %v5750 = vld [vmem:[#allocation4 + $0x68] sm:$0x3f]
  %v5751 = vld [vmem:[#allocation4 + $0x70] sm:$0x3f]
  %v5752 = vld [vmem:[#allocation4 + $0x78] sm:$0x3f]
  %v5753 = vld [vmem:[#allocation4 + $0x80] sm:$0x3f]
  %v5754 = vld [vmem:[#allocation4 + $0x88] sm:$0x3f]
  %v5755 = vld [vmem:[#allocation4 + $0x90] sm:$0x3f]
  %v5756 = vld [vmem:[#allocation4 + $0x98] sm:$0x3f]
  %5774 = vrot.lane.b32.xlu0 %v5740, 124
  %v5775 = vpop.permute.xlu0 %5774
  %5776 = vrot.lane.b32.xlu0 %v5741, 124
  %v5777 = vpop.permute.xlu0 %5776
  %5778 = vrot.lane.b32.xlu0 %v5742, 124
  %v5779 = vpop.permute.xlu0 %5778
  %5780 = vrot.lane.b32.xlu0 %v5743, 124
  %v5781 = vpop.permute.xlu0 %5780
  %5782 = vrot.lane.b32.xlu0 %v5744, 124
  %v5783 = vpop.permute.xlu0 %5782
  %5784 = vrot.lane.b32.xlu0 %v5745, 124
  %v5785 = vpop.permute.xlu0 %5784
  %5786 = vrot.lane.b32.xlu0 %v5746, 124
  %v5787 = vpop.permute.xlu0 %5786
  %5788 = vrot.lane.b32.xlu0 %v5747, 124
  %v5789 = vpop.permute.xlu0 %5788
  %5790 = vrot.lane.b32.xlu0 %v5748, 124
  %v5791 = vpop.permute.xlu0 %5790
  %5792 = vrot.lane.b32.xlu0 %v5749, 124
  %v5793 = vpop.permute.xlu0 %5792
  %5794 = vrot.lane.b32.xlu0 %v5750, 124
  %v5795 = vpop.permute.xlu0 %5794
  %5796 = vrot.lane.b32.xlu0 %v5751, 124
  %v5797 = vpop.permute.xlu0 %5796
  %5798 = vrot.lane.b32.xlu0 %v5752, 124
  %v5799 = vpop.permute.xlu0 %5798
  %5800 = vrot.lane.b32.xlu0 %v5753, 124
  %v5801 = vpop.permute.xlu0 %5800
  %5802 = vrot.lane.b32.xlu0 %v5754, 124
  %v5803 = vpop.permute.xlu0 %5802
  %5804 = vrot.lane.b32.xlu0 %v5755, 124
  %v5805 = vpop.permute.xlu0 %5804
  %5806 = vrot.lane.b32.xlu0 %v5756, 124
  %v5807 = vpop.permute.xlu0 %5806
  %v5808 = vsel %vm293, %v5775, %v5777
  %v5809 = vsel %vm293, %v5777, %v5779
  %v5810 = vsel %vm293, %v5779, %v5781
  %v5811 = vsel %vm293, %v5781, %v5783
  %v5812 = vsel %vm293, %v5783, %v5785
  %v5813 = vsel %vm293, %v5785, %v5787
  %v5814 = vsel %vm293, %v5787, %v5789
  %v5815 = vsel %vm293, %v5789, %v5791
  %v5816 = vsel %vm293, %v5791, %v5793
  %v5817 = vsel %vm293, %v5793, %v5795
  %v5818 = vsel %vm293, %v5795, %v5797
  %v5819 = vsel %vm293, %v5797, %v5799
  %v5820 = vsel %vm293, %v5799, %v5801
  %v5821 = vsel %vm293, %v5801, %v5803
  %v5822 = vsel %vm293, %v5803, %v5805
  %v5823 = vsel %vm293, %v5805, %v5807
  %5840 = vst [vmem:[#allocation2 + $0x800] sm:$0x3f] %v5808
  %5841 = vst [vmem:[#allocation2 + $0x808] sm:$0x3f] %v5809
  %5842 = vst [vmem:[#allocation2 + $0x810] sm:$0x3f] %v5810
  %5843 = vst [vmem:[#allocation2 + $0x818] sm:$0x3f] %v5811
  %5844 = vst [vmem:[#allocation2 + $0x820] sm:$0x3f] %v5812
  %5845 = vst [vmem:[#allocation2 + $0x828] sm:$0x3f] %v5813
  %5846 = vst [vmem:[#allocation2 + $0x830] sm:$0x3f] %v5814
  %5847 = vst [vmem:[#allocation2 + $0x838] sm:$0x3f] %v5815
  %5848 = vst [vmem:[#allocation2 + $0x840] sm:$0x3f] %v5816
  %5849 = vst [vmem:[#allocation2 + $0x848] sm:$0x3f] %v5817
  %5850 = vst [vmem:[#allocation2 + $0x850] sm:$0x3f] %v5818
  %5851 = vst [vmem:[#allocation2 + $0x858] sm:$0x3f] %v5819
  %5852 = vst [vmem:[#allocation2 + $0x860] sm:$0x3f] %v5820
  %5853 = vst [vmem:[#allocation2 + $0x868] sm:$0x3f] %v5821
  %5854 = vst [vmem:[#allocation2 + $0x870] sm:$0x3f] %v5822
  %5855 = vst [vmem:[#allocation2 + $0x878] sm:$0x3f] %v5823
  %v5856 = vld [vmem:[#allocation4 + $0x18] sm:$0x3f]
  %v5857 = vld [vmem:[#allocation4 + $0x20] sm:$0x3f]
  %v5858 = vld [vmem:[#allocation4 + $0x28] sm:$0x3f]
  %v5859 = vld [vmem:[#allocation4 + $0x30] sm:$0x3f]
  %v5860 = vld [vmem:[#allocation4 + $0x38] sm:$0x3f]
  %v5861 = vld [vmem:[#allocation4 + $0x40] sm:$0x3f]
  %v5862 = vld [vmem:[#allocation4 + $0x48] sm:$0x3f]
  %v5863 = vld [vmem:[#allocation4 + $0x50] sm:$0x3f]
  %v5864 = vld [vmem:[#allocation4 + $0x58] sm:$0x3f]
  %v5865 = vld [vmem:[#allocation4 + $0x60] sm:$0x3f]
  %v5866 = vld [vmem:[#allocation4 + $0x68] sm:$0x3f]
  %v5867 = vld [vmem:[#allocation4 + $0x70] sm:$0x3f]
  %v5868 = vld [vmem:[#allocation4 + $0x78] sm:$0x3f]
  %v5869 = vld [vmem:[#allocation4 + $0x80] sm:$0x3f]
  %v5870 = vld [vmem:[#allocation4 + $0x88] sm:$0x3f]
  %v5871 = vld [vmem:[#allocation4 + $0x90] sm:$0x3f]
  %v5872 = vld [vmem:[#allocation4 + $0x98] sm:$0x3f]
  %5890 = vrot.lane.b32.xlu0 %v5856, 120
  %v5891 = vpop.permute.xlu0 %5890
  %5892 = vrot.lane.b32.xlu0 %v5857, 120
  %v5893 = vpop.permute.xlu0 %5892
  %5894 = vrot.lane.b32.xlu0 %v5858, 120
  %v5895 = vpop.permute.xlu0 %5894
  %5896 = vrot.lane.b32.xlu0 %v5859, 120
  %v5897 = vpop.permute.xlu0 %5896
  %5898 = vrot.lane.b32.xlu0 %v5860, 120
  %v5899 = vpop.permute.xlu0 %5898
  %5900 = vrot.lane.b32.xlu0 %v5861, 120
  %v5901 = vpop.permute.xlu0 %5900
  %5902 = vrot.lane.b32.xlu0 %v5862, 120
  %v5903 = vpop.permute.xlu0 %5902
  %5904 = vrot.lane.b32.xlu0 %v5863, 120
  %v5905 = vpop.permute.xlu0 %5904
  %5906 = vrot.lane.b32.xlu0 %v5864, 120
  %v5907 = vpop.permute.xlu0 %5906
  %5908 = vrot.lane.b32.xlu0 %v5865, 120
  %v5909 = vpop.permute.xlu0 %5908
  %5910 = vrot.lane.b32.xlu0 %v5866, 120
  %v5911 = vpop.permute.xlu0 %5910
  %5912 = vrot.lane.b32.xlu0 %v5867, 120
  %v5913 = vpop.permute.xlu0 %5912
  %5914 = vrot.lane.b32.xlu0 %v5868, 120
  %v5915 = vpop.permute.xlu0 %5914
  %5916 = vrot.lane.b32.xlu0 %v5869, 120
  %v5917 = vpop.permute.xlu0 %5916
  %5918 = vrot.lane.b32.xlu0 %v5870, 120
  %v5919 = vpop.permute.xlu0 %5918
  %5920 = vrot.lane.b32.xlu0 %v5871, 120
  %v5921 = vpop.permute.xlu0 %5920
  %5922 = vrot.lane.b32.xlu0 %v5872, 120
  %v5923 = vpop.permute.xlu0 %5922
  %v5924 = vsel %vm543, %v5891, %v5893
  %v5925 = vsel %vm543, %v5893, %v5895
  %v5926 = vsel %vm543, %v5895, %v5897
  %v5927 = vsel %vm543, %v5897, %v5899
  %v5928 = vsel %vm543, %v5899, %v5901
  %v5929 = vsel %vm543, %v5901, %v5903
  %v5930 = vsel %vm543, %v5903, %v5905
  %v5931 = vsel %vm543, %v5905, %v5907
  %v5932 = vsel %vm543, %v5907, %v5909
  %v5933 = vsel %vm543, %v5909, %v5911
  %v5934 = vsel %vm543, %v5911, %v5913
  %v5935 = vsel %vm543, %v5913, %v5915
  %v5936 = vsel %vm543, %v5915, %v5917
  %v5937 = vsel %vm543, %v5917, %v5919
  %v5938 = vsel %vm543, %v5919, %v5921
  %v5939 = vsel %vm543, %v5921, %v5923
  %5956 = vst [vmem:[#allocation2 + $0x880] sm:$0x3f] %v5924
  %5957 = vst [vmem:[#allocation2 + $0x888] sm:$0x3f] %v5925
  %5958 = vst [vmem:[#allocation2 + $0x890] sm:$0x3f] %v5926
  %5959 = vst [vmem:[#allocation2 + $0x898] sm:$0x3f] %v5927
  %5960 = vst [vmem:[#allocation2 + $0x8a0] sm:$0x3f] %v5928
  %5961 = vst [vmem:[#allocation2 + $0x8a8] sm:$0x3f] %v5929
  %5962 = vst [vmem:[#allocation2 + $0x8b0] sm:$0x3f] %v5930
  %5963 = vst [vmem:[#allocation2 + $0x8b8] sm:$0x3f] %v5931
  %5964 = vst [vmem:[#allocation2 + $0x8c0] sm:$0x3f] %v5932
  %5965 = vst [vmem:[#allocation2 + $0x8c8] sm:$0x3f] %v5933
  %5966 = vst [vmem:[#allocation2 + $0x8d0] sm:$0x3f] %v5934
  %5967 = vst [vmem:[#allocation2 + $0x8d8] sm:$0x3f] %v5935
  %5968 = vst [vmem:[#allocation2 + $0x8e0] sm:$0x3f] %v5936
  %5969 = vst [vmem:[#allocation2 + $0x8e8] sm:$0x3f] %v5937
  %5970 = vst [vmem:[#allocation2 + $0x8f0] sm:$0x3f] %v5938
  %5971 = vst [vmem:[#allocation2 + $0x8f8] sm:$0x3f] %v5939
  %v5972 = vld [vmem:[#allocation4 + $0x18] sm:$0x3f]
  %v5973 = vld [vmem:[#allocation4 + $0x20] sm:$0x3f]
  %v5974 = vld [vmem:[#allocation4 + $0x28] sm:$0x3f]
  %v5975 = vld [vmem:[#allocation4 + $0x30] sm:$0x3f]
  %v5976 = vld [vmem:[#allocation4 + $0x38] sm:$0x3f]
  %v5977 = vld [vmem:[#allocation4 + $0x40] sm:$0x3f]
  %v5978 = vld [vmem:[#allocation4 + $0x48] sm:$0x3f]
  %v5979 = vld [vmem:[#allocation4 + $0x50] sm:$0x3f]
  %v5980 = vld [vmem:[#allocation4 + $0x58] sm:$0x3f]
  %v5981 = vld [vmem:[#allocation4 + $0x60] sm:$0x3f]
  %v5982 = vld [vmem:[#allocation4 + $0x68] sm:$0x3f]
  %v5983 = vld [vmem:[#allocation4 + $0x70] sm:$0x3f]
  %v5984 = vld [vmem:[#allocation4 + $0x78] sm:$0x3f]
  %v5985 = vld [vmem:[#allocation4 + $0x80] sm:$0x3f]
  %v5986 = vld [vmem:[#allocation4 + $0x88] sm:$0x3f]
  %v5987 = vld [vmem:[#allocation4 + $0x90] sm:$0x3f]
  %v5988 = vld [vmem:[#allocation4 + $0x98] sm:$0x3f]
  %6006 = vrot.lane.b32.xlu0 %v5972, 116
  %v6007 = vpop.permute.xlu0 %6006
  %6008 = vrot.lane.b32.xlu0 %v5973, 116
  %v6009 = vpop.permute.xlu0 %6008
  %6010 = vrot.lane.b32.xlu0 %v5974, 116
  %v6011 = vpop.permute.xlu0 %6010
  %6012 = vrot.lane.b32.xlu0 %v5975, 116
  %v6013 = vpop.permute.xlu0 %6012
  %6014 = vrot.lane.b32.xlu0 %v5976, 116
  %v6015 = vpop.permute.xlu0 %6014
  %6016 = vrot.lane.b32.xlu0 %v5977, 116
  %v6017 = vpop.permute.xlu0 %6016
  %6018 = vrot.lane.b32.xlu0 %v5978, 116
  %v6019 = vpop.permute.xlu0 %6018
  %6020 = vrot.lane.b32.xlu0 %v5979, 116
  %v6021 = vpop.permute.xlu0 %6020
  %6022 = vrot.lane.b32.xlu0 %v5980, 116
  %v6023 = vpop.permute.xlu0 %6022
  %6024 = vrot.lane.b32.xlu0 %v5981, 116
  %v6025 = vpop.permute.xlu0 %6024
  %6026 = vrot.lane.b32.xlu0 %v5982, 116
  %v6027 = vpop.permute.xlu0 %6026
  %6028 = vrot.lane.b32.xlu0 %v5983, 116
  %v6029 = vpop.permute.xlu0 %6028
  %6030 = vrot.lane.b32.xlu0 %v5984, 116
  %v6031 = vpop.permute.xlu0 %6030
  %6032 = vrot.lane.b32.xlu0 %v5985, 116
  %v6033 = vpop.permute.xlu0 %6032
  %6034 = vrot.lane.b32.xlu0 %v5986, 116
  %v6035 = vpop.permute.xlu0 %6034
  %6036 = vrot.lane.b32.xlu0 %v5987, 116
  %v6037 = vpop.permute.xlu0 %6036
  %6038 = vrot.lane.b32.xlu0 %v5988, 116
  %v6039 = vpop.permute.xlu0 %6038
  %v6040 = vsel %vm4550, %v6007, %v6009
  %v6041 = vsel %vm4550, %v6009, %v6011
  %v6042 = vsel %vm4550, %v6011, %v6013
  %v6043 = vsel %vm4550, %v6013, %v6015
  %v6044 = vsel %vm4550, %v6015, %v6017
  %v6045 = vsel %vm4550, %v6017, %v6019
  %v6046 = vsel %vm4550, %v6019, %v6021
  %v6047 = vsel %vm4550, %v6021, %v6023
  %v6048 = vsel %vm4550, %v6023, %v6025
  %v6049 = vsel %vm4550, %v6025, %v6027
  %v6050 = vsel %vm4550, %v6027, %v6029
  %v6051 = vsel %vm4550, %v6029, %v6031
  %v6052 = vsel %vm4550, %v6031, %v6033
  %v6053 = vsel %vm4550, %v6033, %v6035
  %v6054 = vsel %vm4550, %v6035, %v6037
  %v6055 = vsel %vm4550, %v6037, %v6039
  %6072 = vst [vmem:[#allocation2 + $0x900] sm:$0x3f] %v6040
  %6073 = vst [vmem:[#allocation2 + $0x908] sm:$0x3f] %v6041
  %6074 = vst [vmem:[#allocation2 + $0x910] sm:$0x3f] %v6042
  %6075 = vst [vmem:[#allocation2 + $0x918] sm:$0x3f] %v6043
  %6076 = vst [vmem:[#allocation2 + $0x920] sm:$0x3f] %v6044
  %6077 = vst [vmem:[#allocation2 + $0x928] sm:$0x3f] %v6045
  %6078 = vst [vmem:[#allocation2 + $0x930] sm:$0x3f] %v6046
  %6079 = vst [vmem:[#allocation2 + $0x938] sm:$0x3f] %v6047
  %6080 = vst [vmem:[#allocation2 + $0x940] sm:$0x3f] %v6048
  %6081 = vst [vmem:[#allocation2 + $0x948] sm:$0x3f] %v6049
  %6082 = vst [vmem:[#allocation2 + $0x950] sm:$0x3f] %v6050
  %6083 = vst [vmem:[#allocation2 + $0x958] sm:$0x3f] %v6051
  %6084 = vst [vmem:[#allocation2 + $0x960] sm:$0x3f] %v6052
  %6085 = vst [vmem:[#allocation2 + $0x968] sm:$0x3f] %v6053
  %6086 = vst [vmem:[#allocation2 + $0x970] sm:$0x3f] %v6054
  %6087 = vst [vmem:[#allocation2 + $0x978] sm:$0x3f] %v6055
  %v6088 = vld [vmem:[#allocation4 + $0x18] sm:$0x3f]
  %v6089 = vld [vmem:[#allocation4 + $0x20] sm:$0x3f]
  %v6090 = vld [vmem:[#allocation4 + $0x28] sm:$0x3f]
  %v6091 = vld [vmem:[#allocation4 + $0x30] sm:$0x3f]
  %v6092 = vld [vmem:[#allocation4 + $0x38] sm:$0x3f]
  %v6093 = vld [vmem:[#allocation4 + $0x40] sm:$0x3f]
  %v6094 = vld [vmem:[#allocation4 + $0x48] sm:$0x3f]
  %v6095 = vld [vmem:[#allocation4 + $0x50] sm:$0x3f]
  %v6096 = vld [vmem:[#allocation4 + $0x58] sm:$0x3f]
  %v6097 = vld [vmem:[#allocation4 + $0x60] sm:$0x3f]
  %v6098 = vld [vmem:[#allocation4 + $0x68] sm:$0x3f]
  %v6099 = vld [vmem:[#allocation4 + $0x70] sm:$0x3f]
  %v6100 = vld [vmem:[#allocation4 + $0x78] sm:$0x3f]
  %v6101 = vld [vmem:[#allocation4 + $0x80] sm:$0x3f]
  %v6102 = vld [vmem:[#allocation4 + $0x88] sm:$0x3f]
  %v6103 = vld [vmem:[#allocation4 + $0x90] sm:$0x3f]
  %v6104 = vld [vmem:[#allocation4 + $0x98] sm:$0x3f]
  %6122 = vrot.lane.b32.xlu0 %v6088, 112
  %v6123 = vpop.permute.xlu0 %6122
  %6124 = vrot.lane.b32.xlu0 %v6089, 112
  %v6125 = vpop.permute.xlu0 %6124
  %6126 = vrot.lane.b32.xlu0 %v6090, 112
  %v6127 = vpop.permute.xlu0 %6126
  %6128 = vrot.lane.b32.xlu0 %v6091, 112
  %v6129 = vpop.permute.xlu0 %6128
  %6130 = vrot.lane.b32.xlu0 %v6092, 112
  %v6131 = vpop.permute.xlu0 %6130
  %6132 = vrot.lane.b32.xlu0 %v6093, 112
  %v6133 = vpop.permute.xlu0 %6132
  %6134 = vrot.lane.b32.xlu0 %v6094, 112
  %v6135 = vpop.permute.xlu0 %6134
  %6136 = vrot.lane.b32.xlu0 %v6095, 112
  %v6137 = vpop.permute.xlu0 %6136
  %6138 = vrot.lane.b32.xlu0 %v6096, 112
  %v6139 = vpop.permute.xlu0 %6138
  %6140 = vrot.lane.b32.xlu0 %v6097, 112
  %v6141 = vpop.permute.xlu0 %6140
  %6142 = vrot.lane.b32.xlu0 %v6098, 112
  %v6143 = vpop.permute.xlu0 %6142
  %6144 = vrot.lane.b32.xlu0 %v6099, 112
  %v6145 = vpop.permute.xlu0 %6144
  %6146 = vrot.lane.b32.xlu0 %v6100, 112
  %v6147 = vpop.permute.xlu0 %6146
  %6148 = vrot.lane.b32.xlu0 %v6101, 112
  %v6149 = vpop.permute.xlu0 %6148
  %6150 = vrot.lane.b32.xlu0 %v6102, 112
  %v6151 = vpop.permute.xlu0 %6150
  %6152 = vrot.lane.b32.xlu0 %v6103, 112
  %v6153 = vpop.permute.xlu0 %6152
  %6154 = vrot.lane.b32.xlu0 %v6104, 112
  %v6155 = vpop.permute.xlu0 %6154
  %v6156 = vsel %vm4667, %v6123, %v6125
  %v6157 = vsel %vm4667, %v6125, %v6127
  %v6158 = vsel %vm4667, %v6127, %v6129
  %v6159 = vsel %vm4667, %v6129, %v6131
  %v6160 = vsel %vm4667, %v6131, %v6133
  %v6161 = vsel %vm4667, %v6133, %v6135
  %v6162 = vsel %vm4667, %v6135, %v6137
  %v6163 = vsel %vm4667, %v6137, %v6139
  %v6164 = vsel %vm4667, %v6139, %v6141
  %v6165 = vsel %vm4667, %v6141, %v6143
  %v6166 = vsel %vm4667, %v6143, %v6145
  %v6167 = vsel %vm4667, %v6145, %v6147
  %v6168 = vsel %vm4667, %v6147, %v6149
  %v6169 = vsel %vm4667, %v6149, %v6151
  %v6170 = vsel %vm4667, %v6151, %v6153
  %v6171 = vsel %vm4667, %v6153, %v6155
  %6188 = vst [vmem:[#allocation2 + $0x980] sm:$0x3f] %v6156
  %6189 = vst [vmem:[#allocation2 + $0x988] sm:$0x3f] %v6157
  %6190 = vst [vmem:[#allocation2 + $0x990] sm:$0x3f] %v6158
  %6191 = vst [vmem:[#allocation2 + $0x998] sm:$0x3f] %v6159
  %6192 = vst [vmem:[#allocation2 + $0x9a0] sm:$0x3f] %v6160
  %6193 = vst [vmem:[#allocation2 + $0x9a8] sm:$0x3f] %v6161
  %6194 = vst [vmem:[#allocation2 + $0x9b0] sm:$0x3f] %v6162
  %6195 = vst [vmem:[#allocation2 + $0x9b8] sm:$0x3f] %v6163
  %6196 = vst [vmem:[#allocation2 + $0x9c0] sm:$0x3f] %v6164
  %6197 = vst [vmem:[#allocation2 + $0x9c8] sm:$0x3f] %v6165
  %6198 = vst [vmem:[#allocation2 + $0x9d0] sm:$0x3f] %v6166
  %6199 = vst [vmem:[#allocation2 + $0x9d8] sm:$0x3f] %v6167
  %6200 = vst [vmem:[#allocation2 + $0x9e0] sm:$0x3f] %v6168
  %6201 = vst [vmem:[#allocation2 + $0x9e8] sm:$0x3f] %v6169
  %6202 = vst [vmem:[#allocation2 + $0x9f0] sm:$0x3f] %v6170
  %6203 = vst [vmem:[#allocation2 + $0x9f8] sm:$0x3f] %v6171
  %v6204 = vld [vmem:[#allocation4 + $0x20] sm:$0x3f]
  %v6205 = vld [vmem:[#allocation4 + $0x28] sm:$0x3f]
  %v6206 = vld [vmem:[#allocation4 + $0x30] sm:$0x3f]
  %v6207 = vld [vmem:[#allocation4 + $0x38] sm:$0x3f]
  %v6208 = vld [vmem:[#allocation4 + $0x40] sm:$0x3f]
  %v6209 = vld [vmem:[#allocation4 + $0x48] sm:$0x3f]
  %v6210 = vld [vmem:[#allocation4 + $0x50] sm:$0x3f]
  %v6211 = vld [vmem:[#allocation4 + $0x58] sm:$0x3f]
  %v6212 = vld [vmem:[#allocation4 + $0x60] sm:$0x3f]
  %v6213 = vld [vmem:[#allocation4 + $0x68] sm:$0x3f]
  %v6214 = vld [vmem:[#allocation4 + $0x70] sm:$0x3f]
  %v6215 = vld [vmem:[#allocation4 + $0x78] sm:$0x3f]
  %v6216 = vld [vmem:[#allocation4 + $0x80] sm:$0x3f]
  %v6217 = vld [vmem:[#allocation4 + $0x88] sm:$0x3f]
  %v6218 = vld [vmem:[#allocation4 + $0x90] sm:$0x3f]
  %v6219 = vld [vmem:[#allocation4 + $0x98] sm:$0x3f]
  %6220 = vst [vmem:[#allocation2 + $0xa00] sm:$0x3f] %v6204
  %6221 = vst [vmem:[#allocation2 + $0xa08] sm:$0x3f] %v6205
  %6222 = vst [vmem:[#allocation2 + $0xa10] sm:$0x3f] %v6206
  %6223 = vst [vmem:[#allocation2 + $0xa18] sm:$0x3f] %v6207
  %6224 = vst [vmem:[#allocation2 + $0xa20] sm:$0x3f] %v6208
  %6225 = vst [vmem:[#allocation2 + $0xa28] sm:$0x3f] %v6209
  %6226 = vst [vmem:[#allocation2 + $0xa30] sm:$0x3f] %v6210
  %6227 = vst [vmem:[#allocation2 + $0xa38] sm:$0x3f] %v6211
  %6228 = vst [vmem:[#allocation2 + $0xa40] sm:$0x3f] %v6212
  %6229 = vst [vmem:[#allocation2 + $0xa48] sm:$0x3f] %v6213
  %6230 = vst [vmem:[#allocation2 + $0xa50] sm:$0x3f] %v6214
  %6231 = vst [vmem:[#allocation2 + $0xa58] sm:$0x3f] %v6215
  %6232 = vst [vmem:[#allocation2 + $0xa60] sm:$0x3f] %v6216
  %6233 = vst [vmem:[#allocation2 + $0xa68] sm:$0x3f] %v6217
  %6234 = vst [vmem:[#allocation2 + $0xa70] sm:$0x3f] %v6218
  %6235 = vst [vmem:[#allocation2 + $0xa78] sm:$0x3f] %v6219
  %v6236 = vld [vmem:[#allocation4 + $0x20] sm:$0x3f]
  %v6237 = vld [vmem:[#allocation4 + $0x28] sm:$0x3f]
  %v6238 = vld [vmem:[#allocation4 + $0x30] sm:$0x3f]
  %v6239 = vld [vmem:[#allocation4 + $0x38] sm:$0x3f]
  %v6240 = vld [vmem:[#allocation4 + $0x40] sm:$0x3f]
  %v6241 = vld [vmem:[#allocation4 + $0x48] sm:$0x3f]
  %v6242 = vld [vmem:[#allocation4 + $0x50] sm:$0x3f]
  %v6243 = vld [vmem:[#allocation4 + $0x58] sm:$0x3f]
  %v6244 = vld [vmem:[#allocation4 + $0x60] sm:$0x3f]
  %v6245 = vld [vmem:[#allocation4 + $0x68] sm:$0x3f]
  %v6246 = vld [vmem:[#allocation4 + $0x70] sm:$0x3f]
  %v6247 = vld [vmem:[#allocation4 + $0x78] sm:$0x3f]
  %v6248 = vld [vmem:[#allocation4 + $0x80] sm:$0x3f]
  %v6249 = vld [vmem:[#allocation4 + $0x88] sm:$0x3f]
  %v6250 = vld [vmem:[#allocation4 + $0x90] sm:$0x3f]
  %v6251 = vld [vmem:[#allocation4 + $0x98] sm:$0x3f]
  %v6252 = vld [vmem:[#allocation4 + $0xa0] sm:$0x3f]
  %6270 = vrot.lane.b32.xlu0 %v6236, 124
  %v6271 = vpop.permute.xlu0 %6270
  %6272 = vrot.lane.b32.xlu0 %v6237, 124
  %v6273 = vpop.permute.xlu0 %6272
  %6274 = vrot.lane.b32.xlu0 %v6238, 124
  %v6275 = vpop.permute.xlu0 %6274
  %6276 = vrot.lane.b32.xlu0 %v6239, 124
  %v6277 = vpop.permute.xlu0 %6276
  %6278 = vrot.lane.b32.xlu0 %v6240, 124
  %v6279 = vpop.permute.xlu0 %6278
  %6280 = vrot.lane.b32.xlu0 %v6241, 124
  %v6281 = vpop.permute.xlu0 %6280
  %6282 = vrot.lane.b32.xlu0 %v6242, 124
  %v6283 = vpop.permute.xlu0 %6282
  %6284 = vrot.lane.b32.xlu0 %v6243, 124
  %v6285 = vpop.permute.xlu0 %6284
  %6286 = vrot.lane.b32.xlu0 %v6244, 124
  %v6287 = vpop.permute.xlu0 %6286
  %6288 = vrot.lane.b32.xlu0 %v6245, 124
  %v6289 = vpop.permute.xlu0 %6288
  %6290 = vrot.lane.b32.xlu0 %v6246, 124
  %v6291 = vpop.permute.xlu0 %6290
  %6292 = vrot.lane.b32.xlu0 %v6247, 124
  %v6293 = vpop.permute.xlu0 %6292
  %6294 = vrot.lane.b32.xlu0 %v6248, 124
  %v6295 = vpop.permute.xlu0 %6294
  %6296 = vrot.lane.b32.xlu0 %v6249, 124
  %v6297 = vpop.permute.xlu0 %6296
  %6298 = vrot.lane.b32.xlu0 %v6250, 124
  %v6299 = vpop.permute.xlu0 %6298
  %6300 = vrot.lane.b32.xlu0 %v6251, 124
  %v6301 = vpop.permute.xlu0 %6300
  %6302 = vrot.lane.b32.xlu0 %v6252, 124
  %v6303 = vpop.permute.xlu0 %6302
  %v6304 = vsel %vm293, %v6271, %v6273
  %v6305 = vsel %vm293, %v6273, %v6275
  %v6306 = vsel %vm293, %v6275, %v6277
  %v6307 = vsel %vm293, %v6277, %v6279
  %v6308 = vsel %vm293, %v6279, %v6281
  %v6309 = vsel %vm293, %v6281, %v6283
  %v6310 = vsel %vm293, %v6283, %v6285
  %v6311 = vsel %vm293, %v6285, %v6287
  %v6312 = vsel %vm293, %v6287, %v6289
  %v6313 = vsel %vm293, %v6289, %v6291
  %v6314 = vsel %vm293, %v6291, %v6293
  %v6315 = vsel %vm293, %v6293, %v6295
  %v6316 = vsel %vm293, %v6295, %v6297
  %v6317 = vsel %vm293, %v6297, %v6299
  %v6318 = vsel %vm293, %v6299, %v6301
  %v6319 = vsel %vm293, %v6301, %v6303
  %6336 = vst [vmem:[#allocation2 + $0xa80] sm:$0x3f] %v6304
  %6337 = vst [vmem:[#allocation2 + $0xa88] sm:$0x3f] %v6305
  %6338 = vst [vmem:[#allocation2 + $0xa90] sm:$0x3f] %v6306
  %6339 = vst [vmem:[#allocation2 + $0xa98] sm:$0x3f] %v6307
  %6340 = vst [vmem:[#allocation2 + $0xaa0] sm:$0x3f] %v6308
  %6341 = vst [vmem:[#allocation2 + $0xaa8] sm:$0x3f] %v6309
  %6342 = vst [vmem:[#allocation2 + $0xab0] sm:$0x3f] %v6310
  %6343 = vst [vmem:[#allocation2 + $0xab8] sm:$0x3f] %v6311
  %6344 = vst [vmem:[#allocation2 + $0xac0] sm:$0x3f] %v6312
  %6345 = vst [vmem:[#allocation2 + $0xac8] sm:$0x3f] %v6313
  %6346 = vst [vmem:[#allocation2 + $0xad0] sm:$0x3f] %v6314
  %6347 = vst [vmem:[#allocation2 + $0xad8] sm:$0x3f] %v6315
  %6348 = vst [vmem:[#allocation2 + $0xae0] sm:$0x3f] %v6316
  %6349 = vst [vmem:[#allocation2 + $0xae8] sm:$0x3f] %v6317
  %6350 = vst [vmem:[#allocation2 + $0xaf0] sm:$0x3f] %v6318
  %6351 = vst [vmem:[#allocation2 + $0xaf8] sm:$0x3f] %v6319
  %v6352 = vld [vmem:[#allocation4 + $0x20] sm:$0x3f]
  %v6353 = vld [vmem:[#allocation4 + $0x28] sm:$0x3f]
  %v6354 = vld [vmem:[#allocation4 + $0x30] sm:$0x3f]
  %v6355 = vld [vmem:[#allocation4 + $0x38] sm:$0x3f]
  %v6356 = vld [vmem:[#allocation4 + $0x40] sm:$0x3f]
  %v6357 = vld [vmem:[#allocation4 + $0x48] sm:$0x3f]
  %v6358 = vld [vmem:[#allocation4 + $0x50] sm:$0x3f]
  %v6359 = vld [vmem:[#allocation4 + $0x58] sm:$0x3f]
  %v6360 = vld [vmem:[#allocation4 + $0x60] sm:$0x3f]
  %v6361 = vld [vmem:[#allocation4 + $0x68] sm:$0x3f]
  %v6362 = vld [vmem:[#allocation4 + $0x70] sm:$0x3f]
  %v6363 = vld [vmem:[#allocation4 + $0x78] sm:$0x3f]
  %v6364 = vld [vmem:[#allocation4 + $0x80] sm:$0x3f]
  %v6365 = vld [vmem:[#allocation4 + $0x88] sm:$0x3f]
  %v6366 = vld [vmem:[#allocation4 + $0x90] sm:$0x3f]
  %v6367 = vld [vmem:[#allocation4 + $0x98] sm:$0x3f]
  %v6368 = vld [vmem:[#allocation4 + $0xa0] sm:$0x3f]
  %6386 = vrot.lane.b32.xlu0 %v6352, 120
  %v6387 = vpop.permute.xlu0 %6386
  %6388 = vrot.lane.b32.xlu0 %v6353, 120
  %v6389 = vpop.permute.xlu0 %6388
  %6390 = vrot.lane.b32.xlu0 %v6354, 120
  %v6391 = vpop.permute.xlu0 %6390
  %6392 = vrot.lane.b32.xlu0 %v6355, 120
  %v6393 = vpop.permute.xlu0 %6392
  %6394 = vrot.lane.b32.xlu0 %v6356, 120
  %v6395 = vpop.permute.xlu0 %6394
  %6396 = vrot.lane.b32.xlu0 %v6357, 120
  %v6397 = vpop.permute.xlu0 %6396
  %6398 = vrot.lane.b32.xlu0 %v6358, 120
  %v6399 = vpop.permute.xlu0 %6398
  %6400 = vrot.lane.b32.xlu0 %v6359, 120
  %v6401 = vpop.permute.xlu0 %6400
  %6402 = vrot.lane.b32.xlu0 %v6360, 120
  %v6403 = vpop.permute.xlu0 %6402
  %6404 = vrot.lane.b32.xlu0 %v6361, 120
  %v6405 = vpop.permute.xlu0 %6404
  %6406 = vrot.lane.b32.xlu0 %v6362, 120
  %v6407 = vpop.permute.xlu0 %6406
  %6408 = vrot.lane.b32.xlu0 %v6363, 120
  %v6409 = vpop.permute.xlu0 %6408
  %6410 = vrot.lane.b32.xlu0 %v6364, 120
  %v6411 = vpop.permute.xlu0 %6410
  %6412 = vrot.lane.b32.xlu0 %v6365, 120
  %v6413 = vpop.permute.xlu0 %6412
  %6414 = vrot.lane.b32.xlu0 %v6366, 120
  %v6415 = vpop.permute.xlu0 %6414
  %6416 = vrot.lane.b32.xlu0 %v6367, 120
  %v6417 = vpop.permute.xlu0 %6416
  %6418 = vrot.lane.b32.xlu0 %v6368, 120
  %v6419 = vpop.permute.xlu0 %6418
  %v6420 = vsel %vm543, %v6387, %v6389
  %v6421 = vsel %vm543, %v6389, %v6391
  %v6422 = vsel %vm543, %v6391, %v6393
  %v6423 = vsel %vm543, %v6393, %v6395
  %v6424 = vsel %vm543, %v6395, %v6397
  %v6425 = vsel %vm543, %v6397, %v6399
  %v6426 = vsel %vm543, %v6399, %v6401
  %v6427 = vsel %vm543, %v6401, %v6403
  %v6428 = vsel %vm543, %v6403, %v6405
  %v6429 = vsel %vm543, %v6405, %v6407
  %v6430 = vsel %vm543, %v6407, %v6409
  %v6431 = vsel %vm543, %v6409, %v6411
  %v6432 = vsel %vm543, %v6411, %v6413
  %v6433 = vsel %vm543, %v6413, %v6415
  %v6434 = vsel %vm543, %v6415, %v6417
  %v6435 = vsel %vm543, %v6417, %v6419
  %6452 = vst [vmem:[#allocation2 + $0xb00] sm:$0x3f] %v6420
  %6453 = vst [vmem:[#allocation2 + $0xb08] sm:$0x3f] %v6421
  %6454 = vst [vmem:[#allocation2 + $0xb10] sm:$0x3f] %v6422
  %6455 = vst [vmem:[#allocation2 + $0xb18] sm:$0x3f] %v6423
  %6456 = vst [vmem:[#allocation2 + $0xb20] sm:$0x3f] %v6424
  %6457 = vst [vmem:[#allocation2 + $0xb28] sm:$0x3f] %v6425
  %6458 = vst [vmem:[#allocation2 + $0xb30] sm:$0x3f] %v6426
  %6459 = vst [vmem:[#allocation2 + $0xb38] sm:$0x3f] %v6427
  %6460 = vst [vmem:[#allocation2 + $0xb40] sm:$0x3f] %v6428
  %6461 = vst [vmem:[#allocation2 + $0xb48] sm:$0x3f] %v6429
  %6462 = vst [vmem:[#allocation2 + $0xb50] sm:$0x3f] %v6430
  %6463 = vst [vmem:[#allocation2 + $0xb58] sm:$0x3f] %v6431
  %6464 = vst [vmem:[#allocation2 + $0xb60] sm:$0x3f] %v6432
  %6465 = vst [vmem:[#allocation2 + $0xb68] sm:$0x3f] %v6433
  %6466 = vst [vmem:[#allocation2 + $0xb70] sm:$0x3f] %v6434
  %6467 = vst [vmem:[#allocation2 + $0xb78] sm:$0x3f] %v6435
  %v6468 = vld [vmem:[#allocation4 + $0x20] sm:$0x3f]
  %v6469 = vld [vmem:[#allocation4 + $0x28] sm:$0x3f]
  %v6470 = vld [vmem:[#allocation4 + $0x30] sm:$0x3f]
  %v6471 = vld [vmem:[#allocation4 + $0x38] sm:$0x3f]
  %v6472 = vld [vmem:[#allocation4 + $0x40] sm:$0x3f]
  %v6473 = vld [vmem:[#allocation4 + $0x48] sm:$0x3f]
  %v6474 = vld [vmem:[#allocation4 + $0x50] sm:$0x3f]
  %v6475 = vld [vmem:[#allocation4 + $0x58] sm:$0x3f]
  %v6476 = vld [vmem:[#allocation4 + $0x60] sm:$0x3f]
  %v6477 = vld [vmem:[#allocation4 + $0x68] sm:$0x3f]
  %v6478 = vld [vmem:[#allocation4 + $0x70] sm:$0x3f]
  %v6479 = vld [vmem:[#allocation4 + $0x78] sm:$0x3f]
  %v6480 = vld [vmem:[#allocation4 + $0x80] sm:$0x3f]
  %v6481 = vld [vmem:[#allocation4 + $0x88] sm:$0x3f]
  %v6482 = vld [vmem:[#allocation4 + $0x90] sm:$0x3f]
  %v6483 = vld [vmem:[#allocation4 + $0x98] sm:$0x3f]
  %v6484 = vld [vmem:[#allocation4 + $0xa0] sm:$0x3f]
  %6502 = vrot.lane.b32.xlu0 %v6468, 116
  %v6503 = vpop.permute.xlu0 %6502
  %6504 = vrot.lane.b32.xlu0 %v6469, 116
  %v6505 = vpop.permute.xlu0 %6504
  %6506 = vrot.lane.b32.xlu0 %v6470, 116
  %v6507 = vpop.permute.xlu0 %6506
  %6508 = vrot.lane.b32.xlu0 %v6471, 116
  %v6509 = vpop.permute.xlu0 %6508
  %6510 = vrot.lane.b32.xlu0 %v6472, 116
  %v6511 = vpop.permute.xlu0 %6510
  %6512 = vrot.lane.b32.xlu0 %v6473, 116
  %v6513 = vpop.permute.xlu0 %6512
  %6514 = vrot.lane.b32.xlu0 %v6474, 116
  %v6515 = vpop.permute.xlu0 %6514
  %6516 = vrot.lane.b32.xlu0 %v6475, 116
  %v6517 = vpop.permute.xlu0 %6516
  %6518 = vrot.lane.b32.xlu0 %v6476, 116
  %v6519 = vpop.permute.xlu0 %6518
  %6520 = vrot.lane.b32.xlu0 %v6477, 116
  %v6521 = vpop.permute.xlu0 %6520
  %6522 = vrot.lane.b32.xlu0 %v6478, 116
  %v6523 = vpop.permute.xlu0 %6522
  %6524 = vrot.lane.b32.xlu0 %v6479, 116
  %v6525 = vpop.permute.xlu0 %6524
  %6526 = vrot.lane.b32.xlu0 %v6480, 116
  %v6527 = vpop.permute.xlu0 %6526
  %6528 = vrot.lane.b32.xlu0 %v6481, 116
  %v6529 = vpop.permute.xlu0 %6528
  %6530 = vrot.lane.b32.xlu0 %v6482, 116
  %v6531 = vpop.permute.xlu0 %6530
  %6532 = vrot.lane.b32.xlu0 %v6483, 116
  %v6533 = vpop.permute.xlu0 %6532
  %6534 = vrot.lane.b32.xlu0 %v6484, 116
  %v6535 = vpop.permute.xlu0 %6534
  %v6536 = vsel %vm4550, %v6503, %v6505
  %v6537 = vsel %vm4550, %v6505, %v6507
  %v6538 = vsel %vm4550, %v6507, %v6509
  %v6539 = vsel %vm4550, %v6509, %v6511
  %v6540 = vsel %vm4550, %v6511, %v6513
  %v6541 = vsel %vm4550, %v6513, %v6515
  %v6542 = vsel %vm4550, %v6515, %v6517
  %v6543 = vsel %vm4550, %v6517, %v6519
  %v6544 = vsel %vm4550, %v6519, %v6521
  %v6545 = vsel %vm4550, %v6521, %v6523
  %v6546 = vsel %vm4550, %v6523, %v6525
  %v6547 = vsel %vm4550, %v6525, %v6527
  %v6548 = vsel %vm4550, %v6527, %v6529
  %v6549 = vsel %vm4550, %v6529, %v6531
  %v6550 = vsel %vm4550, %v6531, %v6533
  %v6551 = vsel %vm4550, %v6533, %v6535
  %6568 = vst [vmem:[#allocation2 + $0xb80] sm:$0x3f] %v6536
  %6569 = vst [vmem:[#allocation2 + $0xb88] sm:$0x3f] %v6537
  %6570 = vst [vmem:[#allocation2 + $0xb90] sm:$0x3f] %v6538
  %6571 = vst [vmem:[#allocation2 + $0xb98] sm:$0x3f] %v6539
  %6572 = vst [vmem:[#allocation2 + $0xba0] sm:$0x3f] %v6540
  %6573 = vst [vmem:[#allocation2 + $0xba8] sm:$0x3f] %v6541
  %6574 = vst [vmem:[#allocation2 + $0xbb0] sm:$0x3f] %v6542
  %6575 = vst [vmem:[#allocation2 + $0xbb8] sm:$0x3f] %v6543
  %6576 = vst [vmem:[#allocation2 + $0xbc0] sm:$0x3f] %v6544
  %6577 = vst [vmem:[#allocation2 + $0xbc8] sm:$0x3f] %v6545
  %6578 = vst [vmem:[#allocation2 + $0xbd0] sm:$0x3f] %v6546
  %6579 = vst [vmem:[#allocation2 + $0xbd8] sm:$0x3f] %v6547
  %6580 = vst [vmem:[#allocation2 + $0xbe0] sm:$0x3f] %v6548
  %6581 = vst [vmem:[#allocation2 + $0xbe8] sm:$0x3f] %v6549
  %6582 = vst [vmem:[#allocation2 + $0xbf0] sm:$0x3f] %v6550
  %6583 = vst [vmem:[#allocation2 + $0xbf8] sm:$0x3f] %v6551
  %v6584 = vld [vmem:[#allocation4 + $0x20] sm:$0x3f]
  %v6585 = vld [vmem:[#allocation4 + $0x28] sm:$0x3f]
  %v6586 = vld [vmem:[#allocation4 + $0x30] sm:$0x3f]
  %v6587 = vld [vmem:[#allocation4 + $0x38] sm:$0x3f]
  %v6588 = vld [vmem:[#allocation4 + $0x40] sm:$0x3f]
  %v6589 = vld [vmem:[#allocation4 + $0x48] sm:$0x3f]
  %v6590 = vld [vmem:[#allocation4 + $0x50] sm:$0x3f]
  %v6591 = vld [vmem:[#allocation4 + $0x58] sm:$0x3f]
  %v6592 = vld [vmem:[#allocation4 + $0x60] sm:$0x3f]
  %v6593 = vld [vmem:[#allocation4 + $0x68] sm:$0x3f]
  %v6594 = vld [vmem:[#allocation4 + $0x70] sm:$0x3f]
  %v6595 = vld [vmem:[#allocation4 + $0x78] sm:$0x3f]
  %v6596 = vld [vmem:[#allocation4 + $0x80] sm:$0x3f]
  %v6597 = vld [vmem:[#allocation4 + $0x88] sm:$0x3f]
  %v6598 = vld [vmem:[#allocation4 + $0x90] sm:$0x3f]
  %v6599 = vld [vmem:[#allocation4 + $0x98] sm:$0x3f]
  %v6600 = vld [vmem:[#allocation4 + $0xa0] sm:$0x3f]
  %6618 = vrot.lane.b32.xlu0 %v6584, 112
  %v6619 = vpop.permute.xlu0 %6618
  %6620 = vrot.lane.b32.xlu0 %v6585, 112
  %v6621 = vpop.permute.xlu0 %6620
  %6622 = vrot.lane.b32.xlu0 %v6586, 112
  %v6623 = vpop.permute.xlu0 %6622
  %6624 = vrot.lane.b32.xlu0 %v6587, 112
  %v6625 = vpop.permute.xlu0 %6624
  %6626 = vrot.lane.b32.xlu0 %v6588, 112
  %v6627 = vpop.permute.xlu0 %6626
  %6628 = vrot.lane.b32.xlu0 %v6589, 112
  %v6629 = vpop.permute.xlu0 %6628
  %6630 = vrot.lane.b32.xlu0 %v6590, 112
  %v6631 = vpop.permute.xlu0 %6630
  %6632 = vrot.lane.b32.xlu0 %v6591, 112
  %v6633 = vpop.permute.xlu0 %6632
  %6634 = vrot.lane.b32.xlu0 %v6592, 112
  %v6635 = vpop.permute.xlu0 %6634
  %6636 = vrot.lane.b32.xlu0 %v6593, 112
  %v6637 = vpop.permute.xlu0 %6636
  %6638 = vrot.lane.b32.xlu0 %v6594, 112
  %v6639 = vpop.permute.xlu0 %6638
  %6640 = vrot.lane.b32.xlu0 %v6595, 112
  %v6641 = vpop.permute.xlu0 %6640
  %6642 = vrot.lane.b32.xlu0 %v6596, 112
  %v6643 = vpop.permute.xlu0 %6642
  %6644 = vrot.lane.b32.xlu0 %v6597, 112
  %v6645 = vpop.permute.xlu0 %6644
  %6646 = vrot.lane.b32.xlu0 %v6598, 112
  %v6647 = vpop.permute.xlu0 %6646
  %6648 = vrot.lane.b32.xlu0 %v6599, 112
  %v6649 = vpop.permute.xlu0 %6648
  %6650 = vrot.lane.b32.xlu0 %v6600, 112
  %v6651 = vpop.permute.xlu0 %6650
  %v6652 = vsel %vm4667, %v6619, %v6621
  %v6653 = vsel %vm4667, %v6621, %v6623
  %v6654 = vsel %vm4667, %v6623, %v6625
  %v6655 = vsel %vm4667, %v6625, %v6627
  %v6656 = vsel %vm4667, %v6627, %v6629
  %v6657 = vsel %vm4667, %v6629, %v6631
  %v6658 = vsel %vm4667, %v6631, %v6633
  %v6659 = vsel %vm4667, %v6633, %v6635
  %v6660 = vsel %vm4667, %v6635, %v6637
  %v6661 = vsel %vm4667, %v6637, %v6639
  %v6662 = vsel %vm4667, %v6639, %v6641
  %v6663 = vsel %vm4667, %v6641, %v6643
  %v6664 = vsel %vm4667, %v6643, %v6645
  %v6665 = vsel %vm4667, %v6645, %v6647
  %v6666 = vsel %vm4667, %v6647, %v6649
  %v6667 = vsel %vm4667, %v6649, %v6651
  %6684 = vst [vmem:[#allocation2 + $0xc00] sm:$0x3f] %v6652
  %6685 = vst [vmem:[#allocation2 + $0xc08] sm:$0x3f] %v6653
  %6686 = vst [vmem:[#allocation2 + $0xc10] sm:$0x3f] %v6654
  %6687 = vst [vmem:[#allocation2 + $0xc18] sm:$0x3f] %v6655
  %6688 = vst [vmem:[#allocation2 + $0xc20] sm:$0x3f] %v6656
  %6689 = vst [vmem:[#allocation2 + $0xc28] sm:$0x3f] %v6657
  %6690 = vst [vmem:[#allocation2 + $0xc30] sm:$0x3f] %v6658
  %6691 = vst [vmem:[#allocation2 + $0xc38] sm:$0x3f] %v6659
  %6692 = vst [vmem:[#allocation2 + $0xc40] sm:$0x3f] %v6660
  %6693 = vst [vmem:[#allocation2 + $0xc48] sm:$0x3f] %v6661
  %6694 = vst [vmem:[#allocation2 + $0xc50] sm:$0x3f] %v6662
  %6695 = vst [vmem:[#allocation2 + $0xc58] sm:$0x3f] %v6663
  %6696 = vst [vmem:[#allocation2 + $0xc60] sm:$0x3f] %v6664
  %6697 = vst [vmem:[#allocation2 + $0xc68] sm:$0x3f] %v6665
  %6698 = vst [vmem:[#allocation2 + $0xc70] sm:$0x3f] %v6666
  %6699 = vst [vmem:[#allocation2 + $0xc78] sm:$0x3f] %v6667
  %v6700 = vld [vmem:[%s3] sm:$0xff]
  %v6701 = vld [vmem:[%s3 + $0x8] sm:$0xff]
  %v6702 = vld [vmem:[%s3 + $0x10] sm:$0xff]
  %v6703 = vld [vmem:[%s3 + $0x18] sm:$0xff]
  %v6704 = vld [vmem:[#allocation2] sm:$0xff]
  %v6705 = vld [vmem:[#allocation2 + $0x8] sm:$0xff]
  %v6706 = vld [vmem:[#allocation2 + $0x10] sm:$0xff]
  %v6707 = vld [vmem:[#allocation2 + $0x18] sm:$0xff]
  %v6708 = vld [vmem:[#allocation2 + $0x20] sm:$0xff]
  %v6709 = vld [vmem:[#allocation2 + $0x28] sm:$0xff]
  %v6710 = vld [vmem:[#allocation2 + $0x30] sm:$0xff]
  %v6711 = vld [vmem:[#allocation2 + $0x38] sm:$0xff]
  %v6712 = vld [vmem:[#allocation2 + $0x40] sm:$0xff]
  %v6713 = vld [vmem:[#allocation2 + $0x48] sm:$0xff]
  %v6714 = vld [vmem:[#allocation2 + $0x50] sm:$0xff]
  %v6715 = vld [vmem:[#allocation2 + $0x58] sm:$0xff]
  %v6716 = vld [vmem:[#allocation2 + $0x60] sm:$0xff]
  %v6717 = vld [vmem:[#allocation2 + $0x68] sm:$0xff]
  %v6718 = vld [vmem:[#allocation2 + $0x70] sm:$0xff]
  %v6719 = vld [vmem:[#allocation2 + $0x78] sm:$0xff]
  %v6720 = vld [vmem:[#allocation2 + $0x80] sm:$0xff]
  %v6721 = vld [vmem:[#allocation2 + $0x88] sm:$0xff]
  %v6722 = vld [vmem:[#allocation2 + $0x90] sm:$0xff]
  %v6723 = vld [vmem:[#allocation2 + $0x98] sm:$0xff]
  %v6724 = vld [vmem:[#allocation2 + $0xa0] sm:$0xff]
  %v6725 = vld [vmem:[#allocation2 + $0xa8] sm:$0xff]
  %v6726 = vld [vmem:[#allocation2 + $0xb0] sm:$0xff]
  %v6727 = vld [vmem:[#allocation2 + $0xb8] sm:$0xff]
  %v6728 = vld [vmem:[#allocation2 + $0xc0] sm:$0xff]
  %v6729 = vld [vmem:[#allocation2 + $0xc8] sm:$0xff]
  %v6730 = vld [vmem:[#allocation2 + $0xd0] sm:$0xff]
  %v6731 = vld [vmem:[#allocation2 + $0xd8] sm:$0xff]
  %v6732 = vld [vmem:[#allocation2 + $0xe0] sm:$0xff]
  %v6733 = vld [vmem:[#allocation2 + $0xe8] sm:$0xff]
  %v6734 = vld [vmem:[#allocation2 + $0xf0] sm:$0xff]
  %v6735 = vld [vmem:[#allocation2 + $0xf8] sm:$0xff]
  %v6736 = vld [vmem:[#allocation2 + $0x100] sm:$0xff]
  %v6737 = vld [vmem:[#allocation2 + $0x108] sm:$0xff]
  %v6738 = vld [vmem:[#allocation2 + $0x110] sm:$0xff]
  %v6739 = vld [vmem:[#allocation2 + $0x118] sm:$0xff]
  %v6740 = vld [vmem:[#allocation2 + $0x120] sm:$0xff]
  %v6741 = vld [vmem:[#allocation2 + $0x128] sm:$0xff]
  %v6742 = vld [vmem:[#allocation2 + $0x130] sm:$0xff]
  %v6743 = vld [vmem:[#allocation2 + $0x138] sm:$0xff]
  %v6744 = vld [vmem:[#allocation2 + $0x140] sm:$0xff]
  %v6745 = vld [vmem:[#allocation2 + $0x148] sm:$0xff]
  %v6746 = vld [vmem:[#allocation2 + $0x150] sm:$0xff]
  %v6747 = vld [vmem:[#allocation2 + $0x158] sm:$0xff]
  %v6748 = vld [vmem:[#allocation2 + $0x160] sm:$0xff]
  %v6749 = vld [vmem:[#allocation2 + $0x168] sm:$0xff]
  %v6750 = vld [vmem:[#allocation2 + $0x170] sm:$0xff]
  %v6751 = vld [vmem:[#allocation2 + $0x178] sm:$0xff]
  %v6752 = vld [vmem:[#allocation2 + $0x180] sm:$0xff]
  %v6753 = vld [vmem:[#allocation2 + $0x188] sm:$0xff]
  %v6754 = vld [vmem:[#allocation2 + $0x190] sm:$0xff]
  %v6755 = vld [vmem:[#allocation2 + $0x198] sm:$0xff]
  %v6756 = vld [vmem:[#allocation2 + $0x1a0] sm:$0xff]
  %v6757 = vld [vmem:[#allocation2 + $0x1a8] sm:$0xff]
  %v6758 = vld [vmem:[#allocation2 + $0x1b0] sm:$0xff]
  %v6759 = vld [vmem:[#allocation2 + $0x1b8] sm:$0xff]
  %v6760 = vld [vmem:[#allocation2 + $0x1c0] sm:$0xff]
  %v6761 = vld [vmem:[#allocation2 + $0x1c8] sm:$0xff]
  %v6762 = vld [vmem:[#allocation2 + $0x1d0] sm:$0xff]
  %v6763 = vld [vmem:[#allocation2 + $0x1d8] sm:$0xff]
  %v6764 = vld [vmem:[#allocation2 + $0x1e0] sm:$0xff]
  %v6765 = vld [vmem:[#allocation2 + $0x1e8] sm:$0xff]
  %v6766 = vld [vmem:[#allocation2 + $0x1f0] sm:$0xff]
  %v6767 = vld [vmem:[#allocation2 + $0x1f8] sm:$0xff]
  %v6768 = vld [vmem:[#allocation2 + $0x200] sm:$0xff]
  %v6769 = vld [vmem:[#allocation2 + $0x208] sm:$0xff]
  %v6770 = vld [vmem:[#allocation2 + $0x210] sm:$0xff]
  %v6771 = vld [vmem:[#allocation2 + $0x218] sm:$0xff]
  %v6772 = vld [vmem:[#allocation2 + $0x220] sm:$0xff]
  %v6773 = vld [vmem:[#allocation2 + $0x228] sm:$0xff]
  %v6774 = vld [vmem:[#allocation2 + $0x230] sm:$0xff]
  %v6775 = vld [vmem:[#allocation2 + $0x238] sm:$0xff]
  %v6776 = vld [vmem:[#allocation2 + $0x240] sm:$0xff]
  %v6777 = vld [vmem:[#allocation2 + $0x248] sm:$0xff]
  %v6778 = vld [vmem:[#allocation2 + $0x250] sm:$0xff]
  %v6779 = vld [vmem:[#allocation2 + $0x258] sm:$0xff]
  %v6780 = vld [vmem:[#allocation2 + $0x260] sm:$0xff]
  %v6781 = vld [vmem:[#allocation2 + $0x268] sm:$0xff]
  %v6782 = vld [vmem:[#allocation2 + $0x270] sm:$0xff]
  %v6783 = vld [vmem:[#allocation2 + $0x278] sm:$0xff]
  %v6784 = vld [vmem:[#allocation2 + $0x280] sm:$0xff]
  %v6785 = vld [vmem:[#allocation2 + $0x288] sm:$0xff]
  %v6786 = vld [vmem:[#allocation2 + $0x290] sm:$0xff]
  %v6787 = vld [vmem:[#allocation2 + $0x298] sm:$0xff]
  %v6788 = vld [vmem:[#allocation2 + $0x2a0] sm:$0xff]
  %v6789 = vld [vmem:[#allocation2 + $0x2a8] sm:$0xff]
  %v6790 = vld [vmem:[#allocation2 + $0x2b0] sm:$0xff]
  %v6791 = vld [vmem:[#allocation2 + $0x2b8] sm:$0xff]
  %v6792 = vld [vmem:[#allocation2 + $0x2c0] sm:$0xff]
  %v6793 = vld [vmem:[#allocation2 + $0x2c8] sm:$0xff]
  %v6794 = vld [vmem:[#allocation2 + $0x2d0] sm:$0xff]
  %v6795 = vld [vmem:[#allocation2 + $0x2d8] sm:$0xff]
  %v6796 = vld [vmem:[#allocation2 + $0x2e0] sm:$0xff]
  %v6797 = vld [vmem:[#allocation2 + $0x2e8] sm:$0xff]
  %v6798 = vld [vmem:[#allocation2 + $0x2f0] sm:$0xff]
  %v6799 = vld [vmem:[#allocation2 + $0x2f8] sm:$0xff]
  %v6800 = vld [vmem:[#allocation2 + $0x300] sm:$0xff]
  %v6801 = vld [vmem:[#allocation2 + $0x308] sm:$0xff]
  %v6802 = vld [vmem:[#allocation2 + $0x310] sm:$0xff]
  %v6803 = vld [vmem:[#allocation2 + $0x318] sm:$0xff]
  %v6804 = vld [vmem:[#allocation2 + $0x320] sm:$0xff]
  %v6805 = vld [vmem:[#allocation2 + $0x328] sm:$0xff]
  %v6806 = vld [vmem:[#allocation2 + $0x330] sm:$0xff]
  %v6807 = vld [vmem:[#allocation2 + $0x338] sm:$0xff]
  %v6808 = vld [vmem:[#allocation2 + $0x340] sm:$0xff]
  %v6809 = vld [vmem:[#allocation2 + $0x348] sm:$0xff]
  %v6810 = vld [vmem:[#allocation2 + $0x350] sm:$0xff]
  %v6811 = vld [vmem:[#allocation2 + $0x358] sm:$0xff]
  %v6812 = vld [vmem:[#allocation2 + $0x360] sm:$0xff]
  %v6813 = vld [vmem:[#allocation2 + $0x368] sm:$0xff]
  %v6814 = vld [vmem:[#allocation2 + $0x370] sm:$0xff]
  %v6815 = vld [vmem:[#allocation2 + $0x378] sm:$0xff]
  %v6816 = vld [vmem:[#allocation2 + $0x380] sm:$0xff]
  %v6817 = vld [vmem:[#allocation2 + $0x388] sm:$0xff]
  %v6818 = vld [vmem:[#allocation2 + $0x390] sm:$0xff]
  %v6819 = vld [vmem:[#allocation2 + $0x398] sm:$0xff]
  %v6820 = vld [vmem:[#allocation2 + $0x3a0] sm:$0xff]
  %v6821 = vld [vmem:[#allocation2 + $0x3a8] sm:$0xff]
  %v6822 = vld [vmem:[#allocation2 + $0x3b0] sm:$0xff]
  %v6823 = vld [vmem:[#allocation2 + $0x3b8] sm:$0xff]
  %v6824 = vld [vmem:[#allocation2 + $0x3c0] sm:$0xff]
  %v6825 = vld [vmem:[#allocation2 + $0x3c8] sm:$0xff]
  %v6826 = vld [vmem:[#allocation2 + $0x3d0] sm:$0xff]
  %v6827 = vld [vmem:[#allocation2 + $0x3d8] sm:$0xff]
  %v6828 = vld [vmem:[#allocation2 + $0x3e0] sm:$0xff]
  %v6829 = vld [vmem:[#allocation2 + $0x3e8] sm:$0xff]
  %v6830 = vld [vmem:[#allocation2 + $0x3f0] sm:$0xff]
  %v6831 = vld [vmem:[#allocation2 + $0x3f8] sm:$0xff]
  %v6832 = vld [vmem:[#allocation2 + $0x400] sm:$0xff]
  %v6833 = vld [vmem:[#allocation2 + $0x408] sm:$0xff]
  %v6834 = vld [vmem:[#allocation2 + $0x410] sm:$0xff]
  %v6835 = vld [vmem:[#allocation2 + $0x418] sm:$0xff]
  %v6836 = vld [vmem:[#allocation2 + $0x420] sm:$0xff]
  %v6837 = vld [vmem:[#allocation2 + $0x428] sm:$0xff]
  %v6838 = vld [vmem:[#allocation2 + $0x430] sm:$0xff]
  %v6839 = vld [vmem:[#allocation2 + $0x438] sm:$0xff]
  %v6840 = vld [vmem:[#allocation2 + $0x440] sm:$0xff]
  %v6841 = vld [vmem:[#allocation2 + $0x448] sm:$0xff]
  %v6842 = vld [vmem:[#allocation2 + $0x450] sm:$0xff]
  %v6843 = vld [vmem:[#allocation2 + $0x458] sm:$0xff]
  %v6844 = vld [vmem:[#allocation2 + $0x460] sm:$0xff]
  %v6845 = vld [vmem:[#allocation2 + $0x468] sm:$0xff]
  %v6846 = vld [vmem:[#allocation2 + $0x470] sm:$0xff]
  %v6847 = vld [vmem:[#allocation2 + $0x478] sm:$0xff]
  %v6848 = vld [vmem:[#allocation2 + $0x480] sm:$0xff]
  %v6849 = vld [vmem:[#allocation2 + $0x488] sm:$0xff]
  %v6850 = vld [vmem:[#allocation2 + $0x490] sm:$0xff]
  %v6851 = vld [vmem:[#allocation2 + $0x498] sm:$0xff]
  %v6852 = vld [vmem:[#allocation2 + $0x4a0] sm:$0xff]
  %v6853 = vld [vmem:[#allocation2 + $0x4a8] sm:$0xff]
  %v6854 = vld [vmem:[#allocation2 + $0x4b0] sm:$0xff]
  %v6855 = vld [vmem:[#allocation2 + $0x4b8] sm:$0xff]
  %v6856 = vld [vmem:[#allocation2 + $0x4c0] sm:$0xff]
  %v6857 = vld [vmem:[#allocation2 + $0x4c8] sm:$0xff]
  %v6858 = vld [vmem:[#allocation2 + $0x4d0] sm:$0xff]
  %v6859 = vld [vmem:[#allocation2 + $0x4d8] sm:$0xff]
  %v6860 = vld [vmem:[#allocation2 + $0x4e0] sm:$0xff]
  %v6861 = vld [vmem:[#allocation2 + $0x4e8] sm:$0xff]
  %v6862 = vld [vmem:[#allocation2 + $0x4f0] sm:$0xff]
  %v6863 = vld [vmem:[#allocation2 + $0x4f8] sm:$0xff]
  %v6864 = vld [vmem:[#allocation2 + $0x500] sm:$0xff]
  %v6865 = vld [vmem:[#allocation2 + $0x508] sm:$0xff]
  %v6866 = vld [vmem:[#allocation2 + $0x510] sm:$0xff]
  %v6867 = vld [vmem:[#allocation2 + $0x518] sm:$0xff]
  %v6868 = vld [vmem:[#allocation2 + $0x520] sm:$0xff]
  %v6869 = vld [vmem:[#allocation2 + $0x528] sm:$0xff]
  %v6870 = vld [vmem:[#allocation2 + $0x530] sm:$0xff]
  %v6871 = vld [vmem:[#allocation2 + $0x538] sm:$0xff]
  %v6872 = vld [vmem:[#allocation2 + $0x540] sm:$0xff]
  %v6873 = vld [vmem:[#allocation2 + $0x548] sm:$0xff]
  %v6874 = vld [vmem:[#allocation2 + $0x550] sm:$0xff]
  %v6875 = vld [vmem:[#allocation2 + $0x558] sm:$0xff]
  %v6876 = vld [vmem:[#allocation2 + $0x560] sm:$0xff]
  %v6877 = vld [vmem:[#allocation2 + $0x568] sm:$0xff]
  %v6878 = vld [vmem:[#allocation2 + $0x570] sm:$0xff]
  %v6879 = vld [vmem:[#allocation2 + $0x578] sm:$0xff]
  %v6880 = vld [vmem:[#allocation2 + $0x580] sm:$0xff]
  %v6881 = vld [vmem:[#allocation2 + $0x588] sm:$0xff]
  %v6882 = vld [vmem:[#allocation2 + $0x590] sm:$0xff]
  %v6883 = vld [vmem:[#allocation2 + $0x598] sm:$0xff]
  %v6884 = vld [vmem:[#allocation2 + $0x5a0] sm:$0xff]
  %v6885 = vld [vmem:[#allocation2 + $0x5a8] sm:$0xff]
  %v6886 = vld [vmem:[#allocation2 + $0x5b0] sm:$0xff]
  %v6887 = vld [vmem:[#allocation2 + $0x5b8] sm:$0xff]
  %v6888 = vld [vmem:[#allocation2 + $0x5c0] sm:$0xff]
  %v6889 = vld [vmem:[#allocation2 + $0x5c8] sm:$0xff]
  %v6890 = vld [vmem:[#allocation2 + $0x5d0] sm:$0xff]
  %v6891 = vld [vmem:[#allocation2 + $0x5d8] sm:$0xff]
  %v6892 = vld [vmem:[#allocation2 + $0x5e0] sm:$0xff]
  %v6893 = vld [vmem:[#allocation2 + $0x5e8] sm:$0xff]
  %v6894 = vld [vmem:[#allocation2 + $0x5f0] sm:$0xff]
  %v6895 = vld [vmem:[#allocation2 + $0x5f8] sm:$0xff]
  %v6896 = vld [vmem:[#allocation2 + $0x600] sm:$0xff]
  %v6897 = vld [vmem:[#allocation2 + $0x608] sm:$0xff]
  %v6898 = vld [vmem:[#allocation2 + $0x610] sm:$0xff]
  %v6899 = vld [vmem:[#allocation2 + $0x618] sm:$0xff]
  %v6900 = vld [vmem:[#allocation2 + $0x620] sm:$0xff]
  %v6901 = vld [vmem:[#allocation2 + $0x628] sm:$0xff]
  %v6902 = vld [vmem:[#allocation2 + $0x630] sm:$0xff]
  %v6903 = vld [vmem:[#allocation2 + $0x638] sm:$0xff]
  %v6904 = vld [vmem:[#allocation2 + $0x640] sm:$0xff]
  %v6905 = vld [vmem:[#allocation2 + $0x648] sm:$0xff]
  %v6906 = vld [vmem:[#allocation2 + $0x650] sm:$0xff]
  %v6907 = vld [vmem:[#allocation2 + $0x658] sm:$0xff]
  %v6908 = vld [vmem:[#allocation2 + $0x660] sm:$0xff]
  %v6909 = vld [vmem:[#allocation2 + $0x668] sm:$0xff]
  %v6910 = vld [vmem:[#allocation2 + $0x670] sm:$0xff]
  %v6911 = vld [vmem:[#allocation2 + $0x678] sm:$0xff]
  %v6912 = vld [vmem:[#allocation2 + $0x680] sm:$0xff]
  %v6913 = vld [vmem:[#allocation2 + $0x688] sm:$0xff]
  %v6914 = vld [vmem:[#allocation2 + $0x690] sm:$0xff]
  %v6915 = vld [vmem:[#allocation2 + $0x698] sm:$0xff]
  %v6916 = vld [vmem:[#allocation2 + $0x6a0] sm:$0xff]
  %v6917 = vld [vmem:[#allocation2 + $0x6a8] sm:$0xff]
  %v6918 = vld [vmem:[#allocation2 + $0x6b0] sm:$0xff]
  %v6919 = vld [vmem:[#allocation2 + $0x6b8] sm:$0xff]
  %v6920 = vld [vmem:[#allocation2 + $0x6c0] sm:$0xff]
  %v6921 = vld [vmem:[#allocation2 + $0x6c8] sm:$0xff]
  %v6922 = vld [vmem:[#allocation2 + $0x6d0] sm:$0xff]
  %v6923 = vld [vmem:[#allocation2 + $0x6d8] sm:$0xff]
  %v6924 = vld [vmem:[#allocation2 + $0x6e0] sm:$0xff]
  %v6925 = vld [vmem:[#allocation2 + $0x6e8] sm:$0xff]
  %v6926 = vld [vmem:[#allocation2 + $0x6f0] sm:$0xff]
  %v6927 = vld [vmem:[#allocation2 + $0x6f8] sm:$0xff]
  %v6928 = vld [vmem:[#allocation2 + $0x700] sm:$0xff]
  %v6929 = vld [vmem:[#allocation2 + $0x708] sm:$0xff]
  %v6930 = vld [vmem:[#allocation2 + $0x710] sm:$0xff]
  %v6931 = vld [vmem:[#allocation2 + $0x718] sm:$0xff]
  %v6932 = vld [vmem:[#allocation2 + $0x720] sm:$0xff]
  %v6933 = vld [vmem:[#allocation2 + $0x728] sm:$0xff]
  %v6934 = vld [vmem:[#allocation2 + $0x730] sm:$0xff]
  %v6935 = vld [vmem:[#allocation2 + $0x738] sm:$0xff]
  %v6936 = vld [vmem:[#allocation2 + $0x740] sm:$0xff]
  %v6937 = vld [vmem:[#allocation2 + $0x748] sm:$0xff]
  %v6938 = vld [vmem:[#allocation2 + $0x750] sm:$0xff]
  %v6939 = vld [vmem:[#allocation2 + $0x758] sm:$0xff]
  %v6940 = vld [vmem:[#allocation2 + $0x760] sm:$0xff]
  %v6941 = vld [vmem:[#allocation2 + $0x768] sm:$0xff]
  %v6942 = vld [vmem:[#allocation2 + $0x770] sm:$0xff]
  %v6943 = vld [vmem:[#allocation2 + $0x778] sm:$0xff]
  %v6944 = vld [vmem:[#allocation2 + $0x780] sm:$0xff]
  %v6945 = vld [vmem:[#allocation2 + $0x788] sm:$0xff]
  %v6946 = vld [vmem:[#allocation2 + $0x790] sm:$0xff]
  %v6947 = vld [vmem:[#allocation2 + $0x798] sm:$0xff]
  %v6948 = vld [vmem:[#allocation2 + $0x7a0] sm:$0xff]
  %v6949 = vld [vmem:[#allocation2 + $0x7a8] sm:$0xff]
  %v6950 = vld [vmem:[#allocation2 + $0x7b0] sm:$0xff]
  %v6951 = vld [vmem:[#allocation2 + $0x7b8] sm:$0xff]
  %v6952 = vld [vmem:[#allocation2 + $0x7c0] sm:$0xff]
  %v6953 = vld [vmem:[#allocation2 + $0x7c8] sm:$0xff]
  %v6954 = vld [vmem:[#allocation2 + $0x7d0] sm:$0xff]
  %v6955 = vld [vmem:[#allocation2 + $0x7d8] sm:$0xff]
  %v6956 = vld [vmem:[#allocation2 + $0x7e0] sm:$0xff]
  %v6957 = vld [vmem:[#allocation2 + $0x7e8] sm:$0xff]
  %v6958 = vld [vmem:[#allocation2 + $0x7f0] sm:$0xff]
  %v6959 = vld [vmem:[#allocation2 + $0x7f8] sm:$0xff]
  %v6960 = vld [vmem:[#allocation2 + $0x800] sm:$0xff]
  %v6961 = vld [vmem:[#allocation2 + $0x808] sm:$0xff]
  %v6962 = vld [vmem:[#allocation2 + $0x810] sm:$0xff]
  %v6963 = vld [vmem:[#allocation2 + $0x818] sm:$0xff]
  %v6964 = vld [vmem:[#allocation2 + $0x820] sm:$0xff]
  %v6965 = vld [vmem:[#allocation2 + $0x828] sm:$0xff]
  %v6966 = vld [vmem:[#allocation2 + $0x830] sm:$0xff]
  %v6967 = vld [vmem:[#allocation2 + $0x838] sm:$0xff]
  %v6968 = vld [vmem:[#allocation2 + $0x840] sm:$0xff]
  %v6969 = vld [vmem:[#allocation2 + $0x848] sm:$0xff]
  %v6970 = vld [vmem:[#allocation2 + $0x850] sm:$0xff]
  %v6971 = vld [vmem:[#allocation2 + $0x858] sm:$0xff]
  %v6972 = vld [vmem:[#allocation2 + $0x860] sm:$0xff]
  %v6973 = vld [vmem:[#allocation2 + $0x868] sm:$0xff]
  %v6974 = vld [vmem:[#allocation2 + $0x870] sm:$0xff]
  %v6975 = vld [vmem:[#allocation2 + $0x878] sm:$0xff]
  %v6976 = vld [vmem:[#allocation2 + $0x880] sm:$0xff]
  %v6977 = vld [vmem:[#allocation2 + $0x888] sm:$0xff]
  %v6978 = vld [vmem:[#allocation2 + $0x890] sm:$0xff]
  %v6979 = vld [vmem:[#allocation2 + $0x898] sm:$0xff]
  %v6980 = vld [vmem:[#allocation2 + $0x8a0] sm:$0xff]
  %v6981 = vld [vmem:[#allocation2 + $0x8a8] sm:$0xff]
  %v6982 = vld [vmem:[#allocation2 + $0x8b0] sm:$0xff]
  %v6983 = vld [vmem:[#allocation2 + $0x8b8] sm:$0xff]
  %v6984 = vld [vmem:[#allocation2 + $0x8c0] sm:$0xff]
  %v6985 = vld [vmem:[#allocation2 + $0x8c8] sm:$0xff]
  %v6986 = vld [vmem:[#allocation2 + $0x8d0] sm:$0xff]
  %v6987 = vld [vmem:[#allocation2 + $0x8d8] sm:$0xff]
  %v6988 = vld [vmem:[#allocation2 + $0x8e0] sm:$0xff]
  %v6989 = vld [vmem:[#allocation2 + $0x8e8] sm:$0xff]
  %v6990 = vld [vmem:[#allocation2 + $0x8f0] sm:$0xff]
  %v6991 = vld [vmem:[#allocation2 + $0x8f8] sm:$0xff]
  %v6992 = vld [vmem:[#allocation2 + $0x900] sm:$0xff]
  %v6993 = vld [vmem:[#allocation2 + $0x908] sm:$0xff]
  %v6994 = vld [vmem:[#allocation2 + $0x910] sm:$0xff]
  %v6995 = vld [vmem:[#allocation2 + $0x918] sm:$0xff]
  %v6996 = vld [vmem:[#allocation2 + $0x920] sm:$0xff]
  %v6997 = vld [vmem:[#allocation2 + $0x928] sm:$0xff]
  %v6998 = vld [vmem:[#allocation2 + $0x930] sm:$0xff]
  %v6999 = vld [vmem:[#allocation2 + $0x938] sm:$0xff]
  %v7000 = vld [vmem:[#allocation2 + $0x940] sm:$0xff]
  %v7001 = vld [vmem:[#allocation2 + $0x948] sm:$0xff]
  %v7002 = vld [vmem:[#allocation2 + $0x950] sm:$0xff]
  %v7003 = vld [vmem:[#allocation2 + $0x958] sm:$0xff]
  %v7004 = vld [vmem:[#allocation2 + $0x960] sm:$0xff]
  %v7005 = vld [vmem:[#allocation2 + $0x968] sm:$0xff]
  %v7006 = vld [vmem:[#allocation2 + $0x970] sm:$0xff]
  %v7007 = vld [vmem:[#allocation2 + $0x978] sm:$0xff]
  %v7008 = vld [vmem:[#allocation2 + $0x980] sm:$0xff]
  %v7009 = vld [vmem:[#allocation2 + $0x988] sm:$0xff]
  %v7010 = vld [vmem:[#allocation2 + $0x990] sm:$0xff]
  %v7011 = vld [vmem:[#allocation2 + $0x998] sm:$0xff]
  %v7012 = vld [vmem:[#allocation2 + $0x9a0] sm:$0xff]
  %v7013 = vld [vmem:[#allocation2 + $0x9a8] sm:$0xff]
  %v7014 = vld [vmem:[#allocation2 + $0x9b0] sm:$0xff]
  %v7015 = vld [vmem:[#allocation2 + $0x9b8] sm:$0xff]
  %v7016 = vld [vmem:[#allocation2 + $0x9c0] sm:$0xff]
  %v7017 = vld [vmem:[#allocation2 + $0x9c8] sm:$0xff]
  %v7018 = vld [vmem:[#allocation2 + $0x9d0] sm:$0xff]
  %v7019 = vld [vmem:[#allocation2 + $0x9d8] sm:$0xff]
  %v7020 = vld [vmem:[#allocation2 + $0x9e0] sm:$0xff]
  %v7021 = vld [vmem:[#allocation2 + $0x9e8] sm:$0xff]
  %v7022 = vld [vmem:[#allocation2 + $0x9f0] sm:$0xff]
  %v7023 = vld [vmem:[#allocation2 + $0x9f8] sm:$0xff]
  %v7024 = vld [vmem:[#allocation2 + $0xa00] sm:$0xff]
  %v7025 = vld [vmem:[#allocation2 + $0xa08] sm:$0xff]
  %v7026 = vld [vmem:[#allocation2 + $0xa10] sm:$0xff]
  %v7027 = vld [vmem:[#allocation2 + $0xa18] sm:$0xff]
  %v7028 = vld [vmem:[#allocation2 + $0xa20] sm:$0xff]
  %v7029 = vld [vmem:[#allocation2 + $0xa28] sm:$0xff]
  %v7030 = vld [vmem:[#allocation2 + $0xa30] sm:$0xff]
  %v7031 = vld [vmem:[#allocation2 + $0xa38] sm:$0xff]
  %v7032 = vld [vmem:[#allocation2 + $0xa40] sm:$0xff]
  %v7033 = vld [vmem:[#allocation2 + $0xa48] sm:$0xff]
  %v7034 = vld [vmem:[#allocation2 + $0xa50] sm:$0xff]
  %v7035 = vld [vmem:[#allocation2 + $0xa58] sm:$0xff]
  %v7036 = vld [vmem:[#allocation2 + $0xa60] sm:$0xff]
  %v7037 = vld [vmem:[#allocation2 + $0xa68] sm:$0xff]
  %v7038 = vld [vmem:[#allocation2 + $0xa70] sm:$0xff]
  %v7039 = vld [vmem:[#allocation2 + $0xa78] sm:$0xff]
  %v7040 = vld [vmem:[#allocation2 + $0xa80] sm:$0xff]
  %v7041 = vld [vmem:[#allocation2 + $0xa88] sm:$0xff]
  %v7042 = vld [vmem:[#allocation2 + $0xa90] sm:$0xff]
  %v7043 = vld [vmem:[#allocation2 + $0xa98] sm:$0xff]
  %v7044 = vld [vmem:[#allocation2 + $0xaa0] sm:$0xff]
  %v7045 = vld [vmem:[#allocation2 + $0xaa8] sm:$0xff]
  %v7046 = vld [vmem:[#allocation2 + $0xab0] sm:$0xff]
  %v7047 = vld [vmem:[#allocation2 + $0xab8] sm:$0xff]
  %v7048 = vld [vmem:[#allocation2 + $0xac0] sm:$0xff]
  %v7049 = vld [vmem:[#allocation2 + $0xac8] sm:$0xff]
  %v7050 = vld [vmem:[#allocation2 + $0xad0] sm:$0xff]
  %v7051 = vld [vmem:[#allocation2 + $0xad8] sm:$0xff]
  %v7052 = vld [vmem:[#allocation2 + $0xae0] sm:$0xff]
  %v7053 = vld [vmem:[#allocation2 + $0xae8] sm:$0xff]
  %v7054 = vld [vmem:[#allocation2 + $0xaf0] sm:$0xff]
  %v7055 = vld [vmem:[#allocation2 + $0xaf8] sm:$0xff]
  %v7056 = vld [vmem:[#allocation2 + $0xb00] sm:$0xff]
  %v7057 = vld [vmem:[#allocation2 + $0xb08] sm:$0xff]
  %v7058 = vld [vmem:[#allocation2 + $0xb10] sm:$0xff]
  %v7059 = vld [vmem:[#allocation2 + $0xb18] sm:$0xff]
  %v7060 = vld [vmem:[#allocation2 + $0xb20] sm:$0xff]
  %v7061 = vld [vmem:[#allocation2 + $0xb28] sm:$0xff]
  %v7062 = vld [vmem:[#allocation2 + $0xb30] sm:$0xff]
  %v7063 = vld [vmem:[#allocation2 + $0xb38] sm:$0xff]
  %v7064 = vld [vmem:[#allocation2 + $0xb40] sm:$0xff]
  %v7065 = vld [vmem:[#allocation2 + $0xb48] sm:$0xff]
  %v7066 = vld [vmem:[#allocation2 + $0xb50] sm:$0xff]
  %v7067 = vld [vmem:[#allocation2 + $0xb58] sm:$0xff]
  %v7068 = vld [vmem:[#allocation2 + $0xb60] sm:$0xff]
  %v7069 = vld [vmem:[#allocation2 + $0xb68] sm:$0xff]
  %v7070 = vld [vmem:[#allocation2 + $0xb70] sm:$0xff]
  %v7071 = vld [vmem:[#allocation2 + $0xb78] sm:$0xff]
  %v7072 = vld [vmem:[#allocation2 + $0xb80] sm:$0xff]
  %v7073 = vld [vmem:[#allocation2 + $0xb88] sm:$0xff]
  %v7074 = vld [vmem:[#allocation2 + $0xb90] sm:$0xff]
  %v7075 = vld [vmem:[#allocation2 + $0xb98] sm:$0xff]
  %v7076 = vld [vmem:[#allocation2 + $0xba0] sm:$0xff]
  %v7077 = vld [vmem:[#allocation2 + $0xba8] sm:$0xff]
  %v7078 = vld [vmem:[#allocation2 + $0xbb0] sm:$0xff]
  %v7079 = vld [vmem:[#allocation2 + $0xbb8] sm:$0xff]
  %v7080 = vld [vmem:[#allocation2 + $0xbc0] sm:$0xff]
  %v7081 = vld [vmem:[#allocation2 + $0xbc8] sm:$0xff]
  %v7082 = vld [vmem:[#allocation2 + $0xbd0] sm:$0xff]
  %v7083 = vld [vmem:[#allocation2 + $0xbd8] sm:$0xff]
  %v7084 = vld [vmem:[#allocation2 + $0xbe0] sm:$0xff]
  %v7085 = vld [vmem:[#allocation2 + $0xbe8] sm:$0xff]
  %v7086 = vld [vmem:[#allocation2 + $0xbf0] sm:$0xff]
  %v7087 = vld [vmem:[#allocation2 + $0xbf8] sm:$0xff]
  %v7088 = vld [vmem:[#allocation2 + $0xc00] sm:$0xff]
  %v7089 = vld [vmem:[#allocation2 + $0xc08] sm:$0xff]
  %v7090 = vld [vmem:[#allocation2 + $0xc10] sm:$0xff]
  %v7091 = vld [vmem:[#allocation2 + $0xc18] sm:$0xff]
  %v7092 = vld [vmem:[#allocation2 + $0xc20] sm:$0xff]
  %v7093 = vld [vmem:[#allocation2 + $0xc28] sm:$0xff]
  %v7094 = vld [vmem:[#allocation2 + $0xc30] sm:$0xff]
  %v7095 = vld [vmem:[#allocation2 + $0xc38] sm:$0xff]
  %v7096 = vld [vmem:[#allocation2 + $0xc40] sm:$0xff]
  %v7097 = vld [vmem:[#allocation2 + $0xc48] sm:$0xff]
  %v7098 = vld [vmem:[#allocation2 + $0xc50] sm:$0xff]
  %v7099 = vld [vmem:[#allocation2 + $0xc58] sm:$0xff]
  %v7100 = vld [vmem:[#allocation2 + $0xc60] sm:$0xff]
  %v7101 = vld [vmem:[#allocation2 + $0xc68] sm:$0xff]
  %v7102 = vld [vmem:[#allocation2 + $0xc70] sm:$0xff]
  %v7103 = vld [vmem:[#allocation2 + $0xc78] sm:$0xff]
  %v7104 = vld [vmem:[%s4] sm:$0xff]
  %v7105 = vld [vmem:[%s4 + $0x8] sm:$0xff]
  %7107 = vset.pattern.permute.xlu0 0
  %7108 = vperm.xlu0 %7107, %v7104
  %v7109 = vpop.permute.xlu0 %7108
  %7112 = vset.pattern.permute.xlu0 0
  %7113 = vperm.xlu0 %7112, %v7105
  %v7114 = vpop.permute.xlu0 %7113
  %v7117 = vsel %vm3381, %v6701, 0
  %v7120 = vsel %vm3381, %v6703, 0
  %7122 = vmatprep.subr.mxu0 %v6705
  %7123 = vmatpush1.msra.mxu0 %v6704
  %7124 = vmatprep.subr.mxu0 %v6721
  %7125 = vmatpush1.msra.mxu0 %v6720
  %7126 = vmatprep.subr.mxu0 %v6737
  %7127 = vmatpush1.msra.mxu0 %v6736
  %7128 = vmatprep.subr.mxu0 %v6753
  %7129 = vmatpush1.msra.mxu0 %v6752
  %7130 = vmatprep.subr.mxu0 %v6769
  %7131 = vmatpush1.msra.mxu0 %v6768
  %7132 = vmatprep.subr.mxu0 %v6785
  %7133 = vmatpush1.msra.mxu0 %v6784
  %7134 = vmatprep.subr.mxu0 %v6801
  %7135 = vmatpush1.msra.mxu0 %v6800
  %7136 = vmatprep.subr.mxu0 %v6817
  %7137 = vmatpush1.msra.mxu0 %v6816
  %7138 = vmatprep.subr.mxu0 %v6833
  %7139 = vmatpush1.msra.mxu0 %v6832
  %7140 = vmatprep.subr.mxu0 %v6849
  %7141 = vmatpush1.msra.mxu0 %v6848
  %7142 = vmatprep.subr.mxu0 %v6865
  %7143 = vmatpush1.msra.mxu0 %v6864
  %7144 = vmatprep.subr.mxu0 %v6881
  %7145 = vmatpush1.msra.mxu0 %v6880
  %7146 = vmatprep.subr.mxu0 %v6897
  %7147 = vmatpush1.msra.mxu0 %v6896
  %7148 = vmatprep.subr.mxu0 %v6913
  %7149 = vmatpush1.msra.mxu0 %v6912
  %7150 = vmatprep.subr.mxu0 %v6929
  %7151 = vmatpush1.msra.mxu0 %v6928
  %7152 = vmatprep.subr.mxu0 %v6945
  %7153 = vmatpush1.msra.mxu0 %v6944
  %7154 = vmatprep.subr.mxu0 %v6961
  %7155 = vmatpush1.msra.mxu0 %v6960
  %7156 = vmatprep.subr.mxu0 %v6977
  %7157 = vmatpush1.msra.mxu0 %v6976
  %7158 = vmatprep.subr.mxu0 %v6993
  %7159 = vmatpush1.msra.mxu0 %v6992
  %7160 = vmatprep.subr.mxu0 %v7009
  %7161 = vmatpush1.msra.mxu0 %v7008
  %7162 = vmatprep.subr.mxu0 %v7025
  %7163 = vmatpush1.msra.mxu0 %v7024
  %7164 = vmatprep.subr.mxu0 %v7041
  %7165 = vmatpush1.msra.mxu0 %v7040
  %7166 = vmatprep.subr.mxu0 %v7057
  %7167 = vmatpush1.msra.mxu0 %v7056
  %7168 = vmatprep.subr.mxu0 %v7073
  %7169 = vmatpush1.msra.mxu0 %v7072
  %7170 = vmatprep.subr.mxu0 %v7089
  %7171 = vmatpush1.msra.mxu0 %v7088
  %7172 = vmatprep.subr.mxu0 0.0
  %7173 = vmatpush1.msra.mxu0 0.0
  %7174 = vmatprep.subr.mxu0 0.0
  %7175 = vmatpush1.msra.mxu0 0.0
  %7176 = vmatprep.subr.mxu0 0.0
  %7177 = vmatpush1.msra.mxu0 0.0
  %7178 = vmatprep.subr.mxu0 0.0
  %7179 = vmatpush1.msra.mxu0 0.0
  %7180 = vmatprep.subr.mxu0 0.0
  %7181 = vmatpush1.msra.mxu0 0.0
  %7182 = vmatprep.subr.mxu0 0.0
  %7183 = vmatpush1.msra.mxu0 0.0
  %7184 = vmatprep.subr.mxu0 0.0
  %7185 = vmatpush1.msra.mxu0 0.0
  %7186 = vmatprep.mubr.f32.mxu0 %v7117
  %7187 = vmatmul.mubr.f32.gmra.mrb[0].mxu0 %v6700
  %v7188 = vpop.f32.mrb[0].mxu0
  %v7189 = vadd.f32 %v7109, %v7188
  %v7190 = vpop.f32.mrb[0].mxu0
  %v7191 = vadd.f32 %v7109, %v7190
  %7192 = vmatprep.mubr.f32.mxu0 %v7120
  %7193 = vmatmul.mubr.f32.gmra.mrb[0].mxu0 %v6702
  %v7194 = vpop.f32.mrb[0].mxu0
  %v7195 = vadd.f32 %v7114, %v7194
  %v7196 = vpop.f32.mrb[0].mxu0
  %v7197 = vadd.f32 %v7114, %v7196
  %7198 = vdwg.mxu0
  %7199 = vmatprep.subr.mxu0 %v6707
  %7200 = vmatpush1.msra.mxu0 %v6706
  %7201 = vmatprep.subr.mxu0 %v6723
  %7202 = vmatpush1.msra.mxu0 %v6722
  %7203 = vmatprep.subr.mxu0 %v6739
  %7204 = vmatpush1.msra.mxu0 %v6738
  %7205 = vmatprep.subr.mxu0 %v6755
  %7206 = vmatpush1.msra.mxu0 %v6754
  %7207 = vmatprep.subr.mxu0 %v6771
  %7208 = vmatpush1.msra.mxu0 %v6770
  %7209 = vmatprep.subr.mxu0 %v6787
  %7210 = vmatpush1.msra.mxu0 %v6786
  %7211 = vmatprep.subr.mxu0 %v6803
  %7212 = vmatpush1.msra.mxu0 %v6802
  %7213 = vmatprep.subr.mxu0 %v6819
  %7214 = vmatpush1.msra.mxu0 %v6818
  %7215 = vmatprep.subr.mxu0 %v6835
  %7216 = vmatpush1.msra.mxu0 %v6834
  %7217 = vmatprep.subr.mxu0 %v6851
  %7218 = vmatpush1.msra.mxu0 %v6850
  %7219 = vmatprep.subr.mxu0 %v6867
  %7220 = vmatpush1.msra.mxu0 %v6866
  %7221 = vmatprep.subr.mxu0 %v6883
  %7222 = vmatpush1.msra.mxu0 %v6882
  %7223 = vmatprep.subr.mxu0 %v6899
  %7224 = vmatpush1.msra.mxu0 %v6898
  %7225 = vmatprep.subr.mxu0 %v6915
  %7226 = vmatpush1.msra.mxu0 %v6914
  %7227 = vmatprep.subr.mxu0 %v6931
  %7228 = vmatpush1.msra.mxu0 %v6930
  %7229 = vmatprep.subr.mxu0 %v6947
  %7230 = vmatpush1.msra.mxu0 %v6946
  %7231 = vmatprep.subr.mxu0 %v6963
  %7232 = vmatpush1.msra.mxu0 %v6962
  %7233 = vmatprep.subr.mxu0 %v6979
  %7234 = vmatpush1.msra.mxu0 %v6978
  %7235 = vmatprep.subr.mxu0 %v6995
  %7236 = vmatpush1.msra.mxu0 %v6994
  %7237 = vmatprep.subr.mxu0 %v7011
  %7238 = vmatpush1.msra.mxu0 %v7010
  %7239 = vmatprep.subr.mxu0 %v7027
  %7240 = vmatpush1.msra.mxu0 %v7026
  %7241 = vmatprep.subr.mxu0 %v7043
  %7242 = vmatpush1.msra.mxu0 %v7042
  %7243 = vmatprep.subr.mxu0 %v7059
  %7244 = vmatpush1.msra.mxu0 %v7058
  %7245 = vmatprep.subr.mxu0 %v7075
  %7246 = vmatpush1.msra.mxu0 %v7074
  %7247 = vmatprep.subr.mxu0 %v7091
  %7248 = vmatpush1.msra.mxu0 %v7090
  %7249 = vmatprep.subr.mxu0 0.0
  %7250 = vmatpush1.msra.mxu0 0.0
  %7251 = vmatprep.subr.mxu0 0.0
  %7252 = vmatpush1.msra.mxu0 0.0
  %7253 = vmatprep.subr.mxu0 0.0
  %7254 = vmatpush1.msra.mxu0 0.0
  %7255 = vmatprep.subr.mxu0 0.0
  %7256 = vmatpush1.msra.mxu0 0.0
  %7257 = vmatprep.subr.mxu0 0.0
  %7258 = vmatpush1.msra.mxu0 0.0
  %7259 = vmatprep.subr.mxu0 0.0
  %7260 = vmatpush1.msra.mxu0 0.0
  %7261 = vmatprep.subr.mxu0 0.0
  %7262 = vmatpush1.msra.mxu0 0.0
  %7263 = vmatprep.mubr.f32.mxu0 %v7117
  %7264 = vmatmul.mubr.f32.gmra.mrb[0].mxu0 %v6700
  %v7265 = vpop.f32.mrb[0].mxu0
  %v7266 = vadd.f32 %v7109, %v7265
  %v7267 = vpop.f32.mrb[0].mxu0
  %v7268 = vadd.f32 %v7109, %v7267
  %7269 = vmatprep.mubr.f32.mxu0 %v7120
  %7270 = vmatmul.mubr.f32.gmra.mrb[0].mxu0 %v6702
  %v7271 = vpop.f32.mrb[0].mxu0
  %v7272 = vadd.f32 %v7114, %v7271
  %v7273 = vpop.f32.mrb[0].mxu0
  %v7274 = vadd.f32 %v7114, %v7273
  %7275 = vdwg.mxu0
  %7276 = vmatprep.subr.mxu0 %v6709
  %7277 = vmatpush1.msra.mxu0 %v6708
  %7278 = vmatprep.subr.mxu0 %v6725
  %7279 = vmatpush1.msra.mxu0 %v6724
  %7280 = vmatprep.subr.mxu0 %v6741
  %7281 = vmatpush1.msra.mxu0 %v6740
  %7282 = vmatprep.subr.mxu0 %v6757
  %7283 = vmatpush1.msra.mxu0 %v6756
  %7284 = vmatprep.subr.mxu0 %v6773
  %7285 = vmatpush1.msra.mxu0 %v6772
  %7286 = vmatprep.subr.mxu0 %v6789
  %7287 = vmatpush1.msra.mxu0 %v6788
  %7288 = vmatprep.subr.mxu0 %v6805
  %7289 = vmatpush1.msra.mxu0 %v6804
  %7290 = vmatprep.subr.mxu0 %v6821
  %7291 = vmatpush1.msra.mxu0 %v6820
  %7292 = vmatprep.subr.mxu0 %v6837
  %7293 = vmatpush1.msra.mxu0 %v6836
  %7294 = vmatprep.subr.mxu0 %v6853
  %7295 = vmatpush1.msra.mxu0 %v6852
  %7296 = vmatprep.subr.mxu0 %v6869
  %7297 = vmatpush1.msra.mxu0 %v6868
  %7298 = vmatprep.subr.mxu0 %v6885
  %7299 = vmatpush1.msra.mxu0 %v6884
  %7300 = vmatprep.subr.mxu0 %v6901
  %7301 = vmatpush1.msra.mxu0 %v6900
  %7302 = vmatprep.subr.mxu0 %v6917
  %7303 = vmatpush1.msra.mxu0 %v6916
  %7304 = vmatprep.subr.mxu0 %v6933
  %7305 = vmatpush1.msra.mxu0 %v6932
  %7306 = vmatprep.subr.mxu0 %v6949
  %7307 = vmatpush1.msra.mxu0 %v6948
  %7308 = vmatprep.subr.mxu0 %v6965
  %7309 = vmatpush1.msra.mxu0 %v6964
  %7310 = vmatprep.subr.mxu0 %v6981
  %7311 = vmatpush1.msra.mxu0 %v6980
  %7312 = vmatprep.subr.mxu0 %v6997
  %7313 = vmatpush1.msra.mxu0 %v6996
  %7314 = vmatprep.subr.mxu0 %v7013
  %7315 = vmatpush1.msra.mxu0 %v7012
  %7316 = vmatprep.subr.mxu0 %v7029
  %7317 = vmatpush1.msra.mxu0 %v7028
  %7318 = vmatprep.subr.mxu0 %v7045
  %7319 = vmatpush1.msra.mxu0 %v7044
  %7320 = vmatprep.subr.mxu0 %v7061
  %7321 = vmatpush1.msra.mxu0 %v7060
  %7322 = vmatprep.subr.mxu0 %v7077
  %7323 = vmatpush1.msra.mxu0 %v7076
  %7324 = vmatprep.subr.mxu0 %v7093
  %7325 = vmatpush1.msra.mxu0 %v7092
  %7326 = vmatprep.subr.mxu0 0.0
  %7327 = vmatpush1.msra.mxu0 0.0
  %7328 = vmatprep.subr.mxu0 0.0
  %7329 = vmatpush1.msra.mxu0 0.0
  %7330 = vmatprep.subr.mxu0 0.0
  %7331 = vmatpush1.msra.mxu0 0.0
  %7332 = vmatprep.subr.mxu0 0.0
  %7333 = vmatpush1.msra.mxu0 0.0
  %7334 = vmatprep.subr.mxu0 0.0
  %7335 = vmatpush1.msra.mxu0 0.0
  %7336 = vmatprep.subr.mxu0 0.0
  %7337 = vmatpush1.msra.mxu0 0.0
  %7338 = vmatprep.subr.mxu0 0.0
  %7339 = vmatpush1.msra.mxu0 0.0
  %7340 = vmatprep.mubr.f32.mxu0 %v7117
  %7341 = vmatmul.mubr.f32.gmra.mrb[0].mxu0 %v6700
  %v7342 = vpop.f32.mrb[0].mxu0
  %v7343 = vadd.f32 %v7109, %v7342
  %v7344 = vpop.f32.mrb[0].mxu0
  %v7345 = vadd.f32 %v7109, %v7344
  %7346 = vmatprep.mubr.f32.mxu0 %v7120
  %7347 = vmatmul.mubr.f32.gmra.mrb[0].mxu0 %v6702
  %v7348 = vpop.f32.mrb[0].mxu0
  %v7349 = vadd.f32 %v7114, %v7348
  %v7350 = vpop.f32.mrb[0].mxu0
  %v7351 = vadd.f32 %v7114, %v7350
  %7352 = vdwg.mxu0
  %7353 = vmatprep.subr.mxu0 %v6711
  %7354 = vmatpush1.msra.mxu0 %v6710
  %7355 = vmatprep.subr.mxu0 %v6727
  %7356 = vmatpush1.msra.mxu0 %v6726
  %7357 = vmatprep.subr.mxu0 %v6743
  %7358 = vmatpush1.msra.mxu0 %v6742
  %7359 = vmatprep.subr.mxu0 %v6759
  %7360 = vmatpush1.msra.mxu0 %v6758
  %7361 = vmatprep.subr.mxu0 %v6775
  %7362 = vmatpush1.msra.mxu0 %v6774
  %7363 = vmatprep.subr.mxu0 %v6791
  %7364 = vmatpush1.msra.mxu0 %v6790
  %7365 = vmatprep.subr.mxu0 %v6807
  %7366 = vmatpush1.msra.mxu0 %v6806
  %7367 = vmatprep.subr.mxu0 %v6823
  %7368 = vmatpush1.msra.mxu0 %v6822
  %7369 = vmatprep.subr.mxu0 %v6839
  %7370 = vmatpush1.msra.mxu0 %v6838
  %7371 = vmatprep.subr.mxu0 %v6855
  %7372 = vmatpush1.msra.mxu0 %v6854
  %7373 = vmatprep.subr.mxu0 %v6871
  %7374 = vmatpush1.msra.mxu0 %v6870
  %7375 = vmatprep.subr.mxu0 %v6887
  %7376 = vmatpush1.msra.mxu0 %v6886
  %7377 = vmatprep.subr.mxu0 %v6903
  %7378 = vmatpush1.msra.mxu0 %v6902
  %7379 = vmatprep.subr.mxu0 %v6919
  %7380 = vmatpush1.msra.mxu0 %v6918
  %7381 = vmatprep.subr.mxu0 %v6935
  %7382 = vmatpush1.msra.mxu0 %v6934
  %7383 = vmatprep.subr.mxu0 %v6951
  %7384 = vmatpush1.msra.mxu0 %v6950
  %7385 = vmatprep.subr.mxu0 %v6967
  %7386 = vmatpush1.msra.mxu0 %v6966
  %7387 = vmatprep.subr.mxu0 %v6983
  %7388 = vmatpush1.msra.mxu0 %v6982
  %7389 = vmatprep.subr.mxu0 %v6999
  %7390 = vmatpush1.msra.mxu0 %v6998
  %7391 = vmatprep.subr.mxu0 %v7015
  %7392 = vmatpush1.msra.mxu0 %v7014
  %7393 = vmatprep.subr.mxu0 %v7031
  %7394 = vmatpush1.msra.mxu0 %v7030
  %7395 = vmatprep.subr.mxu0 %v7047
  %7396 = vmatpush1.msra.mxu0 %v7046
  %7397 = vmatprep.subr.mxu0 %v7063
  %7398 = vmatpush1.msra.mxu0 %v7062
  %7399 = vmatprep.subr.mxu0 %v7079
  %7400 = vmatpush1.msra.mxu0 %v7078
  %7401 = vmatprep.subr.mxu0 %v7095
  %7402 = vmatpush1.msra.mxu0 %v7094
  %7403 = vmatprep.subr.mxu0 0.0
  %7404 = vmatpush1.msra.mxu0 0.0
  %7405 = vmatprep.subr.mxu0 0.0
  %7406 = vmatpush1.msra.mxu0 0.0
  %7407 = vmatprep.subr.mxu0 0.0
  %7408 = vmatpush1.msra.mxu0 0.0
  %7409 = vmatprep.subr.mxu0 0.0
  %7410 = vmatpush1.msra.mxu0 0.0
  %7411 = vmatprep.subr.mxu0 0.0
  %7412 = vmatpush1.msra.mxu0 0.0
  %7413 = vmatprep.subr.mxu0 0.0
  %7414 = vmatpush1.msra.mxu0 0.0
  %7415 = vmatprep.subr.mxu0 0.0
  %7416 = vmatpush1.msra.mxu0 0.0
  %7417 = vmatprep.mubr.f32.mxu0 %v7117
  %7418 = vmatmul.mubr.f32.gmra.mrb[0].mxu0 %v6700
  %v7419 = vpop.f32.mrb[0].mxu0
  %v7420 = vadd.f32 %v7109, %v7419
  %v7421 = vpop.f32.mrb[0].mxu0
  %v7422 = vadd.f32 %v7109, %v7421
  %7423 = vmatprep.mubr.f32.mxu0 %v7120
  %7424 = vmatmul.mubr.f32.gmra.mrb[0].mxu0 %v6702
  %v7425 = vpop.f32.mrb[0].mxu0
  %v7426 = vadd.f32 %v7114, %v7425
  %v7427 = vpop.f32.mrb[0].mxu0
  %v7428 = vadd.f32 %v7114, %v7427
  %7429 = vdwg.mxu0
  %7430 = vmatprep.subr.mxu0 %v6713
  %7431 = vmatpush1.msra.mxu0 %v6712
  %7432 = vmatprep.subr.mxu0 %v6729
  %7433 = vmatpush1.msra.mxu0 %v6728
  %7434 = vmatprep.subr.mxu0 %v6745
  %7435 = vmatpush1.msra.mxu0 %v6744
  %7436 = vmatprep.subr.mxu0 %v6761
  %7437 = vmatpush1.msra.mxu0 %v6760
  %7438 = vmatprep.subr.mxu0 %v6777
  %7439 = vmatpush1.msra.mxu0 %v6776
  %7440 = vmatprep.subr.mxu0 %v6793
  %7441 = vmatpush1.msra.mxu0 %v6792
  %7442 = vmatprep.subr.mxu0 %v6809
  %7443 = vmatpush1.msra.mxu0 %v6808
  %7444 = vmatprep.subr.mxu0 %v6825
  %7445 = vmatpush1.msra.mxu0 %v6824
  %7446 = vmatprep.subr.mxu0 %v6841
  %7447 = vmatpush1.msra.mxu0 %v6840
  %7448 = vmatprep.subr.mxu0 %v6857
  %7449 = vmatpush1.msra.mxu0 %v6856
  %7450 = vmatprep.subr.mxu0 %v6873
  %7451 = vmatpush1.msra.mxu0 %v6872
  %7452 = vmatprep.subr.mxu0 %v6889
  %7453 = vmatpush1.msra.mxu0 %v6888
  %7454 = vmatprep.subr.mxu0 %v6905
  %7455 = vmatpush1.msra.mxu0 %v6904
  %7456 = vmatprep.subr.mxu0 %v6921
  %7457 = vmatpush1.msra.mxu0 %v6920
  %7458 = vmatprep.subr.mxu0 %v6937
  %7459 = vmatpush1.msra.mxu0 %v6936
  %7460 = vmatprep.subr.mxu0 %v6953
  %7461 = vmatpush1.msra.mxu0 %v6952
  %7462 = vmatprep.subr.mxu0 %v6969
  %7463 = vmatpush1.msra.mxu0 %v6968
  %7464 = vmatprep.subr.mxu0 %v6985
  %7465 = vmatpush1.msra.mxu0 %v6984
  %7466 = vmatprep.subr.mxu0 %v7001
  %7467 = vmatpush1.msra.mxu0 %v7000
  %7468 = vmatprep.subr.mxu0 %v7017
  %7469 = vmatpush1.msra.mxu0 %v7016
  %7470 = vmatprep.subr.mxu0 %v7033
  %7471 = vmatpush1.msra.mxu0 %v7032
  %7472 = vmatprep.subr.mxu0 %v7049
  %7473 = vmatpush1.msra.mxu0 %v7048
  %7474 = vmatprep.subr.mxu0 %v7065
  %7475 = vmatpush1.msra.mxu0 %v7064
  %7476 = vmatprep.subr.mxu0 %v7081
  %7477 = vmatpush1.msra.mxu0 %v7080
  %7478 = vmatprep.subr.mxu0 %v7097
  %7479 = vmatpush1.msra.mxu0 %v7096
  %7480 = vmatprep.subr.mxu0 0.0
  %7481 = vmatpush1.msra.mxu0 0.0
  %7482 = vmatprep.subr.mxu0 0.0
  %7483 = vmatpush1.msra.mxu0 0.0
  %7484 = vmatprep.subr.mxu0 0.0
  %7485 = vmatpush1.msra.mxu0 0.0
  %7486 = vmatprep.subr.mxu0 0.0
  %7487 = vmatpush1.msra.mxu0 0.0
  %7488 = vmatprep.subr.mxu0 0.0
  %7489 = vmatpush1.msra.mxu0 0.0
  %7490 = vmatprep.subr.mxu0 0.0
  %7491 = vmatpush1.msra.mxu0 0.0
  %7492 = vmatprep.subr.mxu0 0.0
  %7493 = vmatpush1.msra.mxu0 0.0
  %7494 = vmatprep.mubr.f32.mxu0 %v7117
  %7495 = vmatmul.mubr.f32.gmra.mrb[0].mxu0 %v6700
  %v7496 = vpop.f32.mrb[0].mxu0
  %v7497 = vadd.f32 %v7109, %v7496
  %v7498 = vpop.f32.mrb[0].mxu0
  %v7499 = vadd.f32 %v7109, %v7498
  %7500 = vmatprep.mubr.f32.mxu0 %v7120
  %7501 = vmatmul.mubr.f32.gmra.mrb[0].mxu0 %v6702
  %v7502 = vpop.f32.mrb[0].mxu0
  %v7503 = vadd.f32 %v7114, %v7502
  %v7504 = vpop.f32.mrb[0].mxu0
  %v7505 = vadd.f32 %v7114, %v7504
  %7506 = vdwg.mxu0
  %7507 = vmatprep.subr.mxu0 %v6715
  %7508 = vmatpush1.msra.mxu0 %v6714
  %7509 = vmatprep.subr.mxu0 %v6731
  %7510 = vmatpush1.msra.mxu0 %v6730
  %7511 = vmatprep.subr.mxu0 %v6747
  %7512 = vmatpush1.msra.mxu0 %v6746
  %7513 = vmatprep.subr.mxu0 %v6763
  %7514 = vmatpush1.msra.mxu0 %v6762
  %7515 = vmatprep.subr.mxu0 %v6779
  %7516 = vmatpush1.msra.mxu0 %v6778
  %7517 = vmatprep.subr.mxu0 %v6795
  %7518 = vmatpush1.msra.mxu0 %v6794
  %7519 = vmatprep.subr.mxu0 %v6811
  %7520 = vmatpush1.msra.mxu0 %v6810
  %7521 = vmatprep.subr.mxu0 %v6827
  %7522 = vmatpush1.msra.mxu0 %v6826
  %7523 = vmatprep.subr.mxu0 %v6843
  %7524 = vmatpush1.msra.mxu0 %v6842
  %7525 = vmatprep.subr.mxu0 %v6859
  %7526 = vmatpush1.msra.mxu0 %v6858
  %7527 = vmatprep.subr.mxu0 %v6875
  %7528 = vmatpush1.msra.mxu0 %v6874
  %7529 = vmatprep.subr.mxu0 %v6891
  %7530 = vmatpush1.msra.mxu0 %v6890
  %7531 = vmatprep.subr.mxu0 %v6907
  %7532 = vmatpush1.msra.mxu0 %v6906
  %7533 = vmatprep.subr.mxu0 %v6923
  %7534 = vmatpush1.msra.mxu0 %v6922
  %7535 = vmatprep.subr.mxu0 %v6939
  %7536 = vmatpush1.msra.mxu0 %v6938
  %7537 = vmatprep.subr.mxu0 %v6955
  %7538 = vmatpush1.msra.mxu0 %v6954
  %7539 = vmatprep.subr.mxu0 %v6971
  %7540 = vmatpush1.msra.mxu0 %v6970
  %7541 = vmatprep.subr.mxu0 %v6987
  %7542 = vmatpush1.msra.mxu0 %v6986
  %7543 = vmatprep.subr.mxu0 %v7003
  %7544 = vmatpush1.msra.mxu0 %v7002
  %7545 = vmatprep.subr.mxu0 %v7019
  %7546 = vmatpush1.msra.mxu0 %v7018
  %7547 = vmatprep.subr.mxu0 %v7035
  %7548 = vmatpush1.msra.mxu0 %v7034
  %7549 = vmatprep.subr.mxu0 %v7051
  %7550 = vmatpush1.msra.mxu0 %v7050
  %7551 = vmatprep.subr.mxu0 %v7067
  %7552 = vmatpush1.msra.mxu0 %v7066
  %7553 = vmatprep.subr.mxu0 %v7083
  %7554 = vmatpush1.msra.mxu0 %v7082
  %7555 = vmatprep.subr.mxu0 %v7099
  %7556 = vmatpush1.msra.mxu0 %v7098
  %7557 = vmatprep.subr.mxu0 0.0
  %7558 = vmatpush1.msra.mxu0 0.0
  %7559 = vmatprep.subr.mxu0 0.0
  %7560 = vmatpush1.msra.mxu0 0.0
  %7561 = vmatprep.subr.mxu0 0.0
  %7562 = vmatpush1.msra.mxu0 0.0
  %7563 = vmatprep.subr.mxu0 0.0
  %7564 = vmatpush1.msra.mxu0 0.0
  %7565 = vmatprep.subr.mxu0 0.0
  %7566 = vmatpush1.msra.mxu0 0.0
  %7567 = vmatprep.subr.mxu0 0.0
  %7568 = vmatpush1.msra.mxu0 0.0
  %7569 = vmatprep.subr.mxu0 0.0
  %7570 = vmatpush1.msra.mxu0 0.0
  %7571 = vmatprep.mubr.f32.mxu0 %v7117
  %7572 = vmatmul.mubr.f32.gmra.mrb[0].mxu0 %v6700
  %v7573 = vpop.f32.mrb[0].mxu0
  %v7574 = vadd.f32 %v7109, %v7573
  %v7575 = vpop.f32.mrb[0].mxu0
  %v7576 = vadd.f32 %v7109, %v7575
  %7577 = vmatprep.mubr.f32.mxu0 %v7120
  %7578 = vmatmul.mubr.f32.gmra.mrb[0].mxu0 %v6702
  %v7579 = vpop.f32.mrb[0].mxu0
  %v7580 = vadd.f32 %v7114, %v7579
  %v7581 = vpop.f32.mrb[0].mxu0
  %v7582 = vadd.f32 %v7114, %v7581
  %7583 = vdwg.mxu0
  %7584 = vmatprep.subr.mxu0 %v6717
  %7585 = vmatpush1.msra.mxu0 %v6716
  %7586 = vmatprep.subr.mxu0 %v6733
  %7587 = vmatpush1.msra.mxu0 %v6732
  %7588 = vmatprep.subr.mxu0 %v6749
  %7589 = vmatpush1.msra.mxu0 %v6748
  %7590 = vmatprep.subr.mxu0 %v6765
  %7591 = vmatpush1.msra.mxu0 %v6764
  %7592 = vmatprep.subr.mxu0 %v6781
  %7593 = vmatpush1.msra.mxu0 %v6780
  %7594 = vmatprep.subr.mxu0 %v6797
  %7595 = vmatpush1.msra.mxu0 %v6796
  %7596 = vmatprep.subr.mxu0 %v6813
  %7597 = vmatpush1.msra.mxu0 %v6812
  %7598 = vmatprep.subr.mxu0 %v6829
  %7599 = vmatpush1.msra.mxu0 %v6828
  %7600 = vmatprep.subr.mxu0 %v6845
  %7601 = vmatpush1.msra.mxu0 %v6844
  %7602 = vmatprep.subr.mxu0 %v6861
  %7603 = vmatpush1.msra.mxu0 %v6860
  %7604 = vmatprep.subr.mxu0 %v6877
  %7605 = vmatpush1.msra.mxu0 %v6876
  %7606 = vmatprep.subr.mxu0 %v6893
  %7607 = vmatpush1.msra.mxu0 %v6892
  %7608 = vmatprep.subr.mxu0 %v6909
  %7609 = vmatpush1.msra.mxu0 %v6908
  %7610 = vmatprep.subr.mxu0 %v6925
  %7611 = vmatpush1.msra.mxu0 %v6924
  %7612 = vmatprep.subr.mxu0 %v6941
  %7613 = vmatpush1.msra.mxu0 %v6940
  %7614 = vmatprep.subr.mxu0 %v6957
  %7615 = vmatpush1.msra.mxu0 %v6956
  %7616 = vmatprep.subr.mxu0 %v6973
  %7617 = vmatpush1.msra.mxu0 %v6972
  %7618 = vmatprep.subr.mxu0 %v6989
  %7619 = vmatpush1.msra.mxu0 %v6988
  %7620 = vmatprep.subr.mxu0 %v7005
  %7621 = vmatpush1.msra.mxu0 %v7004
  %7622 = vmatprep.subr.mxu0 %v7021
  %7623 = vmatpush1.msra.mxu0 %v7020
  %7624 = vmatprep.subr.mxu0 %v7037
  %7625 = vmatpush1.msra.mxu0 %v7036
  %7626 = vmatprep.subr.mxu0 %v7053
  %7627 = vmatpush1.msra.mxu0 %v7052
  %7628 = vmatprep.subr.mxu0 %v7069
  %7629 = vmatpush1.msra.mxu0 %v7068
  %7630 = vmatprep.subr.mxu0 %v7085
  %7631 = vmatpush1.msra.mxu0 %v7084
  %7632 = vmatprep.subr.mxu0 %v7101
  %7633 = vmatpush1.msra.mxu0 %v7100
  %7634 = vmatprep.subr.mxu0 0.0
  %7635 = vmatpush1.msra.mxu0 0.0
  %7636 = vmatprep.subr.mxu0 0.0
  %7637 = vmatpush1.msra.mxu0 0.0
  %7638 = vmatprep.subr.mxu0 0.0
  %7639 = vmatpush1.msra.mxu0 0.0
  %7640 = vmatprep.subr.mxu0 0.0
  %7641 = vmatpush1.msra.mxu0 0.0
  %7642 = vmatprep.subr.mxu0 0.0
  %7643 = vmatpush1.msra.mxu0 0.0
  %7644 = vmatprep.subr.mxu0 0.0
  %7645 = vmatpush1.msra.mxu0 0.0
  %7646 = vmatprep.subr.mxu0 0.0
  %7647 = vmatpush1.msra.mxu0 0.0
  %7648 = vmatprep.mubr.f32.mxu0 %v7117
  %7649 = vmatmul.mubr.f32.gmra.mrb[0].mxu0 %v6700
  %v7650 = vpop.f32.mrb[0].mxu0
  %v7651 = vadd.f32 %v7109, %v7650
  %v7652 = vpop.f32.mrb[0].mxu0
  %v7653 = vadd.f32 %v7109, %v7652
  %7654 = vmatprep.mubr.f32.mxu0 %v7120
  %7655 = vmatmul.mubr.f32.gmra.mrb[0].mxu0 %v6702
  %v7656 = vpop.f32.mrb[0].mxu0
  %v7657 = vadd.f32 %v7114, %v7656
  %v7658 = vpop.f32.mrb[0].mxu0
  %v7659 = vadd.f32 %v7114, %v7658
  %7660 = vdwg.mxu0
  %7661 = vmatprep.subr.mxu0 %v6719
  %7662 = vmatpush1.msra.mxu0 %v6718
  %7663 = vmatprep.subr.mxu0 %v6735
  %7664 = vmatpush1.msra.mxu0 %v6734
  %7665 = vmatprep.subr.mxu0 %v6751
  %7666 = vmatpush1.msra.mxu0 %v6750
  %7667 = vmatprep.subr.mxu0 %v6767
  %7668 = vmatpush1.msra.mxu0 %v6766
  %7669 = vmatprep.subr.mxu0 %v6783
  %7670 = vmatpush1.msra.mxu0 %v6782
  %7671 = vmatprep.subr.mxu0 %v6799
  %7672 = vmatpush1.msra.mxu0 %v6798
  %7673 = vmatprep.subr.mxu0 %v6815
  %7674 = vmatpush1.msra.mxu0 %v6814
  %7675 = vmatprep.subr.mxu0 %v6831
  %7676 = vmatpush1.msra.mxu0 %v6830
  %7677 = vmatprep.subr.mxu0 %v6847
  %7678 = vmatpush1.msra.mxu0 %v6846
  %7679 = vmatprep.subr.mxu0 %v6863
  %7680 = vmatpush1.msra.mxu0 %v6862
  %7681 = vmatprep.subr.mxu0 %v6879
  %7682 = vmatpush1.msra.mxu0 %v6878
  %7683 = vmatprep.subr.mxu0 %v6895
  %7684 = vmatpush1.msra.mxu0 %v6894
  %7685 = vmatprep.subr.mxu0 %v6911
  %7686 = vmatpush1.msra.mxu0 %v6910
  %7687 = vmatprep.subr.mxu0 %v6927
  %7688 = vmatpush1.msra.mxu0 %v6926
  %7689 = vmatprep.subr.mxu0 %v6943
  %7690 = vmatpush1.msra.mxu0 %v6942
  %7691 = vmatprep.subr.mxu0 %v6959
  %7692 = vmatpush1.msra.mxu0 %v6958
  %7693 = vmatprep.subr.mxu0 %v6975
  %7694 = vmatpush1.msra.mxu0 %v6974
  %7695 = vmatprep.subr.mxu0 %v6991
  %7696 = vmatpush1.msra.mxu0 %v6990
  %7697 = vmatprep.subr.mxu0 %v7007
  %7698 = vmatpush1.msra.mxu0 %v7006
  %7699 = vmatprep.subr.mxu0 %v7023
  %7700 = vmatpush1.msra.mxu0 %v7022
  %7701 = vmatprep.subr.mxu0 %v7039
  %7702 = vmatpush1.msra.mxu0 %v7038
  %7703 = vmatprep.subr.mxu0 %v7055
  %7704 = vmatpush1.msra.mxu0 %v7054
  %7705 = vmatprep.subr.mxu0 %v7071
  %7706 = vmatpush1.msra.mxu0 %v7070
  %7707 = vmatprep.subr.mxu0 %v7087
  %7708 = vmatpush1.msra.mxu0 %v7086
  %7709 = vmatprep.subr.mxu0 %v7103
  %7710 = vmatpush1.msra.mxu0 %v7102
  %7711 = vmatprep.subr.mxu0 0.0
  %7712 = vmatpush1.msra.mxu0 0.0
  %7713 = vmatprep.subr.mxu0 0.0
  %7714 = vmatpush1.msra.mxu0 0.0
  %7715 = vmatprep.subr.mxu0 0.0
  %7716 = vmatpush1.msra.mxu0 0.0
  %7717 = vmatprep.subr.mxu0 0.0
  %7718 = vmatpush1.msra.mxu0 0.0
  %7719 = vmatprep.subr.mxu0 0.0
  %7720 = vmatpush1.msra.mxu0 0.0
  %7721 = vmatprep.subr.mxu0 0.0
  %7722 = vmatpush1.msra.mxu0 0.0
  %7723 = vmatprep.subr.mxu0 0.0
  %7724 = vmatpush1.msra.mxu0 0.0
  %7725 = vmatprep.mubr.f32.mxu0 %v7117
  %7726 = vmatmul.mubr.f32.gmra.mrb[0].mxu0 %v6700
  %v7727 = vpop.f32.mrb[0].mxu0
  %v7728 = vadd.f32 %v7109, %v7727
  %v7729 = vpop.f32.mrb[0].mxu0
  %v7730 = vadd.f32 %v7109, %v7729
  %7731 = vmatprep.mubr.f32.mxu0 %v7120
  %7732 = vmatmul.mubr.f32.gmra.mrb[0].mxu0 %v6702
  %v7733 = vpop.f32.mrb[0].mxu0
  %v7734 = vadd.f32 %v7114, %v7733
  %v7735 = vpop.f32.mrb[0].mxu0
  %v7736 = vadd.f32 %v7114, %v7735
  %7737 = vdwg.mxu0
  %v7738 = vmax.f32 %v7189, 0.0
  %v7739 = vmax.f32 %v7191, 0.0
  %v7740 = vmax.f32 %v7266, 0.0
  %v7741 = vmax.f32 %v7268, 0.0
  %v7742 = vmax.f32 %v7343, 0.0
  %v7743 = vmax.f32 %v7345, 0.0
  %v7744 = vmax.f32 %v7420, 0.0
  %v7745 = vmax.f32 %v7422, 0.0
  %v7746 = vmax.f32 %v7497, 0.0
  %v7747 = vmax.f32 %v7499, 0.0
  %v7748 = vmax.f32 %v7574, 0.0
  %v7749 = vmax.f32 %v7576, 0.0
  %v7750 = vmax.f32 %v7651, 0.0
  %v7751 = vmax.f32 %v7653, 0.0
  %v7752 = vmax.f32 %v7728, 0.0
  %v7753 = vmax.f32 %v7730, 0.0
  %v7754 = vmax.f32 %v7195, 0.0
  %v7755 = vmax.f32 %v7197, 0.0
  %v7756 = vmax.f32 %v7272, 0.0
  %v7757 = vmax.f32 %v7274, 0.0
  %v7758 = vmax.f32 %v7349, 0.0
  %v7759 = vmax.f32 %v7351, 0.0
  %v7760 = vmax.f32 %v7426, 0.0
  %v7761 = vmax.f32 %v7428, 0.0
  %v7762 = vmax.f32 %v7503, 0.0
  %v7763 = vmax.f32 %v7505, 0.0
  %v7764 = vmax.f32 %v7580, 0.0
  %v7765 = vmax.f32 %v7582, 0.0
  %v7766 = vmax.f32 %v7657, 0.0
  %v7767 = vmax.f32 %v7659, 0.0
  %v7768 = vmax.f32 %v7734, 0.0
  %v7769 = vmax.f32 %v7736, 0.0
  %7770 = vst [vmem:[#allocation5] sm:$0xff] %v7738
  %7771 = vst [vmem:[#allocation5 + $0x8] sm:$0xff] %v7739
  %7772 = vst [vmem:[#allocation5 + $0x10] sm:$0xff] %v7740
  %7773 = vst [vmem:[#allocation5 + $0x18] sm:$0xff] %v7741
  %7774 = vst [vmem:[#allocation5 + $0x20] sm:$0xff] %v7742
  %7775 = vst [vmem:[#allocation5 + $0x28] sm:$0xff] %v7743
  %7776 = vst [vmem:[#allocation5 + $0x30] sm:$0xff] %v7744
  %7777 = vst [vmem:[#allocation5 + $0x38] sm:$0xff] %v7745
  %7778 = vst [vmem:[#allocation5 + $0x40] sm:$0xff] %v7746
  %7779 = vst [vmem:[#allocation5 + $0x48] sm:$0xff] %v7747
  %7780 = vst [vmem:[#allocation5 + $0x50] sm:$0xff] %v7748
  %7781 = vst [vmem:[#allocation5 + $0x58] sm:$0xff] %v7749
  %7782 = vst [vmem:[#allocation5 + $0x60] sm:$0xff] %v7750
  %7783 = vst [vmem:[#allocation5 + $0x68] sm:$0xff] %v7751
  %7784 = vst [vmem:[#allocation5 + $0x70] sm:$0xff] %v7752
  %7785 = vst [vmem:[#allocation5 + $0x78] sm:$0xff] %v7753
  %7786 = vst [vmem:[#allocation5 + $0x80] sm:$0xff] %v7754
  %7787 = vst [vmem:[#allocation5 + $0x88] sm:$0xff] %v7755
  %7788 = vst [vmem:[#allocation5 + $0x90] sm:$0xff] %v7756
  %7789 = vst [vmem:[#allocation5 + $0x98] sm:$0xff] %v7757
  %7790 = vst [vmem:[#allocation5 + $0xa0] sm:$0xff] %v7758
  %7791 = vst [vmem:[#allocation5 + $0xa8] sm:$0xff] %v7759
  %7792 = vst [vmem:[#allocation5 + $0xb0] sm:$0xff] %v7760
  %7793 = vst [vmem:[#allocation5 + $0xb8] sm:$0xff] %v7761
  %7794 = vst [vmem:[#allocation5 + $0xc0] sm:$0xff] %v7762
  %7795 = vst [vmem:[#allocation5 + $0xc8] sm:$0xff] %v7763
  %7796 = vst [vmem:[#allocation5 + $0xd0] sm:$0xff] %v7764
  %7797 = vst [vmem:[#allocation5 + $0xd8] sm:$0xff] %v7765
  %7798 = vst [vmem:[#allocation5 + $0xe0] sm:$0xff] %v7766
  %7799 = vst [vmem:[#allocation5 + $0xe8] sm:$0xff] %v7767
  %7800 = vst [vmem:[#allocation5 + $0xf0] sm:$0xff] %v7768
  %7801 = vst [vmem:[#allocation5 + $0xf8] sm:$0xff] %v7769
  %v7802 = vld [vmem:[#allocation5] sm:$0xff]
  %v7803 = vld [vmem:[#allocation5 + $0x80] sm:$0xff]
  %7806 = vrot.lane.b32.xlu0 %v7802, 124
  %v7807 = vpop.permute.xlu0 %7806
  %7808 = vrot.lane.b32.xlu0 %v7803, 124
  %v7809 = vpop.permute.xlu0 %7808
  %v7812 = vmax.f32 %v7802, %v7807
  %v7813 = vmax.f32 %v7803, %v7809
  %v7814 = vld [vmem:[#allocation5 + $0x8] sm:$0xff]
  %v7815 = vld [vmem:[#allocation5 + $0x88] sm:$0xff]
  %7818 = vrot.lane.b32.xlu0 %v7814, 124
  %v7819 = vpop.permute.xlu0 %7818
  %7820 = vrot.lane.b32.xlu0 %v7815, 124
  %v7821 = vpop.permute.xlu0 %7820
  %v7824 = vmax.f32 %v7814, %v7819
  %v7825 = vmax.f32 %v7815, %v7821
  %v7826 = vmax.f32 %v7812, %v7824
  %v7827 = vmax.f32 %v7813, %v7825
  %vm7828 = vcmask 15360
  %7829 = vst.msk [vmem:[#allocation6] sm:$0xff] %vm7828, %v7826
  %7830 = vst.msk [vmem:[#allocation6 + $0x8] sm:$0xff] %vm7828, %v7827
  %v7831 = vld [vmem:[#allocation5] sm:$0xff]
  %v7832 = vld [vmem:[#allocation5 + $0x80] sm:$0xff]
  %7835 = vrot.lane.b32.xlu0 %v7831, 124
  %v7836 = vpop.permute.xlu0 %7835
  %7837 = vrot.lane.b32.xlu0 %v7832, 124
  %v7838 = vpop.permute.xlu0 %7837
  %v7841 = vmax.f32 %v7831, %v7836
  %v7842 = vmax.f32 %v7832, %v7838
  %v7843 = vld [vmem:[#allocation5 + $0x8] sm:$0xff]
  %v7844 = vld [vmem:[#allocation5 + $0x88] sm:$0xff]
  %7847 = vrot.lane.b32.xlu0 %v7843, 124
  %v7848 = vpop.permute.xlu0 %7847
  %7849 = vrot.lane.b32.xlu0 %v7844, 124
  %v7850 = vpop.permute.xlu0 %7849
  %v7853 = vmax.f32 %v7843, %v7848
  %v7854 = vmax.f32 %v7844, %v7850
  %v7855 = vmax.f32 %v7841, %v7853
  %v7856 = vmax.f32 %v7842, %v7854
  %7859 = vrot.lane.b32.xlu0 %v7855, 120
  %v7860 = vpop.permute.xlu0 %7859
  %7861 = vrot.lane.b32.xlu0 %v7856, 120
  %v7862 = vpop.permute.xlu0 %7861
  %7865 = vst.msk [vmem:[#allocation6 + $0x10] sm:$0xff] %vm7828, %v7860
  %7866 = vst.msk [vmem:[#allocation6 + $0x18] sm:$0xff] %vm7828, %v7862
  %v7867 = vld [vmem:[#allocation5] sm:$0xff]
  %v7868 = vld [vmem:[#allocation5 + $0x80] sm:$0xff]
  %7871 = vrot.lane.b32.xlu0 %v7867, 124
  %v7872 = vpop.permute.xlu0 %7871
  %7873 = vrot.lane.b32.xlu0 %v7868, 124
  %v7874 = vpop.permute.xlu0 %7873
  %v7877 = vmax.f32 %v7867, %v7872
  %v7878 = vmax.f32 %v7868, %v7874
  %v7879 = vld [vmem:[#allocation5 + $0x8] sm:$0xff]
  %v7880 = vld [vmem:[#allocation5 + $0x88] sm:$0xff]
  %7883 = vrot.lane.b32.xlu0 %v7879, 124
  %v7884 = vpop.permute.xlu0 %7883
  %7885 = vrot.lane.b32.xlu0 %v7880, 124
  %v7886 = vpop.permute.xlu0 %7885
  %v7889 = vmax.f32 %v7879, %v7884
  %v7890 = vmax.f32 %v7880, %v7886
  %v7891 = vmax.f32 %v7877, %v7889
  %v7892 = vmax.f32 %v7878, %v7890
  %7895 = vrot.lane.b32.xlu0 %v7891, 112
  %v7896 = vpop.permute.xlu0 %7895
  %7897 = vrot.lane.b32.xlu0 %v7892, 112
  %v7898 = vpop.permute.xlu0 %7897
  %7901 = vst.msk [vmem:[#allocation6 + $0x20] sm:$0xff] %vm7828, %v7896
  %7902 = vst.msk [vmem:[#allocation6 + $0x28] sm:$0xff] %vm7828, %v7898
  %v7903 = vld [vmem:[#allocation5] sm:$0xff]
  %v7904 = vld [vmem:[#allocation5 + $0x80] sm:$0xff]
  %7907 = vrot.lane.b32.xlu0 %v7903, 124
  %v7908 = vpop.permute.xlu0 %7907
  %7909 = vrot.lane.b32.xlu0 %v7904, 124
  %v7910 = vpop.permute.xlu0 %7909
  %v7913 = vmax.f32 %v7903, %v7908
  %v7914 = vmax.f32 %v7904, %v7910
  %v7915 = vld [vmem:[#allocation5 + $0x8] sm:$0xff]
  %v7916 = vld [vmem:[#allocation5 + $0x88] sm:$0xff]
  %7919 = vrot.lane.b32.xlu0 %v7915, 124
  %v7920 = vpop.permute.xlu0 %7919
  %7921 = vrot.lane.b32.xlu0 %v7916, 124
  %v7922 = vpop.permute.xlu0 %7921
  %v7925 = vmax.f32 %v7915, %v7920
  %v7926 = vmax.f32 %v7916, %v7922
  %v7927 = vmax.f32 %v7913, %v7925
  %v7928 = vmax.f32 %v7914, %v7926
  %7931 = vrot.lane.b32.xlu0 %v7927, 104
  %v7932 = vpop.permute.xlu0 %7931
  %7933 = vrot.lane.b32.xlu0 %v7928, 104
  %v7934 = vpop.permute.xlu0 %7933
  %7937 = vst.msk [vmem:[#allocation6 + $0x30] sm:$0xff] %vm7828, %v7932
  %7938 = vst.msk [vmem:[#allocation6 + $0x38] sm:$0xff] %vm7828, %v7934
  %v7939 = vld [vmem:[#allocation5] sm:$0xff]
  %v7940 = vld [vmem:[#allocation5 + $0x80] sm:$0xff]
  %7943 = vrot.lane.b32.xlu0 %v7939, 124
  %v7944 = vpop.permute.xlu0 %7943
  %7945 = vrot.lane.b32.xlu0 %v7940, 124
  %v7946 = vpop.permute.xlu0 %7945
  %v7949 = vmax.f32 %v7939, %v7944
  %v7950 = vmax.f32 %v7940, %v7946
  %v7951 = vld [vmem:[#allocation5 + $0x8] sm:$0xff]
  %v7952 = vld [vmem:[#allocation5 + $0x88] sm:$0xff]
  %7955 = vrot.lane.b32.xlu0 %v7951, 124
  %v7956 = vpop.permute.xlu0 %7955
  %7957 = vrot.lane.b32.xlu0 %v7952, 124
  %v7958 = vpop.permute.xlu0 %7957
  %v7961 = vmax.f32 %v7951, %v7956
  %v7962 = vmax.f32 %v7952, %v7958
  %v7963 = vmax.f32 %v7949, %v7961
  %v7964 = vmax.f32 %v7950, %v7962
  %7967 = vrot.lane.b32.xlu0 %v7963, 96
  %v7968 = vpop.permute.xlu0 %7967
  %7969 = vrot.lane.b32.xlu0 %v7964, 96
  %v7970 = vpop.permute.xlu0 %7969
  %7973 = vst.msk [vmem:[#allocation6 + $0x40] sm:$0xff] %vm7828, %v7968
  %7974 = vst.msk [vmem:[#allocation6 + $0x48] sm:$0xff] %vm7828, %v7970
  %v7975 = vld [vmem:[#allocation5 + $0x10] sm:$0xff]
  %v7976 = vld [vmem:[#allocation5 + $0x90] sm:$0xff]
  %7979 = vrot.lane.b32.xlu0 %v7975, 124
  %v7980 = vpop.permute.xlu0 %7979
  %7981 = vrot.lane.b32.xlu0 %v7976, 124
  %v7982 = vpop.permute.xlu0 %7981
  %v7985 = vmax.f32 %v7975, %v7980
  %v7986 = vmax.f32 %v7976, %v7982
  %v7987 = vld [vmem:[#allocation5 + $0x18] sm:$0xff]
  %v7988 = vld [vmem:[#allocation5 + $0x98] sm:$0xff]
  %7991 = vrot.lane.b32.xlu0 %v7987, 124
  %v7992 = vpop.permute.xlu0 %7991
  %7993 = vrot.lane.b32.xlu0 %v7988, 124
  %v7994 = vpop.permute.xlu0 %7993
  %v7997 = vmax.f32 %v7987, %v7992
  %v7998 = vmax.f32 %v7988, %v7994
  %v7999 = vmax.f32 %v7985, %v7997
  %v8000 = vmax.f32 %v7986, %v7998
  %8001 = vst.msk [vmem:[#allocation6 + $0x50] sm:$0xff] %vm7828, %v7999
  %8002 = vst.msk [vmem:[#allocation6 + $0x58] sm:$0xff] %vm7828, %v8000
  %v8003 = vld [vmem:[#allocation5 + $0x10] sm:$0xff]
  %v8004 = vld [vmem:[#allocation5 + $0x90] sm:$0xff]
  %8007 = vrot.lane.b32.xlu0 %v8003, 124
  %v8008 = vpop.permute.xlu0 %8007
  %8009 = vrot.lane.b32.xlu0 %v8004, 124
  %v8010 = vpop.permute.xlu0 %8009
  %v8013 = vmax.f32 %v8003, %v8008
  %v8014 = vmax.f32 %v8004, %v8010
  %v8015 = vld [vmem:[#allocation5 + $0x18] sm:$0xff]
  %v8016 = vld [vmem:[#allocation5 + $0x98] sm:$0xff]
  %8019 = vrot.lane.b32.xlu0 %v8015, 124
  %v8020 = vpop.permute.xlu0 %8019
  %8021 = vrot.lane.b32.xlu0 %v8016, 124
  %v8022 = vpop.permute.xlu0 %8021
  %v8025 = vmax.f32 %v8015, %v8020
  %v8026 = vmax.f32 %v8016, %v8022
  %v8027 = vmax.f32 %v8013, %v8025
  %v8028 = vmax.f32 %v8014, %v8026
  %8031 = vrot.lane.b32.xlu0 %v8027, 120
  %v8032 = vpop.permute.xlu0 %8031
  %8033 = vrot.lane.b32.xlu0 %v8028, 120
  %v8034 = vpop.permute.xlu0 %8033
  %8037 = vst.msk [vmem:[#allocation6 + $0x60] sm:$0xff] %vm7828, %v8032
  %8038 = vst.msk [vmem:[#allocation6 + $0x68] sm:$0xff] %vm7828, %v8034
  %v8039 = vld [vmem:[#allocation5 + $0x10] sm:$0xff]
  %v8040 = vld [vmem:[#allocation5 + $0x90] sm:$0xff]
  %8043 = vrot.lane.b32.xlu0 %v8039, 124
  %v8044 = vpop.permute.xlu0 %8043
  %8045 = vrot.lane.b32.xlu0 %v8040, 124
  %v8046 = vpop.permute.xlu0 %8045
  %v8049 = vmax.f32 %v8039, %v8044
  %v8050 = vmax.f32 %v8040, %v8046
  %v8051 = vld [vmem:[#allocation5 + $0x18] sm:$0xff]
  %v8052 = vld [vmem:[#allocation5 + $0x98] sm:$0xff]
  %8055 = vrot.lane.b32.xlu0 %v8051, 124
  %v8056 = vpop.permute.xlu0 %8055
  %8057 = vrot.lane.b32.xlu0 %v8052, 124
  %v8058 = vpop.permute.xlu0 %8057
  %v8061 = vmax.f32 %v8051, %v8056
  %v8062 = vmax.f32 %v8052, %v8058
  %v8063 = vmax.f32 %v8049, %v8061
  %v8064 = vmax.f32 %v8050, %v8062
  %8067 = vrot.lane.b32.xlu0 %v8063, 112
  %v8068 = vpop.permute.xlu0 %8067
  %8069 = vrot.lane.b32.xlu0 %v8064, 112
  %v8070 = vpop.permute.xlu0 %8069
  %8073 = vst.msk [vmem:[#allocation6 + $0x70] sm:$0xff] %vm7828, %v8068
  %8074 = vst.msk [vmem:[#allocation6 + $0x78] sm:$0xff] %vm7828, %v8070
  %v8075 = vld [vmem:[#allocation5 + $0x10] sm:$0xff]
  %v8076 = vld [vmem:[#allocation5 + $0x90] sm:$0xff]
  %8079 = vrot.lane.b32.xlu0 %v8075, 124
  %v8080 = vpop.permute.xlu0 %8079
  %8081 = vrot.lane.b32.xlu0 %v8076, 124
  %v8082 = vpop.permute.xlu0 %8081
  %v8085 = vmax.f32 %v8075, %v8080
  %v8086 = vmax.f32 %v8076, %v8082
  %v8087 = vld [vmem:[#allocation5 + $0x18] sm:$0xff]
  %v8088 = vld [vmem:[#allocation5 + $0x98] sm:$0xff]
  %8091 = vrot.lane.b32.xlu0 %v8087, 124
  %v8092 = vpop.permute.xlu0 %8091
  %8093 = vrot.lane.b32.xlu0 %v8088, 124
  %v8094 = vpop.permute.xlu0 %8093
  %v8097 = vmax.f32 %v8087, %v8092
  %v8098 = vmax.f32 %v8088, %v8094
  %v8099 = vmax.f32 %v8085, %v8097
  %v8100 = vmax.f32 %v8086, %v8098
  %8103 = vrot.lane.b32.xlu0 %v8099, 104
  %v8104 = vpop.permute.xlu0 %8103
  %8105 = vrot.lane.b32.xlu0 %v8100, 104
  %v8106 = vpop.permute.xlu0 %8105
  %8109 = vst.msk [vmem:[#allocation6 + $0x80] sm:$0xff] %vm7828, %v8104
  %8110 = vst.msk [vmem:[#allocation6 + $0x88] sm:$0xff] %vm7828, %v8106
  %v8111 = vld [vmem:[#allocation5 + $0x10] sm:$0xff]
  %v8112 = vld [vmem:[#allocation5 + $0x90] sm:$0xff]
  %8115 = vrot.lane.b32.xlu0 %v8111, 124
  %v8116 = vpop.permute.xlu0 %8115
  %8117 = vrot.lane.b32.xlu0 %v8112, 124
  %v8118 = vpop.permute.xlu0 %8117
  %v8121 = vmax.f32 %v8111, %v8116
  %v8122 = vmax.f32 %v8112, %v8118
  %v8123 = vld [vmem:[#allocation5 + $0x18] sm:$0xff]
  %v8124 = vld [vmem:[#allocation5 + $0x98] sm:$0xff]
  %8127 = vrot.lane.b32.xlu0 %v8123, 124
  %v8128 = vpop.permute.xlu0 %8127
  %8129 = vrot.lane.b32.xlu0 %v8124, 124
  %v8130 = vpop.permute.xlu0 %8129
  %v8133 = vmax.f32 %v8123, %v8128
  %v8134 = vmax.f32 %v8124, %v8130
  %v8135 = vmax.f32 %v8121, %v8133
  %v8136 = vmax.f32 %v8122, %v8134
  %8139 = vrot.lane.b32.xlu0 %v8135, 96
  %v8140 = vpop.permute.xlu0 %8139
  %8141 = vrot.lane.b32.xlu0 %v8136, 96
  %v8142 = vpop.permute.xlu0 %8141
  %8145 = vst.msk [vmem:[#allocation6 + $0x90] sm:$0xff] %vm7828, %v8140
  %8146 = vst.msk [vmem:[#allocation6 + $0x98] sm:$0xff] %vm7828, %v8142
  %v8147 = vld [vmem:[#allocation5 + $0x20] sm:$0xff]
  %v8148 = vld [vmem:[#allocation5 + $0xa0] sm:$0xff]
  %8151 = vrot.lane.b32.xlu0 %v8147, 124
  %v8152 = vpop.permute.xlu0 %8151
  %8153 = vrot.lane.b32.xlu0 %v8148, 124
  %v8154 = vpop.permute.xlu0 %8153
  %v8157 = vmax.f32 %v8147, %v8152
  %v8158 = vmax.f32 %v8148, %v8154
  %v8159 = vld [vmem:[#allocation5 + $0x28] sm:$0xff]
  %v8160 = vld [vmem:[#allocation5 + $0xa8] sm:$0xff]
  %8163 = vrot.lane.b32.xlu0 %v8159, 124
  %v8164 = vpop.permute.xlu0 %8163
  %8165 = vrot.lane.b32.xlu0 %v8160, 124
  %v8166 = vpop.permute.xlu0 %8165
  %v8169 = vmax.f32 %v8159, %v8164
  %v8170 = vmax.f32 %v8160, %v8166
  %v8171 = vmax.f32 %v8157, %v8169
  %v8172 = vmax.f32 %v8158, %v8170
  %8173 = vst.msk [vmem:[#allocation6 + $0xa0] sm:$0xff] %vm7828, %v8171
  %8174 = vst.msk [vmem:[#allocation6 + $0xa8] sm:$0xff] %vm7828, %v8172
  %v8175 = vld [vmem:[#allocation5 + $0x20] sm:$0xff]
  %v8176 = vld [vmem:[#allocation5 + $0xa0] sm:$0xff]
  %8179 = vrot.lane.b32.xlu0 %v8175, 124
  %v8180 = vpop.permute.xlu0 %8179
  %8181 = vrot.lane.b32.xlu0 %v8176, 124
  %v8182 = vpop.permute.xlu0 %8181
  %v8185 = vmax.f32 %v8175, %v8180
  %v8186 = vmax.f32 %v8176, %v8182
  %v8187 = vld [vmem:[#allocation5 + $0x28] sm:$0xff]
  %v8188 = vld [vmem:[#allocation5 + $0xa8] sm:$0xff]
  %8191 = vrot.lane.b32.xlu0 %v8187, 124
  %v8192 = vpop.permute.xlu0 %8191
  %8193 = vrot.lane.b32.xlu0 %v8188, 124
  %v8194 = vpop.permute.xlu0 %8193
  %v8197 = vmax.f32 %v8187, %v8192
  %v8198 = vmax.f32 %v8188, %v8194
  %v8199 = vmax.f32 %v8185, %v8197
  %v8200 = vmax.f32 %v8186, %v8198
  %8203 = vrot.lane.b32.xlu0 %v8199, 120
  %v8204 = vpop.permute.xlu0 %8203
  %8205 = vrot.lane.b32.xlu0 %v8200, 120
  %v8206 = vpop.permute.xlu0 %8205
  %8209 = vst.msk [vmem:[#allocation6 + $0xb0] sm:$0xff] %vm7828, %v8204
  %8210 = vst.msk [vmem:[#allocation6 + $0xb8] sm:$0xff] %vm7828, %v8206
  %v8211 = vld [vmem:[#allocation5 + $0x20] sm:$0xff]
  %v8212 = vld [vmem:[#allocation5 + $0xa0] sm:$0xff]
  %8215 = vrot.lane.b32.xlu0 %v8211, 124
  %v8216 = vpop.permute.xlu0 %8215
  %8217 = vrot.lane.b32.xlu0 %v8212, 124
  %v8218 = vpop.permute.xlu0 %8217
  %v8221 = vmax.f32 %v8211, %v8216
  %v8222 = vmax.f32 %v8212, %v8218
  %v8223 = vld [vmem:[#allocation5 + $0x28] sm:$0xff]
  %v8224 = vld [vmem:[#allocation5 + $0xa8] sm:$0xff]
  %8227 = vrot.lane.b32.xlu0 %v8223, 124
  %v8228 = vpop.permute.xlu0 %8227
  %8229 = vrot.lane.b32.xlu0 %v8224, 124
  %v8230 = vpop.permute.xlu0 %8229
  %v8233 = vmax.f32 %v8223, %v8228
  %v8234 = vmax.f32 %v8224, %v8230
  %v8235 = vmax.f32 %v8221, %v8233
  %v8236 = vmax.f32 %v8222, %v8234
  %8239 = vrot.lane.b32.xlu0 %v8235, 112
  %v8240 = vpop.permute.xlu0 %8239
  %8241 = vrot.lane.b32.xlu0 %v8236, 112
  %v8242 = vpop.permute.xlu0 %8241
  %8245 = vst.msk [vmem:[#allocation6 + $0xc0] sm:$0xff] %vm7828, %v8240
  %8246 = vst.msk [vmem:[#allocation6 + $0xc8] sm:$0xff] %vm7828, %v8242
  %v8247 = vld [vmem:[#allocation5 + $0x20] sm:$0xff]
  %v8248 = vld [vmem:[#allocation5 + $0xa0] sm:$0xff]
  %8251 = vrot.lane.b32.xlu0 %v8247, 124
  %v8252 = vpop.permute.xlu0 %8251
  %8253 = vrot.lane.b32.xlu0 %v8248, 124
  %v8254 = vpop.permute.xlu0 %8253
  %v8257 = vmax.f32 %v8247, %v8252
  %v8258 = vmax.f32 %v8248, %v8254
  %v8259 = vld [vmem:[#allocation5 + $0x28] sm:$0xff]
  %v8260 = vld [vmem:[#allocation5 + $0xa8] sm:$0xff]
  %8263 = vrot.lane.b32.xlu0 %v8259, 124
  %v8264 = vpop.permute.xlu0 %8263
  %8265 = vrot.lane.b32.xlu0 %v8260, 124
  %v8266 = vpop.permute.xlu0 %8265
  %v8269 = vmax.f32 %v8259, %v8264
  %v8270 = vmax.f32 %v8260, %v8266
  %v8271 = vmax.f32 %v8257, %v8269
  %v8272 = vmax.f32 %v8258, %v8270
  %8275 = vrot.lane.b32.xlu0 %v8271, 104
  %v8276 = vpop.permute.xlu0 %8275
  %8277 = vrot.lane.b32.xlu0 %v8272, 104
  %v8278 = vpop.permute.xlu0 %8277
  %8281 = vst.msk [vmem:[#allocation6 + $0xd0] sm:$0xff] %vm7828, %v8276
  %8282 = vst.msk [vmem:[#allocation6 + $0xd8] sm:$0xff] %vm7828, %v8278
  %v8283 = vld [vmem:[#allocation5 + $0x20] sm:$0xff]
  %v8284 = vld [vmem:[#allocation5 + $0xa0] sm:$0xff]
  %8287 = vrot.lane.b32.xlu0 %v8283, 124
  %v8288 = vpop.permute.xlu0 %8287
  %8289 = vrot.lane.b32.xlu0 %v8284, 124
  %v8290 = vpop.permute.xlu0 %8289
  %v8293 = vmax.f32 %v8283, %v8288
  %v8294 = vmax.f32 %v8284, %v8290
  %v8295 = vld [vmem:[#allocation5 + $0x28] sm:$0xff]
  %v8296 = vld [vmem:[#allocation5 + $0xa8] sm:$0xff]
  %8299 = vrot.lane.b32.xlu0 %v8295, 124
  %v8300 = vpop.permute.xlu0 %8299
  %8301 = vrot.lane.b32.xlu0 %v8296, 124
  %v8302 = vpop.permute.xlu0 %8301
  %v8305 = vmax.f32 %v8295, %v8300
  %v8306 = vmax.f32 %v8296, %v8302
  %v8307 = vmax.f32 %v8293, %v8305
  %v8308 = vmax.f32 %v8294, %v8306
  %8311 = vrot.lane.b32.xlu0 %v8307, 96
  %v8312 = vpop.permute.xlu0 %8311
  %8313 = vrot.lane.b32.xlu0 %v8308, 96
  %v8314 = vpop.permute.xlu0 %8313
  %8317 = vst.msk [vmem:[#allocation6 + $0xe0] sm:$0xff] %vm7828, %v8312
  %8318 = vst.msk [vmem:[#allocation6 + $0xe8] sm:$0xff] %vm7828, %v8314
  %v8319 = vld [vmem:[#allocation5 + $0x30] sm:$0xff]
  %v8320 = vld [vmem:[#allocation5 + $0xb0] sm:$0xff]
  %8323 = vrot.lane.b32.xlu0 %v8319, 124
  %v8324 = vpop.permute.xlu0 %8323
  %8325 = vrot.lane.b32.xlu0 %v8320, 124
  %v8326 = vpop.permute.xlu0 %8325
  %v8329 = vmax.f32 %v8319, %v8324
  %v8330 = vmax.f32 %v8320, %v8326
  %v8331 = vld [vmem:[#allocation5 + $0x38] sm:$0xff]
  %v8332 = vld [vmem:[#allocation5 + $0xb8] sm:$0xff]
  %8335 = vrot.lane.b32.xlu0 %v8331, 124
  %v8336 = vpop.permute.xlu0 %8335
  %8337 = vrot.lane.b32.xlu0 %v8332, 124
  %v8338 = vpop.permute.xlu0 %8337
  %v8341 = vmax.f32 %v8331, %v8336
  %v8342 = vmax.f32 %v8332, %v8338
  %v8343 = vmax.f32 %v8329, %v8341
  %v8344 = vmax.f32 %v8330, %v8342
  %8345 = vst.msk [vmem:[#allocation6 + $0xf0] sm:$0xff] %vm7828, %v8343
  %8346 = vst.msk [vmem:[#allocation6 + $0xf8] sm:$0xff] %vm7828, %v8344
  %v8347 = vld [vmem:[#allocation5 + $0x30] sm:$0xff]
  %v8348 = vld [vmem:[#allocation5 + $0xb0] sm:$0xff]
  %8351 = vrot.lane.b32.xlu0 %v8347, 124
  %v8352 = vpop.permute.xlu0 %8351
  %8353 = vrot.lane.b32.xlu0 %v8348, 124
  %v8354 = vpop.permute.xlu0 %8353
  %v8357 = vmax.f32 %v8347, %v8352
  %v8358 = vmax.f32 %v8348, %v8354
  %v8359 = vld [vmem:[#allocation5 + $0x38] sm:$0xff]
  %v8360 = vld [vmem:[#allocation5 + $0xb8] sm:$0xff]
  %8363 = vrot.lane.b32.xlu0 %v8359, 124
  %v8364 = vpop.permute.xlu0 %8363
  %8365 = vrot.lane.b32.xlu0 %v8360, 124
  %v8366 = vpop.permute.xlu0 %8365
  %v8369 = vmax.f32 %v8359, %v8364
  %v8370 = vmax.f32 %v8360, %v8366
  %v8371 = vmax.f32 %v8357, %v8369
  %v8372 = vmax.f32 %v8358, %v8370
  %8375 = vrot.lane.b32.xlu0 %v8371, 120
  %v8376 = vpop.permute.xlu0 %8375
  %8377 = vrot.lane.b32.xlu0 %v8372, 120
  %v8378 = vpop.permute.xlu0 %8377
  %8381 = vst.msk [vmem:[#allocation6 + $0x100] sm:$0xff] %vm7828, %v8376
  %8382 = vst.msk [vmem:[#allocation6 + $0x108] sm:$0xff] %vm7828, %v8378
  %v8383 = vld [vmem:[#allocation5 + $0x30] sm:$0xff]
  %v8384 = vld [vmem:[#allocation5 + $0xb0] sm:$0xff]
  %8387 = vrot.lane.b32.xlu0 %v8383, 124
  %v8388 = vpop.permute.xlu0 %8387
  %8389 = vrot.lane.b32.xlu0 %v8384, 124
  %v8390 = vpop.permute.xlu0 %8389
  %v8393 = vmax.f32 %v8383, %v8388
  %v8394 = vmax.f32 %v8384, %v8390
  %v8395 = vld [vmem:[#allocation5 + $0x38] sm:$0xff]
  %v8396 = vld [vmem:[#allocation5 + $0xb8] sm:$0xff]
  %8399 = vrot.lane.b32.xlu0 %v8395, 124
  %v8400 = vpop.permute.xlu0 %8399
  %8401 = vrot.lane.b32.xlu0 %v8396, 124
  %v8402 = vpop.permute.xlu0 %8401
  %v8405 = vmax.f32 %v8395, %v8400
  %v8406 = vmax.f32 %v8396, %v8402
  %v8407 = vmax.f32 %v8393, %v8405
  %v8408 = vmax.f32 %v8394, %v8406
  %8411 = vrot.lane.b32.xlu0 %v8407, 112
  %v8412 = vpop.permute.xlu0 %8411
  %8413 = vrot.lane.b32.xlu0 %v8408, 112
  %v8414 = vpop.permute.xlu0 %8413
  %8417 = vst.msk [vmem:[#allocation6 + $0x110] sm:$0xff] %vm7828, %v8412
  %8418 = vst.msk [vmem:[#allocation6 + $0x118] sm:$0xff] %vm7828, %v8414
  %v8419 = vld [vmem:[#allocation5 + $0x30] sm:$0xff]
  %v8420 = vld [vmem:[#allocation5 + $0xb0] sm:$0xff]
  %8423 = vrot.lane.b32.xlu0 %v8419, 124
  %v8424 = vpop.permute.xlu0 %8423
  %8425 = vrot.lane.b32.xlu0 %v8420, 124
  %v8426 = vpop.permute.xlu0 %8425
  %v8429 = vmax.f32 %v8419, %v8424
  %v8430 = vmax.f32 %v8420, %v8426
  %v8431 = vld [vmem:[#allocation5 + $0x38] sm:$0xff]
  %v8432 = vld [vmem:[#allocation5 + $0xb8] sm:$0xff]
  %8435 = vrot.lane.b32.xlu0 %v8431, 124
  %v8436 = vpop.permute.xlu0 %8435
  %8437 = vrot.lane.b32.xlu0 %v8432, 124
  %v8438 = vpop.permute.xlu0 %8437
  %v8441 = vmax.f32 %v8431, %v8436
  %v8442 = vmax.f32 %v8432, %v8438
  %v8443 = vmax.f32 %v8429, %v8441
  %v8444 = vmax.f32 %v8430, %v8442
  %8447 = vrot.lane.b32.xlu0 %v8443, 104
  %v8448 = vpop.permute.xlu0 %8447
  %8449 = vrot.lane.b32.xlu0 %v8444, 104
  %v8450 = vpop.permute.xlu0 %8449
  %8453 = vst.msk [vmem:[#allocation6 + $0x120] sm:$0xff] %vm7828, %v8448
  %8454 = vst.msk [vmem:[#allocation6 + $0x128] sm:$0xff] %vm7828, %v8450
  %v8455 = vld [vmem:[#allocation5 + $0x30] sm:$0xff]
  %v8456 = vld [vmem:[#allocation5 + $0xb0] sm:$0xff]
  %8459 = vrot.lane.b32.xlu0 %v8455, 124
  %v8460 = vpop.permute.xlu0 %8459
  %8461 = vrot.lane.b32.xlu0 %v8456, 124
  %v8462 = vpop.permute.xlu0 %8461
  %v8465 = vmax.f32 %v8455, %v8460
  %v8466 = vmax.f32 %v8456, %v8462
  %v8467 = vld [vmem:[#allocation5 + $0x38] sm:$0xff]
  %v8468 = vld [vmem:[#allocation5 + $0xb8] sm:$0xff]
  %8471 = vrot.lane.b32.xlu0 %v8467, 124
  %v8472 = vpop.permute.xlu0 %8471
  %8473 = vrot.lane.b32.xlu0 %v8468, 124
  %v8474 = vpop.permute.xlu0 %8473
  %v8477 = vmax.f32 %v8467, %v8472
  %v8478 = vmax.f32 %v8468, %v8474
  %v8479 = vmax.f32 %v8465, %v8477
  %v8480 = vmax.f32 %v8466, %v8478
  %8483 = vrot.lane.b32.xlu0 %v8479, 96
  %v8484 = vpop.permute.xlu0 %8483
  %8485 = vrot.lane.b32.xlu0 %v8480, 96
  %v8486 = vpop.permute.xlu0 %8485
  %8489 = vst.msk [vmem:[#allocation6 + $0x130] sm:$0xff] %vm7828, %v8484
  %8490 = vst.msk [vmem:[#allocation6 + $0x138] sm:$0xff] %vm7828, %v8486
  %v8491 = vld [vmem:[#allocation5 + $0x40] sm:$0xff]
  %v8492 = vld [vmem:[#allocation5 + $0xc0] sm:$0xff]
  %8495 = vrot.lane.b32.xlu0 %v8491, 124
  %v8496 = vpop.permute.xlu0 %8495
  %8497 = vrot.lane.b32.xlu0 %v8492, 124
  %v8498 = vpop.permute.xlu0 %8497
  %v8501 = vmax.f32 %v8491, %v8496
  %v8502 = vmax.f32 %v8492, %v8498
  %v8503 = vld [vmem:[#allocation5 + $0x48] sm:$0xff]
  %v8504 = vld [vmem:[#allocation5 + $0xc8] sm:$0xff]
  %8507 = vrot.lane.b32.xlu0 %v8503, 124
  %v8508 = vpop.permute.xlu0 %8507
  %8509 = vrot.lane.b32.xlu0 %v8504, 124
  %v8510 = vpop.permute.xlu0 %8509
  %v8513 = vmax.f32 %v8503, %v8508
  %v8514 = vmax.f32 %v8504, %v8510
  %v8515 = vmax.f32 %v8501, %v8513
  %v8516 = vmax.f32 %v8502, %v8514
  %8517 = vst.msk [vmem:[#allocation6 + $0x140] sm:$0xff] %vm7828, %v8515
  %8518 = vst.msk [vmem:[#allocation6 + $0x148] sm:$0xff] %vm7828, %v8516
  %v8519 = vld [vmem:[#allocation5 + $0x40] sm:$0xff]
  %v8520 = vld [vmem:[#allocation5 + $0xc0] sm:$0xff]
  %8523 = vrot.lane.b32.xlu0 %v8519, 124
  %v8524 = vpop.permute.xlu0 %8523
  %8525 = vrot.lane.b32.xlu0 %v8520, 124
  %v8526 = vpop.permute.xlu0 %8525
  %v8529 = vmax.f32 %v8519, %v8524
  %v8530 = vmax.f32 %v8520, %v8526
  %v8531 = vld [vmem:[#allocation5 + $0x48] sm:$0xff]
  %v8532 = vld [vmem:[#allocation5 + $0xc8] sm:$0xff]
  %8535 = vrot.lane.b32.xlu0 %v8531, 124
  %v8536 = vpop.permute.xlu0 %8535
  %8537 = vrot.lane.b32.xlu0 %v8532, 124
  %v8538 = vpop.permute.xlu0 %8537
  %v8541 = vmax.f32 %v8531, %v8536
  %v8542 = vmax.f32 %v8532, %v8538
  %v8543 = vmax.f32 %v8529, %v8541
  %v8544 = vmax.f32 %v8530, %v8542
  %8547 = vrot.lane.b32.xlu0 %v8543, 120
  %v8548 = vpop.permute.xlu0 %8547
  %8549 = vrot.lane.b32.xlu0 %v8544, 120
  %v8550 = vpop.permute.xlu0 %8549
  %8553 = vst.msk [vmem:[#allocation6 + $0x150] sm:$0xff] %vm7828, %v8548
  %8554 = vst.msk [vmem:[#allocation6 + $0x158] sm:$0xff] %vm7828, %v8550
  %v8555 = vld [vmem:[#allocation5 + $0x40] sm:$0xff]
  %v8556 = vld [vmem:[#allocation5 + $0xc0] sm:$0xff]
  %8559 = vrot.lane.b32.xlu0 %v8555, 124
  %v8560 = vpop.permute.xlu0 %8559
  %8561 = vrot.lane.b32.xlu0 %v8556, 124
  %v8562 = vpop.permute.xlu0 %8561
  %v8565 = vmax.f32 %v8555, %v8560
  %v8566 = vmax.f32 %v8556, %v8562
  %v8567 = vld [vmem:[#allocation5 + $0x48] sm:$0xff]
  %v8568 = vld [vmem:[#allocation5 + $0xc8] sm:$0xff]
  %8571 = vrot.lane.b32.xlu0 %v8567, 124
  %v8572 = vpop.permute.xlu0 %8571
  %8573 = vrot.lane.b32.xlu0 %v8568, 124
  %v8574 = vpop.permute.xlu0 %8573
  %v8577 = vmax.f32 %v8567, %v8572
  %v8578 = vmax.f32 %v8568, %v8574
  %v8579 = vmax.f32 %v8565, %v8577
  %v8580 = vmax.f32 %v8566, %v8578
  %8583 = vrot.lane.b32.xlu0 %v8579, 112
  %v8584 = vpop.permute.xlu0 %8583
  %8585 = vrot.lane.b32.xlu0 %v8580, 112
  %v8586 = vpop.permute.xlu0 %8585
  %8589 = vst.msk [vmem:[#allocation6 + $0x160] sm:$0xff] %vm7828, %v8584
  %8590 = vst.msk [vmem:[#allocation6 + $0x168] sm:$0xff] %vm7828, %v8586
  %v8591 = vld [vmem:[#allocation5 + $0x40] sm:$0xff]
  %v8592 = vld [vmem:[#allocation5 + $0xc0] sm:$0xff]
  %8595 = vrot.lane.b32.xlu0 %v8591, 124
  %v8596 = vpop.permute.xlu0 %8595
  %8597 = vrot.lane.b32.xlu0 %v8592, 124
  %v8598 = vpop.permute.xlu0 %8597
  %v8601 = vmax.f32 %v8591, %v8596
  %v8602 = vmax.f32 %v8592, %v8598
  %v8603 = vld [vmem:[#allocation5 + $0x48] sm:$0xff]
  %v8604 = vld [vmem:[#allocation5 + $0xc8] sm:$0xff]
  %8607 = vrot.lane.b32.xlu0 %v8603, 124
  %v8608 = vpop.permute.xlu0 %8607
  %8609 = vrot.lane.b32.xlu0 %v8604, 124
  %v8610 = vpop.permute.xlu0 %8609
  %v8613 = vmax.f32 %v8603, %v8608
  %v8614 = vmax.f32 %v8604, %v8610
  %v8615 = vmax.f32 %v8601, %v8613
  %v8616 = vmax.f32 %v8602, %v8614
  %8619 = vrot.lane.b32.xlu0 %v8615, 104
  %v8620 = vpop.permute.xlu0 %8619
  %8621 = vrot.lane.b32.xlu0 %v8616, 104
  %v8622 = vpop.permute.xlu0 %8621
  %8625 = vst.msk [vmem:[#allocation6 + $0x170] sm:$0xff] %vm7828, %v8620
  %8626 = vst.msk [vmem:[#allocation6 + $0x178] sm:$0xff] %vm7828, %v8622
  %v8627 = vld [vmem:[#allocation5 + $0x40] sm:$0xff]
  %v8628 = vld [vmem:[#allocation5 + $0xc0] sm:$0xff]
  %8631 = vrot.lane.b32.xlu0 %v8627, 124
  %v8632 = vpop.permute.xlu0 %8631
  %8633 = vrot.lane.b32.xlu0 %v8628, 124
  %v8634 = vpop.permute.xlu0 %8633
  %v8637 = vmax.f32 %v8627, %v8632
  %v8638 = vmax.f32 %v8628, %v8634
  %v8639 = vld [vmem:[#allocation5 + $0x48] sm:$0xff]
  %v8640 = vld [vmem:[#allocation5 + $0xc8] sm:$0xff]
  %8643 = vrot.lane.b32.xlu0 %v8639, 124
  %v8644 = vpop.permute.xlu0 %8643
  %8645 = vrot.lane.b32.xlu0 %v8640, 124
  %v8646 = vpop.permute.xlu0 %8645
  %v8649 = vmax.f32 %v8639, %v8644
  %v8650 = vmax.f32 %v8640, %v8646
  %v8651 = vmax.f32 %v8637, %v8649
  %v8652 = vmax.f32 %v8638, %v8650
  %8655 = vrot.lane.b32.xlu0 %v8651, 96
  %v8656 = vpop.permute.xlu0 %8655
  %8657 = vrot.lane.b32.xlu0 %v8652, 96
  %v8658 = vpop.permute.xlu0 %8657
  %8661 = vst.msk [vmem:[#allocation6 + $0x180] sm:$0xff] %vm7828, %v8656
  %8662 = vst.msk [vmem:[#allocation6 + $0x188] sm:$0xff] %vm7828, %v8658
  %v8663 = vld [vmem:[%s5] sm:$0xff]
  %v8664 = vld [vmem:[%s5 + $0x8] sm:$0xff]
  %v8665 = vld [vmem:[%s5 + $0x10] sm:$0xff]
  %v8666 = vld [vmem:[%s5 + $0x18] sm:$0xff]
  %v8667 = vld [vmem:[%s5 + $0x20] sm:$0xff]
  %v8668 = vld [vmem:[%s5 + $0x28] sm:$0xff]
  %v8669 = vld [vmem:[%s5 + $0x30] sm:$0xff]
  %v8670 = vld [vmem:[%s5 + $0x38] sm:$0xff]
  %v8671 = vld [vmem:[%s5 + $0x40] sm:$0xff]
  %v8672 = vld [vmem:[%s5 + $0x48] sm:$0xff]
  %v8673 = vld [vmem:[%s5 + $0x50] sm:$0xff]
  %v8674 = vld [vmem:[%s5 + $0x58] sm:$0xff]
  %v8675 = vld [vmem:[%s5 + $0x60] sm:$0xff]
  %v8676 = vld [vmem:[%s5 + $0x68] sm:$0xff]
  %v8677 = vld [vmem:[%s5 + $0x70] sm:$0xff]
  %v8678 = vld [vmem:[%s5 + $0x78] sm:$0xff]
  %v8679 = vld [vmem:[%s5 + $0x80] sm:$0xff]
  %v8680 = vld [vmem:[%s5 + $0x88] sm:$0xff]
  %v8681 = vld [vmem:[%s5 + $0x90] sm:$0xff]
  %v8682 = vld [vmem:[%s5 + $0x98] sm:$0xff]
  %v8683 = vld [vmem:[%s5 + $0xa0] sm:$0xff]
  %v8684 = vld [vmem:[%s5 + $0xa8] sm:$0xff]
  %v8685 = vld [vmem:[%s5 + $0xb0] sm:$0xff]
  %v8686 = vld [vmem:[%s5 + $0xb8] sm:$0xff]
  %v8687 = vld [vmem:[%s5 + $0xc0] sm:$0xff]
  %v8688 = vld [vmem:[%s5 + $0xc8] sm:$0xff]
  %v8689 = vld [vmem:[%s5 + $0xd0] sm:$0xff]
  %v8690 = vld [vmem:[%s5 + $0xd8] sm:$0xff]
  %v8691 = vld [vmem:[%s5 + $0xe0] sm:$0xff]
  %v8692 = vld [vmem:[%s5 + $0xe8] sm:$0xff]
  %v8693 = vld [vmem:[%s5 + $0xf0] sm:$0xff]
  %v8694 = vld [vmem:[%s5 + $0xf8] sm:$0xff]
  %v8695 = vld [vmem:[%s5 + $0x100] sm:$0xff]
  %v8696 = vld [vmem:[%s5 + $0x108] sm:$0xff]
  %v8697 = vld [vmem:[%s5 + $0x110] sm:$0xff]
  %v8698 = vld [vmem:[%s5 + $0x118] sm:$0xff]
  %v8699 = vld [vmem:[%s5 + $0x120] sm:$0xff]
  %v8700 = vld [vmem:[%s5 + $0x128] sm:$0xff]
  %v8701 = vld [vmem:[%s5 + $0x130] sm:$0xff]
  %v8702 = vld [vmem:[%s5 + $0x138] sm:$0xff]
  %v8703 = vld [vmem:[%s5 + $0x140] sm:$0xff]
  %v8704 = vld [vmem:[%s5 + $0x148] sm:$0xff]
  %v8705 = vld [vmem:[%s5 + $0x150] sm:$0xff]
  %v8706 = vld [vmem:[%s5 + $0x158] sm:$0xff]
  %v8707 = vld [vmem:[%s5 + $0x160] sm:$0xff]
  %v8708 = vld [vmem:[%s5 + $0x168] sm:$0xff]
  %v8709 = vld [vmem:[%s5 + $0x170] sm:$0xff]
  %v8710 = vld [vmem:[%s5 + $0x178] sm:$0xff]
  %v8711 = vld [vmem:[%s5 + $0x180] sm:$0xff]
  %v8712 = vld [vmem:[%s5 + $0x188] sm:$0xff]
  %v8713 = vld [vmem:[%s5 + $0x190] sm:$0xff]
  %v8714 = vld [vmem:[%s5 + $0x198] sm:$0xff]
  %v8715 = vld [vmem:[%s5 + $0x1a0] sm:$0xff]
  %v8716 = vld [vmem:[%s5 + $0x1a8] sm:$0xff]
  %v8717 = vld [vmem:[%s5 + $0x1b0] sm:$0xff]
  %v8718 = vld [vmem:[%s5 + $0x1b8] sm:$0xff]
  %v8719 = vld [vmem:[%s5 + $0x1c0] sm:$0xff]
  %v8720 = vld [vmem:[%s5 + $0x1c8] sm:$0xff]
  %v8721 = vld [vmem:[%s5 + $0x1d0] sm:$0xff]
  %v8722 = vld [vmem:[%s5 + $0x1d8] sm:$0xff]
  %v8723 = vld [vmem:[#allocation6] sm:$0xff]
  %v8724 = vld [vmem:[#allocation6 + $0x8] sm:$0xff]
  %v8725 = vld [vmem:[#allocation6 + $0x10] sm:$0xff]
  %v8726 = vld [vmem:[#allocation6 + $0x18] sm:$0xff]
  %v8727 = vld [vmem:[#allocation6 + $0x20] sm:$0xff]
  %v8728 = vld [vmem:[#allocation6 + $0x28] sm:$0xff]
  %v8729 = vld [vmem:[#allocation6 + $0x30] sm:$0xff]
  %v8730 = vld [vmem:[#allocation6 + $0x38] sm:$0xff]
  %v8731 = vld [vmem:[#allocation6 + $0x40] sm:$0xff]
  %v8732 = vld [vmem:[#allocation6 + $0x48] sm:$0xff]
  %v8733 = vld [vmem:[#allocation6 + $0x50] sm:$0xff]
  %v8734 = vld [vmem:[#allocation6 + $0x58] sm:$0xff]
  %v8735 = vld [vmem:[#allocation6 + $0x60] sm:$0xff]
  %v8736 = vld [vmem:[#allocation6 + $0x68] sm:$0xff]
  %v8737 = vld [vmem:[#allocation6 + $0x70] sm:$0xff]
  %v8738 = vld [vmem:[#allocation6 + $0x78] sm:$0xff]
  %v8739 = vld [vmem:[#allocation6 + $0x80] sm:$0xff]
  %v8740 = vld [vmem:[#allocation6 + $0x88] sm:$0xff]
  %v8741 = vld [vmem:[#allocation6 + $0x90] sm:$0xff]
  %v8742 = vld [vmem:[#allocation6 + $0x98] sm:$0xff]
  %v8743 = vld [vmem:[#allocation6 + $0xa0] sm:$0xff]
  %v8744 = vld [vmem:[#allocation6 + $0xa8] sm:$0xff]
  %v8745 = vld [vmem:[#allocation6 + $0xb0] sm:$0xff]
  %v8746 = vld [vmem:[#allocation6 + $0xb8] sm:$0xff]
  %v8747 = vld [vmem:[#allocation6 + $0xc0] sm:$0xff]
  %v8748 = vld [vmem:[#allocation6 + $0xc8] sm:$0xff]
  %v8749 = vld [vmem:[#allocation6 + $0xd0] sm:$0xff]
  %v8750 = vld [vmem:[#allocation6 + $0xd8] sm:$0xff]
  %v8751 = vld [vmem:[#allocation6 + $0xe0] sm:$0xff]
  %v8752 = vld [vmem:[#allocation6 + $0xe8] sm:$0xff]
  %v8753 = vld [vmem:[#allocation6 + $0xf0] sm:$0xff]
  %v8754 = vld [vmem:[#allocation6 + $0xf8] sm:$0xff]
  %v8755 = vld [vmem:[#allocation6 + $0x100] sm:$0xff]
  %v8756 = vld [vmem:[#allocation6 + $0x108] sm:$0xff]
  %v8757 = vld [vmem:[#allocation6 + $0x110] sm:$0xff]
  %v8758 = vld [vmem:[#allocation6 + $0x118] sm:$0xff]
  %v8759 = vld [vmem:[#allocation6 + $0x120] sm:$0xff]
  %v8760 = vld [vmem:[#allocation6 + $0x128] sm:$0xff]
  %v8761 = vld [vmem:[#allocation6 + $0x130] sm:$0xff]
  %v8762 = vld [vmem:[#allocation6 + $0x138] sm:$0xff]
  %v8763 = vld [vmem:[#allocation6 + $0x140] sm:$0xff]
  %v8764 = vld [vmem:[#allocation6 + $0x148] sm:$0xff]
  %v8765 = vld [vmem:[#allocation6 + $0x150] sm:$0xff]
  %v8766 = vld [vmem:[#allocation6 + $0x158] sm:$0xff]
  %v8767 = vld [vmem:[#allocation6 + $0x160] sm:$0xff]
  %v8768 = vld [vmem:[#allocation6 + $0x168] sm:$0xff]
  %v8769 = vld [vmem:[#allocation6 + $0x170] sm:$0xff]
  %v8770 = vld [vmem:[#allocation6 + $0x178] sm:$0xff]
  %v8771 = vld [vmem:[#allocation6 + $0x180] sm:$0xff]
  %v8772 = vld [vmem:[#allocation6 + $0x188] sm:$0xff]
  %v8773 = vld [vmem:[%s6] sm:$0xff]
  %v8774 = vld [vmem:[%s6 + $0x8] sm:$0xff]
  %v8775 = vld [vmem:[%s6 + $0x10] sm:$0xff]
  %v8776 = vld [vmem:[%s6 + $0x18] sm:$0xff]
  %v8777 = vld [vmem:[%s6 + $0x20] sm:$0xff]
  %v8778 = vld [vmem:[%s6 + $0x28] sm:$0xff]
  %v8779 = vld [vmem:[%s6 + $0x30] sm:$0xff]
  %v8780 = vld [vmem:[%s6 + $0x38] sm:$0xff]
  %v8781 = vld [vmem:[%s6 + $0x40] sm:$0xff]
  %v8782 = vld [vmem:[%s6 + $0x48] sm:$0xff]
  %v8783 = vld [vmem:[%s6 + $0x50] sm:$0xff]
  %v8784 = vld [vmem:[%s6 + $0x58] sm:$0xff]
  %v8785 = vld [vmem:[%s6 + $0x60] sm:$0xff]
  %v8786 = vld [vmem:[%s6 + $0x68] sm:$0xff]
  %v8787 = vld [vmem:[%s6 + $0x70] sm:$0xff]
  %8789 = vset.pattern.permute.xlu0 0
  %8790 = vperm.xlu0 %8789, %v8773
  %v8791 = vpop.permute.xlu0 %8790
  %8794 = vset.pattern.permute.xlu0 0
  %8795 = vperm.xlu0 %8794, %v8774
  %v8796 = vpop.permute.xlu0 %8795
  %8799 = vset.pattern.permute.xlu0 0
  %8800 = vperm.xlu0 %8799, %v8775
  %v8801 = vpop.permute.xlu0 %8800
  %8804 = vset.pattern.permute.xlu0 0
  %8805 = vperm.xlu0 %8804, %v8776
  %v8806 = vpop.permute.xlu0 %8805
  %8809 = vset.pattern.permute.xlu0 0
  %8810 = vperm.xlu0 %8809, %v8777
  %v8811 = vpop.permute.xlu0 %8810
  %8814 = vset.pattern.permute.xlu0 0
  %8815 = vperm.xlu0 %8814, %v8778
  %v8816 = vpop.permute.xlu0 %8815
  %8819 = vset.pattern.permute.xlu0 0
  %8820 = vperm.xlu0 %8819, %v8779
  %v8821 = vpop.permute.xlu0 %8820
  %8824 = vset.pattern.permute.xlu0 0
  %8825 = vperm.xlu0 %8824, %v8780
  %v8826 = vpop.permute.xlu0 %8825
  %8829 = vset.pattern.permute.xlu0 0
  %8830 = vperm.xlu0 %8829, %v8781
  %v8831 = vpop.permute.xlu0 %8830
  %8834 = vset.pattern.permute.xlu0 0
  %8835 = vperm.xlu0 %8834, %v8782
  %v8836 = vpop.permute.xlu0 %8835
  %8839 = vset.pattern.permute.xlu0 0
  %8840 = vperm.xlu0 %8839, %v8783
  %v8841 = vpop.permute.xlu0 %8840
  %8844 = vset.pattern.permute.xlu0 0
  %8845 = vperm.xlu0 %8844, %v8784
  %v8846 = vpop.permute.xlu0 %8845
  %8849 = vset.pattern.permute.xlu0 0
  %8850 = vperm.xlu0 %8849, %v8785
  %v8851 = vpop.permute.xlu0 %8850
  %8854 = vset.pattern.permute.xlu0 0
  %8855 = vperm.xlu0 %8854, %v8786
  %v8856 = vpop.permute.xlu0 %8855
  %8859 = vset.pattern.permute.xlu0 0
  %8860 = vperm.xlu0 %8859, %v8787
  %v8861 = vpop.permute.xlu0 %8860
  %vm8863 = vcmask 130048
  %v8865 = vsel %vm8863, %v8666, 0
  %v8868 = vsel %vm8863, %v8670, 0
  %v8871 = vsel %vm8863, %v8674, 0
  %v8874 = vsel %vm8863, %v8678, 0
  %v8877 = vsel %vm8863, %v8682, 0
  %v8880 = vsel %vm8863, %v8686, 0
  %v8883 = vsel %vm8863, %v8690, 0
  %v8886 = vsel %vm8863, %v8694, 0
  %v8889 = vsel %vm8863, %v8698, 0
  %v8892 = vsel %vm8863, %v8702, 0
  %v8895 = vsel %vm8863, %v8706, 0
  %v8898 = vsel %vm8863, %v8710, 0
  %v8901 = vsel %vm8863, %v8714, 0
  %v8904 = vsel %vm8863, %v8718, 0
  %v8907 = vsel %vm8863, %v8722, 0
  %8909 = vmatprep.subr.mxu0 0.0
  %8910 = vmatpush1.msra.mxu0 %v8723
  %8911 = vmatprep.subr.mxu0 0.0
  %8912 = vmatpush1.msra.mxu0 %v8724
  %8913 = vmatprep.subr.mxu0 0.0
  %8914 = vmatpush1.msra.mxu0 %v8725
  %8915 = vmatprep.subr.mxu0 0.0
  %8916 = vmatpush1.msra.mxu0 %v8726
  %8917 = vmatprep.subr.mxu0 0.0
  %8918 = vmatpush1.msra.mxu0 %v8727
  %8919 = vmatprep.subr.mxu0 0.0
  %8920 = vmatpush1.msra.mxu0 %v8728
  %8921 = vmatprep.subr.mxu0 0.0
  %8922 = vmatpush1.msra.mxu0 %v8729
  %8923 = vmatprep.subr.mxu0 0.0
  %8924 = vmatpush1.msra.mxu0 %v8730
  %8925 = vmatprep.subr.mxu0 0.0
  %8926 = vmatpush1.msra.mxu0 %v8731
  %8927 = vmatprep.subr.mxu0 0.0
  %8928 = vmatpush1.msra.mxu0 %v8732
  %8929 = vmatprep.subr.mxu0 0.0
  %8930 = vmatpush1.msra.mxu0 %v8733
  %8931 = vmatprep.subr.mxu0 0.0
  %8932 = vmatpush1.msra.mxu0 %v8734
  %8933 = vmatprep.subr.mxu0 0.0
  %8934 = vmatpush1.msra.mxu0 %v8735
  %8935 = vmatprep.subr.mxu0 0.0
  %8936 = vmatpush1.msra.mxu0 %v8736
  %8937 = vmatprep.subr.mxu0 0.0
  %8938 = vmatpush1.msra.mxu0 %v8737
  %8939 = vmatprep.subr.mxu0 0.0
  %8940 = vmatpush1.msra.mxu0 %v8738
  %8941 = vmatprep.subr.mxu0 0.0
  %8942 = vmatpush1.msra.mxu0 %v8739
  %8943 = vmatprep.subr.mxu0 0.0
  %8944 = vmatpush1.msra.mxu0 %v8740
  %8945 = vmatprep.subr.mxu0 0.0
  %8946 = vmatpush1.msra.mxu0 %v8741
  %8947 = vmatprep.subr.mxu0 0.0
  %8948 = vmatpush1.msra.mxu0 %v8742
  %8949 = vmatprep.subr.mxu0 0.0
  %8950 = vmatpush1.msra.mxu0 %v8743
  %8951 = vmatprep.subr.mxu0 0.0
  %8952 = vmatpush1.msra.mxu0 %v8744
  %8953 = vmatprep.subr.mxu0 0.0
  %8954 = vmatpush1.msra.mxu0 %v8745
  %8955 = vmatprep.subr.mxu0 0.0
  %8956 = vmatpush1.msra.mxu0 %v8746
  %8957 = vmatprep.subr.mxu0 0.0
  %8958 = vmatpush1.msra.mxu0 %v8747
  %8959 = vmatprep.subr.mxu0 0.0
  %8960 = vmatpush1.msra.mxu0 %v8748
  %8961 = vmatprep.subr.mxu0 0.0
  %8962 = vmatpush1.msra.mxu0 %v8749
  %8963 = vmatprep.subr.mxu0 0.0
  %8964 = vmatpush1.msra.mxu0 %v8750
  %8965 = vmatprep.subr.mxu0 0.0
  %8966 = vmatpush1.msra.mxu0 %v8751
  %8967 = vmatprep.subr.mxu0 0.0
  %8968 = vmatpush1.msra.mxu0 %v8752
  %8969 = vmatprep.subr.mxu0 0.0
  %8970 = vmatpush1.msra.mxu0 %v8753
  %8971 = vmatprep.subr.mxu0 0.0
  %8972 = vmatpush1.msra.mxu0 %v8754
  %8973 = vmatprep.mubr.f32.mxu0 %v8664
  %8974 = vmatmul.mubr.f32.gmra.mrb[0].mxu0 %v8663
  %v8975 = vpop.f32.mrb[0].mxu0
  %v8976 = vadd.f32 %v8791, %v8975
  %v8977 = vpop.f32.mrb[0].mxu0
  %8978 = vmatprep.mubr.f32.mxu0 %v8668
  %8979 = vmatmul.mubr.f32.gmra.mrb[0].mxu0 %v8667
  %v8980 = vpop.f32.mrb[0].mxu0
  %v8981 = vadd.f32 %v8796, %v8980
  %v8982 = vpop.f32.mrb[0].mxu0
  %8983 = vmatprep.mubr.f32.mxu0 %v8672
  %8984 = vmatmul.mubr.f32.gmra.mrb[0].mxu0 %v8671
  %v8985 = vpop.f32.mrb[0].mxu0
  %v8986 = vadd.f32 %v8801, %v8985
  %v8987 = vpop.f32.mrb[0].mxu0
  %8988 = vmatprep.mubr.f32.mxu0 %v8676
  %8989 = vmatmul.mubr.f32.gmra.mrb[0].mxu0 %v8675
  %v8990 = vpop.f32.mrb[0].mxu0
  %v8991 = vadd.f32 %v8806, %v8990
  %v8992 = vpop.f32.mrb[0].mxu0
  %8993 = vmatprep.mubr.f32.mxu0 %v8680
  %8994 = vmatmul.mubr.f32.gmra.mrb[0].mxu0 %v8679
  %v8995 = vpop.f32.mrb[0].mxu0
  %v8996 = vadd.f32 %v8811, %v8995
  %v8997 = vpop.f32.mrb[0].mxu0
  %8998 = vmatprep.mubr.f32.mxu0 %v8684
  %8999 = vmatmul.mubr.f32.gmra.mrb[0].mxu0 %v8683
  %v9000 = vpop.f32.mrb[0].mxu0
  %v9001 = vadd.f32 %v8816, %v9000
  %v9002 = vpop.f32.mrb[0].mxu0
  %9003 = vmatprep.mubr.f32.mxu0 %v8688
  %9004 = vmatmul.mubr.f32.gmra.mrb[0].mxu0 %v8687
  %v9005 = vpop.f32.mrb[0].mxu0
  %v9006 = vadd.f32 %v8821, %v9005
  %v9007 = vpop.f32.mrb[0].mxu0
  %9008 = vmatprep.mubr.f32.mxu0 %v8692
  %9009 = vmatmul.mubr.f32.gmra.mrb[0].mxu0 %v8691
  %v9010 = vpop.f32.mrb[0].mxu0
  %v9011 = vadd.f32 %v8826, %v9010
  %v9012 = vpop.f32.mrb[0].mxu0
  %9013 = vmatprep.mubr.f32.mxu0 %v8696
  %9014 = vmatmul.mubr.f32.gmra.mrb[0].mxu0 %v8695
  %v9015 = vpop.f32.mrb[0].mxu0
  %v9016 = vadd.f32 %v8831, %v9015
  %v9017 = vpop.f32.mrb[0].mxu0
  %9018 = vmatprep.mubr.f32.mxu0 %v8700
  %9019 = vmatmul.mubr.f32.gmra.mrb[0].mxu0 %v8699
  %v9020 = vpop.f32.mrb[0].mxu0
  %v9021 = vadd.f32 %v8836, %v9020
  %v9022 = vpop.f32.mrb[0].mxu0
  %9023 = vmatprep.mubr.f32.mxu0 %v8704
  %9024 = vmatmul.mubr.f32.gmra.mrb[0].mxu0 %v8703
  %v9025 = vpop.f32.mrb[0].mxu0
  %v9026 = vadd.f32 %v8841, %v9025
  %v9027 = vpop.f32.mrb[0].mxu0
  %9028 = vmatprep.mubr.f32.mxu0 %v8708
  %9029 = vmatmul.mubr.f32.gmra.mrb[0].mxu0 %v8707
  %v9030 = vpop.f32.mrb[0].mxu0
  %v9031 = vadd.f32 %v8846, %v9030
  %v9032 = vpop.f32.mrb[0].mxu0
  %9033 = vmatprep.mubr.f32.mxu0 %v8712
  %9034 = vmatmul.mubr.f32.gmra.mrb[0].mxu0 %v8711
  %v9035 = vpop.f32.mrb[0].mxu0
  %v9036 = vadd.f32 %v8851, %v9035
  %v9037 = vpop.f32.mrb[0].mxu0
  %9038 = vmatprep.mubr.f32.mxu0 %v8716
  %9039 = vmatmul.mubr.f32.gmra.mrb[0].mxu0 %v8715
  %v9040 = vpop.f32.mrb[0].mxu0
  %v9041 = vadd.f32 %v8856, %v9040
  %v9042 = vpop.f32.mrb[0].mxu0
  %9043 = vmatprep.mubr.f32.mxu0 %v8720
  %9044 = vmatmul.mubr.f32.gmra.mrb[0].mxu0 %v8719
  %v9045 = vpop.f32.mrb[0].mxu0
  %v9046 = vadd.f32 %v8861, %v9045
  %v9047 = vpop.f32.mrb[0].mxu0
  %9048 = vdwg.mxu0
  %9049 = vmatprep.subr.mxu0 0.0
  %9050 = vmatpush1.msra.mxu0 %v8755
  %9051 = vmatprep.subr.mxu0 0.0
  %9052 = vmatpush1.msra.mxu0 %v8756
  %9053 = vmatprep.subr.mxu0 0.0
  %9054 = vmatpush1.msra.mxu0 %v8757
  %9055 = vmatprep.subr.mxu0 0.0
  %9056 = vmatpush1.msra.mxu0 %v8758
  %9057 = vmatprep.subr.mxu0 0.0
  %9058 = vmatpush1.msra.mxu0 %v8759
  %9059 = vmatprep.subr.mxu0 0.0
  %9060 = vmatpush1.msra.mxu0 %v8760
  %9061 = vmatprep.subr.mxu0 0.0
  %9062 = vmatpush1.msra.mxu0 %v8761
  %9063 = vmatprep.subr.mxu0 0.0
  %9064 = vmatpush1.msra.mxu0 %v8762
  %9065 = vmatprep.subr.mxu0 0.0
  %9066 = vmatpush1.msra.mxu0 %v8763
  %9067 = vmatprep.subr.mxu0 0.0
  %9068 = vmatpush1.msra.mxu0 %v8764
  %9069 = vmatprep.subr.mxu0 0.0
  %9070 = vmatpush1.msra.mxu0 %v8765
  %9071 = vmatprep.subr.mxu0 0.0
  %9072 = vmatpush1.msra.mxu0 %v8766
  %9073 = vmatprep.subr.mxu0 0.0
  %9074 = vmatpush1.msra.mxu0 %v8767
  %9075 = vmatprep.subr.mxu0 0.0
  %9076 = vmatpush1.msra.mxu0 %v8768
  %9077 = vmatprep.subr.mxu0 0.0
  %9078 = vmatpush1.msra.mxu0 %v8769
  %9079 = vmatprep.subr.mxu0 0.0
  %9080 = vmatpush1.msra.mxu0 %v8770
  %9081 = vmatprep.subr.mxu0 0.0
  %9082 = vmatpush1.msra.mxu0 %v8771
  %9083 = vmatprep.subr.mxu0 0.0
  %9084 = vmatpush1.msra.mxu0 %v8772
  %9085 = vmatprep.subr.mxu0 0.0
  %9086 = vmatpush1.msra.mxu0 0.0
  %9087 = vmatprep.subr.mxu0 0.0
  %9088 = vmatpush1.msra.mxu0 0.0
  %9089 = vmatprep.subr.mxu0 0.0
  %9090 = vmatpush1.msra.mxu0 0.0
  %9091 = vmatprep.subr.mxu0 0.0
  %9092 = vmatpush1.msra.mxu0 0.0
  %9093 = vmatprep.subr.mxu0 0.0
  %9094 = vmatpush1.msra.mxu0 0.0
  %9095 = vmatprep.subr.mxu0 0.0
  %9096 = vmatpush1.msra.mxu0 0.0
  %9097 = vmatprep.subr.mxu0 0.0
  %9098 = vmatpush1.msra.mxu0 0.0
  %9099 = vmatprep.subr.mxu0 0.0
  %9100 = vmatpush1.msra.mxu0 0.0
  %9101 = vmatprep.subr.mxu0 0.0
  %9102 = vmatpush1.msra.mxu0 0.0
  %9103 = vmatprep.subr.mxu0 0.0
  %9104 = vmatpush1.msra.mxu0 0.0
  %9105 = vmatprep.subr.mxu0 0.0
  %9106 = vmatpush1.msra.mxu0 0.0
  %9107 = vmatprep.subr.mxu0 0.0
  %9108 = vmatpush1.msra.mxu0 0.0
  %9109 = vmatprep.subr.mxu0 0.0
  %9110 = vmatpush1.msra.mxu0 0.0
  %9111 = vmatprep.subr.mxu0 0.0
  %9112 = vmatpush1.msra.mxu0 0.0
  %9113 = vmatprep.mubr.f32.mxu0 %v8865
  %9114 = vmatmul.mubr.f32.gmra.mrb[0].mxu0 %v8665
  %v9115 = vpop.f32.mrb[0].mxu0
  %v9116 = vadd.f32 %v8976, %v9115
  %v9117 = vpop.f32.mrb[0].mxu0
  %9118 = vmatprep.mubr.f32.mxu0 %v8868
  %9119 = vmatmul.mubr.f32.gmra.mrb[0].mxu0 %v8669
  %v9120 = vpop.f32.mrb[0].mxu0
  %v9121 = vadd.f32 %v8981, %v9120
  %v9122 = vpop.f32.mrb[0].mxu0
  %9123 = vmatprep.mubr.f32.mxu0 %v8871
  %9124 = vmatmul.mubr.f32.gmra.mrb[0].mxu0 %v8673
  %v9125 = vpop.f32.mrb[0].mxu0
  %v9126 = vadd.f32 %v8986, %v9125
  %v9127 = vpop.f32.mrb[0].mxu0
  %9128 = vmatprep.mubr.f32.mxu0 %v8874
  %9129 = vmatmul.mubr.f32.gmra.mrb[0].mxu0 %v8677
  %v9130 = vpop.f32.mrb[0].mxu0
  %v9131 = vadd.f32 %v8991, %v9130
  %v9132 = vpop.f32.mrb[0].mxu0
  %9133 = vmatprep.mubr.f32.mxu0 %v8877
  %9134 = vmatmul.mubr.f32.gmra.mrb[0].mxu0 %v8681
  %v9135 = vpop.f32.mrb[0].mxu0
  %v9136 = vadd.f32 %v8996, %v9135
  %v9137 = vpop.f32.mrb[0].mxu0
  %9138 = vmatprep.mubr.f32.mxu0 %v8880
  %9139 = vmatmul.mubr.f32.gmra.mrb[0].mxu0 %v8685
  %v9140 = vpop.f32.mrb[0].mxu0
  %v9141 = vadd.f32 %v9001, %v9140
  %v9142 = vpop.f32.mrb[0].mxu0
  %9143 = vmatprep.mubr.f32.mxu0 %v8883
  %9144 = vmatmul.mubr.f32.gmra.mrb[0].mxu0 %v8689
  %v9145 = vpop.f32.mrb[0].mxu0
  %v9146 = vadd.f32 %v9006, %v9145
  %v9147 = vpop.f32.mrb[0].mxu0
  %9148 = vmatprep.mubr.f32.mxu0 %v8886
  %9149 = vmatmul.mubr.f32.gmra.mrb[0].mxu0 %v8693
  %v9150 = vpop.f32.mrb[0].mxu0
  %v9151 = vadd.f32 %v9011, %v9150
  %v9152 = vpop.f32.mrb[0].mxu0
  %9153 = vmatprep.mubr.f32.mxu0 %v8889
  %9154 = vmatmul.mubr.f32.gmra.mrb[0].mxu0 %v8697
  %v9155 = vpop.f32.mrb[0].mxu0
  %v9156 = vadd.f32 %v9016, %v9155
  %v9157 = vpop.f32.mrb[0].mxu0
  %9158 = vmatprep.mubr.f32.mxu0 %v8892
  %9159 = vmatmul.mubr.f32.gmra.mrb[0].mxu0 %v8701
  %v9160 = vpop.f32.mrb[0].mxu0
  %v9161 = vadd.f32 %v9021, %v9160
  %v9162 = vpop.f32.mrb[0].mxu0
  %9163 = vmatprep.mubr.f32.mxu0 %v8895
  %9164 = vmatmul.mubr.f32.gmra.mrb[0].mxu0 %v8705
  %v9165 = vpop.f32.mrb[0].mxu0
  %v9166 = vadd.f32 %v9026, %v9165
  %v9167 = vpop.f32.mrb[0].mxu0
  %9168 = vmatprep.mubr.f32.mxu0 %v8898
  %9169 = vmatmul.mubr.f32.gmra.mrb[0].mxu0 %v8709
  %v9170 = vpop.f32.mrb[0].mxu0
  %v9171 = vadd.f32 %v9031, %v9170
  %v9172 = vpop.f32.mrb[0].mxu0
  %9173 = vmatprep.mubr.f32.mxu0 %v8901
  %9174 = vmatmul.mubr.f32.gmra.mrb[0].mxu0 %v8713
  %v9175 = vpop.f32.mrb[0].mxu0
  %v9176 = vadd.f32 %v9036, %v9175
  %v9177 = vpop.f32.mrb[0].mxu0
  %9178 = vmatprep.mubr.f32.mxu0 %v8904
  %9179 = vmatmul.mubr.f32.gmra.mrb[0].mxu0 %v8717
  %v9180 = vpop.f32.mrb[0].mxu0
  %v9181 = vadd.f32 %v9041, %v9180
  %v9182 = vpop.f32.mrb[0].mxu0
  %9183 = vmatprep.mubr.f32.mxu0 %v8907
  %9184 = vmatmul.mubr.f32.gmra.mrb[0].mxu0 %v8721
  %v9185 = vpop.f32.mrb[0].mxu0
  %v9186 = vadd.f32 %v9046, %v9185
  %v9187 = vpop.f32.mrb[0].mxu0
  %9188 = vdwg.mxu0
  %v9189 = vmax.f32 %v9116, 0.0
  %v9190 = vmax.f32 %v9121, 0.0
  %v9191 = vmax.f32 %v9126, 0.0
  %v9192 = vmax.f32 %v9131, 0.0
  %v9193 = vmax.f32 %v9136, 0.0
  %v9194 = vmax.f32 %v9141, 0.0
  %v9195 = vmax.f32 %v9146, 0.0
  %v9196 = vmax.f32 %v9151, 0.0
  %v9197 = vmax.f32 %v9156, 0.0
  %v9198 = vmax.f32 %v9161, 0.0
  %v9199 = vmax.f32 %v9166, 0.0
  %v9200 = vmax.f32 %v9171, 0.0
  %v9201 = vmax.f32 %v9176, 0.0
  %v9202 = vmax.f32 %v9181, 0.0
  %v9203 = vmax.f32 %v9186, 0.0
  %v9204 = vld [vmem:[%s7] sm:$0xff]
  %v9205 = vld [vmem:[%s7 + $0x8] sm:$0xff]
  %v9206 = vld [vmem:[%s7 + $0x10] sm:$0xff]
  %v9207 = vld [vmem:[%s7 + $0x18] sm:$0xff]
  %v9208 = vld [vmem:[%s7 + $0x20] sm:$0xff]
  %v9209 = vld [vmem:[%s7 + $0x28] sm:$0xff]
  %v9210 = vld [vmem:[%s7 + $0x30] sm:$0xff]
  %v9211 = vld [vmem:[%s7 + $0x38] sm:$0xff]
  %v9212 = vld [vmem:[%s7 + $0x40] sm:$0xff]
  %v9213 = vld [vmem:[%s7 + $0x48] sm:$0xff]
  %v9214 = vld [vmem:[%s7 + $0x50] sm:$0xf]
  %v9215 = vld [vmem:[%s8] sm:$0xff]
  %v9216 = vld [vmem:[%s8 + $0x8] sm:$0xff]
  %v9217 = vld [vmem:[%s8 + $0x10] sm:$0xff]
  %v9218 = vld [vmem:[%s8 + $0x18] sm:$0xff]
  %v9219 = vld [vmem:[%s8 + $0x20] sm:$0xff]
  %v9220 = vld [vmem:[%s8 + $0x28] sm:$0xff]
  %v9221 = vld [vmem:[%s8 + $0x30] sm:$0xff]
  %v9222 = vld [vmem:[%s8 + $0x38] sm:$0xff]
  %v9223 = vld [vmem:[%s8 + $0x40] sm:$0xff]
  %v9224 = vld [vmem:[%s8 + $0x48] sm:$0xff]
  %v9225 = vld [vmem:[%s8 + $0x50] sm:$0xf]
  %9227 = vset.pattern.permute.xlu0 0
  %9228 = vperm.xlu0 %9227, %v9215
  %v9229 = vpop.permute.xlu0 %9228
  %9232 = vset.pattern.permute.xlu0 0
  %9233 = vperm.xlu0 %9232, %v9216
  %v9234 = vpop.permute.xlu0 %9233
  %9237 = vset.pattern.permute.xlu0 0
  %9238 = vperm.xlu0 %9237, %v9217
  %v9239 = vpop.permute.xlu0 %9238
  %9242 = vset.pattern.permute.xlu0 0
  %9243 = vperm.xlu0 %9242, %v9218
  %v9244 = vpop.permute.xlu0 %9243
  %9247 = vset.pattern.permute.xlu0 0
  %9248 = vperm.xlu0 %9247, %v9219
  %v9249 = vpop.permute.xlu0 %9248
  %9252 = vset.pattern.permute.xlu0 0
  %9253 = vperm.xlu0 %9252, %v9220
  %v9254 = vpop.permute.xlu0 %9253
  %9257 = vset.pattern.permute.xlu0 0
  %9258 = vperm.xlu0 %9257, %v9221
  %v9259 = vpop.permute.xlu0 %9258
  %9262 = vset.pattern.permute.xlu0 0
  %9263 = vperm.xlu0 %9262, %v9222
  %v9264 = vpop.permute.xlu0 %9263
  %9267 = vset.pattern.permute.xlu0 0
  %9268 = vperm.xlu0 %9267, %v9223
  %v9269 = vpop.permute.xlu0 %9268
  %9272 = vset.pattern.permute.xlu0 0
  %9273 = vperm.xlu0 %9272, %v9224
  %v9274 = vpop.permute.xlu0 %9273
  %9277 = vset.pattern.permute.xlu0 0
  %9278 = vperm.xlu0 %9277, %v9225
  %v9279 = vpop.permute.xlu0 %9278
  %v9282 = vsel %vm543, %v9204, 0
  %v9285 = vsel %vm543, %v9205, 0
  %v9288 = vsel %vm543, %v9206, 0
  %v9291 = vsel %vm543, %v9207, 0
  %v9294 = vsel %vm543, %v9208, 0
  %v9297 = vsel %vm543, %v9209, 0
  %v9300 = vsel %vm543, %v9210, 0
  %v9303 = vsel %vm543, %v9211, 0
  %v9306 = vsel %vm543, %v9212, 0
  %v9309 = vsel %vm543, %v9213, 0
  %v9312 = vsel %vm543, %v9214, 0
  %9314 = vmatprep.subr.mxu0 0.0
  %9315 = vmatpush1.msra.mxu0 %v9189
  %9316 = vmatprep.subr.mxu0 0.0
  %9317 = vmatpush1.msra.mxu0 %v9190
  %9318 = vmatprep.subr.mxu0 0.0
  %9319 = vmatpush1.msra.mxu0 %v9191
  %9320 = vmatprep.subr.mxu0 0.0
  %9321 = vmatpush1.msra.mxu0 %v9192
  %9322 = vmatprep.subr.mxu0 0.0
  %9323 = vmatpush1.msra.mxu0 %v9193
  %9324 = vmatprep.subr.mxu0 0.0
  %9325 = vmatpush1.msra.mxu0 %v9194
  %9326 = vmatprep.subr.mxu0 0.0
  %9327 = vmatpush1.msra.mxu0 %v9195
  %9328 = vmatprep.subr.mxu0 0.0
  %9329 = vmatpush1.msra.mxu0 %v9196
  %9330 = vmatprep.subr.mxu0 0.0
  %9331 = vmatpush1.msra.mxu0 %v9197
  %9332 = vmatprep.subr.mxu0 0.0
  %9333 = vmatpush1.msra.mxu0 %v9198
  %9334 = vmatprep.subr.mxu0 0.0
  %9335 = vmatpush1.msra.mxu0 %v9199
  %9336 = vmatprep.subr.mxu0 0.0
  %9337 = vmatpush1.msra.mxu0 %v9200
  %9338 = vmatprep.subr.mxu0 0.0
  %9339 = vmatpush1.msra.mxu0 %v9201
  %9340 = vmatprep.subr.mxu0 0.0
  %9341 = vmatpush1.msra.mxu0 %v9202
  %9342 = vmatprep.subr.mxu0 0.0
  %9343 = vmatpush1.msra.mxu0 %v9203
  %9344 = vmatprep.subr.mxu0 0.0
  %9345 = vmatpush1.msra.mxu0 0.0
  %9346 = vmatprep.subr.mxu0 0.0
  %9347 = vmatpush1.msra.mxu0 0.0
  %9348 = vmatprep.subr.mxu0 0.0
  %9349 = vmatpush1.msra.mxu0 0.0
  %9350 = vmatprep.subr.mxu0 0.0
  %9351 = vmatpush1.msra.mxu0 0.0
  %9352 = vmatprep.subr.mxu0 0.0
  %9353 = vmatpush1.msra.mxu0 0.0
  %9354 = vmatprep.subr.mxu0 0.0
  %9355 = vmatpush1.msra.mxu0 0.0
  %9356 = vmatprep.subr.mxu0 0.0
  %9357 = vmatpush1.msra.mxu0 0.0
  %9358 = vmatprep.subr.mxu0 0.0
  %9359 = vmatpush1.msra.mxu0 0.0
  %9360 = vmatprep.subr.mxu0 0.0
  %9361 = vmatpush1.msra.mxu0 0.0
  %9362 = vmatprep.subr.mxu0 0.0
  %9363 = vmatpush1.msra.mxu0 0.0
  %9364 = vmatprep.subr.mxu0 0.0
  %9365 = vmatpush1.msra.mxu0 0.0
  %9366 = vmatprep.subr.mxu0 0.0
  %9367 = vmatpush1.msra.mxu0 0.0
  %9368 = vmatprep.subr.mxu0 0.0
  %9369 = vmatpush1.msra.mxu0 0.0
  %9370 = vmatprep.subr.mxu0 0.0
  %9371 = vmatpush1.msra.mxu0 0.0
  %9372 = vmatprep.subr.mxu0 0.0
  %9373 = vmatpush1.msra.mxu0 0.0
  %9374 = vmatprep.subr.mxu0 0.0
  %9375 = vmatpush1.msra.mxu0 0.0
  %9376 = vmatprep.subr.mxu0 0.0
  %9377 = vmatpush1.msra.mxu0 0.0
  %9378 = vmatprep.mubr.f32.mxu0 0.0
  %9379 = vmatmul.mubr.f32.gmra.mrb[0].mxu0 %v9282
  %v9380 = vpop.f32.mrb[0].mxu0
  %v9381 = vadd.f32 %v9229, %v9380
  %v9382 = vpop.f32.mrb[0].mxu0
  %9383 = vmatprep.mubr.f32.mxu0 0.0
  %9384 = vmatmul.mubr.f32.gmra.mrb[0].mxu0 %v9285
  %v9385 = vpop.f32.mrb[0].mxu0
  %v9386 = vadd.f32 %v9234, %v9385
  %v9387 = vpop.f32.mrb[0].mxu0
  %9388 = vmatprep.mubr.f32.mxu0 0.0
  %9389 = vmatmul.mubr.f32.gmra.mrb[0].mxu0 %v9288
  %v9390 = vpop.f32.mrb[0].mxu0
  %v9391 = vadd.f32 %v9239, %v9390
  %v9392 = vpop.f32.mrb[0].mxu0
  %9393 = vmatprep.mubr.f32.mxu0 0.0
  %9394 = vmatmul.mubr.f32.gmra.mrb[0].mxu0 %v9291
  %v9395 = vpop.f32.mrb[0].mxu0
  %v9396 = vadd.f32 %v9244, %v9395
  %v9397 = vpop.f32.mrb[0].mxu0
  %9398 = vmatprep.mubr.f32.mxu0 0.0
  %9399 = vmatmul.mubr.f32.gmra.mrb[0].mxu0 %v9294
  %v9400 = vpop.f32.mrb[0].mxu0
  %v9401 = vadd.f32 %v9249, %v9400
  %v9402 = vpop.f32.mrb[0].mxu0
  %9403 = vmatprep.mubr.f32.mxu0 0.0
  %9404 = vmatmul.mubr.f32.gmra.mrb[0].mxu0 %v9297
  %v9405 = vpop.f32.mrb[0].mxu0
  %v9406 = vadd.f32 %v9254, %v9405
  %v9407 = vpop.f32.mrb[0].mxu0
  %9408 = vmatprep.mubr.f32.mxu0 0.0
  %9409 = vmatmul.mubr.f32.gmra.mrb[0].mxu0 %v9300
  %v9410 = vpop.f32.mrb[0].mxu0
  %v9411 = vadd.f32 %v9259, %v9410
  %v9412 = vpop.f32.mrb[0].mxu0
  %9413 = vmatprep.mubr.f32.mxu0 0.0
  %9414 = vmatmul.mubr.f32.gmra.mrb[0].mxu0 %v9303
  %v9415 = vpop.f32.mrb[0].mxu0
  %v9416 = vadd.f32 %v9264, %v9415
  %v9417 = vpop.f32.mrb[0].mxu0
  %9418 = vmatprep.mubr.f32.mxu0 0.0
  %9419 = vmatmul.mubr.f32.gmra.mrb[0].mxu0 %v9306
  %v9420 = vpop.f32.mrb[0].mxu0
  %v9421 = vadd.f32 %v9269, %v9420
  %v9422 = vpop.f32.mrb[0].mxu0
  %9423 = vmatprep.mubr.f32.mxu0 0.0
  %9424 = vmatmul.mubr.f32.gmra.mrb[0].mxu0 %v9309
  %v9425 = vpop.f32.mrb[0].mxu0
  %v9426 = vadd.f32 %v9274, %v9425
  %v9427 = vpop.f32.mrb[0].mxu0
  %9428 = vmatprep.mubr.f32.mxu0 0.0
  %9429 = vmatmul.mubr.f32.gmra.mrb[0].mxu0 %v9312
  %v9430 = vpop.f32.mrb[0].mxu0
  %v9431 = vadd.f32 %v9279, %v9430
  %v9432 = vpop.f32.mrb[0].mxu0
  %9433 = vdwg.mxu0
  %v9434 = vmax.f32 %v9381, 0.0
  %v9435 = vmax.f32 %v9386, 0.0
  %v9436 = vmax.f32 %v9391, 0.0
  %v9437 = vmax.f32 %v9396, 0.0
  %v9438 = vmax.f32 %v9401, 0.0
  %v9439 = vmax.f32 %v9406, 0.0
  %v9440 = vmax.f32 %v9411, 0.0
  %v9441 = vmax.f32 %v9416, 0.0
  %v9442 = vmax.f32 %v9421, 0.0
  %v9443 = vmax.f32 %v9426, 0.0
  %v9444 = vmax.f32 %v9431, 0.0
  %v9445 = vld [vmem:[%s9] sm:$0xff]
  %v9446 = vld [vmem:[%s9 + $0x8] sm:$0x3]
  %v9447 = vld [vmem:[%s10] sm:$0xff]
  %v9448 = vld [vmem:[%s10 + $0x8] sm:$0x3]
  %9450 = vset.pattern.permute.xlu0 0
  %9451 = vperm.xlu0 %9450, %v9447
  %v9452 = vpop.permute.xlu0 %9451
  %9455 = vset.pattern.permute.xlu0 0
  %9456 = vperm.xlu0 %9455, %v9448
  %v9457 = vpop.permute.xlu0 %9456
  %vm9459 = vcmask 687104
  %v9461 = vsel %vm9459, %v9445, 0
  %v9464 = vsel %vm9459, %v9446, 0
  %vm9466 = vcmask 1043456
  %v9468 = vsel %vm9466, %v9444, 0
  %9470 = vmatprep.subr.mxu0 0.0
  %9471 = vmatpush1.msra.mxu0 %v9434
  %9472 = vmatprep.subr.mxu0 0.0
  %9473 = vmatpush1.msra.mxu0 %v9435
  %9474 = vmatprep.subr.mxu0 0.0
  %9475 = vmatpush1.msra.mxu0 %v9436
  %9476 = vmatprep.subr.mxu0 0.0
  %9477 = vmatpush1.msra.mxu0 %v9437
  %9478 = vmatprep.subr.mxu0 0.0
  %9479 = vmatpush1.msra.mxu0 %v9438
  %9480 = vmatprep.subr.mxu0 0.0
  %9481 = vmatpush1.msra.mxu0 %v9439
  %9482 = vmatprep.subr.mxu0 0.0
  %9483 = vmatpush1.msra.mxu0 %v9440
  %9484 = vmatprep.subr.mxu0 0.0
  %9485 = vmatpush1.msra.mxu0 %v9441
  %9486 = vmatprep.subr.mxu0 0.0
  %9487 = vmatpush1.msra.mxu0 %v9442
  %9488 = vmatprep.subr.mxu0 0.0
  %9489 = vmatpush1.msra.mxu0 %v9443
  %9490 = vmatprep.subr.mxu0 0.0
  %9491 = vmatpush1.msra.mxu0 %v9468
  %9492 = vmatprep.subr.mxu0 0.0
  %9493 = vmatpush1.msra.mxu0 0.0
  %9494 = vmatprep.subr.mxu0 0.0
  %9495 = vmatpush1.msra.mxu0 0.0
  %9496 = vmatprep.subr.mxu0 0.0
  %9497 = vmatpush1.msra.mxu0 0.0
  %9498 = vmatprep.subr.mxu0 0.0
  %9499 = vmatpush1.msra.mxu0 0.0
  %9500 = vmatprep.subr.mxu0 0.0
  %9501 = vmatpush1.msra.mxu0 0.0
  %9502 = vmatprep.subr.mxu0 0.0
  %9503 = vmatpush1.msra.mxu0 0.0
  %9504 = vmatprep.subr.mxu0 0.0
  %9505 = vmatpush1.msra.mxu0 0.0
  %9506 = vmatprep.subr.mxu0 0.0
  %9507 = vmatpush1.msra.mxu0 0.0
  %9508 = vmatprep.subr.mxu0 0.0
  %9509 = vmatpush1.msra.mxu0 0.0
  %9510 = vmatprep.subr.mxu0 0.0
  %9511 = vmatpush1.msra.mxu0 0.0
  %9512 = vmatprep.subr.mxu0 0.0
  %9513 = vmatpush1.msra.mxu0 0.0
  %9514 = vmatprep.subr.mxu0 0.0
  %9515 = vmatpush1.msra.mxu0 0.0
  %9516 = vmatprep.subr.mxu0 0.0
  %9517 = vmatpush1.msra.mxu0 0.0
  %9518 = vmatprep.subr.mxu0 0.0
  %9519 = vmatpush1.msra.mxu0 0.0
  %9520 = vmatprep.subr.mxu0 0.0
  %9521 = vmatpush1.msra.mxu0 0.0
  %9522 = vmatprep.subr.mxu0 0.0
  %9523 = vmatpush1.msra.mxu0 0.0
  %9524 = vmatprep.subr.mxu0 0.0
  %9525 = vmatpush1.msra.mxu0 0.0
  %9526 = vmatprep.subr.mxu0 0.0
  %9527 = vmatpush1.msra.mxu0 0.0
  %9528 = vmatprep.subr.mxu0 0.0
  %9529 = vmatpush1.msra.mxu0 0.0
  %9530 = vmatprep.subr.mxu0 0.0
  %9531 = vmatpush1.msra.mxu0 0.0
  %9532 = vmatprep.subr.mxu0 0.0
  %9533 = vmatpush1.msra.mxu0 0.0
  %9534 = vmatprep.mubr.f32.mxu0 0.0
  %9535 = vmatmul.mubr.f32.gmra.mrb[0].mxu0 %v9461
  %v9536 = vpop.f32.mrb[0].mxu0
  %v9537 = vadd.f32 %v9452, %v9536
  %v9538 = vpop.f32.mrb[0].mxu0
  %9539 = vmatprep.mubr.f32.mxu0 0.0
  %9540 = vmatmul.mubr.f32.gmra.mrb[0].mxu0 %v9464
  %v9541 = vpop.f32.mrb[0].mxu0
  %v9542 = vadd.f32 %v9457, %v9541
  %v9543 = vpop.f32.mrb[0].mxu0
  %9544 = vdwg.mxu0
  %9545 = vst.msk [vmem:[%s11] sm:$0xff] %vm7828, %v9537
  %vm9546 = vcmask 9216
  %9547 = vst.msk [vmem:[%s11 + $0x8] sm:$0x3] %vm9546, %v9542
  // Predicated region
  $region46: #{lenet_forward.1} parent=0 // pred_check
    _
  $region47: #{lenet_forward.1} parent=0 // pred_check_branch
    %9549 = sbr.rel (0) target = $region49
  $region48: #{lenet_forward.1} parent=0 // pred_region
    _
  $region49: #{lenet_forward.1} parent=0 // pred_fallthru
    _
  // Predicated region
  $region50: #{lenet_forward.1} parent=0 // pred_check
    _
  $region51: #{lenet_forward.1} parent=0 // pred_check_branch
    %9551 = sbr.rel (0) target = $region53
  $region52: #{lenet_forward.1} parent=0 // pred_region
    _
  $region53: #{lenet_forward.1} parent=0 // pred_fallthru
    _

</llo_original>
